<compile_context>
chip_gen: v7x
topology: tpu7x:2x2x1
jax: 0.10.0
libtpu: 0.0.40
codegen_flags: <defaults>
</compile_context>

<pallas_src>
import jax
import jax.numpy as jnp
from jax import lax
from jax.experimental import pallas as pl
from jax.experimental.pallas import tpu as pltpu


def bilstm_kernel(xf_ref, xb_ref,
                  wih_f_ref, whh_f_ref, b_f_ref,
                  wih_b_ref, whh_b_ref, b_b_ref,
                  out_ref,
                  gf_ref, gb_ref, hf_ref, cf_ref, hb_ref, cb_ref):
    """One time-chunk of a bidirectional single-layer LSTM.

    xf_ref/xb_ref: (Tc, B, E) bf16  forward / backward time chunks
    wih_*: (E, 4H) bf16, whh_*: (H, 4H) bf16, b_*: (1, 4H) f32 (b_ih + b_hh)
    out_ref: (B, 2H) f32  [forward final h | backward final h]
    gf/gb:   (Tc, B, 4H) f32 VMEM scratch (hoisted input projections)
    hf/cf/hb/cb: (B, H) f32 VMEM scratch (recurrent state carried across chunks)
    Gate layout is [i, f, o, g].
    """
    Tc, B, E = xf_ref.shape
    H = whh_f_ref.shape[0]
    step_i = pl.program_id(0)
    n_chunks = pl.num_programs(0)

    @pl.when(step_i == 0)
    def _init():
        hf_ref[...] = jnp.zeros_like(hf_ref)
        cf_ref[...] = jnp.zeros_like(cf_ref)
        hb_ref[...] = jnp.zeros_like(hb_ref)
        cb_ref[...] = jnp.zeros_like(cb_ref)

    # ---- Hoisted input projection: one big MXU matmul per direction per
    # chunk, bias folded in once (not per timestep). ------------------------
    xf = xf_ref[...].reshape(Tc * B, E)
    xb = xb_ref[...].reshape(Tc * B, E)
    gf_ref[...] = (jnp.dot(xf, wih_f_ref[...],
                           preferred_element_type=jnp.float32)
                   + b_f_ref[...]).reshape(Tc, B, 4 * H)
    gb_ref[...] = (jnp.dot(xb, wih_b_ref[...],
                           preferred_element_type=jnp.float32)
                   + b_b_ref[...]).reshape(Tc, B, 4 * H)

    # Recurrent weights loaded once per chunk (loop-invariant), kept in bf16.
    whh_f = whh_f_ref[...]
    whh_b = whh_b_ref[...]

    def lstm_cell(pre, h, c, whh):
        # bf16 recurrent matmul (single MXU pass), f32 accumulation.
        gates = pre + jnp.dot(h.astype(jnp.bfloat16), whh,
                              preferred_element_type=jnp.float32)
        # Gate layout [i, f, o, g]: one sigmoid over (B, 3H), one tanh (B, H).
        sig = jax.nn.sigmoid(gates[:, :3 * H])
        i_g = sig[:, 0 * H:1 * H]
        f_g = sig[:, 1 * H:2 * H]
        o_g = sig[:, 2 * H:3 * H]
        g_g = jnp.tanh(gates[:, 3 * H:4 * H])
        c_new = f_g * c + i_g * g_g
        h_new = o_g * jnp.tanh(c_new)
        return h_new, c_new

    # ---- Recurrence: fwd walks the chunk front-to-back, bwd back-to-front.
    # The two chains are independent; unroll=True gives the scheduler
    # cross-iteration visibility so their matmuls / EUP ops interleave.
    def step(t, carry):
        h_f, c_f, h_b, c_b = carry
        h_f, c_f = lstm_cell(gf_ref[t], h_f, c_f, whh_f)
        h_b, c_b = lstm_cell(gb_ref[Tc - 1 - t], h_b, c_b, whh_b)
        return h_f, c_f, h_b, c_b

    carry0 = (hf_ref[...], cf_ref[...], hb_ref[...], cb_ref[...])
    h_f, c_f, h_b, c_b = lax.fori_loop(0, Tc, step, carry0, unroll=True)

    hf_ref[...] = h_f
    cf_ref[...] = c_f
    hb_ref[...] = h_b
    cb_ref[...] = c_b

    @pl.when(step_i == n_chunks - 1)
    def _finalize():
        # Lane-dense direct stores (H is a multiple of 128), no concatenate.
        out_ref[:, :H] = h_f
        out_ref[:, H:] = h_b


def _reorder_ifgo_to_ifog(w):
    """Permute PyTorch gate blocks [i, f, g, o] -> kernel layout [i, f, o, g]."""
    i, f, g, o = jnp.split(w, 4, axis=0)
    return jnp.concatenate([i, f, o, g], axis=0)


def init_params(key, vocab_size, emb_size, hidden_size):
    """Deterministic init mimicking SeqEncoder.init_weights (uniform(-0.1, 0.1),
    embedding row 0 zeroed for padding_idx=0). Weights are stored pre-transposed
    to (E, 4H)/(H, 4H), the two LSTM biases pre-summed, gate order [i, f, o, g]
    (a pure relabeling of the uniformly-initialized PyTorch [i, f, g, o] order;
    real PyTorch weights would be permuted with _reorder_ifgo_to_ifog)."""
    ks = jax.random.split(key, 9)
    u = lambda k, shape: jax.random.uniform(k, shape, jnp.float32, -0.1, 0.1)

    emb = u(ks[0], (vocab_size, emb_size)).at[0].set(0.0)   # padding_idx=0

    def direction(kw, kr, kbi, kbh):
        wih = _reorder_ifgo_to_ifog(u(kw, (4 * hidden_size, emb_size)))
        whh = _reorder_ifgo_to_ifog(u(kr, (4 * hidden_size, hidden_size)))
        b = _reorder_ifgo_to_ifog(u(kbi, (4 * hidden_size,))
                                  + u(kbh, (4 * hidden_size,)))
        return wih.T, whh.T, b.reshape(1, -1)

    wih_f, whh_f, b_f = direction(ks[1], ks[2], ks[3], ks[4])
    wih_b, whh_b, b_b = direction(ks[5], ks[6], ks[7], ks[8])

    return dict(embedding=emb,
                wih_f=wih_f, whh_f=whh_f, b_f=b_f,
                wih_b=wih_b, whh_b=whh_b, b_b=b_b)


def seq_encoder_forward(token_ids, params, *, time_chunk=None):
    """Pallas-backed equivalent of SeqEncoder.forward(inputs, input_lens=None)
    in eval mode (dropout p=0.25 with training=False is the identity)."""
    # TODO(synk): input_lens / pack_padded_sequence path and training-mode
    #             dropout are not implemented (eval, input_lens=None only).
    B, T = token_ids.shape
    E = params["embedding"].shape[1]
    H = params["whh_f"].shape[0]

    Tc = T if time_chunk is None else min(time_chunk, T)
    assert T % Tc == 0, "seq len must be a multiple of the time chunk"
    nc = T // Tc

    # Gather straight into (T, B, E) from a bf16 table: no (B,T,E) f32 HBM
    # round trip and no separate transpose / cast kernels before pallas_call.
    emb_bf16 = params["embedding"].astype(jnp.bfloat16)
    x = jnp.take(emb_bf16, token_ids.T, axis=0)                 # (T, B, E) bf16

    wih_f = params["wih_f"].astype(jnp.bfloat16)
    wih_b = params["wih_b"].astype(jnp.bfloat16)
    whh_f = params["whh_f"].astype(jnp.bfloat16)   # bf16 recurrent matmul
    whh_b = params["whh_b"].astype(jnp.bfloat16)
    b_f = params["b_f"].astype(jnp.float32)
    b_b = params["b_b"].astype(jnp.float32)

    # Explicit VMEM budget (matters when Tc is sized up; v7x has only 64 MiB,
    # ~48 MiB practically usable).
    vmem_bytes = (
        2 * 2 * Tc * B * E * 2            # double-buffered fwd/bwd x chunks (bf16)
        + 2 * Tc * B * 4 * H * 4          # gf/gb pre-activation scratch (f32)
        + 2 * 2 * (E + H) * 4 * H * 2     # double-buffered W_ih/W_hh, both dirs (bf16)
        + 2 * 2 * 4 * H * 4               # biases
        + 4 * B * H * 4                   # h/c carried state
        + 2 * B * 2 * H * 4               # output
    )
    assert vmem_bytes < (48 << 20), "time_chunk too large for v7x VMEM budget"
    vmem_limit = int(min(max(2 * vmem_bytes, 32 << 20), 48 << 20))

    grid_spec = pltpu.PrefetchScalarGridSpec(
        num_scalar_prefetch=0,
        grid=(nc,),
        in_specs=[
            # forward chunks ascending, backward chunks descending (same array)
            pl.BlockSpec((Tc, B, E), lambda i: (i, 0, 0)),
            pl.BlockSpec((Tc, B, E), lambda i: (nc - 1 - i, 0, 0)),
            pl.BlockSpec((E, 4 * H), lambda i: (0, 0)),
            pl.BlockSpec((H, 4 * H), lambda i: (0, 0)),
            pl.BlockSpec((1, 4 * H), lambda i: (0, 0)),
            pl.BlockSpec((E, 4 * H), lambda i: (0, 0)),
            pl.BlockSpec((H, 4 * H), lambda i: (0, 0)),
            pl.BlockSpec((1, 4 * H), lambda i: (0, 0)),
        ],
        out_specs=pl.BlockSpec((B, 2 * H), lambda i: (0, 0)),
        scratch_shapes=[
            pltpu.VMEM((Tc, B, 4 * H), jnp.float32),   # fwd input projections
            pltpu.VMEM((Tc, B, 4 * H), jnp.float32),   # bwd input projections
            pltpu.VMEM((B, H), jnp.float32),           # h_fwd
            pltpu.VMEM((B, H), jnp.float32),           # c_fwd
            pltpu.VMEM((B, H), jnp.float32),           # h_bwd
            pltpu.VMEM((B, H), jnp.float32),           # c_bwd
        ],
    )

    out = pl.pallas_call(
        bilstm_kernel,
        out_shape=jax.ShapeDtypeStruct((B, 2 * H), jnp.float32),
        grid_spec=grid_spec,
        compiler_params=pltpu.CompilerParams(
            # carried h/c scratch requires the time axis to run sequentially
            dimension_semantics=("arbitrary",),
            vmem_limit_bytes=vmem_limit),
    )(x, x, wih_f, whh_f, b_f, wih_b, whh_b, b_b)
    return out                                                     # (B, 2H)


def seq_encoder_reference(token_ids, params):
    """Pure-JAX f32 reference (PyTorch nn.LSTM h_n semantics), using the same
    pre-transposed / pre-summed / [i, f, o, g]-ordered parameter layout."""
    emb = jnp.take(params["embedding"], token_ids, axis=0).astype(jnp.float32)
    x = jnp.transpose(emb, (1, 0, 2))                              # (T, B, E)
    H = params["whh_f"].shape[0]
    B = token_ids.shape[0]

    def direction(x_seq, wih, whh, b):
        def cell(carry, xt):
            h, c = carry
            g = xt @ wih + h @ whh + b
            i = jax.nn.sigmoid(g[:, :H])
            f = jax.nn.sigmoid(g[:, H:2 * H])
            o = jax.nn.sigmoid(g[:, 2 * H:3 * H])
            gg = jnp.tanh(g[:, 3 * H:])
            c = f * c + i * gg
            h = o * jnp.tanh(c)
            return (h, c), None
        h0 = jnp.zeros((B, H), jnp.float32)
        c0 = jnp.zeros((B, H), jnp.float32)
        (h, _), _ = lax.scan(cell, (h0, c0), x_seq)
        return h

    h_f = direction(x, params["wih_f"], params["whh_f"], params["b_f"])
    h_b = direction(x[::-1], params["wih_b"], params["whh_b"], params["b_b"])
    return jnp.concatenate([h_f, h_b], axis=-1)


if __name__ == "__main__":
    VOCAB, EMB, HID = 50, 128, 128   # H=128 keeps gates / output lane-dense
    B, T = 8, 16                     # B=8 fills the sublane dimension

    key = jax.random.PRNGKey(0)
    k_param, k_tok = jax.random.split(key)

    params = init_params(k_param, VOCAB, EMB, HID)
    token_ids = jax.random.randint(k_tok, (B, T), 0, VOCAB, dtype=jnp.int32)

    # time_chunk=None -> Tc = T (nc = 1): full sequence in one grid step.
    encoding = seq_encoder_forward(token_ids, params)
    jax.block_until_ready(encoding)

    assert encoding.shape == (B, 2 * HID)
    assert encoding.dtype == jnp.float32

    ref = seq_encoder_reference(token_ids, params)
    max_err = float(jnp.max(jnp.abs(encoding - ref)))
    assert max_err < 2e-2, f"mismatch vs reference: {max_err}"

    print("KERNEL_OK")
</pallas_src>

<mosaic_0001>
module attributes {stable_mosaic.version = 11 : i64} {
  func.func @bilstm_kernel(%arg0: i32, %arg1: memref<16x8x128xbf16, #tpu.memory_space<vmem>>, %arg2: memref<16x8x128xbf16, #tpu.memory_space<vmem>>, %arg3: memref<128x512xbf16, #tpu.memory_space<vmem>>, %arg4: memref<128x512xbf16, #tpu.memory_space<vmem>>, %arg5: memref<1x512xf32, #tpu.memory_space<vmem>>, %arg6: memref<128x512xbf16, #tpu.memory_space<vmem>>, %arg7: memref<128x512xbf16, #tpu.memory_space<vmem>>, %arg8: memref<1x512xf32, #tpu.memory_space<vmem>>, %arg9: memref<8x256xf32, #tpu.memory_space<vmem>>, %arg10: memref<16x8x512xf32, #tpu.memory_space<vmem>>, %arg11: memref<16x8x512xf32, #tpu.memory_space<vmem>>, %arg12: memref<8x128xf32, #tpu.memory_space<vmem>>, %arg13: memref<8x128xf32, #tpu.memory_space<vmem>>, %arg14: memref<8x128xf32, #tpu.memory_space<vmem>>, %arg15: memref<8x128xf32, #tpu.memory_space<vmem>>) attributes {dimension_semantics = [#tpu.dimension_semantics<arbitrary>], iteration_bounds = array<i64: 1>, scalar_prefetch = 0 : i64, scratch_operands = 6 : i64, tpu.core_type = #tpu.core_type<tc>, window_params = [{transform_indices = @transform_0, window_bounds = array<i64: 16, 8, 128>}, {transform_indices = @transform_1, window_bounds = array<i64: 16, 8, 128>}, {pipeline_mode = #tpu.pipeline_mode<synchronous>, transform_indices = @transform_2, window_bounds = array<i64: 128, 512>}, {pipeline_mode = #tpu.pipeline_mode<synchronous>, transform_indices = @transform_3, window_bounds = array<i64: 128, 512>}, {pipeline_mode = #tpu.pipeline_mode<synchronous>, transform_indices = @transform_4, window_bounds = array<i64: 1, 512>}, {pipeline_mode = #tpu.pipeline_mode<synchronous>, transform_indices = @transform_5, window_bounds = array<i64: 128, 512>}, {pipeline_mode = #tpu.pipeline_mode<synchronous>, transform_indices = @transform_6, window_bounds = array<i64: 128, 512>}, {pipeline_mode = #tpu.pipeline_mode<synchronous>, transform_indices = @transform_7, window_bounds = array<i64: 1, 512>}, {pipeline_mode = #tpu.pipeline_mode<synchronous>, transform_indices = @transform_8, window_bounds = array<i64: 8, 256>}]} {
    %c0_i32 = arith.constant 0 : i32
    %0 = arith.cmpi eq, %arg0, %c0_i32 : i32
    %1 = arith.extui %0 : i1 to i32
    %c0_i32_0 = arith.constant 0 : i32
    %2 = arith.cmpi ne, %1, %c0_i32_0 : i32
    scf.if %2 {
      %cst_188 = arith.constant 0.000000e+00 : f32
      %754 = vector.broadcast %cst_188 : f32 to vector<8x128xf32>
      %c0_189 = arith.constant 0 : index
      %c0_190 = arith.constant 0 : index
      %755 = vector.load %arg12[%c0_189, %c0_190] : memref<8x128xf32, #tpu.memory_space<vmem>>, vector<8x128xf32>
      tpu.vector_store %arg12[%c0_189, %c0_190], %754 {strides = array<i32>} : memref<8x128xf32, #tpu.memory_space<vmem>>, vector<8x128xf32>,
      %cst_191 = arith.constant 0.000000e+00 : f32
      %756 = vector.broadcast %cst_191 : f32 to vector<8x128xf32>
      %c0_192 = arith.constant 0 : index
      %c0_193 = arith.constant 0 : index
      %757 = vector.load %arg13[%c0_192, %c0_193] : memref<8x128xf32, #tpu.memory_space<vmem>>, vector<8x128xf32>
      tpu.vector_store %arg13[%c0_192, %c0_193], %756 {strides = array<i32>} : memref<8x128xf32, #tpu.memory_space<vmem>>, vector<8x128xf32>,
      %cst_194 = arith.constant 0.000000e+00 : f32
      %758 = vector.broadcast %cst_194 : f32 to vector<8x128xf32>
      %c0_195 = arith.constant 0 : index
      %c0_196 = arith.constant 0 : index
      %759 = vector.load %arg14[%c0_195, %c0_196] : memref<8x128xf32, #tpu.memory_space<vmem>>, vector<8x128xf32>
      tpu.vector_store %arg14[%c0_195, %c0_196], %758 {strides = array<i32>} : memref<8x128xf32, #tpu.memory_space<vmem>>, vector<8x128xf32>,
      %cst_197 = arith.constant 0.000000e+00 : f32
      %760 = vector.broadcast %cst_197 : f32 to vector<8x128xf32>
      %c0_198 = arith.constant 0 : index
      %c0_199 = arith.constant 0 : index
      %761 = vector.load %arg15[%c0_198, %c0_199] : memref<8x128xf32, #tpu.memory_space<vmem>>, vector<8x128xf32>
      tpu.vector_store %arg15[%c0_198, %c0_199], %760 {strides = array<i32>} : memref<8x128xf32, #tpu.memory_space<vmem>>, vector<8x128xf32>,
    } else {
    }
    %c0 = arith.constant 0 : index
    %c0_1 = arith.constant 0 : index
    %c0_2 = arith.constant 0 : index
    %3 = vector.load %arg1[%c0, %c0_1, %c0_2] : memref<16x8x128xbf16, #tpu.memory_space<vmem>>, vector<16x8x128xbf16>
    %4 = vector.shape_cast %3 : vector<16x8x128xbf16> to vector<128x128xbf16>
    %c0_3 = arith.constant 0 : index
    %c0_4 = arith.constant 0 : index
    %c0_5 = arith.constant 0 : index
    %5 = vector.load %arg2[%c0_3, %c0_4, %c0_5] : memref<16x8x128xbf16, #tpu.memory_space<vmem>>, vector<16x8x128xbf16>
    %6 = vector.shape_cast %5 : vector<16x8x128xbf16> to vector<128x128xbf16>
    %c0_6 = arith.constant 0 : index
    %c0_7 = arith.constant 0 : index
    %7 = vector.load %arg3[%c0_6, %c0_7] : memref<128x512xbf16, #tpu.memory_space<vmem>>, vector<128x512xbf16>
    %cst = arith.constant dense<0.000000e+00> : vector<128x512xf32>
    %8 = tpu.matmul %4, %7, %cst {dimension_numbers = #tpu.dot_dimension_numbers<[1], [0], [0], [1], [0, 0, 1, 1], [], []>} : vector<128x128xbf16>, vector<128x512xbf16>, vector<128x512xf32> -> vector<128x512xf32>
    %c0_8 = arith.constant 0 : index
    %c0_9 = arith.constant 0 : index
    %9 = vector.load %arg5[%c0_8, %c0_9] : memref<1x512xf32, #tpu.memory_space<vmem>>, vector<1x512xf32>
    %10 = vector.broadcast %9 : vector<1x512xf32> to vector<128x512xf32>
    %11 = arith.addf %8, %10 : vector<128x512xf32>
    %12 = vector.shape_cast %11 : vector<128x512xf32> to vector<16x8x512xf32>
    %c0_10 = arith.constant 0 : index
    %c0_11 = arith.constant 0 : index
    %c0_12 = arith.constant 0 : index
    %13 = vector.load %arg10[%c0_10, %c0_11, %c0_12] : memref<16x8x512xf32, #tpu.memory_space<vmem>>, vector<16x8x512xf32>
    tpu.vector_store %arg10[%c0_10, %c0_11, %c0_12], %12 {strides = array<i32>} : memref<16x8x512xf32, #tpu.memory_space<vmem>>, vector<16x8x512xf32>,
    %c0_13 = arith.constant 0 : index
    %c0_14 = arith.constant 0 : index
    %14 = vector.load %arg6[%c0_13, %c0_14] : memref<128x512xbf16, #tpu.memory_space<vmem>>, vector<128x512xbf16>
    %cst_15 = arith.constant dense<0.000000e+00> : vector<128x512xf32>
    %15 = tpu.matmul %6, %14, %cst_15 {dimension_numbers = #tpu.dot_dimension_numbers<[1], [0], [0], [1], [0, 0, 1, 1], [], []>} : vector<128x128xbf16>, vector<128x512xbf16>, vector<128x512xf32> -> vector<128x512xf32>
    %c0_16 = arith.constant 0 : index
    %c0_17 = arith.constant 0 : index
    %16 = vector.load %arg8[%c0_16, %c0_17] : memref<1x512xf32, #tpu.memory_space<vmem>>, vector<1x512xf32>
    %17 = vector.broadcast %16 : vector<1x512xf32> to vector<128x512xf32>
    %18 = arith.addf %15, %17 : vector<128x512xf32>
    %19 = vector.shape_cast %18 : vector<128x512xf32> to vector<16x8x512xf32>
    %c0_18 = arith.constant 0 : index
    %c0_19 = arith.constant 0 : index
    %c0_20 = arith.constant 0 : index
    %20 = vector.load %arg11[%c0_18, %c0_19, %c0_20] : memref<16x8x512xf32, #tpu.memory_space<vmem>>, vector<16x8x512xf32>
    tpu.vector_store %arg11[%c0_18, %c0_19, %c0_20], %19 {strides = array<i32>} : memref<16x8x512xf32, #tpu.memory_space<vmem>>, vector<16x8x512xf32>,
    %c0_21 = arith.constant 0 : index
    %c0_22 = arith.constant 0 : index
    %21 = vector.load %arg4[%c0_21, %c0_22] : memref<128x512xbf16, #tpu.memory_space<vmem>>, vector<128x512xbf16>
    %c0_23 = arith.constant 0 : index
    %c0_24 = arith.constant 0 : index
    %22 = vector.load %arg7[%c0_23, %c0_24] : memref<128x512xbf16, #tpu.memory_space<vmem>>, vector<128x512xbf16>
    %c0_25 = arith.constant 0 : index
    %c0_26 = arith.constant 0 : index
    %23 = vector.load %arg12[%c0_25, %c0_26] : memref<8x128xf32, #tpu.memory_space<vmem>>, vector<8x128xf32>
    %c0_27 = arith.constant 0 : index
    %c0_28 = arith.constant 0 : index
    %24 = vector.load %arg13[%c0_27, %c0_28] : memref<8x128xf32, #tpu.memory_space<vmem>>, vector<8x128xf32>
    %c0_29 = arith.constant 0 : index
    %c0_30 = arith.constant 0 : index
    %25 = vector.load %arg14[%c0_29, %c0_30] : memref<8x128xf32, #tpu.memory_space<vmem>>, vector<8x128xf32>
    %c0_31 = arith.constant 0 : index
    %c0_32 = arith.constant 0 : index
    %26 = vector.load %arg15[%c0_31, %c0_32] : memref<8x128xf32, #tpu.memory_space<vmem>>, vector<8x128xf32>
    %c0_i32_33 = arith.constant 0 : i32
    %27 = arith.index_cast %c0_i32_33 : i32 to index
    %c0_34 = arith.constant 0 : index
    %c0_35 = arith.constant 0 : index
    %28 = vector.load %arg10[%27, %c0_34, %c0_35] : memref<16x8x512xf32, #tpu.memory_space<vmem>>, vector<1x8x512xf32>
    %29 = vector.shape_cast %28 : vector<1x8x512xf32> to vector<8x512xf32>
    %30 = arith.truncf %23 : vector<8x128xf32> to vector<8x128xbf16>
    %cst_36 = arith.constant dense<0.000000e+00> : vector<8x512xf32>
    %31 = tpu.matmul %30, %21, %cst_36 {dimension_numbers = #tpu.dot_dimension_numbers<[1], [0], [0], [1], [0, 0, 1, 1], [], []>} : vector<8x128xbf16>, vector<128x512xbf16>, vector<8x512xf32> -> vector<8x512xf32>
    %32 = arith.addf %29, %31 : vector<8x512xf32>
    %33 = vector.extract_strided_slice %32 {offsets = [0, 0], sizes = [8, 384], strides = [1, 1]} : vector<8x512xf32> to vector<8x384xf32>
    %34 = arith.negf %33 : vector<8x384xf32>
    %35 = math.exp %34 : vector<8x384xf32>
    %cst_37 = arith.constant 1.000000e+00 : f32
    %36 = vector.broadcast %cst_37 : f32 to vector<8x384xf32>
    %37 = arith.addf %36, %35 : vector<8x384xf32>
    %38 = arith.divf %36, %37 : vector<8x384xf32>
    %39 = vector.extract_strided_slice %38 {offsets = [0, 0], sizes = [8, 128], strides = [1, 1]} : vector<8x384xf32> to vector<8x128xf32>
    %40 = vector.extract_strided_slice %38 {offsets = [0, 128], sizes = [8, 128], strides = [1, 1]} : vector<8x384xf32> to vector<8x128xf32>
    %41 = vector.extract_strided_slice %38 {offsets = [0, 256], sizes = [8, 128], strides = [1, 1]} : vector<8x384xf32> to vector<8x128xf32>
    %42 = vector.extract_strided_slice %32 {offsets = [0, 384], sizes = [8, 128], strides = [1, 1]} : vector<8x512xf32> to vector<8x128xf32>
    %43 = math.tanh %42 : vector<8x128xf32>
    %44 = arith.mulf %40, %24 : vector<8x128xf32>
    %45 = arith.mulf %39, %43 : vector<8x128xf32>
    %46 = arith.addf %44, %45 : vector<8x128xf32>
    %47 = math.tanh %46 : vector<8x128xf32>
    %48 = arith.mulf %41, %47 : vector<8x128xf32>
    %c15_i32 = arith.constant 15 : i32
    %49 = arith.subi %c15_i32, %c0_i32_33 : i32
    %50 = arith.index_cast %49 : i32 to index
    %c0_38 = arith.constant 0 : index
    %c0_39 = arith.constant 0 : index
    %51 = vector.load %arg11[%50, %c0_38, %c0_39] : memref<16x8x512xf32, #tpu.memory_space<vmem>>, vector<1x8x512xf32>
    %52 = vector.shape_cast %51 : vector<1x8x512xf32> to vector<8x512xf32>
    %53 = arith.truncf %25 : vector<8x128xf32> to vector<8x128xbf16>
    %cst_40 = arith.constant dense<0.000000e+00> : vector<8x512xf32>
    %54 = tpu.matmul %53, %22, %cst_40 {dimension_numbers = #tpu.dot_dimension_numbers<[1], [0], [0], [1], [0, 0, 1, 1], [], []>} : vector<8x128xbf16>, vector<128x512xbf16>, vector<8x512xf32> -> vector<8x512xf32>
    %55 = arith.addf %52, %54 : vector<8x512xf32>
    %56 = vector.extract_strided_slice %55 {offsets = [0, 0], sizes = [8, 384], strides = [1, 1]} : vector<8x512xf32> to vector<8x384xf32>
    %57 = arith.negf %56 : vector<8x384xf32>
    %58 = math.exp %57 : vector<8x384xf32>
    %cst_41 = arith.constant 1.000000e+00 : f32
    %59 = vector.broadcast %cst_41 : f32 to vector<8x384xf32>
    %60 = arith.addf %59, %58 : vector<8x384xf32>
    %61 = arith.divf %59, %60 : vector<8x384xf32>
    %62 = vector.extract_strided_slice %61 {offsets = [0, 0], sizes = [8, 128], strides = [1, 1]} : vector<8x384xf32> to vector<8x128xf32>
    %63 = vector.extract_strided_slice %61 {offsets = [0, 128], sizes = [8, 128], strides = [1, 1]} : vector<8x384xf32> to vector<8x128xf32>
    %64 = vector.extract_strided_slice %61 {offsets = [0, 256], sizes = [8, 128], strides = [1, 1]} : vector<8x384xf32> to vector<8x128xf32>
    %65 = vector.extract_strided_slice %55 {offsets = [0, 384], sizes = [8, 128], strides = [1, 1]} : vector<8x512xf32> to vector<8x128xf32>
    %66 = math.tanh %65 : vector<8x128xf32>
    %67 = arith.mulf %63, %26 : vector<8x128xf32>
    %68 = arith.mulf %62, %66 : vector<8x128xf32>
    %69 = arith.addf %67, %68 : vector<8x128xf32>
    %70 = math.tanh %69 : vector<8x128xf32>
    %71 = arith.mulf %64, %70 : vector<8x128xf32>
    %c1_i32 = arith.constant 1 : i32
    %72 = arith.index_cast %c1_i32 : i32 to index
    %c0_42 = arith.constant 0 : index
    %c0_43 = arith.constant 0 : index
    %73 = vector.load %arg10[%72, %c0_42, %c0_43] : memref<16x8x512xf32, #tpu.memory_space<vmem>>, vector<1x8x512xf32>
    %74 = vector.shape_cast %73 : vector<1x8x512xf32> to vector<8x512xf32>
    %75 = arith.truncf %48 : vector<8x128xf32> to vector<8x128xbf16>
    %cst_44 = arith.constant dense<0.000000e+00> : vector<8x512xf32>
    %76 = tpu.matmul %75, %21, %cst_44 {dimension_numbers = #tpu.dot_dimension_numbers<[1], [0], [0], [1], [0, 0, 1, 1], [], []>} : vector<8x128xbf16>, vector<128x512xbf16>, vector<8x512xf32> -> vector<8x512xf32>
    %77 = arith.addf %74, %76 : vector<8x512xf32>
    %78 = vector.extract_strided_slice %77 {offsets = [0, 0], sizes = [8, 384], strides = [1, 1]} : vector<8x512xf32> to vector<8x384xf32>
    %79 = arith.negf %78 : vector<8x384xf32>
    %80 = math.exp %79 : vector<8x384xf32>
    %cst_45 = arith.constant 1.000000e+00 : f32
    %81 = vector.broadcast %cst_45 : f32 to vector<8x384xf32>
    %82 = arith.addf %81, %80 : vector<8x384xf32>
    %83 = arith.divf %81, %82 : vector<8x384xf32>
    %84 = vector.extract_strided_slice %83 {offsets = [0, 0], sizes = [8, 128], strides = [1, 1]} : vector<8x384xf32> to vector<8x128xf32>
    %85 = vector.extract_strided_slice %83 {offsets = [0, 128], sizes = [8, 128], strides = [1, 1]} : vector<8x384xf32> to vector<8x128xf32>
    %86 = vector.extract_strided_slice %83 {offsets = [0, 256], sizes = [8, 128], strides = [1, 1]} : vector<8x384xf32> to vector<8x128xf32>
    %87 = vector.extract_strided_slice %77 {offsets = [0, 384], sizes = [8, 128], strides = [1, 1]} : vector<8x512xf32> to vector<8x128xf32>
    %88 = math.tanh %87 : vector<8x128xf32>
    %89 = arith.mulf %85, %46 : vector<8x128xf32>
    %90 = arith.mulf %84, %88 : vector<8x128xf32>
    %91 = arith.addf %89, %90 : vector<8x128xf32>
    %92 = math.tanh %91 : vector<8x128xf32>
    %93 = arith.mulf %86, %92 : vector<8x128xf32>
    %c15_i32_46 = arith.constant 15 : i32
    %94 = arith.subi %c15_i32_46, %c1_i32 : i32
    %95 = arith.index_cast %94 : i32 to index
    %c0_47 = arith.constant 0 : index
    %c0_48 = arith.constant 0 : index
    %96 = vector.load %arg11[%95, %c0_47, %c0_48] : memref<16x8x512xf32, #tpu.memory_space<vmem>>, vector<1x8x512xf32>
    %97 = vector.shape_cast %96 : vector<1x8x512xf32> to vector<8x512xf32>
    %98 = arith.truncf %71 : vector<8x128xf32> to vector<8x128xbf16>
    %cst_49 = arith.constant dense<0.000000e+00> : vector<8x512xf32>
    %99 = tpu.matmul %98, %22, %cst_49 {dimension_numbers = #tpu.dot_dimension_numbers<[1], [0], [0], [1], [0, 0, 1, 1], [], []>} : vector<8x128xbf16>, vector<128x512xbf16>, vector<8x512xf32> -> vector<8x512xf32>
    %100 = arith.addf %97, %99 : vector<8x512xf32>
    %101 = vector.extract_strided_slice %100 {offsets = [0, 0], sizes = [8, 384], strides = [1, 1]} : vector<8x512xf32> to vector<8x384xf32>
    %102 = arith.negf %101 : vector<8x384xf32>
    %103 = math.exp %102 : vector<8x384xf32>
    %cst_50 = arith.constant 1.000000e+00 : f32
    %104 = vector.broadcast %cst_50 : f32 to vector<8x384xf32>
    %105 = arith.addf %104, %103 : vector<8x384xf32>
    %106 = arith.divf %104, %105 : vector<8x384xf32>
    %107 = vector.extract_strided_slice %106 {offsets = [0, 0], sizes = [8, 128], strides = [1, 1]} : vector<8x384xf32> to vector<8x128xf32>
    %108 = vector.extract_strided_slice %106 {offsets = [0, 128], sizes = [8, 128], strides = [1, 1]} : vector<8x384xf32> to vector<8x128xf32>
    %109 = vector.extract_strided_slice %106 {offsets = [0, 256], sizes = [8, 128], strides = [1, 1]} : vector<8x384xf32> to vector<8x128xf32>
    %110 = vector.extract_strided_slice %100 {offsets = [0, 384], sizes = [8, 128], strides = [1, 1]} : vector<8x512xf32> to vector<8x128xf32>
    %111 = math.tanh %110 : vector<8x128xf32>
    %112 = arith.mulf %108, %69 : vector<8x128xf32>
    %113 = arith.mulf %107, %111 : vector<8x128xf32>
    %114 = arith.addf %112, %113 : vector<8x128xf32>
    %115 = math.tanh %114 : vector<8x128xf32>
    %116 = arith.mulf %109, %115 : vector<8x128xf32>
    %c2_i32 = arith.constant 2 : i32
    %117 = arith.index_cast %c2_i32 : i32 to index
    %c0_51 = arith.constant 0 : index
    %c0_52 = arith.constant 0 : index
    %118 = vector.load %arg10[%117, %c0_51, %c0_52] : memref<16x8x512xf32, #tpu.memory_space<vmem>>, vector<1x8x512xf32>
    %119 = vector.shape_cast %118 : vector<1x8x512xf32> to vector<8x512xf32>
    %120 = arith.truncf %93 : vector<8x128xf32> to vector<8x128xbf16>
    %cst_53 = arith.constant dense<0.000000e+00> : vector<8x512xf32>
    %121 = tpu.matmul %120, %21, %cst_53 {dimension_numbers = #tpu.dot_dimension_numbers<[1], [0], [0], [1], [0, 0, 1, 1], [], []>} : vector<8x128xbf16>, vector<128x512xbf16>, vector<8x512xf32> -> vector<8x512xf32>
    %122 = arith.addf %119, %121 : vector<8x512xf32>
    %123 = vector.extract_strided_slice %122 {offsets = [0, 0], sizes = [8, 384], strides = [1, 1]} : vector<8x512xf32> to vector<8x384xf32>
    %124 = arith.negf %123 : vector<8x384xf32>
    %125 = math.exp %124 : vector<8x384xf32>
    %cst_54 = arith.constant 1.000000e+00 : f32
    %126 = vector.broadcast %cst_54 : f32 to vector<8x384xf32>
    %127 = arith.addf %126, %125 : vector<8x384xf32>
    %128 = arith.divf %126, %127 : vector<8x384xf32>
    %129 = vector.extract_strided_slice %128 {offsets = [0, 0], sizes = [8, 128], strides = [1, 1]} : vector<8x384xf32> to vector<8x128xf32>
    %130 = vector.extract_strided_slice %128 {offsets = [0, 128], sizes = [8, 128], strides = [1, 1]} : vector<8x384xf32> to vector<8x128xf32>
    %131 = vector.extract_strided_slice %128 {offsets = [0, 256], sizes = [8, 128], strides = [1, 1]} : vector<8x384xf32> to vector<8x128xf32>
    %132 = vector.extract_strided_slice %122 {offsets = [0, 384], sizes = [8, 128], strides = [1, 1]} : vector<8x512xf32> to vector<8x128xf32>
    %133 = math.tanh %132 : vector<8x128xf32>
    %134 = arith.mulf %130, %91 : vector<8x128xf32>
    %135 = arith.mulf %129, %133 : vector<8x128xf32>
    %136 = arith.addf %134, %135 : vector<8x128xf32>
    %137 = math.tanh %136 : vector<8x128xf32>
    %138 = arith.mulf %131, %137 : vector<8x128xf32>
    %c15_i32_55 = arith.constant 15 : i32
    %139 = arith.subi %c15_i32_55, %c2_i32 : i32
    %140 = arith.index_cast %139 : i32 to index
    %c0_56 = arith.constant 0 : index
    %c0_57 = arith.constant 0 : index
    %141 = vector.load %arg11[%140, %c0_56, %c0_57] : memref<16x8x512xf32, #tpu.memory_space<vmem>>, vector<1x8x512xf32>
    %142 = vector.shape_cast %141 : vector<1x8x512xf32> to vector<8x512xf32>
    %143 = arith.truncf %116 : vector<8x128xf32> to vector<8x128xbf16>
    %cst_58 = arith.constant dense<0.000000e+00> : vector<8x512xf32>
    %144 = tpu.matmul %143, %22, %cst_58 {dimension_numbers = #tpu.dot_dimension_numbers<[1], [0], [0], [1], [0, 0, 1, 1], [], []>} : vector<8x128xbf16>, vector<128x512xbf16>, vector<8x512xf32> -> vector<8x512xf32>
    %145 = arith.addf %142, %144 : vector<8x512xf32>
    %146 = vector.extract_strided_slice %145 {offsets = [0, 0], sizes = [8, 384], strides = [1, 1]} : vector<8x512xf32> to vector<8x384xf32>
    %147 = arith.negf %146 : vector<8x384xf32>
    %148 = math.exp %147 : vector<8x384xf32>
    %cst_59 = arith.constant 1.000000e+00 : f32
    %149 = vector.broadcast %cst_59 : f32 to vector<8x384xf32>
    %150 = arith.addf %149, %148 : vector<8x384xf32>
    %151 = arith.divf %149, %150 : vector<8x384xf32>
    %152 = vector.extract_strided_slice %151 {offsets = [0, 0], sizes = [8, 128], strides = [1, 1]} : vector<8x384xf32> to vector<8x128xf32>
    %153 = vector.extract_strided_slice %151 {offsets = [0, 128], sizes = [8, 128], strides = [1, 1]} : vector<8x384xf32> to vector<8x128xf32>
    %154 = vector.extract_strided_slice %151 {offsets = [0, 256], sizes = [8, 128], strides = [1, 1]} : vector<8x384xf32> to vector<8x128xf32>
    %155 = vector.extract_strided_slice %145 {offsets = [0, 384], sizes = [8, 128], strides = [1, 1]} : vector<8x512xf32> to vector<8x128xf32>
    %156 = math.tanh %155 : vector<8x128xf32>
    %157 = arith.mulf %153, %114 : vector<8x128xf32>
    %158 = arith.mulf %152, %156 : vector<8x128xf32>
    %159 = arith.addf %157, %158 : vector<8x128xf32>
    %160 = math.tanh %159 : vector<8x128xf32>
    %161 = arith.mulf %154, %160 : vector<8x128xf32>
    %c3_i32 = arith.constant 3 : i32
    %162 = arith.index_cast %c3_i32 : i32 to index
    %c0_60 = arith.constant 0 : index
    %c0_61 = arith.constant 0 : index
    %163 = vector.load %arg10[%162, %c0_60, %c0_61] : memref<16x8x512xf32, #tpu.memory_space<vmem>>, vector<1x8x512xf32>
    %164 = vector.shape_cast %163 : vector<1x8x512xf32> to vector<8x512xf32>
    %165 = arith.truncf %138 : vector<8x128xf32> to vector<8x128xbf16>
    %cst_62 = arith.constant dense<0.000000e+00> : vector<8x512xf32>
    %166 = tpu.matmul %165, %21, %cst_62 {dimension_numbers = #tpu.dot_dimension_numbers<[1], [0], [0], [1], [0, 0, 1, 1], [], []>} : vector<8x128xbf16>, vector<128x512xbf16>, vector<8x512xf32> -> vector<8x512xf32>
    %167 = arith.addf %164, %166 : vector<8x512xf32>
    %168 = vector.extract_strided_slice %167 {offsets = [0, 0], sizes = [8, 384], strides = [1, 1]} : vector<8x512xf32> to vector<8x384xf32>
    %169 = arith.negf %168 : vector<8x384xf32>
    %170 = math.exp %169 : vector<8x384xf32>
    %cst_63 = arith.constant 1.000000e+00 : f32
    %171 = vector.broadcast %cst_63 : f32 to vector<8x384xf32>
    %172 = arith.addf %171, %170 : vector<8x384xf32>
    %173 = arith.divf %171, %172 : vector<8x384xf32>
    %174 = vector.extract_strided_slice %173 {offsets = [0, 0], sizes = [8, 128], strides = [1, 1]} : vector<8x384xf32> to vector<8x128xf32>
    %175 = vector.extract_strided_slice %173 {offsets = [0, 128], sizes = [8, 128], strides = [1, 1]} : vector<8x384xf32> to vector<8x128xf32>
    %176 = vector.extract_strided_slice %173 {offsets = [0, 256], sizes = [8, 128], strides = [1, 1]} : vector<8x384xf32> to vector<8x128xf32>
    %177 = vector.extract_strided_slice %167 {offsets = [0, 384], sizes = [8, 128], strides = [1, 1]} : vector<8x512xf32> to vector<8x128xf32>
    %178 = math.tanh %177 : vector<8x128xf32>
    %179 = arith.mulf %175, %136 : vector<8x128xf32>
    %180 = arith.mulf %174, %178 : vector<8x128xf32>
    %181 = arith.addf %179, %180 : vector<8x128xf32>
    %182 = math.tanh %181 : vector<8x128xf32>
    %183 = arith.mulf %176, %182 : vector<8x128xf32>
    %c15_i32_64 = arith.constant 15 : i32
    %184 = arith.subi %c15_i32_64, %c3_i32 : i32
    %185 = arith.index_cast %184 : i32 to index
    %c0_65 = arith.constant 0 : index
    %c0_66 = arith.constant 0 : index
    %186 = vector.load %arg11[%185, %c0_65, %c0_66] : memref<16x8x512xf32, #tpu.memory_space<vmem>>, vector<1x8x512xf32>
    %187 = vector.shape_cast %186 : vector<1x8x512xf32> to vector<8x512xf32>
    %188 = arith.truncf %161 : vector<8x128xf32> to vector<8x128xbf16>
    %cst_67 = arith.constant dense<0.000000e+00> : vector<8x512xf32>
    %189 = tpu.matmul %188, %22, %cst_67 {dimension_numbers = #tpu.dot_dimension_numbers<[1], [0], [0], [1], [0, 0, 1, 1], [], []>} : vector<8x128xbf16>, vector<128x512xbf16>, vector<8x512xf32> -> vector<8x512xf32>
    %190 = arith.addf %187, %189 : vector<8x512xf32>
    %191 = vector.extract_strided_slice %190 {offsets = [0, 0], sizes = [8, 384], strides = [1, 1]} : vector<8x512xf32> to vector<8x384xf32>
    %192 = arith.negf %191 : vector<8x384xf32>
    %193 = math.exp %192 : vector<8x384xf32>
    %cst_68 = arith.constant 1.000000e+00 : f32
    %194 = vector.broadcast %cst_68 : f32 to vector<8x384xf32>
    %195 = arith.addf %194, %193 : vector<8x384xf32>
    %196 = arith.divf %194, %195 : vector<8x384xf32>
    %197 = vector.extract_strided_slice %196 {offsets = [0, 0], sizes = [8, 128], strides = [1, 1]} : vector<8x384xf32> to vector<8x128xf32>
    %198 = vector.extract_strided_slice %196 {offsets = [0, 128], sizes = [8, 128], strides = [1, 1]} : vector<8x384xf32> to vector<8x128xf32>
    %199 = vector.extract_strided_slice %196 {offsets = [0, 256], sizes = [8, 128], strides = [1, 1]} : vector<8x384xf32> to vector<8x128xf32>
    %200 = vector.extract_strided_slice %190 {offsets = [0, 384], sizes = [8, 128], strides = [1, 1]} : vector<8x512xf32> to vector<8x128xf32>
    %201 = math.tanh %200 : vector<8x128xf32>
    %202 = arith.mulf %198, %159 : vector<8x128xf32>
    %203 = arith.mulf %197, %201 : vector<8x128xf32>
    %204 = arith.addf %202, %203 : vector<8x128xf32>
    %205 = math.tanh %204 : vector<8x128xf32>
    %206 = arith.mulf %199, %205 : vector<8x128xf32>
    %c4_i32 = arith.constant 4 : i32
    %207 = arith.index_cast %c4_i32 : i32 to index
    %c0_69 = arith.constant 0 : index
    %c0_70 = arith.constant 0 : index
    %208 = vector.load %arg10[%207, %c0_69, %c0_70] : memref<16x8x512xf32, #tpu.memory_space<vmem>>, vector<1x8x512xf32>
    %209 = vector.shape_cast %208 : vector<1x8x512xf32> to vector<8x512xf32>
    %210 = arith.truncf %183 : vector<8x128xf32> to vector<8x128xbf16>
    %cst_71 = arith.constant dense<0.000000e+00> : vector<8x512xf32>
    %211 = tpu.matmul %210, %21, %cst_71 {dimension_numbers = #tpu.dot_dimension_numbers<[1], [0], [0], [1], [0, 0, 1, 1], [], []>} : vector<8x128xbf16>, vector<128x512xbf16>, vector<8x512xf32> -> vector<8x512xf32>
    %212 = arith.addf %209, %211 : vector<8x512xf32>
    %213 = vector.extract_strided_slice %212 {offsets = [0, 0], sizes = [8, 384], strides = [1, 1]} : vector<8x512xf32> to vector<8x384xf32>
    %214 = arith.negf %213 : vector<8x384xf32>
    %215 = math.exp %214 : vector<8x384xf32>
    %cst_72 = arith.constant 1.000000e+00 : f32
    %216 = vector.broadcast %cst_72 : f32 to vector<8x384xf32>
    %217 = arith.addf %216, %215 : vector<8x384xf32>
    %218 = arith.divf %216, %217 : vector<8x384xf32>
    %219 = vector.extract_strided_slice %218 {offsets = [0, 0], sizes = [8, 128], strides = [1, 1]} : vector<8x384xf32> to vector<8x128xf32>
    %220 = vector.extract_strided_slice %218 {offsets = [0, 128], sizes = [8, 128], strides = [1, 1]} : vector<8x384xf32> to vector<8x128xf32>
    %221 = vector.extract_strided_slice %218 {offsets = [0, 256], sizes = [8, 128], strides = [1, 1]} : vector<8x384xf32> to vector<8x128xf32>
    %222 = vector.extract_strided_slice %212 {offsets = [0, 384], sizes = [8, 128], strides = [1, 1]} : vector<8x512xf32> to vector<8x128xf32>
    %223 = math.tanh %222 : vector<8x128xf32>
    %224 = arith.mulf %220, %181 : vector<8x128xf32>
    %225 = arith.mulf %219, %223 : vector<8x128xf32>
    %226 = arith.addf %224, %225 : vector<8x128xf32>
    %227 = math.tanh %226 : vector<8x128xf32>
    %228 = arith.mulf %221, %227 : vector<8x128xf32>
    %c15_i32_73 = arith.constant 15 : i32
    %229 = arith.subi %c15_i32_73, %c4_i32 : i32
    %230 = arith.index_cast %229 : i32 to index
    %c0_74 = arith.constant 0 : index
    %c0_75 = arith.constant 0 : index
    %231 = vector.load %arg11[%230, %c0_74, %c0_75] : memref<16x8x512xf32, #tpu.memory_space<vmem>>, vector<1x8x512xf32>
    %232 = vector.shape_cast %231 : vector<1x8x512xf32> to vector<8x512xf32>
    %233 = arith.truncf %206 : vector<8x128xf32> to vector<8x128xbf16>
    %cst_76 = arith.constant dense<0.000000e+00> : vector<8x512xf32>
    %234 = tpu.matmul %233, %22, %cst_76 {dimension_numbers = #tpu.dot_dimension_numbers<[1], [0], [0], [1], [0, 0, 1, 1], [], []>} : vector<8x128xbf16>, vector<128x512xbf16>, vector<8x512xf32> -> vector<8x512xf32>
    %235 = arith.addf %232, %234 : vector<8x512xf32>
    %236 = vector.extract_strided_slice %235 {offsets = [0, 0], sizes = [8, 384], strides = [1, 1]} : vector<8x512xf32> to vector<8x384xf32>
    %237 = arith.negf %236 : vector<8x384xf32>
    %238 = math.exp %237 : vector<8x384xf32>
    %cst_77 = arith.constant 1.000000e+00 : f32
    %239 = vector.broadcast %cst_77 : f32 to vector<8x384xf32>
    %240 = arith.addf %239, %238 : vector<8x384xf32>
    %241 = arith.divf %239, %240 : vector<8x384xf32>
    %242 = vector.extract_strided_slice %241 {offsets = [0, 0], sizes = [8, 128], strides = [1, 1]} : vector<8x384xf32> to vector<8x128xf32>
    %243 = vector.extract_strided_slice %241 {offsets = [0, 128], sizes = [8, 128], strides = [1, 1]} : vector<8x384xf32> to vector<8x128xf32>
    %244 = vector.extract_strided_slice %241 {offsets = [0, 256], sizes = [8, 128], strides = [1, 1]} : vector<8x384xf32> to vector<8x128xf32>
    %245 = vector.extract_strided_slice %235 {offsets = [0, 384], sizes = [8, 128], strides = [1, 1]} : vector<8x512xf32> to vector<8x128xf32>
    %246 = math.tanh %245 : vector<8x128xf32>
    %247 = arith.mulf %243, %204 : vector<8x128xf32>
    %248 = arith.mulf %242, %246 : vector<8x128xf32>
    %249 = arith.addf %247, %248 : vector<8x128xf32>
    %250 = math.tanh %249 : vector<8x128xf32>
    %251 = arith.mulf %244, %250 : vector<8x128xf32>
    %c5_i32 = arith.constant 5 : i32
    %252 = arith.index_cast %c5_i32 : i32 to index
    %c0_78 = arith.constant 0 : index
    %c0_79 = arith.constant 0 : index
    %253 = vector.load %arg10[%252, %c0_78, %c0_79] : memref<16x8x512xf32, #tpu.memory_space<vmem>>, vector<1x8x512xf32>
    %254 = vector.shape_cast %253 : vector<1x8x512xf32> to vector<8x512xf32>
    %255 = arith.truncf %228 : vector<8x128xf32> to vector<8x128xbf16>
    %cst_80 = arith.constant dense<0.000000e+00> : vector<8x512xf32>
    %256 = tpu.matmul %255, %21, %cst_80 {dimension_numbers = #tpu.dot_dimension_numbers<[1], [0], [0], [1], [0, 0, 1, 1], [], []>} : vector<8x128xbf16>, vector<128x512xbf16>, vector<8x512xf32> -> vector<8x512xf32>
    %257 = arith.addf %254, %256 : vector<8x512xf32>
    %258 = vector.extract_strided_slice %257 {offsets = [0, 0], sizes = [8, 384], strides = [1, 1]} : vector<8x512xf32> to vector<8x384xf32>
    %259 = arith.negf %258 : vector<8x384xf32>
    %260 = math.exp %259 : vector<8x384xf32>
    %cst_81 = arith.constant 1.000000e+00 : f32
    %261 = vector.broadcast %cst_81 : f32 to vector<8x384xf32>
    %262 = arith.addf %261, %260 : vector<8x384xf32>
    %263 = arith.divf %261, %262 : vector<8x384xf32>
    %264 = vector.extract_strided_slice %263 {offsets = [0, 0], sizes = [8, 128], strides = [1, 1]} : vector<8x384xf32> to vector<8x128xf32>
    %265 = vector.extract_strided_slice %263 {offsets = [0, 128], sizes = [8, 128], strides = [1, 1]} : vector<8x384xf32> to vector<8x128xf32>
    %266 = vector.extract_strided_slice %263 {offsets = [0, 256], sizes = [8, 128], strides = [1, 1]} : vector<8x384xf32> to vector<8x128xf32>
    %267 = vector.extract_strided_slice %257 {offsets = [0, 384], sizes = [8, 128], strides = [1, 1]} : vector<8x512xf32> to vector<8x128xf32>
    %268 = math.tanh %267 : vector<8x128xf32>
    %269 = arith.mulf %265, %226 : vector<8x128xf32>
    %270 = arith.mulf %264, %268 : vector<8x128xf32>
    %271 = arith.addf %269, %270 : vector<8x128xf32>
    %272 = math.tanh %271 : vector<8x128xf32>
    %273 = arith.mulf %266, %272 : vector<8x128xf32>
    %c15_i32_82 = arith.constant 15 : i32
    %274 = arith.subi %c15_i32_82, %c5_i32 : i32
    %275 = arith.index_cast %274 : i32 to index
    %c0_83 = arith.constant 0 : index
    %c0_84 = arith.constant 0 : index
    %276 = vector.load %arg11[%275, %c0_83, %c0_84] : memref<16x8x512xf32, #tpu.memory_space<vmem>>, vector<1x8x512xf32>
    %277 = vector.shape_cast %276 : vector<1x8x512xf32> to vector<8x512xf32>
    %278 = arith.truncf %251 : vector<8x128xf32> to vector<8x128xbf16>
    %cst_85 = arith.constant dense<0.000000e+00> : vector<8x512xf32>
    %279 = tpu.matmul %278, %22, %cst_85 {dimension_numbers = #tpu.dot_dimension_numbers<[1], [0], [0], [1], [0, 0, 1, 1], [], []>} : vector<8x128xbf16>, vector<128x512xbf16>, vector<8x512xf32> -> vector<8x512xf32>
    %280 = arith.addf %277, %279 : vector<8x512xf32>
    %281 = vector.extract_strided_slice %280 {offsets = [0, 0], sizes = [8, 384], strides = [1, 1]} : vector<8x512xf32> to vector<8x384xf32>
    %282 = arith.negf %281 : vector<8x384xf32>
    %283 = math.exp %282 : vector<8x384xf32>
    %cst_86 = arith.constant 1.000000e+00 : f32
    %284 = vector.broadcast %cst_86 : f32 to vector<8x384xf32>
    %285 = arith.addf %284, %283 : vector<8x384xf32>
    %286 = arith.divf %284, %285 : vector<8x384xf32>
    %287 = vector.extract_strided_slice %286 {offsets = [0, 0], sizes = [8, 128], strides = [1, 1]} : vector<8x384xf32> to vector<8x128xf32>
    %288 = vector.extract_strided_slice %286 {offsets = [0, 128], sizes = [8, 128], strides = [1, 1]} : vector<8x384xf32> to vector<8x128xf32>
    %289 = vector.extract_strided_slice %286 {offsets = [0, 256], sizes = [8, 128], strides = [1, 1]} : vector<8x384xf32> to vector<8x128xf32>
    %290 = vector.extract_strided_slice %280 {offsets = [0, 384], sizes = [8, 128], strides = [1, 1]} : vector<8x512xf32> to vector<8x128xf32>
    %291 = math.tanh %290 : vector<8x128xf32>
    %292 = arith.mulf %288, %249 : vector<8x128xf32>
    %293 = arith.mulf %287, %291 : vector<8x128xf32>
    %294 = arith.addf %292, %293 : vector<8x128xf32>
    %295 = math.tanh %294 : vector<8x128xf32>
    %296 = arith.mulf %289, %295 : vector<8x128xf32>
    %c6_i32 = arith.constant 6 : i32
    %297 = arith.index_cast %c6_i32 : i32 to index
    %c0_87 = arith.constant 0 : index
    %c0_88 = arith.constant 0 : index
    %298 = vector.load %arg10[%297, %c0_87, %c0_88] : memref<16x8x512xf32, #tpu.memory_space<vmem>>, vector<1x8x512xf32>
    %299 = vector.shape_cast %298 : vector<1x8x512xf32> to vector<8x512xf32>
    %300 = arith.truncf %273 : vector<8x128xf32> to vector<8x128xbf16>
    %cst_89 = arith.constant dense<0.000000e+00> : vector<8x512xf32>
    %301 = tpu.matmul %300, %21, %cst_89 {dimension_numbers = #tpu.dot_dimension_numbers<[1], [0], [0], [1], [0, 0, 1, 1], [], []>} : vector<8x128xbf16>, vector<128x512xbf16>, vector<8x512xf32> -> vector<8x512xf32>
    %302 = arith.addf %299, %301 : vector<8x512xf32>
    %303 = vector.extract_strided_slice %302 {offsets = [0, 0], sizes = [8, 384], strides = [1, 1]} : vector<8x512xf32> to vector<8x384xf32>
    %304 = arith.negf %303 : vector<8x384xf32>
    %305 = math.exp %304 : vector<8x384xf32>
    %cst_90 = arith.constant 1.000000e+00 : f32
    %306 = vector.broadcast %cst_90 : f32 to vector<8x384xf32>
    %307 = arith.addf %306, %305 : vector<8x384xf32>
    %308 = arith.divf %306, %307 : vector<8x384xf32>
    %309 = vector.extract_strided_slice %308 {offsets = [0, 0], sizes = [8, 128], strides = [1, 1]} : vector<8x384xf32> to vector<8x128xf32>
    %310 = vector.extract_strided_slice %308 {offsets = [0, 128], sizes = [8, 128], strides = [1, 1]} : vector<8x384xf32> to vector<8x128xf32>
    %311 = vector.extract_strided_slice %308 {offsets = [0, 256], sizes = [8, 128], strides = [1, 1]} : vector<8x384xf32> to vector<8x128xf32>
    %312 = vector.extract_strided_slice %302 {offsets = [0, 384], sizes = [8, 128], strides = [1, 1]} : vector<8x512xf32> to vector<8x128xf32>
    %313 = math.tanh %312 : vector<8x128xf32>
    %314 = arith.mulf %310, %271 : vector<8x128xf32>
    %315 = arith.mulf %309, %313 : vector<8x128xf32>
    %316 = arith.addf %314, %315 : vector<8x128xf32>
    %317 = math.tanh %316 : vector<8x128xf32>
    %318 = arith.mulf %311, %317 : vector<8x128xf32>
    %c15_i32_91 = arith.constant 15 : i32
    %319 = arith.subi %c15_i32_91, %c6_i32 : i32
    %320 = arith.index_cast %319 : i32 to index
    %c0_92 = arith.constant 0 : index
    %c0_93 = arith.constant 0 : index
    %321 = vector.load %arg11[%320, %c0_92, %c0_93] : memref<16x8x512xf32, #tpu.memory_space<vmem>>, vector<1x8x512xf32>
    %322 = vector.shape_cast %321 : vector<1x8x512xf32> to vector<8x512xf32>
    %323 = arith.truncf %296 : vector<8x128xf32> to vector<8x128xbf16>
    %cst_94 = arith.constant dense<0.000000e+00> : vector<8x512xf32>
    %324 = tpu.matmul %323, %22, %cst_94 {dimension_numbers = #tpu.dot_dimension_numbers<[1], [0], [0], [1], [0, 0, 1, 1], [], []>} : vector<8x128xbf16>, vector<128x512xbf16>, vector<8x512xf32> -> vector<8x512xf32>
    %325 = arith.addf %322, %324 : vector<8x512xf32>
    %326 = vector.extract_strided_slice %325 {offsets = [0, 0], sizes = [8, 384], strides = [1, 1]} : vector<8x512xf32> to vector<8x384xf32>
    %327 = arith.negf %326 : vector<8x384xf32>
    %328 = math.exp %327 : vector<8x384xf32>
    %cst_95 = arith.constant 1.000000e+00 : f32
    %329 = vector.broadcast %cst_95 : f32 to vector<8x384xf32>
    %330 = arith.addf %329, %328 : vector<8x384xf32>
    %331 = arith.divf %329, %330 : vector<8x384xf32>
    %332 = vector.extract_strided_slice %331 {offsets = [0, 0], sizes = [8, 128], strides = [1, 1]} : vector<8x384xf32> to vector<8x128xf32>
    %333 = vector.extract_strided_slice %331 {offsets = [0, 128], sizes = [8, 128], strides = [1, 1]} : vector<8x384xf32> to vector<8x128xf32>
    %334 = vector.extract_strided_slice %331 {offsets = [0, 256], sizes = [8, 128], strides = [1, 1]} : vector<8x384xf32> to vector<8x128xf32>
    %335 = vector.extract_strided_slice %325 {offsets = [0, 384], sizes = [8, 128], strides = [1, 1]} : vector<8x512xf32> to vector<8x128xf32>
    %336 = math.tanh %335 : vector<8x128xf32>
    %337 = arith.mulf %333, %294 : vector<8x128xf32>
    %338 = arith.mulf %332, %336 : vector<8x128xf32>
    %339 = arith.addf %337, %338 : vector<8x128xf32>
    %340 = math.tanh %339 : vector<8x128xf32>
    %341 = arith.mulf %334, %340 : vector<8x128xf32>
    %c7_i32 = arith.constant 7 : i32
    %342 = arith.index_cast %c7_i32 : i32 to index
    %c0_96 = arith.constant 0 : index
    %c0_97 = arith.constant 0 : index
    %343 = vector.load %arg10[%342, %c0_96, %c0_97] : memref<16x8x512xf32, #tpu.memory_space<vmem>>, vector<1x8x512xf32>
    %344 = vector.shape_cast %343 : vector<1x8x512xf32> to vector<8x512xf32>
    %345 = arith.truncf %318 : vector<8x128xf32> to vector<8x128xbf16>
    %cst_98 = arith.constant dense<0.000000e+00> : vector<8x512xf32>
    %346 = tpu.matmul %345, %21, %cst_98 {dimension_numbers = #tpu.dot_dimension_numbers<[1], [0], [0], [1], [0, 0, 1, 1], [], []>} : vector<8x128xbf16>, vector<128x512xbf16>, vector<8x512xf32> -> vector<8x512xf32>
    %347 = arith.addf %344, %346 : vector<8x512xf32>
    %348 = vector.extract_strided_slice %347 {offsets = [0, 0], sizes = [8, 384], strides = [1, 1]} : vector<8x512xf32> to vector<8x384xf32>
    %349 = arith.negf %348 : vector<8x384xf32>
    %350 = math.exp %349 : vector<8x384xf32>
    %cst_99 = arith.constant 1.000000e+00 : f32
    %351 = vector.broadcast %cst_99 : f32 to vector<8x384xf32>
    %352 = arith.addf %351, %350 : vector<8x384xf32>
    %353 = arith.divf %351, %352 : vector<8x384xf32>
    %354 = vector.extract_strided_slice %353 {offsets = [0, 0], sizes = [8, 128], strides = [1, 1]} : vector<8x384xf32> to vector<8x128xf32>
    %355 = vector.extract_strided_slice %353 {offsets = [0, 128], sizes = [8, 128], strides = [1, 1]} : vector<8x384xf32> to vector<8x128xf32>
    %356 = vector.extract_strided_slice %353 {offsets = [0, 256], sizes = [8, 128], strides = [1, 1]} : vector<8x384xf32> to vector<8x128xf32>
    %357 = vector.extract_strided_slice %347 {offsets = [0, 384], sizes = [8, 128], strides = [1, 1]} : vector<8x512xf32> to vector<8x128xf32>
    %358 = math.tanh %357 : vector<8x128xf32>
    %359 = arith.mulf %355, %316 : vector<8x128xf32>
    %360 = arith.mulf %354, %358 : vector<8x128xf32>
    %361 = arith.addf %359, %360 : vector<8x128xf32>
    %362 = math.tanh %361 : vector<8x128xf32>
    %363 = arith.mulf %356, %362 : vector<8x128xf32>
    %c15_i32_100 = arith.constant 15 : i32
    %364 = arith.subi %c15_i32_100, %c7_i32 : i32
    %365 = arith.index_cast %364 : i32 to index
    %c0_101 = arith.constant 0 : index
    %c0_102 = arith.constant 0 : index
    %366 = vector.load %arg11[%365, %c0_101, %c0_102] : memref<16x8x512xf32, #tpu.memory_space<vmem>>, vector<1x8x512xf32>
    %367 = vector.shape_cast %366 : vector<1x8x512xf32> to vector<8x512xf32>
    %368 = arith.truncf %341 : vector<8x128xf32> to vector<8x128xbf16>
    %cst_103 = arith.constant dense<0.000000e+00> : vector<8x512xf32>
    %369 = tpu.matmul %368, %22, %cst_103 {dimension_numbers = #tpu.dot_dimension_numbers<[1], [0], [0], [1], [0, 0, 1, 1], [], []>} : vector<8x128xbf16>, vector<128x512xbf16>, vector<8x512xf32> -> vector<8x512xf32>
    %370 = arith.addf %367, %369 : vector<8x512xf32>
    %371 = vector.extract_strided_slice %370 {offsets = [0, 0], sizes = [8, 384], strides = [1, 1]} : vector<8x512xf32> to vector<8x384xf32>
    %372 = arith.negf %371 : vector<8x384xf32>
    %373 = math.exp %372 : vector<8x384xf32>
    %cst_104 = arith.constant 1.000000e+00 : f32
    %374 = vector.broadcast %cst_104 : f32 to vector<8x384xf32>
    %375 = arith.addf %374, %373 : vector<8x384xf32>
    %376 = arith.divf %374, %375 : vector<8x384xf32>
    %377 = vector.extract_strided_slice %376 {offsets = [0, 0], sizes = [8, 128], strides = [1, 1]} : vector<8x384xf32> to vector<8x128xf32>
    %378 = vector.extract_strided_slice %376 {offsets = [0, 128], sizes = [8, 128], strides = [1, 1]} : vector<8x384xf32> to vector<8x128xf32>
    %379 = vector.extract_strided_slice %376 {offsets = [0, 256], sizes = [8, 128], strides = [1, 1]} : vector<8x384xf32> to vector<8x128xf32>
    %380 = vector.extract_strided_slice %370 {offsets = [0, 384], sizes = [8, 128], strides = [1, 1]} : vector<8x512xf32> to vector<8x128xf32>
    %381 = math.tanh %380 : vector<8x128xf32>
    %382 = arith.mulf %378, %339 : vector<8x128xf32>
    %383 = arith.mulf %377, %381 : vector<8x128xf32>
    %384 = arith.addf %382, %383 : vector<8x128xf32>
    %385 = math.tanh %384 : vector<8x128xf32>
    %386 = arith.mulf %379, %385 : vector<8x128xf32>
    %c8_i32 = arith.constant 8 : i32
    %387 = arith.index_cast %c8_i32 : i32 to index
    %c0_105 = arith.constant 0 : index
    %c0_106 = arith.constant 0 : index
    %388 = vector.load %arg10[%387, %c0_105, %c0_106] : memref<16x8x512xf32, #tpu.memory_space<vmem>>, vector<1x8x512xf32>
    %389 = vector.shape_cast %388 : vector<1x8x512xf32> to vector<8x512xf32>
    %390 = arith.truncf %363 : vector<8x128xf32> to vector<8x128xbf16>
    %cst_107 = arith.constant dense<0.000000e+00> : vector<8x512xf32>
    %391 = tpu.matmul %390, %21, %cst_107 {dimension_numbers = #tpu.dot_dimension_numbers<[1], [0], [0], [1], [0, 0, 1, 1], [], []>} : vector<8x128xbf16>, vector<128x512xbf16>, vector<8x512xf32> -> vector<8x512xf32>
    %392 = arith.addf %389, %391 : vector<8x512xf32>
    %393 = vector.extract_strided_slice %392 {offsets = [0, 0], sizes = [8, 384], strides = [1, 1]} : vector<8x512xf32> to vector<8x384xf32>
    %394 = arith.negf %393 : vector<8x384xf32>
    %395 = math.exp %394 : vector<8x384xf32>
    %cst_108 = arith.constant 1.000000e+00 : f32
    %396 = vector.broadcast %cst_108 : f32 to vector<8x384xf32>
    %397 = arith.addf %396, %395 : vector<8x384xf32>
    %398 = arith.divf %396, %397 : vector<8x384xf32>
    %399 = vector.extract_strided_slice %398 {offsets = [0, 0], sizes = [8, 128], strides = [1, 1]} : vector<8x384xf32> to vector<8x128xf32>
    %400 = vector.extract_strided_slice %398 {offsets = [0, 128], sizes = [8, 128], strides = [1, 1]} : vector<8x384xf32> to vector<8x128xf32>
    %401 = vector.extract_strided_slice %398 {offsets = [0, 256], sizes = [8, 128], strides = [1, 1]} : vector<8x384xf32> to vector<8x128xf32>
    %402 = vector.extract_strided_slice %392 {offsets = [0, 384], sizes = [8, 128], strides = [1, 1]} : vector<8x512xf32> to vector<8x128xf32>
    %403 = math.tanh %402 : vector<8x128xf32>
    %404 = arith.mulf %400, %361 : vector<8x128xf32>
    %405 = arith.mulf %399, %403 : vector<8x128xf32>
    %406 = arith.addf %404, %405 : vector<8x128xf32>
    %407 = math.tanh %406 : vector<8x128xf32>
    %408 = arith.mulf %401, %407 : vector<8x128xf32>
    %c15_i32_109 = arith.constant 15 : i32
    %409 = arith.subi %c15_i32_109, %c8_i32 : i32
    %410 = arith.index_cast %409 : i32 to index
    %c0_110 = arith.constant 0 : index
    %c0_111 = arith.constant 0 : index
    %411 = vector.load %arg11[%410, %c0_110, %c0_111] : memref<16x8x512xf32, #tpu.memory_space<vmem>>, vector<1x8x512xf32>
    %412 = vector.shape_cast %411 : vector<1x8x512xf32> to vector<8x512xf32>
    %413 = arith.truncf %386 : vector<8x128xf32> to vector<8x128xbf16>
    %cst_112 = arith.constant dense<0.000000e+00> : vector<8x512xf32>
    %414 = tpu.matmul %413, %22, %cst_112 {dimension_numbers = #tpu.dot_dimension_numbers<[1], [0], [0], [1], [0, 0, 1, 1], [], []>} : vector<8x128xbf16>, vector<128x512xbf16>, vector<8x512xf32> -> vector<8x512xf32>
    %415 = arith.addf %412, %414 : vector<8x512xf32>
    %416 = vector.extract_strided_slice %415 {offsets = [0, 0], sizes = [8, 384], strides = [1, 1]} : vector<8x512xf32> to vector<8x384xf32>
    %417 = arith.negf %416 : vector<8x384xf32>
    %418 = math.exp %417 : vector<8x384xf32>
    %cst_113 = arith.constant 1.000000e+00 : f32
    %419 = vector.broadcast %cst_113 : f32 to vector<8x384xf32>
    %420 = arith.addf %419, %418 : vector<8x384xf32>
    %421 = arith.divf %419, %420 : vector<8x384xf32>
    %422 = vector.extract_strided_slice %421 {offsets = [0, 0], sizes = [8, 128], strides = [1, 1]} : vector<8x384xf32> to vector<8x128xf32>
    %423 = vector.extract_strided_slice %421 {offsets = [0, 128], sizes = [8, 128], strides = [1, 1]} : vector<8x384xf32> to vector<8x128xf32>
    %424 = vector.extract_strided_slice %421 {offsets = [0, 256], sizes = [8, 128], strides = [1, 1]} : vector<8x384xf32> to vector<8x128xf32>
    %425 = vector.extract_strided_slice %415 {offsets = [0, 384], sizes = [8, 128], strides = [1, 1]} : vector<8x512xf32> to vector<8x128xf32>
    %426 = math.tanh %425 : vector<8x128xf32>
    %427 = arith.mulf %423, %384 : vector<8x128xf32>
    %428 = arith.mulf %422, %426 : vector<8x128xf32>
    %429 = arith.addf %427, %428 : vector<8x128xf32>
    %430 = math.tanh %429 : vector<8x128xf32>
    %431 = arith.mulf %424, %430 : vector<8x128xf32>
    %c9_i32 = arith.constant 9 : i32
    %432 = arith.index_cast %c9_i32 : i32 to index
    %c0_114 = arith.constant 0 : index
    %c0_115 = arith.constant 0 : index
    %433 = vector.load %arg10[%432, %c0_114, %c0_115] : memref<16x8x512xf32, #tpu.memory_space<vmem>>, vector<1x8x512xf32>
    %434 = vector.shape_cast %433 : vector<1x8x512xf32> to vector<8x512xf32>
    %435 = arith.truncf %408 : vector<8x128xf32> to vector<8x128xbf16>
    %cst_116 = arith.constant dense<0.000000e+00> : vector<8x512xf32>
    %436 = tpu.matmul %435, %21, %cst_116 {dimension_numbers = #tpu.dot_dimension_numbers<[1], [0], [0], [1], [0, 0, 1, 1], [], []>} : vector<8x128xbf16>, vector<128x512xbf16>, vector<8x512xf32> -> vector<8x512xf32>
    %437 = arith.addf %434, %436 : vector<8x512xf32>
    %438 = vector.extract_strided_slice %437 {offsets = [0, 0], sizes = [8, 384], strides = [1, 1]} : vector<8x512xf32> to vector<8x384xf32>
    %439 = arith.negf %438 : vector<8x384xf32>
    %440 = math.exp %439 : vector<8x384xf32>
    %cst_117 = arith.constant 1.000000e+00 : f32
    %441 = vector.broadcast %cst_117 : f32 to vector<8x384xf32>
    %442 = arith.addf %441, %440 : vector<8x384xf32>
    %443 = arith.divf %441, %442 : vector<8x384xf32>
    %444 = vector.extract_strided_slice %443 {offsets = [0, 0], sizes = [8, 128], strides = [1, 1]} : vector<8x384xf32> to vector<8x128xf32>
    %445 = vector.extract_strided_slice %443 {offsets = [0, 128], sizes = [8, 128], strides = [1, 1]} : vector<8x384xf32> to vector<8x128xf32>
    %446 = vector.extract_strided_slice %443 {offsets = [0, 256], sizes = [8, 128], strides = [1, 1]} : vector<8x384xf32> to vector<8x128xf32>
    %447 = vector.extract_strided_slice %437 {offsets = [0, 384], sizes = [8, 128], strides = [1, 1]} : vector<8x512xf32> to vector<8x128xf32>
    %448 = math.tanh %447 : vector<8x128xf32>
    %449 = arith.mulf %445, %406 : vector<8x128xf32>
    %450 = arith.mulf %444, %448 : vector<8x128xf32>
    %451 = arith.addf %449, %450 : vector<8x128xf32>
    %452 = math.tanh %451 : vector<8x128xf32>
    %453 = arith.mulf %446, %452 : vector<8x128xf32>
    %c15_i32_118 = arith.constant 15 : i32
    %454 = arith.subi %c15_i32_118, %c9_i32 : i32
    %455 = arith.index_cast %454 : i32 to index
    %c0_119 = arith.constant 0 : index
    %c0_120 = arith.constant 0 : index
    %456 = vector.load %arg11[%455, %c0_119, %c0_120] : memref<16x8x512xf32, #tpu.memory_space<vmem>>, vector<1x8x512xf32>
    %457 = vector.shape_cast %456 : vector<1x8x512xf32> to vector<8x512xf32>
    %458 = arith.truncf %431 : vector<8x128xf32> to vector<8x128xbf16>
    %cst_121 = arith.constant dense<0.000000e+00> : vector<8x512xf32>
    %459 = tpu.matmul %458, %22, %cst_121 {dimension_numbers = #tpu.dot_dimension_numbers<[1], [0], [0], [1], [0, 0, 1, 1], [], []>} : vector<8x128xbf16>, vector<128x512xbf16>, vector<8x512xf32> -> vector<8x512xf32>
    %460 = arith.addf %457, %459 : vector<8x512xf32>
    %461 = vector.extract_strided_slice %460 {offsets = [0, 0], sizes = [8, 384], strides = [1, 1]} : vector<8x512xf32> to vector<8x384xf32>
    %462 = arith.negf %461 : vector<8x384xf32>
    %463 = math.exp %462 : vector<8x384xf32>
    %cst_122 = arith.constant 1.000000e+00 : f32
    %464 = vector.broadcast %cst_122 : f32 to vector<8x384xf32>
    %465 = arith.addf %464, %463 : vector<8x384xf32>
    %466 = arith.divf %464, %465 : vector<8x384xf32>
    %467 = vector.extract_strided_slice %466 {offsets = [0, 0], sizes = [8, 128], strides = [1, 1]} : vector<8x384xf32> to vector<8x128xf32>
    %468 = vector.extract_strided_slice %466 {offsets = [0, 128], sizes = [8, 128], strides = [1, 1]} : vector<8x384xf32> to vector<8x128xf32>
    %469 = vector.extract_strided_slice %466 {offsets = [0, 256], sizes = [8, 128], strides = [1, 1]} : vector<8x384xf32> to vector<8x128xf32>
    %470 = vector.extract_strided_slice %460 {offsets = [0, 384], sizes = [8, 128], strides = [1, 1]} : vector<8x512xf32> to vector<8x128xf32>
    %471 = math.tanh %470 : vector<8x128xf32>
    %472 = arith.mulf %468, %429 : vector<8x128xf32>
    %473 = arith.mulf %467, %471 : vector<8x128xf32>
    %474 = arith.addf %472, %473 : vector<8x128xf32>
    %475 = math.tanh %474 : vector<8x128xf32>
    %476 = arith.mulf %469, %475 : vector<8x128xf32>
    %c10_i32 = arith.constant 10 : i32
    %477 = arith.index_cast %c10_i32 : i32 to index
    %c0_123 = arith.constant 0 : index
    %c0_124 = arith.constant 0 : index
    %478 = vector.load %arg10[%477, %c0_123, %c0_124] : memref<16x8x512xf32, #tpu.memory_space<vmem>>, vector<1x8x512xf32>
    %479 = vector.shape_cast %478 : vector<1x8x512xf32> to vector<8x512xf32>
    %480 = arith.truncf %453 : vector<8x128xf32> to vector<8x128xbf16>
    %cst_125 = arith.constant dense<0.000000e+00> : vector<8x512xf32>
    %481 = tpu.matmul %480, %21, %cst_125 {dimension_numbers = #tpu.dot_dimension_numbers<[1], [0], [0], [1], [0, 0, 1, 1], [], []>} : vector<8x128xbf16>, vector<128x512xbf16>, vector<8x512xf32> -> vector<8x512xf32>
    %482 = arith.addf %479, %481 : vector<8x512xf32>
    %483 = vector.extract_strided_slice %482 {offsets = [0, 0], sizes = [8, 384], strides = [1, 1]} : vector<8x512xf32> to vector<8x384xf32>
    %484 = arith.negf %483 : vector<8x384xf32>
    %485 = math.exp %484 : vector<8x384xf32>
    %cst_126 = arith.constant 1.000000e+00 : f32
    %486 = vector.broadcast %cst_126 : f32 to vector<8x384xf32>
    %487 = arith.addf %486, %485 : vector<8x384xf32>
    %488 = arith.divf %486, %487 : vector<8x384xf32>
    %489 = vector.extract_strided_slice %488 {offsets = [0, 0], sizes = [8, 128], strides = [1, 1]} : vector<8x384xf32> to vector<8x128xf32>
    %490 = vector.extract_strided_slice %488 {offsets = [0, 128], sizes = [8, 128], strides = [1, 1]} : vector<8x384xf32> to vector<8x128xf32>
    %491 = vector.extract_strided_slice %488 {offsets = [0, 256], sizes = [8, 128], strides = [1, 1]} : vector<8x384xf32> to vector<8x128xf32>
    %492 = vector.extract_strided_slice %482 {offsets = [0, 384], sizes = [8, 128], strides = [1, 1]} : vector<8x512xf32> to vector<8x128xf32>
    %493 = math.tanh %492 : vector<8x128xf32>
    %494 = arith.mulf %490, %451 : vector<8x128xf32>
    %495 = arith.mulf %489, %493 : vector<8x128xf32>
    %496 = arith.addf %494, %495 : vector<8x128xf32>
    %497 = math.tanh %496 : vector<8x128xf32>
    %498 = arith.mulf %491, %497 : vector<8x128xf32>
    %c15_i32_127 = arith.constant 15 : i32
    %499 = arith.subi %c15_i32_127, %c10_i32 : i32
    %500 = arith.index_cast %499 : i32 to index
    %c0_128 = arith.constant 0 : index
    %c0_129 = arith.constant 0 : index
    %501 = vector.load %arg11[%500, %c0_128, %c0_129] : memref<16x8x512xf32, #tpu.memory_space<vmem>>, vector<1x8x512xf32>
    %502 = vector.shape_cast %501 : vector<1x8x512xf32> to vector<8x512xf32>
    %503 = arith.truncf %476 : vector<8x128xf32> to vector<8x128xbf16>
    %cst_130 = arith.constant dense<0.000000e+00> : vector<8x512xf32>
    %504 = tpu.matmul %503, %22, %cst_130 {dimension_numbers = #tpu.dot_dimension_numbers<[1], [0], [0], [1], [0, 0, 1, 1], [], []>} : vector<8x128xbf16>, vector<128x512xbf16>, vector<8x512xf32> -> vector<8x512xf32>
    %505 = arith.addf %502, %504 : vector<8x512xf32>
    %506 = vector.extract_strided_slice %505 {offsets = [0, 0], sizes = [8, 384], strides = [1, 1]} : vector<8x512xf32> to vector<8x384xf32>
    %507 = arith.negf %506 : vector<8x384xf32>
    %508 = math.exp %507 : vector<8x384xf32>
    %cst_131 = arith.constant 1.000000e+00 : f32
    %509 = vector.broadcast %cst_131 : f32 to vector<8x384xf32>
    %510 = arith.addf %509, %508 : vector<8x384xf32>
    %511 = arith.divf %509, %510 : vector<8x384xf32>
    %512 = vector.extract_strided_slice %511 {offsets = [0, 0], sizes = [8, 128], strides = [1, 1]} : vector<8x384xf32> to vector<8x128xf32>
    %513 = vector.extract_strided_slice %511 {offsets = [0, 128], sizes = [8, 128], strides = [1, 1]} : vector<8x384xf32> to vector<8x128xf32>
    %514 = vector.extract_strided_slice %511 {offsets = [0, 256], sizes = [8, 128], strides = [1, 1]} : vector<8x384xf32> to vector<8x128xf32>
    %515 = vector.extract_strided_slice %505 {offsets = [0, 384], sizes = [8, 128], strides = [1, 1]} : vector<8x512xf32> to vector<8x128xf32>
    %516 = math.tanh %515 : vector<8x128xf32>
    %517 = arith.mulf %513, %474 : vector<8x128xf32>
    %518 = arith.mulf %512, %516 : vector<8x128xf32>
    %519 = arith.addf %517, %518 : vector<8x128xf32>
    %520 = math.tanh %519 : vector<8x128xf32>
    %521 = arith.mulf %514, %520 : vector<8x128xf32>
    %c11_i32 = arith.constant 11 : i32
    %522 = arith.index_cast %c11_i32 : i32 to index
    %c0_132 = arith.constant 0 : index
    %c0_133 = arith.constant 0 : index
    %523 = vector.load %arg10[%522, %c0_132, %c0_133] : memref<16x8x512xf32, #tpu.memory_space<vmem>>, vector<1x8x512xf32>
    %524 = vector.shape_cast %523 : vector<1x8x512xf32> to vector<8x512xf32>
    %525 = arith.truncf %498 : vector<8x128xf32> to vector<8x128xbf16>
    %cst_134 = arith.constant dense<0.000000e+00> : vector<8x512xf32>
    %526 = tpu.matmul %525, %21, %cst_134 {dimension_numbers = #tpu.dot_dimension_numbers<[1], [0], [0], [1], [0, 0, 1, 1], [], []>} : vector<8x128xbf16>, vector<128x512xbf16>, vector<8x512xf32> -> vector<8x512xf32>
    %527 = arith.addf %524, %526 : vector<8x512xf32>
    %528 = vector.extract_strided_slice %527 {offsets = [0, 0], sizes = [8, 384], strides = [1, 1]} : vector<8x512xf32> to vector<8x384xf32>
    %529 = arith.negf %528 : vector<8x384xf32>
    %530 = math.exp %529 : vector<8x384xf32>
    %cst_135 = arith.constant 1.000000e+00 : f32
    %531 = vector.broadcast %cst_135 : f32 to vector<8x384xf32>
    %532 = arith.addf %531, %530 : vector<8x384xf32>
    %533 = arith.divf %531, %532 : vector<8x384xf32>
    %534 = vector.extract_strided_slice %533 {offsets = [0, 0], sizes = [8, 128], strides = [1, 1]} : vector<8x384xf32> to vector<8x128xf32>
    %535 = vector.extract_strided_slice %533 {offsets = [0, 128], sizes = [8, 128], strides = [1, 1]} : vector<8x384xf32> to vector<8x128xf32>
    %536 = vector.extract_strided_slice %533 {offsets = [0, 256], sizes = [8, 128], strides = [1, 1]} : vector<8x384xf32> to vector<8x128xf32>
    %537 = vector.extract_strided_slice %527 {offsets = [0, 384], sizes = [8, 128], strides = [1, 1]} : vector<8x512xf32> to vector<8x128xf32>
    %538 = math.tanh %537 : vector<8x128xf32>
    %539 = arith.mulf %535, %496 : vector<8x128xf32>
    %540 = arith.mulf %534, %538 : vector<8x128xf32>
    %541 = arith.addf %539, %540 : vector<8x128xf32>
    %542 = math.tanh %541 : vector<8x128xf32>
    %543 = arith.mulf %536, %542 : vector<8x128xf32>
    %c15_i32_136 = arith.constant 15 : i32
    %544 = arith.subi %c15_i32_136, %c11_i32 : i32
    %545 = arith.index_cast %544 : i32 to index
    %c0_137 = arith.constant 0 : index
    %c0_138 = arith.constant 0 : index
    %546 = vector.load %arg11[%545, %c0_137, %c0_138] : memref<16x8x512xf32, #tpu.memory_space<vmem>>, vector<1x8x512xf32>
    %547 = vector.shape_cast %546 : vector<1x8x512xf32> to vector<8x512xf32>
    %548 = arith.truncf %521 : vector<8x128xf32> to vector<8x128xbf16>
    %cst_139 = arith.constant dense<0.000000e+00> : vector<8x512xf32>
    %549 = tpu.matmul %548, %22, %cst_139 {dimension_numbers = #tpu.dot_dimension_numbers<[1], [0], [0], [1], [0, 0, 1, 1], [], []>} : vector<8x128xbf16>, vector<128x512xbf16>, vector<8x512xf32> -> vector<8x512xf32>
    %550 = arith.addf %547, %549 : vector<8x512xf32>
    %551 = vector.extract_strided_slice %550 {offsets = [0, 0], sizes = [8, 384], strides = [1, 1]} : vector<8x512xf32> to vector<8x384xf32>
    %552 = arith.negf %551 : vector<8x384xf32>
    %553 = math.exp %552 : vector<8x384xf32>
    %cst_140 = arith.constant 1.000000e+00 : f32
    %554 = vector.broadcast %cst_140 : f32 to vector<8x384xf32>
    %555 = arith.addf %554, %553 : vector<8x384xf32>
    %556 = arith.divf %554, %555 : vector<8x384xf32>
    %557 = vector.extract_strided_slice %556 {offsets = [0, 0], sizes = [8, 128], strides = [1, 1]} : vector<8x384xf32> to vector<8x128xf32>
    %558 = vector.extract_strided_slice %556 {offsets = [0, 128], sizes = [8, 128], strides = [1, 1]} : vector<8x384xf32> to vector<8x128xf32>
    %559 = vector.extract_strided_slice %556 {offsets = [0, 256], sizes = [8, 128], strides = [1, 1]} : vector<8x384xf32> to vector<8x128xf32>
    %560 = vector.extract_strided_slice %550 {offsets = [0, 384], sizes = [8, 128], strides = [1, 1]} : vector<8x512xf32> to vector<8x128xf32>
    %561 = math.tanh %560 : vector<8x128xf32>
    %562 = arith.mulf %558, %519 : vector<8x128xf32>
    %563 = arith.mulf %557, %561 : vector<8x128xf32>
    %564 = arith.addf %562, %563 : vector<8x128xf32>
    %565 = math.tanh %564 : vector<8x128xf32>
    %566 = arith.mulf %559, %565 : vector<8x128xf32>
    %c12_i32 = arith.constant 12 : i32
    %567 = arith.index_cast %c12_i32 : i32 to index
    %c0_141 = arith.constant 0 : index
    %c0_142 = arith.constant 0 : index
    %568 = vector.load %arg10[%567, %c0_141, %c0_142] : memref<16x8x512xf32, #tpu.memory_space<vmem>>, vector<1x8x512xf32>
    %569 = vector.shape_cast %568 : vector<1x8x512xf32> to vector<8x512xf32>
    %570 = arith.truncf %543 : vector<8x128xf32> to vector<8x128xbf16>
    %cst_143 = arith.constant dense<0.000000e+00> : vector<8x512xf32>
    %571 = tpu.matmul %570, %21, %cst_143 {dimension_numbers = #tpu.dot_dimension_numbers<[1], [0], [0], [1], [0, 0, 1, 1], [], []>} : vector<8x128xbf16>, vector<128x512xbf16>, vector<8x512xf32> -> vector<8x512xf32>
    %572 = arith.addf %569, %571 : vector<8x512xf32>
    %573 = vector.extract_strided_slice %572 {offsets = [0, 0], sizes = [8, 384], strides = [1, 1]} : vector<8x512xf32> to vector<8x384xf32>
    %574 = arith.negf %573 : vector<8x384xf32>
    %575 = math.exp %574 : vector<8x384xf32>
    %cst_144 = arith.constant 1.000000e+00 : f32
    %576 = vector.broadcast %cst_144 : f32 to vector<8x384xf32>
    %577 = arith.addf %576, %575 : vector<8x384xf32>
    %578 = arith.divf %576, %577 : vector<8x384xf32>
    %579 = vector.extract_strided_slice %578 {offsets = [0, 0], sizes = [8, 128], strides = [1, 1]} : vector<8x384xf32> to vector<8x128xf32>
    %580 = vector.extract_strided_slice %578 {offsets = [0, 128], sizes = [8, 128], strides = [1, 1]} : vector<8x384xf32> to vector<8x128xf32>
    %581 = vector.extract_strided_slice %578 {offsets = [0, 256], sizes = [8, 128], strides = [1, 1]} : vector<8x384xf32> to vector<8x128xf32>
    %582 = vector.extract_strided_slice %572 {offsets = [0, 384], sizes = [8, 128], strides = [1, 1]} : vector<8x512xf32> to vector<8x128xf32>
    %583 = math.tanh %582 : vector<8x128xf32>
    %584 = arith.mulf %580, %541 : vector<8x128xf32>
    %585 = arith.mulf %579, %583 : vector<8x128xf32>
    %586 = arith.addf %584, %585 : vector<8x128xf32>
    %587 = math.tanh %586 : vector<8x128xf32>
    %588 = arith.mulf %581, %587 : vector<8x128xf32>
    %c15_i32_145 = arith.constant 15 : i32
    %589 = arith.subi %c15_i32_145, %c12_i32 : i32
    %590 = arith.index_cast %589 : i32 to index
    %c0_146 = arith.constant 0 : index
    %c0_147 = arith.constant 0 : index
    %591 = vector.load %arg11[%590, %c0_146, %c0_147] : memref<16x8x512xf32, #tpu.memory_space<vmem>>, vector<1x8x512xf32>
    %592 = vector.shape_cast %591 : vector<1x8x512xf32> to vector<8x512xf32>
    %593 = arith.truncf %566 : vector<8x128xf32> to vector<8x128xbf16>
    %cst_148 = arith.constant dense<0.000000e+00> : vector<8x512xf32>
    %594 = tpu.matmul %593, %22, %cst_148 {dimension_numbers = #tpu.dot_dimension_numbers<[1], [0], [0], [1], [0, 0, 1, 1], [], []>} : vector<8x128xbf16>, vector<128x512xbf16>, vector<8x512xf32> -> vector<8x512xf32>
    %595 = arith.addf %592, %594 : vector<8x512xf32>
    %596 = vector.extract_strided_slice %595 {offsets = [0, 0], sizes = [8, 384], strides = [1, 1]} : vector<8x512xf32> to vector<8x384xf32>
    %597 = arith.negf %596 : vector<8x384xf32>
    %598 = math.exp %597 : vector<8x384xf32>
    %cst_149 = arith.constant 1.000000e+00 : f32
    %599 = vector.broadcast %cst_149 : f32 to vector<8x384xf32>
    %600 = arith.addf %599, %598 : vector<8x384xf32>
    %601 = arith.divf %599, %600 : vector<8x384xf32>
    %602 = vector.extract_strided_slice %601 {offsets = [0, 0], sizes = [8, 128], strides = [1, 1]} : vector<8x384xf32> to vector<8x128xf32>
    %603 = vector.extract_strided_slice %601 {offsets = [0, 128], sizes = [8, 128], strides = [1, 1]} : vector<8x384xf32> to vector<8x128xf32>
    %604 = vector.extract_strided_slice %601 {offsets = [0, 256], sizes = [8, 128], strides = [1, 1]} : vector<8x384xf32> to vector<8x128xf32>
    %605 = vector.extract_strided_slice %595 {offsets = [0, 384], sizes = [8, 128], strides = [1, 1]} : vector<8x512xf32> to vector<8x128xf32>
    %606 = math.tanh %605 : vector<8x128xf32>
    %607 = arith.mulf %603, %564 : vector<8x128xf32>
    %608 = arith.mulf %602, %606 : vector<8x128xf32>
    %609 = arith.addf %607, %608 : vector<8x128xf32>
    %610 = math.tanh %609 : vector<8x128xf32>
    %611 = arith.mulf %604, %610 : vector<8x128xf32>
    %c13_i32 = arith.constant 13 : i32
    %612 = arith.index_cast %c13_i32 : i32 to index
    %c0_150 = arith.constant 0 : index
    %c0_151 = arith.constant 0 : index
    %613 = vector.load %arg10[%612, %c0_150, %c0_151] : memref<16x8x512xf32, #tpu.memory_space<vmem>>, vector<1x8x512xf32>
    %614 = vector.shape_cast %613 : vector<1x8x512xf32> to vector<8x512xf32>
    %615 = arith.truncf %588 : vector<8x128xf32> to vector<8x128xbf16>
    %cst_152 = arith.constant dense<0.000000e+00> : vector<8x512xf32>
    %616 = tpu.matmul %615, %21, %cst_152 {dimension_numbers = #tpu.dot_dimension_numbers<[1], [0], [0], [1], [0, 0, 1, 1], [], []>} : vector<8x128xbf16>, vector<128x512xbf16>, vector<8x512xf32> -> vector<8x512xf32>
    %617 = arith.addf %614, %616 : vector<8x512xf32>
    %618 = vector.extract_strided_slice %617 {offsets = [0, 0], sizes = [8, 384], strides = [1, 1]} : vector<8x512xf32> to vector<8x384xf32>
    %619 = arith.negf %618 : vector<8x384xf32>
    %620 = math.exp %619 : vector<8x384xf32>
    %cst_153 = arith.constant 1.000000e+00 : f32
    %621 = vector.broadcast %cst_153 : f32 to vector<8x384xf32>
    %622 = arith.addf %621, %620 : vector<8x384xf32>
    %623 = arith.divf %621, %622 : vector<8x384xf32>
    %624 = vector.extract_strided_slice %623 {offsets = [0, 0], sizes = [8, 128], strides = [1, 1]} : vector<8x384xf32> to vector<8x128xf32>
    %625 = vector.extract_strided_slice %623 {offsets = [0, 128], sizes = [8, 128], strides = [1, 1]} : vector<8x384xf32> to vector<8x128xf32>
    %626 = vector.extract_strided_slice %623 {offsets = [0, 256], sizes = [8, 128], strides = [1, 1]} : vector<8x384xf32> to vector<8x128xf32>
    %627 = vector.extract_strided_slice %617 {offsets = [0, 384], sizes = [8, 128], strides = [1, 1]} : vector<8x512xf32> to vector<8x128xf32>
    %628 = math.tanh %627 : vector<8x128xf32>
    %629 = arith.mulf %625, %586 : vector<8x128xf32>
    %630 = arith.mulf %624, %628 : vector<8x128xf32>
    %631 = arith.addf %629, %630 : vector<8x128xf32>
    %632 = math.tanh %631 : vector<8x128xf32>
    %633 = arith.mulf %626, %632 : vector<8x128xf32>
    %c15_i32_154 = arith.constant 15 : i32
    %634 = arith.subi %c15_i32_154, %c13_i32 : i32
    %635 = arith.index_cast %634 : i32 to index
    %c0_155 = arith.constant 0 : index
    %c0_156 = arith.constant 0 : index
    %636 = vector.load %arg11[%635, %c0_155, %c0_156] : memref<16x8x512xf32, #tpu.memory_space<vmem>>, vector<1x8x512xf32>
    %637 = vector.shape_cast %636 : vector<1x8x512xf32> to vector<8x512xf32>
    %638 = arith.truncf %611 : vector<8x128xf32> to vector<8x128xbf16>
    %cst_157 = arith.constant dense<0.000000e+00> : vector<8x512xf32>
    %639 = tpu.matmul %638, %22, %cst_157 {dimension_numbers = #tpu.dot_dimension_numbers<[1], [0], [0], [1], [0, 0, 1, 1], [], []>} : vector<8x128xbf16>, vector<128x512xbf16>, vector<8x512xf32> -> vector<8x512xf32>
    %640 = arith.addf %637, %639 : vector<8x512xf32>
    %641 = vector.extract_strided_slice %640 {offsets = [0, 0], sizes = [8, 384], strides = [1, 1]} : vector<8x512xf32> to vector<8x384xf32>
    %642 = arith.negf %641 : vector<8x384xf32>
    %643 = math.exp %642 : vector<8x384xf32>
    %cst_158 = arith.constant 1.000000e+00 : f32
    %644 = vector.broadcast %cst_158 : f32 to vector<8x384xf32>
    %645 = arith.addf %644, %643 : vector<8x384xf32>
    %646 = arith.divf %644, %645 : vector<8x384xf32>
    %647 = vector.extract_strided_slice %646 {offsets = [0, 0], sizes = [8, 128], strides = [1, 1]} : vector<8x384xf32> to vector<8x128xf32>
    %648 = vector.extract_strided_slice %646 {offsets = [0, 128], sizes = [8, 128], strides = [1, 1]} : vector<8x384xf32> to vector<8x128xf32>
    %649 = vector.extract_strided_slice %646 {offsets = [0, 256], sizes = [8, 128], strides = [1, 1]} : vector<8x384xf32> to vector<8x128xf32>
    %650 = vector.extract_strided_slice %640 {offsets = [0, 384], sizes = [8, 128], strides = [1, 1]} : vector<8x512xf32> to vector<8x128xf32>
    %651 = math.tanh %650 : vector<8x128xf32>
    %652 = arith.mulf %648, %609 : vector<8x128xf32>
    %653 = arith.mulf %647, %651 : vector<8x128xf32>
    %654 = arith.addf %652, %653 : vector<8x128xf32>
    %655 = math.tanh %654 : vector<8x128xf32>
    %656 = arith.mulf %649, %655 : vector<8x128xf32>
    %c14_i32 = arith.constant 14 : i32
    %657 = arith.index_cast %c14_i32 : i32 to index
    %c0_159 = arith.constant 0 : index
    %c0_160 = arith.constant 0 : index
    %658 = vector.load %arg10[%657, %c0_159, %c0_160] : memref<16x8x512xf32, #tpu.memory_space<vmem>>, vector<1x8x512xf32>
    %659 = vector.shape_cast %658 : vector<1x8x512xf32> to vector<8x512xf32>
    %660 = arith.truncf %633 : vector<8x128xf32> to vector<8x128xbf16>
    %cst_161 = arith.constant dense<0.000000e+00> : vector<8x512xf32>
    %661 = tpu.matmul %660, %21, %cst_161 {dimension_numbers = #tpu.dot_dimension_numbers<[1], [0], [0], [1], [0, 0, 1, 1], [], []>} : vector<8x128xbf16>, vector<128x512xbf16>, vector<8x512xf32> -> vector<8x512xf32>
    %662 = arith.addf %659, %661 : vector<8x512xf32>
    %663 = vector.extract_strided_slice %662 {offsets = [0, 0], sizes = [8, 384], strides = [1, 1]} : vector<8x512xf32> to vector<8x384xf32>
    %664 = arith.negf %663 : vector<8x384xf32>
    %665 = math.exp %664 : vector<8x384xf32>
    %cst_162 = arith.constant 1.000000e+00 : f32
    %666 = vector.broadcast %cst_162 : f32 to vector<8x384xf32>
    %667 = arith.addf %666, %665 : vector<8x384xf32>
    %668 = arith.divf %666, %667 : vector<8x384xf32>
    %669 = vector.extract_strided_slice %668 {offsets = [0, 0], sizes = [8, 128], strides = [1, 1]} : vector<8x384xf32> to vector<8x128xf32>
    %670 = vector.extract_strided_slice %668 {offsets = [0, 128], sizes = [8, 128], strides = [1, 1]} : vector<8x384xf32> to vector<8x128xf32>
    %671 = vector.extract_strided_slice %668 {offsets = [0, 256], sizes = [8, 128], strides = [1, 1]} : vector<8x384xf32> to vector<8x128xf32>
    %672 = vector.extract_strided_slice %662 {offsets = [0, 384], sizes = [8, 128], strides = [1, 1]} : vector<8x512xf32> to vector<8x128xf32>
    %673 = math.tanh %672 : vector<8x128xf32>
    %674 = arith.mulf %670, %631 : vector<8x128xf32>
    %675 = arith.mulf %669, %673 : vector<8x128xf32>
    %676 = arith.addf %674, %675 : vector<8x128xf32>
    %677 = math.tanh %676 : vector<8x128xf32>
    %678 = arith.mulf %671, %677 : vector<8x128xf32>
    %c15_i32_163 = arith.constant 15 : i32
    %679 = arith.subi %c15_i32_163, %c14_i32 : i32
    %680 = arith.index_cast %679 : i32 to index
    %c0_164 = arith.constant 0 : index
    %c0_165 = arith.constant 0 : index
    %681 = vector.load %arg11[%680, %c0_164, %c0_165] : memref<16x8x512xf32, #tpu.memory_space<vmem>>, vector<1x8x512xf32>
    %682 = vector.shape_cast %681 : vector<1x8x512xf32> to vector<8x512xf32>
    %683 = arith.truncf %656 : vector<8x128xf32> to vector<8x128xbf16>
    %cst_166 = arith.constant dense<0.000000e+00> : vector<8x512xf32>
    %684 = tpu.matmul %683, %22, %cst_166 {dimension_numbers = #tpu.dot_dimension_numbers<[1], [0], [0], [1], [0, 0, 1, 1], [], []>} : vector<8x128xbf16>, vector<128x512xbf16>, vector<8x512xf32> -> vector<8x512xf32>
    %685 = arith.addf %682, %684 : vector<8x512xf32>
    %686 = vector.extract_strided_slice %685 {offsets = [0, 0], sizes = [8, 384], strides = [1, 1]} : vector<8x512xf32> to vector<8x384xf32>
    %687 = arith.negf %686 : vector<8x384xf32>
    %688 = math.exp %687 : vector<8x384xf32>
    %cst_167 = arith.constant 1.000000e+00 : f32
    %689 = vector.broadcast %cst_167 : f32 to vector<8x384xf32>
    %690 = arith.addf %689, %688 : vector<8x384xf32>
    %691 = arith.divf %689, %690 : vector<8x384xf32>
    %692 = vector.extract_strided_slice %691 {offsets = [0, 0], sizes = [8, 128], strides = [1, 1]} : vector<8x384xf32> to vector<8x128xf32>
    %693 = vector.extract_strided_slice %691 {offsets = [0, 128], sizes = [8, 128], strides = [1, 1]} : vector<8x384xf32> to vector<8x128xf32>
    %694 = vector.extract_strided_slice %691 {offsets = [0, 256], sizes = [8, 128], strides = [1, 1]} : vector<8x384xf32> to vector<8x128xf32>
    %695 = vector.extract_strided_slice %685 {offsets = [0, 384], sizes = [8, 128], strides = [1, 1]} : vector<8x512xf32> to vector<8x128xf32>
    %696 = math.tanh %695 : vector<8x128xf32>
    %697 = arith.mulf %693, %654 : vector<8x128xf32>
    %698 = arith.mulf %692, %696 : vector<8x128xf32>
    %699 = arith.addf %697, %698 : vector<8x128xf32>
    %700 = math.tanh %699 : vector<8x128xf32>
    %701 = arith.mulf %694, %700 : vector<8x128xf32>
    %c15_i32_168 = arith.constant 15 : i32
    %702 = arith.index_cast %c15_i32_168 : i32 to index
    %c0_169 = arith.constant 0 : index
    %c0_170 = arith.constant 0 : index
    %703 = vector.load %arg10[%702, %c0_169, %c0_170] : memref<16x8x512xf32, #tpu.memory_space<vmem>>, vector<1x8x512xf32>
    %704 = vector.shape_cast %703 : vector<1x8x512xf32> to vector<8x512xf32>
    %705 = arith.truncf %678 : vector<8x128xf32> to vector<8x128xbf16>
    %cst_171 = arith.constant dense<0.000000e+00> : vector<8x512xf32>
    %706 = tpu.matmul %705, %21, %cst_171 {dimension_numbers = #tpu.dot_dimension_numbers<[1], [0], [0], [1], [0, 0, 1, 1], [], []>} : vector<8x128xbf16>, vector<128x512xbf16>, vector<8x512xf32> -> vector<8x512xf32>
    %707 = arith.addf %704, %706 : vector<8x512xf32>
    %708 = vector.extract_strided_slice %707 {offsets = [0, 0], sizes = [8, 384], strides = [1, 1]} : vector<8x512xf32> to vector<8x384xf32>
    %709 = arith.negf %708 : vector<8x384xf32>
    %710 = math.exp %709 : vector<8x384xf32>
    %cst_172 = arith.constant 1.000000e+00 : f32
    %711 = vector.broadcast %cst_172 : f32 to vector<8x384xf32>
    %712 = arith.addf %711, %710 : vector<8x384xf32>
    %713 = arith.divf %711, %712 : vector<8x384xf32>
    %714 = vector.extract_strided_slice %713 {offsets = [0, 0], sizes = [8, 128], strides = [1, 1]} : vector<8x384xf32> to vector<8x128xf32>
    %715 = vector.extract_strided_slice %713 {offsets = [0, 128], sizes = [8, 128], strides = [1, 1]} : vector<8x384xf32> to vector<8x128xf32>
    %716 = vector.extract_strided_slice %713 {offsets = [0, 256], sizes = [8, 128], strides = [1, 1]} : vector<8x384xf32> to vector<8x128xf32>
    %717 = vector.extract_strided_slice %707 {offsets = [0, 384], sizes = [8, 128], strides = [1, 1]} : vector<8x512xf32> to vector<8x128xf32>
    %718 = math.tanh %717 : vector<8x128xf32>
    %719 = arith.mulf %715, %676 : vector<8x128xf32>
    %720 = arith.mulf %714, %718 : vector<8x128xf32>
    %721 = arith.addf %719, %720 : vector<8x128xf32>
    %722 = math.tanh %721 : vector<8x128xf32>
    %723 = arith.mulf %716, %722 : vector<8x128xf32>
    %c15_i32_173 = arith.constant 15 : i32
    %724 = arith.subi %c15_i32_173, %c15_i32_168 : i32
    %725 = arith.index_cast %724 : i32 to index
    %c0_174 = arith.constant 0 : index
    %c0_175 = arith.constant 0 : index
    %726 = vector.load %arg11[%725, %c0_174, %c0_175] : memref<16x8x512xf32, #tpu.memory_space<vmem>>, vector<1x8x512xf32>
    %727 = vector.shape_cast %726 : vector<1x8x512xf32> to vector<8x512xf32>
    %728 = arith.truncf %701 : vector<8x128xf32> to vector<8x128xbf16>
    %cst_176 = arith.constant dense<0.000000e+00> : vector<8x512xf32>
    %729 = tpu.matmul %728, %22, %cst_176 {dimension_numbers = #tpu.dot_dimension_numbers<[1], [0], [0], [1], [0, 0, 1, 1], [], []>} : vector<8x128xbf16>, vector<128x512xbf16>, vector<8x512xf32> -> vector<8x512xf32>
    %730 = arith.addf %727, %729 : vector<8x512xf32>
    %731 = vector.extract_strided_slice %730 {offsets = [0, 0], sizes = [8, 384], strides = [1, 1]} : vector<8x512xf32> to vector<8x384xf32>
    %732 = arith.negf %731 : vector<8x384xf32>
    %733 = math.exp %732 : vector<8x384xf32>
    %cst_177 = arith.constant 1.000000e+00 : f32
    %734 = vector.broadcast %cst_177 : f32 to vector<8x384xf32>
    %735 = arith.addf %734, %733 : vector<8x384xf32>
    %736 = arith.divf %734, %735 : vector<8x384xf32>
    %737 = vector.extract_strided_slice %736 {offsets = [0, 0], sizes = [8, 128], strides = [1, 1]} : vector<8x384xf32> to vector<8x128xf32>
    %738 = vector.extract_strided_slice %736 {offsets = [0, 128], sizes = [8, 128], strides = [1, 1]} : vector<8x384xf32> to vector<8x128xf32>
    %739 = vector.extract_strided_slice %736 {offsets = [0, 256], sizes = [8, 128], strides = [1, 1]} : vector<8x384xf32> to vector<8x128xf32>
    %740 = vector.extract_strided_slice %730 {offsets = [0, 384], sizes = [8, 128], strides = [1, 1]} : vector<8x512xf32> to vector<8x128xf32>
    %741 = math.tanh %740 : vector<8x128xf32>
    %742 = arith.mulf %738, %699 : vector<8x128xf32>
    %743 = arith.mulf %737, %741 : vector<8x128xf32>
    %744 = arith.addf %742, %743 : vector<8x128xf32>
    %745 = math.tanh %744 : vector<8x128xf32>
    %746 = arith.mulf %739, %745 : vector<8x128xf32>
    %c16_i32 = arith.constant 16 : i32
    %c0_178 = arith.constant 0 : index
    %c0_179 = arith.constant 0 : index
    %747 = vector.load %arg12[%c0_178, %c0_179] : memref<8x128xf32, #tpu.memory_space<vmem>>, vector<8x128xf32>
    tpu.vector_store %arg12[%c0_178, %c0_179], %723 {strides = array<i32>} : memref<8x128xf32, #tpu.memory_space<vmem>>, vector<8x128xf32>,
    %c0_180 = arith.constant 0 : index
    %c0_181 = arith.constant 0 : index
    %748 = vector.load %arg13[%c0_180, %c0_181] : memref<8x128xf32, #tpu.memory_space<vmem>>, vector<8x128xf32>
    tpu.vector_store %arg13[%c0_180, %c0_181], %721 {strides = array<i32>} : memref<8x128xf32, #tpu.memory_space<vmem>>, vector<8x128xf32>,
    %c0_182 = arith.constant 0 : index
    %c0_183 = arith.constant 0 : index
    %749 = vector.load %arg14[%c0_182, %c0_183] : memref<8x128xf32, #tpu.memory_space<vmem>>, vector<8x128xf32>
    tpu.vector_store %arg14[%c0_182, %c0_183], %746 {strides = array<i32>} : memref<8x128xf32, #tpu.memory_space<vmem>>, vector<8x128xf32>,
    %c0_184 = arith.constant 0 : index
    %c0_185 = arith.constant 0 : index
    %750 = vector.load %arg15[%c0_184, %c0_185] : memref<8x128xf32, #tpu.memory_space<vmem>>, vector<8x128xf32>
    tpu.vector_store %arg15[%c0_184, %c0_185], %744 {strides = array<i32>} : memref<8x128xf32, #tpu.memory_space<vmem>>, vector<8x128xf32>,
    %c0_i32_186 = arith.constant 0 : i32
    %751 = arith.cmpi eq, %arg0, %c0_i32_186 : i32
    %752 = arith.extui %751 : i1 to i32
    %c0_i32_187 = arith.constant 0 : i32
    %753 = arith.cmpi ne, %752, %c0_i32_187 : i32
    scf.if %753 {
      %c0_188 = arith.constant 0 : index
      %c0_189 = arith.constant 0 : index
      %754 = vector.load %arg9[%c0_188, %c0_189] : memref<8x256xf32, #tpu.memory_space<vmem>>, vector<8x128xf32>
      tpu.vector_store %arg9[%c0_188, %c0_189], %723 {strides = array<i32>} : memref<8x256xf32, #tpu.memory_space<vmem>>, vector<8x128xf32>,
      %c0_190 = arith.constant 0 : index
      %c128 = arith.constant 128 : index
      %755 = vector.load %arg9[%c0_190, %c128] : memref<8x256xf32, #tpu.memory_space<vmem>>, vector<8x128xf32>
      tpu.vector_store %arg9[%c0_190, %c128], %746 {strides = array<i32>} : memref<8x256xf32, #tpu.memory_space<vmem>>, vector<8x128xf32>,
    } else {
    }
    return
  }
  func.func @transform_0(%arg0: i32) -> (i32, i32, i32) {
    %c0_i32 = arith.constant 0 : i32
    %c0_i32_0 = arith.constant 0 : i32
    %c0_i32_1 = arith.constant 0 : i32
    return %arg0, %c0_i32, %c0_i32_0 : i32, i32, i32
  }
  func.func @transform_1(%arg0: i32) -> (i32, i32, i32) {
    %c0_i32 = arith.constant 0 : i32
    %0 = arith.subi %c0_i32, %arg0 : i32
    %c0_i32_0 = arith.constant 0 : i32
    %c0_i32_1 = arith.constant 0 : i32
    %c0_i32_2 = arith.constant 0 : i32
    return %0, %c0_i32_0, %c0_i32_1 : i32, i32, i32
  }
  func.func @transform_2(%arg0: i32) -> (i32, i32) {
    %c0_i32 = arith.constant 0 : i32
    %c0_i32_0 = arith.constant 0 : i32
    %c0_i32_1 = arith.constant 0 : i32
    return %c0_i32, %c0_i32_0 : i32, i32
  }
  func.func @transform_3(%arg0: i32) -> (i32, i32) {
    %c0_i32 = arith.constant 0 : i32
    %c0_i32_0 = arith.constant 0 : i32
    %c0_i32_1 = arith.constant 0 : i32
    return %c0_i32, %c0_i32_0 : i32, i32
  }
  func.func @transform_4(%arg0: i32) -> (i32, i32) {
    %c0_i32 = arith.constant 0 : i32
    %c0_i32_0 = arith.constant 0 : i32
    %c0_i32_1 = arith.constant 0 : i32
    return %c0_i32, %c0_i32_0 : i32, i32
  }
  func.func @transform_5(%arg0: i32) -> (i32, i32) {
    %c0_i32 = arith.constant 0 : i32
    %c0_i32_0 = arith.constant 0 : i32
    %c0_i32_1 = arith.constant 0 : i32
    return %c0_i32, %c0_i32_0 : i32, i32
  }
  func.func @transform_6(%arg0: i32) -> (i32, i32) {
    %c0_i32 = arith.constant 0 : i32
    %c0_i32_0 = arith.constant 0 : i32
    %c0_i32_1 = arith.constant 0 : i32
    return %c0_i32, %c0_i32_0 : i32, i32
  }
  func.func @transform_7(%arg0: i32) -> (i32, i32) {
    %c0_i32 = arith.constant 0 : i32
    %c0_i32_0 = arith.constant 0 : i32
    %c0_i32_1 = arith.constant 0 : i32
    return %c0_i32, %c0_i32_0 : i32, i32
  }
  func.func @transform_8(%arg0: i32) -> (i32, i32) {
    %c0_i32 = arith.constant 0 : i32
    %c0_i32_0 = arith.constant 0 : i32
    %c0_i32_1 = arith.constant 0 : i32
    return %c0_i32, %c0_i32_0 : i32, i32
  }
}

</mosaic_0001>

<llo_original>
// kernel: tpu_custom_call.1
$region0: #{tpu_custom_call.1}
  #allocation0 [shape = 'u32[]', space=smem, size = 0x4, offset = 0x4, fixed_abs, tag = 'smem constant byte address 0x4 - core index']
  #allocation1 [shape = 'u32[144,128]{1,0:T(1,128)}', space=vmem, size = 0x12000, scoped, tag = 'internal scratch']
  #allocation2 [shape = 'f32[16,8,512]{2,1,0:T(8,128)}', space=vmem, size = 0x40000, scoped, tag = 'scratch operand']
  #allocation3 [shape = 'f32[16,8,512]{2,1,0:T(8,128)}', space=vmem, size = 0x40000, scoped, tag = 'scratch operand']
  #allocation4 [shape = 'f32[8,128]{1,0:T(8,128)}', space=vmem, size = 0x1000, scoped, tag = 'scratch operand']
  #allocation5 [shape = 'f32[8,128]{1,0:T(8,128)}', space=vmem, size = 0x1000, scoped, tag = 'scratch operand']
  #allocation6 [shape = 'f32[8,128]{1,0:T(8,128)}', space=vmem, size = 0x1000, scoped, tag = 'scratch operand']
  #allocation7 [shape = 'f32[8,128]{1,0:T(8,128)}', space=vmem, size = 0x1000, scoped, tag = 'scratch operand']
  %s0 = inlined_call_operand.hbm [shape: bf16[16,8,128], index: 0, kind: input, shape index: {}]
  %s1 = inlined_call_operand.hbm [shape: bf16[16,8,128], index: 1, kind: input, shape index: {}]
  %s2 = inlined_call_operand.hbm [shape: bf16[128,512], index: 2, kind: input, shape index: {}]
  %s3 = inlined_call_operand.hbm [shape: bf16[128,512], index: 3, kind: input, shape index: {}]
  %s4 = inlined_call_operand.vmem [shape: f32[1,512], index: 4, kind: input, shape index: {}]
  %s5 = inlined_call_operand.hbm [shape: bf16[128,512], index: 5, kind: input, shape index: {}]
  %s6 = inlined_call_operand.hbm [shape: bf16[128,512], index: 6, kind: input, shape index: {}]
  %s7 = inlined_call_operand.vmem [shape: f32[1,512], index: 7, kind: input, shape index: {}]
  %s8 = inlined_call_operand.hbm [shape: f32[8,256], index: 8, kind: output, shape index: {}]
  %s9 = sld [smem:[#allocation0]]
  $region74: #{tpu_custom_call.1} parent=0
    _
  %s11 = ssub.s32 1, %s9
  %s12 = scalar_select 0, %s11, %s9
  $region1: #{tpu_custom_call.1} parent=0
    #allocation8 [shape = 'u8[32768]{0}', space=vmem, size = 0x8000, scoped, tag = 'input window, operand 0, single buffered']
    #allocation9 [shape = 's32[1]{0}', space=sflag, size = 0x4, scoped, tag = 'scoped memory for tpu_custom_call.1']
    #allocation10 [shape = 's32[1]{0}', space=sflag, size = 0x4, scoped, tag = 'scoped memory for tpu_custom_call.1']
    #allocation11 [shape = 'u8[32768]{0}', space=vmem, size = 0x8000, scoped, tag = 'input window, operand 1, single buffered']
    #allocation12 [shape = 's32[1]{0}', space=sflag, size = 0x4, scoped, tag = 'scoped memory for tpu_custom_call.1']
    #allocation13 [shape = 'u8[131072]{0}', space=vmem, size = 0x20000, scoped, tag = 'input window, operand 2, single buffered']
    #allocation14 [shape = 'u8[131072]{0}', space=vmem, size = 0x20000, scoped, tag = 'input window, operand 3, single buffered']
    #allocation15 [shape = 's32[1]{0}', space=sflag, size = 0x4, scoped, tag = 'scoped memory for tpu_custom_call.1']
    #allocation16 [shape = 'u8[131072]{0}', space=vmem, size = 0x20000, scoped, tag = 'input window, operand 5, single buffered']
    #allocation17 [shape = 'u8[131072]{0}', space=vmem, size = 0x20000, scoped, tag = 'input window, operand 6, single buffered']
    #allocation18 [shape = 's32[1]{0}', space=sflag, size = 0x4, scoped, tag = 'scoped memory for tpu_custom_call.1']
    #allocation19 [shape = 'u8[8192]{0}', space=vmem, size = 0x2000, scoped, tag = 'output window, operand 0, single buffered']
    %13 = vsyncpa [#allocation9], 0
    %14 = vsyncpa [#allocation12], 0
    %15 = vsyncpa [#allocation15], 0
    %16 = vsyncpa [#allocation18], 0
    %17 = vsyncpa [#allocation10], 0
    // Predicated region
    $region2: #{tpu_custom_call.1} parent=1 // pred_check
      _
    $region3: #{tpu_custom_call.1} parent=1 // pred_check_branch
      %19 = sbr.rel (0) target = $region5
    $region4: #{tpu_custom_call.1} parent=1 // pred_region
      %s21 = ssub.s32 1024, 1024
      %22 = vsyncadd [#allocation9], %s21
      %s23 = sshll.u32 [#allocation8], 4
      %s24 = int_to_ptr.vmem [resolvable:$true] %s23
      %29 = dma.hbm_to_vmem [thread:$0]  %s0, 1024, %s24, [#allocation9], 64, 64, 4
    $region5: #{tpu_custom_call.1} parent=1 // pred_fallthru
      _
    // Predicated region
    $region6: #{tpu_custom_call.1} parent=1 // pred_check
      _
    $region7: #{tpu_custom_call.1} parent=1 // pred_check_branch
      %31 = sbr.rel (0) target = $region9
    $region8: #{tpu_custom_call.1} parent=1 // pred_region
      %s32 = ssub.s32 0, 0
      %s33 = smul.u32 16, %s32
      %s35 = ssub.s32 1024, 1024
      %36 = vsyncadd [#allocation12], %s35
      %s37 = smul.addr %s33, 64
      %s38 = scalar_lea.hbm %s1, %s37
      %s39 = sshll.u32 [#allocation11], 4
      %s40 = int_to_ptr.vmem [resolvable:$true] %s39
      %45 = dma.hbm_to_vmem [thread:$0]  %s38, 1024, %s40, [#allocation12], 64, 64, 4
    $region9: #{tpu_custom_call.1} parent=1 // pred_fallthru
      _
    // Predicated region
    $region10: #{tpu_custom_call.1} parent=1 // pred_check
      _
    $region11: #{tpu_custom_call.1} parent=1 // pred_check_branch
      %47 = sbr.rel (0) target = $region13
    $region12: #{tpu_custom_call.1} parent=1 // pred_region
      %s49 = ssub.s32 4096, 4096
      %50 = vsyncadd [#allocation12], %s49
      %s51 = sshll.u32 [#allocation13], 4
      %s52 = int_to_ptr.vmem [resolvable:$true] %s51
      %57 = dma.hbm_to_vmem [thread:$0]  %s2, 4096, %s52, [#allocation12], 256, 256, 16
    $region13: #{tpu_custom_call.1} parent=1 // pred_fallthru
      _
    // Predicated region
    $region14: #{tpu_custom_call.1} parent=1 // pred_check
      _
    $region15: #{tpu_custom_call.1} parent=1 // pred_check_branch
      %59 = sbr.rel (0) target = $region17
    $region16: #{tpu_custom_call.1} parent=1 // pred_region
      %s61 = ssub.s32 4096, 4096
      %62 = vsyncadd [#allocation15], %s61
      %s63 = sshll.u32 [#allocation14], 4
      %s64 = int_to_ptr.vmem [resolvable:$true] %s63
      %69 = dma.hbm_to_vmem [thread:$0]  %s3, 4096, %s64, [#allocation15], 256, 256, 16
    $region17: #{tpu_custom_call.1} parent=1 // pred_fallthru
      _
    // Predicated region
    $region18: #{tpu_custom_call.1} parent=1 // pred_check
      _
    $region19: #{tpu_custom_call.1} parent=1 // pred_check_branch
      %71 = sbr.rel (0) target = $region21
    $region20: #{tpu_custom_call.1} parent=1 // pred_region
      _
    $region21: #{tpu_custom_call.1} parent=1 // pred_fallthru
      _
    // Predicated region
    $region22: #{tpu_custom_call.1} parent=1 // pred_check
      _
    $region23: #{tpu_custom_call.1} parent=1 // pred_check_branch
      %73 = sbr.rel (0) target = $region25
    $region24: #{tpu_custom_call.1} parent=1 // pred_region
      %s75 = ssub.s32 4096, 4096
      %76 = vsyncadd [#allocation15], %s75
      %s77 = sshll.u32 [#allocation16], 4
      %s78 = int_to_ptr.vmem [resolvable:$true] %s77
      %83 = dma.hbm_to_vmem [thread:$0]  %s5, 4096, %s78, [#allocation15], 256, 256, 16
    $region25: #{tpu_custom_call.1} parent=1 // pred_fallthru
      _
    // Predicated region
    $region26: #{tpu_custom_call.1} parent=1 // pred_check
      _
    $region27: #{tpu_custom_call.1} parent=1 // pred_check_branch
      %85 = sbr.rel (0) target = $region29
    $region28: #{tpu_custom_call.1} parent=1 // pred_region
      %s87 = ssub.s32 4096, 4096
      %88 = vsyncadd [#allocation18], %s87
      %s89 = sshll.u32 [#allocation17], 4
      %s90 = int_to_ptr.vmem [resolvable:$true] %s89
      %95 = dma.hbm_to_vmem [thread:$0]  %s6, 4096, %s90, [#allocation18], 256, 256, 16
    $region29: #{tpu_custom_call.1} parent=1 // pred_fallthru
      _
    // Predicated region
    $region30: #{tpu_custom_call.1} parent=1 // pred_check
      _
    $region31: #{tpu_custom_call.1} parent=1 // pred_check_branch
      %97 = sbr.rel (0) target = $region33
    $region32: #{tpu_custom_call.1} parent=1 // pred_region
      _
    $region33: #{tpu_custom_call.1} parent=1 // pred_fallthru
      _
    // Predicated region
    $region34: #{tpu_custom_call.1} parent=1 // pred_check
      _
    $region35: #{tpu_custom_call.1} parent=1 // pred_check_branch
      %99 = sbr.rel (0) target = $region37
    $region36: #{tpu_custom_call.1} parent=1 // pred_region
      %100 = dma.done [#allocation9], 1024
    $region37: #{tpu_custom_call.1} parent=1 // pred_fallthru
      _
    // Predicated region
    $region38: #{tpu_custom_call.1} parent=1 // pred_check
      _
    $region39: #{tpu_custom_call.1} parent=1 // pred_check_branch
      %102 = sbr.rel (0) target = $region41
    $region40: #{tpu_custom_call.1} parent=1 // pred_region
      %103 = dma.done [#allocation12], 1024
    $region41: #{tpu_custom_call.1} parent=1 // pred_fallthru
      _
    // Predicated region
    $region42: #{tpu_custom_call.1} parent=1 // pred_check
      _
    $region43: #{tpu_custom_call.1} parent=1 // pred_check_branch
      %105 = sbr.rel (0) target = $region45
    $region44: #{tpu_custom_call.1} parent=1 // pred_region
      %106 = dma.done [#allocation12], 4096
    $region45: #{tpu_custom_call.1} parent=1 // pred_fallthru
      _
    // Predicated region
    $region46: #{tpu_custom_call.1} parent=1 // pred_check
      _
    $region47: #{tpu_custom_call.1} parent=1 // pred_check_branch
      %108 = sbr.rel (0) target = $region49
    $region48: #{tpu_custom_call.1} parent=1 // pred_region
      %109 = dma.done [#allocation15], 4096
    $region49: #{tpu_custom_call.1} parent=1 // pred_fallthru
      _
    // Predicated region
    $region50: #{tpu_custom_call.1} parent=1 // pred_check
      _
    $region51: #{tpu_custom_call.1} parent=1 // pred_check_branch
      %111 = sbr.rel (0) target = $region53
    $region52: #{tpu_custom_call.1} parent=1 // pred_region
      %112 = dma.done [#allocation15], 4096
    $region53: #{tpu_custom_call.1} parent=1 // pred_fallthru
      _
    // Predicated region
    $region54: #{tpu_custom_call.1} parent=1 // pred_check
      _
    $region55: #{tpu_custom_call.1} parent=1 // pred_check_branch
      %114 = sbr.rel (0) target = $region57
    $region56: #{tpu_custom_call.1} parent=1 // pred_region
      %115 = dma.done [#allocation18], 4096
    $region57: #{tpu_custom_call.1} parent=1 // pred_fallthru
      _
    %s116 = ssub.s32 0, 0
    %s117 = smul.u32 16, %s116
    %p119 = scmp.eq.s32.totalorder 0, 0
    // Predicated region
    $region58: #{tpu_custom_call.1} parent=1 // pred_check
      %p120 = pneg %p119
    $region59: #{tpu_custom_call.1} parent=1 // pred_check_branch
      %122 = sbr.rel (%p120) target = $region61
    $region60: #{tpu_custom_call.1} parent=1 // pred_region
      %123 = vst [vmem:[#allocation4] sm:$0xff] 0.0
      %124 = vst [vmem:[#allocation5] sm:$0xff] 0.0
      %125 = vst [vmem:[#allocation6] sm:$0xff] 0.0
      %126 = vst [vmem:[#allocation7] sm:$0xff] 0.0
    $region61: #{tpu_custom_call.1} parent=1 // pred_fallthru
      _
    %v127 = vld [vmem:[#allocation8] sm:$0xf]
    %v128 = vld [vmem:[#allocation8 + $0x4] sm:$0xf]
    %v129 = vld [vmem:[#allocation8 + $0x8] sm:$0xf]
    %v130 = vld [vmem:[#allocation8 + $0xc] sm:$0xf]
    %v131 = vld [vmem:[#allocation8 + $0x10] sm:$0xf]
    %v132 = vld [vmem:[#allocation8 + $0x14] sm:$0xf]
    %v133 = vld [vmem:[#allocation8 + $0x18] sm:$0xf]
    %v134 = vld [vmem:[#allocation8 + $0x1c] sm:$0xf]
    %v135 = vld [vmem:[#allocation8 + $0x20] sm:$0xf]
    %v136 = vld [vmem:[#allocation8 + $0x24] sm:$0xf]
    %v137 = vld [vmem:[#allocation8 + $0x28] sm:$0xf]
    %v138 = vld [vmem:[#allocation8 + $0x2c] sm:$0xf]
    %v139 = vld [vmem:[#allocation8 + $0x30] sm:$0xf]
    %v140 = vld [vmem:[#allocation8 + $0x34] sm:$0xf]
    %v141 = vld [vmem:[#allocation8 + $0x38] sm:$0xf]
    %v142 = vld [vmem:[#allocation8 + $0x3c] sm:$0xf]
    %v143 = vld [vmem:[#allocation11] sm:$0xf]
    %v144 = vld [vmem:[#allocation11 + $0x4] sm:$0xf]
    %v145 = vld [vmem:[#allocation11 + $0x8] sm:$0xf]
    %v146 = vld [vmem:[#allocation11 + $0xc] sm:$0xf]
    %v147 = vld [vmem:[#allocation11 + $0x10] sm:$0xf]
    %v148 = vld [vmem:[#allocation11 + $0x14] sm:$0xf]
    %v149 = vld [vmem:[#allocation11 + $0x18] sm:$0xf]
    %v150 = vld [vmem:[#allocation11 + $0x1c] sm:$0xf]
    %v151 = vld [vmem:[#allocation11 + $0x20] sm:$0xf]
    %v152 = vld [vmem:[#allocation11 + $0x24] sm:$0xf]
    %v153 = vld [vmem:[#allocation11 + $0x28] sm:$0xf]
    %v154 = vld [vmem:[#allocation11 + $0x2c] sm:$0xf]
    %v155 = vld [vmem:[#allocation11 + $0x30] sm:$0xf]
    %v156 = vld [vmem:[#allocation11 + $0x34] sm:$0xf]
    %v157 = vld [vmem:[#allocation11 + $0x38] sm:$0xf]
    %v158 = vld [vmem:[#allocation11 + $0x3c] sm:$0xf]
    %v159 = vld [vmem:[#allocation13] sm:$0xff]
    %v160 = vld [vmem:[#allocation13 + $0x8] sm:$0xff]
    %v161 = vld [vmem:[#allocation13 + $0x10] sm:$0xff]
    %v162 = vld [vmem:[#allocation13 + $0x18] sm:$0xff]
    %v163 = vld [vmem:[#allocation13 + $0x20] sm:$0xff]
    %v164 = vld [vmem:[#allocation13 + $0x28] sm:$0xff]
    %v165 = vld [vmem:[#allocation13 + $0x30] sm:$0xff]
    %v166 = vld [vmem:[#allocation13 + $0x38] sm:$0xff]
    %v167 = vld [vmem:[#allocation13 + $0x40] sm:$0xff]
    %v168 = vld [vmem:[#allocation13 + $0x48] sm:$0xff]
    %v169 = vld [vmem:[#allocation13 + $0x50] sm:$0xff]
    %v170 = vld [vmem:[#allocation13 + $0x58] sm:$0xff]
    %v171 = vld [vmem:[#allocation13 + $0x60] sm:$0xff]
    %v172 = vld [vmem:[#allocation13 + $0x68] sm:$0xff]
    %v173 = vld [vmem:[#allocation13 + $0x70] sm:$0xff]
    %v174 = vld [vmem:[#allocation13 + $0x78] sm:$0xff]
    %v175 = vld [vmem:[#allocation13 + $0x80] sm:$0xff]
    %v176 = vld [vmem:[#allocation13 + $0x88] sm:$0xff]
    %v177 = vld [vmem:[#allocation13 + $0x90] sm:$0xff]
    %v178 = vld [vmem:[#allocation13 + $0x98] sm:$0xff]
    %v179 = vld [vmem:[#allocation13 + $0xa0] sm:$0xff]
    %v180 = vld [vmem:[#allocation13 + $0xa8] sm:$0xff]
    %v181 = vld [vmem:[#allocation13 + $0xb0] sm:$0xff]
    %v182 = vld [vmem:[#allocation13 + $0xb8] sm:$0xff]
    %v183 = vld [vmem:[#allocation13 + $0xc0] sm:$0xff]
    %v184 = vld [vmem:[#allocation13 + $0xc8] sm:$0xff]
    %v185 = vld [vmem:[#allocation13 + $0xd0] sm:$0xff]
    %v186 = vld [vmem:[#allocation13 + $0xd8] sm:$0xff]
    %v187 = vld [vmem:[#allocation13 + $0xe0] sm:$0xff]
    %v188 = vld [vmem:[#allocation13 + $0xe8] sm:$0xff]
    %v189 = vld [vmem:[#allocation13 + $0xf0] sm:$0xff]
    %v190 = vld [vmem:[#allocation13 + $0xf8] sm:$0xff]
    %v191 = vld [vmem:[%s4] sm:$0xf]
    %v193 = vlaneseq
    %v194 = vshrl.u32 %v193, 7
    %v195 = vsub.s32 0, %v194
    %v196 = vrot.slane %v191, %v195
    %v197 = vlaneseq
    %v198 = vshrl.u32 %v197, 7
    %v199 = vsub.s32 1, %v198
    %v200 = vrot.slane %v191, %v199
    %v201 = vlaneseq
    %v202 = vshrl.u32 %v201, 7
    %v203 = vsub.s32 2, %v202
    %v204 = vrot.slane %v191, %v203
    %v205 = vlaneseq
    %v206 = vshrl.u32 %v205, 7
    %v207 = vsub.s32 3, %v206
    %v208 = vrot.slane %v191, %v207
    %v229 = vunpack.c.l.b16 %v127
    %v230 = vunpack.c.l.b16 %v128
    %v231 = vunpack.c.l.b16 %v129
    %v232 = vunpack.c.l.b16 %v130
    %v233 = vunpack.c.l.b16 %v131
    %v234 = vunpack.c.l.b16 %v132
    %v235 = vunpack.c.l.b16 %v133
    %v236 = vunpack.c.l.b16 %v134
    %v237 = vunpack.c.l.b16 %v135
    %v238 = vunpack.c.l.b16 %v136
    %v239 = vunpack.c.l.b16 %v137
    %v240 = vunpack.c.l.b16 %v138
    %v241 = vunpack.c.l.b16 %v139
    %v242 = vunpack.c.l.b16 %v140
    %v243 = vunpack.c.l.b16 %v141
    %v244 = vunpack.c.l.b16 %v142
    %v245 = vpack.c.b16 %v230, %v229
    %v246 = vpack.c.b16 %v232, %v231
    %v247 = vpack.c.b16 %v234, %v233
    %v248 = vpack.c.b16 %v236, %v235
    %v249 = vpack.c.b16 %v238, %v237
    %v250 = vpack.c.b16 %v240, %v239
    %v251 = vpack.c.b16 %v242, %v241
    %v252 = vpack.c.b16 %v244, %v243
    %v293 = vunpack.c.l.b16 %v159
    %v294 = vunpack.c.h.b16 %v159
    %v295 = vunpack.c.l.b16 %v160
    %v296 = vunpack.c.h.b16 %v160
    %v297 = vunpack.c.l.b16 %v161
    %v298 = vunpack.c.h.b16 %v161
    %v299 = vunpack.c.l.b16 %v162
    %v300 = vunpack.c.h.b16 %v162
    %v301 = vunpack.c.l.b16 %v163
    %v302 = vunpack.c.h.b16 %v163
    %v303 = vunpack.c.l.b16 %v164
    %v304 = vunpack.c.h.b16 %v164
    %v305 = vunpack.c.l.b16 %v165
    %v306 = vunpack.c.h.b16 %v165
    %v307 = vunpack.c.l.b16 %v166
    %v308 = vunpack.c.h.b16 %v166
    %v309 = vunpack.c.l.b16 %v167
    %v310 = vunpack.c.h.b16 %v167
    %v311 = vunpack.c.l.b16 %v168
    %v312 = vunpack.c.h.b16 %v168
    %v313 = vunpack.c.l.b16 %v169
    %v314 = vunpack.c.h.b16 %v169
    %v315 = vunpack.c.l.b16 %v170
    %v316 = vunpack.c.h.b16 %v170
    %v317 = vunpack.c.l.b16 %v171
    %v318 = vunpack.c.h.b16 %v171
    %v319 = vunpack.c.l.b16 %v172
    %v320 = vunpack.c.h.b16 %v172
    %v321 = vunpack.c.l.b16 %v173
    %v322 = vunpack.c.h.b16 %v173
    %v323 = vunpack.c.l.b16 %v174
    %v324 = vunpack.c.h.b16 %v174
    %v325 = vunpack.c.l.b16 %v175
    %v326 = vunpack.c.h.b16 %v175
    %v327 = vunpack.c.l.b16 %v176
    %v328 = vunpack.c.h.b16 %v176
    %v329 = vunpack.c.l.b16 %v177
    %v330 = vunpack.c.h.b16 %v177
    %v331 = vunpack.c.l.b16 %v178
    %v332 = vunpack.c.h.b16 %v178
    %v333 = vunpack.c.l.b16 %v179
    %v334 = vunpack.c.h.b16 %v179
    %v335 = vunpack.c.l.b16 %v180
    %v336 = vunpack.c.h.b16 %v180
    %v337 = vunpack.c.l.b16 %v181
    %v338 = vunpack.c.h.b16 %v181
    %v339 = vunpack.c.l.b16 %v182
    %v340 = vunpack.c.h.b16 %v182
    %v341 = vunpack.c.l.b16 %v183
    %v342 = vunpack.c.h.b16 %v183
    %v343 = vunpack.c.l.b16 %v184
    %v344 = vunpack.c.h.b16 %v184
    %v345 = vunpack.c.l.b16 %v185
    %v346 = vunpack.c.h.b16 %v185
    %v347 = vunpack.c.l.b16 %v186
    %v348 = vunpack.c.h.b16 %v186
    %v349 = vunpack.c.l.b16 %v187
    %v350 = vunpack.c.h.b16 %v187
    %v351 = vunpack.c.l.b16 %v188
    %v352 = vunpack.c.h.b16 %v188
    %v353 = vunpack.c.l.b16 %v189
    %v354 = vunpack.c.h.b16 %v189
    %v355 = vunpack.c.l.b16 %v190
    %v356 = vunpack.c.h.b16 %v190
    %v357 = vpack.c.b16 %v297, %v293
    %v358 = vpack.c.b16 %v298, %v294
    %v359 = vpack.c.b16 %v299, %v295
    %v360 = vpack.c.b16 %v300, %v296
    %v361 = vpack.c.b16 %v305, %v301
    %v362 = vpack.c.b16 %v306, %v302
    %v363 = vpack.c.b16 %v307, %v303
    %v364 = vpack.c.b16 %v308, %v304
    %v365 = vpack.c.b16 %v313, %v309
    %v366 = vpack.c.b16 %v314, %v310
    %v367 = vpack.c.b16 %v315, %v311
    %v368 = vpack.c.b16 %v316, %v312
    %v369 = vpack.c.b16 %v321, %v317
    %v370 = vpack.c.b16 %v322, %v318
    %v371 = vpack.c.b16 %v323, %v319
    %v372 = vpack.c.b16 %v324, %v320
    %v373 = vpack.c.b16 %v329, %v325
    %v374 = vpack.c.b16 %v330, %v326
    %v375 = vpack.c.b16 %v331, %v327
    %v376 = vpack.c.b16 %v332, %v328
    %v377 = vpack.c.b16 %v337, %v333
    %v378 = vpack.c.b16 %v338, %v334
    %v379 = vpack.c.b16 %v339, %v335
    %v380 = vpack.c.b16 %v340, %v336
    %v381 = vpack.c.b16 %v345, %v341
    %v382 = vpack.c.b16 %v346, %v342
    %v383 = vpack.c.b16 %v347, %v343
    %v384 = vpack.c.b16 %v348, %v344
    %v385 = vpack.c.b16 %v353, %v349
    %v386 = vpack.c.b16 %v354, %v350
    %v387 = vpack.c.b16 %v355, %v351
    %v388 = vpack.c.b16 %v356, %v352
    %421 = vmatprep.subr.bf16.mxu0 %v358
    %422 = vmatpush1.bf16.msra.mxu0 %v357
    %423 = vmatprep.subr.bf16.mxu0 %v362
    %424 = vmatpush1.bf16.msra.mxu0 %v361
    %425 = vmatprep.subr.bf16.mxu0 %v366
    %426 = vmatpush1.bf16.msra.mxu0 %v365
    %427 = vmatprep.subr.bf16.mxu0 %v370
    %428 = vmatpush1.bf16.msra.mxu0 %v369
    %429 = vmatprep.subr.bf16.mxu0 %v374
    %430 = vmatpush1.bf16.msra.mxu0 %v373
    %431 = vmatprep.subr.bf16.mxu0 %v378
    %432 = vmatpush1.bf16.msra.mxu0 %v377
    %433 = vmatprep.subr.bf16.mxu0 %v382
    %434 = vmatpush1.bf16.msra.mxu0 %v381
    %435 = vmatprep.subr.bf16.mxu0 %v386
    %436 = vmatpush1.bf16.msra.mxu0 %v385
    %437 = vmatprep.subr.bf16.mxu0 0
    %438 = vmatpush1.bf16.msra.mxu0 0
    %439 = vmatprep.subr.bf16.mxu0 0
    %440 = vmatpush1.bf16.msra.mxu0 0
    %441 = vmatprep.subr.bf16.mxu0 0
    %442 = vmatpush1.bf16.msra.mxu0 0
    %443 = vmatprep.subr.bf16.mxu0 0
    %444 = vmatpush1.bf16.msra.mxu0 0
    %445 = vmatprep.subr.bf16.mxu0 0
    %446 = vmatpush1.bf16.msra.mxu0 0
    %447 = vmatprep.subr.bf16.mxu0 0
    %448 = vmatpush1.bf16.msra.mxu0 0
    %449 = vmatprep.subr.bf16.mxu0 0
    %450 = vmatpush1.bf16.msra.mxu0 0
    %451 = vmatprep.subr.bf16.mxu0 0
    %452 = vmatpush1.bf16.msra.mxu0 0
    %453 = vmatprep.mubr.bf16.mxu0 0
    %454 = vmatmul.mubr.bf16.gmra.mrb[0].mxu0 %v245
    %v455 = vpop.f32.mrb[0].mxu0
    %v456 = vadd.f32 %v196, %v455
    %v457 = vpop.f32.mrb[0].mxu0
    %v458 = vadd.f32 %v200, %v457
    %v459 = vpop.f32.mrb[0].mxu0
    %v460 = vadd.f32 %v196, %v459
    %v461 = vpop.f32.mrb[0].mxu0
    %v462 = vadd.f32 %v200, %v461
    %463 = vmatprep.mubr.bf16.mxu0 0
    %464 = vmatmul.mubr.bf16.gmra.mrb[0].mxu0 %v246
    %v465 = vpop.f32.mrb[0].mxu0
    %v466 = vadd.f32 %v196, %v465
    %v467 = vpop.f32.mrb[0].mxu0
    %v468 = vadd.f32 %v200, %v467
    %v469 = vpop.f32.mrb[0].mxu0
    %v470 = vadd.f32 %v196, %v469
    %v471 = vpop.f32.mrb[0].mxu0
    %v472 = vadd.f32 %v200, %v471
    %473 = vmatprep.mubr.bf16.mxu0 0
    %474 = vmatmul.mubr.bf16.gmra.mrb[0].mxu0 %v247
    %v475 = vpop.f32.mrb[0].mxu0
    %v476 = vadd.f32 %v196, %v475
    %v477 = vpop.f32.mrb[0].mxu0
    %v478 = vadd.f32 %v200, %v477
    %v479 = vpop.f32.mrb[0].mxu0
    %v480 = vadd.f32 %v196, %v479
    %v481 = vpop.f32.mrb[0].mxu0
    %v482 = vadd.f32 %v200, %v481
    %483 = vmatprep.mubr.bf16.mxu0 0
    %484 = vmatmul.mubr.bf16.gmra.mrb[0].mxu0 %v248
    %v485 = vpop.f32.mrb[0].mxu0
    %v486 = vadd.f32 %v196, %v485
    %v487 = vpop.f32.mrb[0].mxu0
    %v488 = vadd.f32 %v200, %v487
    %v489 = vpop.f32.mrb[0].mxu0
    %v490 = vadd.f32 %v196, %v489
    %v491 = vpop.f32.mrb[0].mxu0
    %v492 = vadd.f32 %v200, %v491
    %493 = vmatprep.mubr.bf16.mxu0 0
    %494 = vmatmul.mubr.bf16.gmra.mrb[0].mxu0 %v249
    %v495 = vpop.f32.mrb[0].mxu0
    %v496 = vadd.f32 %v196, %v495
    %v497 = vpop.f32.mrb[0].mxu0
    %v498 = vadd.f32 %v200, %v497
    %v499 = vpop.f32.mrb[0].mxu0
    %v500 = vadd.f32 %v196, %v499
    %v501 = vpop.f32.mrb[0].mxu0
    %v502 = vadd.f32 %v200, %v501
    %503 = vmatprep.mubr.bf16.mxu0 0
    %504 = vmatmul.mubr.bf16.gmra.mrb[0].mxu0 %v250
    %v505 = vpop.f32.mrb[0].mxu0
    %v506 = vadd.f32 %v196, %v505
    %v507 = vpop.f32.mrb[0].mxu0
    %v508 = vadd.f32 %v200, %v507
    %v509 = vpop.f32.mrb[0].mxu0
    %v510 = vadd.f32 %v196, %v509
    %v511 = vpop.f32.mrb[0].mxu0
    %v512 = vadd.f32 %v200, %v511
    %513 = vmatprep.mubr.bf16.mxu0 0
    %514 = vmatmul.mubr.bf16.gmra.mrb[0].mxu0 %v251
    %v515 = vpop.f32.mrb[0].mxu0
    %v516 = vadd.f32 %v196, %v515
    %v517 = vpop.f32.mrb[0].mxu0
    %v518 = vadd.f32 %v200, %v517
    %v519 = vpop.f32.mrb[0].mxu0
    %v520 = vadd.f32 %v196, %v519
    %v521 = vpop.f32.mrb[0].mxu0
    %v522 = vadd.f32 %v200, %v521
    %523 = vmatprep.mubr.bf16.mxu0 0
    %524 = vmatmul.mubr.bf16.gmra.mrb[0].mxu0 %v252
    %v525 = vpop.f32.mrb[0].mxu0
    %v526 = vadd.f32 %v196, %v525
    %v527 = vpop.f32.mrb[0].mxu0
    %v528 = vadd.f32 %v200, %v527
    %v529 = vpop.f32.mrb[0].mxu0
    %v530 = vadd.f32 %v196, %v529
    %v531 = vpop.f32.mrb[0].mxu0
    %v532 = vadd.f32 %v200, %v531
    %533 = vdwg.mxu0
    %534 = vmatprep.subr.bf16.mxu0 %v360
    %535 = vmatpush1.bf16.msra.mxu0 %v359
    %536 = vmatprep.subr.bf16.mxu0 %v364
    %537 = vmatpush1.bf16.msra.mxu0 %v363
    %538 = vmatprep.subr.bf16.mxu0 %v368
    %539 = vmatpush1.bf16.msra.mxu0 %v367
    %540 = vmatprep.subr.bf16.mxu0 %v372
    %541 = vmatpush1.bf16.msra.mxu0 %v371
    %542 = vmatprep.subr.bf16.mxu0 %v376
    %543 = vmatpush1.bf16.msra.mxu0 %v375
    %544 = vmatprep.subr.bf16.mxu0 %v380
    %545 = vmatpush1.bf16.msra.mxu0 %v379
    %546 = vmatprep.subr.bf16.mxu0 %v384
    %547 = vmatpush1.bf16.msra.mxu0 %v383
    %548 = vmatprep.subr.bf16.mxu0 %v388
    %549 = vmatpush1.bf16.msra.mxu0 %v387
    %550 = vmatprep.subr.bf16.mxu0 0
    %551 = vmatpush1.bf16.msra.mxu0 0
    %552 = vmatprep.subr.bf16.mxu0 0
    %553 = vmatpush1.bf16.msra.mxu0 0
    %554 = vmatprep.subr.bf16.mxu0 0
    %555 = vmatpush1.bf16.msra.mxu0 0
    %556 = vmatprep.subr.bf16.mxu0 0
    %557 = vmatpush1.bf16.msra.mxu0 0
    %558 = vmatprep.subr.bf16.mxu0 0
    %559 = vmatpush1.bf16.msra.mxu0 0
    %560 = vmatprep.subr.bf16.mxu0 0
    %561 = vmatpush1.bf16.msra.mxu0 0
    %562 = vmatprep.subr.bf16.mxu0 0
    %563 = vmatpush1.bf16.msra.mxu0 0
    %564 = vmatprep.subr.bf16.mxu0 0
    %565 = vmatpush1.bf16.msra.mxu0 0
    %566 = vmatprep.mubr.bf16.mxu0 0
    %567 = vmatmul.mubr.bf16.gmra.mrb[0].mxu0 %v245
    %v568 = vpop.f32.mrb[0].mxu0
    %v569 = vadd.f32 %v204, %v568
    %v570 = vpop.f32.mrb[0].mxu0
    %v571 = vadd.f32 %v208, %v570
    %v572 = vpop.f32.mrb[0].mxu0
    %v573 = vadd.f32 %v204, %v572
    %v574 = vpop.f32.mrb[0].mxu0
    %v575 = vadd.f32 %v208, %v574
    %576 = vmatprep.mubr.bf16.mxu0 0
    %577 = vmatmul.mubr.bf16.gmra.mrb[0].mxu0 %v246
    %v578 = vpop.f32.mrb[0].mxu0
    %v579 = vadd.f32 %v204, %v578
    %v580 = vpop.f32.mrb[0].mxu0
    %v581 = vadd.f32 %v208, %v580
    %v582 = vpop.f32.mrb[0].mxu0
    %v583 = vadd.f32 %v204, %v582
    %v584 = vpop.f32.mrb[0].mxu0
    %v585 = vadd.f32 %v208, %v584
    %586 = vmatprep.mubr.bf16.mxu0 0
    %587 = vmatmul.mubr.bf16.gmra.mrb[0].mxu0 %v247
    %v588 = vpop.f32.mrb[0].mxu0
    %v589 = vadd.f32 %v204, %v588
    %v590 = vpop.f32.mrb[0].mxu0
    %v591 = vadd.f32 %v208, %v590
    %v592 = vpop.f32.mrb[0].mxu0
    %v593 = vadd.f32 %v204, %v592
    %v594 = vpop.f32.mrb[0].mxu0
    %v595 = vadd.f32 %v208, %v594
    %596 = vmatprep.mubr.bf16.mxu0 0
    %597 = vmatmul.mubr.bf16.gmra.mrb[0].mxu0 %v248
    %v598 = vpop.f32.mrb[0].mxu0
    %v599 = vadd.f32 %v204, %v598
    %v600 = vpop.f32.mrb[0].mxu0
    %v601 = vadd.f32 %v208, %v600
    %v602 = vpop.f32.mrb[0].mxu0
    %v603 = vadd.f32 %v204, %v602
    %v604 = vpop.f32.mrb[0].mxu0
    %v605 = vadd.f32 %v208, %v604
    %606 = vmatprep.mubr.bf16.mxu0 0
    %607 = vmatmul.mubr.bf16.gmra.mrb[0].mxu0 %v249
    %v608 = vpop.f32.mrb[0].mxu0
    %v609 = vadd.f32 %v204, %v608
    %v610 = vpop.f32.mrb[0].mxu0
    %v611 = vadd.f32 %v208, %v610
    %v612 = vpop.f32.mrb[0].mxu0
    %v613 = vadd.f32 %v204, %v612
    %v614 = vpop.f32.mrb[0].mxu0
    %v615 = vadd.f32 %v208, %v614
    %616 = vmatprep.mubr.bf16.mxu0 0
    %617 = vmatmul.mubr.bf16.gmra.mrb[0].mxu0 %v250
    %v618 = vpop.f32.mrb[0].mxu0
    %v619 = vadd.f32 %v204, %v618
    %v620 = vpop.f32.mrb[0].mxu0
    %v621 = vadd.f32 %v208, %v620
    %v622 = vpop.f32.mrb[0].mxu0
    %v623 = vadd.f32 %v204, %v622
    %v624 = vpop.f32.mrb[0].mxu0
    %v625 = vadd.f32 %v208, %v624
    %626 = vmatprep.mubr.bf16.mxu0 0
    %627 = vmatmul.mubr.bf16.gmra.mrb[0].mxu0 %v251
    %v628 = vpop.f32.mrb[0].mxu0
    %v629 = vadd.f32 %v204, %v628
    %v630 = vpop.f32.mrb[0].mxu0
    %v631 = vadd.f32 %v208, %v630
    %v632 = vpop.f32.mrb[0].mxu0
    %v633 = vadd.f32 %v204, %v632
    %v634 = vpop.f32.mrb[0].mxu0
    %v635 = vadd.f32 %v208, %v634
    %636 = vmatprep.mubr.bf16.mxu0 0
    %637 = vmatmul.mubr.bf16.gmra.mrb[0].mxu0 %v252
    %v638 = vpop.f32.mrb[0].mxu0
    %v639 = vadd.f32 %v204, %v638
    %v640 = vpop.f32.mrb[0].mxu0
    %v641 = vadd.f32 %v208, %v640
    %v642 = vpop.f32.mrb[0].mxu0
    %v643 = vadd.f32 %v204, %v642
    %v644 = vpop.f32.mrb[0].mxu0
    %v645 = vadd.f32 %v208, %v644
    %646 = vdwg.mxu0
    %647 = vst [vmem:[#allocation2] sm:$0xff] %v456
    %648 = vst [vmem:[#allocation2 + $0x8] sm:$0xff] %v458
    %649 = vst [vmem:[#allocation2 + $0x10] sm:$0xff] %v569
    %650 = vst [vmem:[#allocation2 + $0x18] sm:$0xff] %v571
    %651 = vst [vmem:[#allocation2 + $0x20] sm:$0xff] %v460
    %652 = vst [vmem:[#allocation2 + $0x28] sm:$0xff] %v462
    %653 = vst [vmem:[#allocation2 + $0x30] sm:$0xff] %v573
    %654 = vst [vmem:[#allocation2 + $0x38] sm:$0xff] %v575
    %655 = vst [vmem:[#allocation2 + $0x40] sm:$0xff] %v466
    %656 = vst [vmem:[#allocation2 + $0x48] sm:$0xff] %v468
    %657 = vst [vmem:[#allocation2 + $0x50] sm:$0xff] %v579
    %658 = vst [vmem:[#allocation2 + $0x58] sm:$0xff] %v581
    %659 = vst [vmem:[#allocation2 + $0x60] sm:$0xff] %v470
    %660 = vst [vmem:[#allocation2 + $0x68] sm:$0xff] %v472
    %661 = vst [vmem:[#allocation2 + $0x70] sm:$0xff] %v583
    %662 = vst [vmem:[#allocation2 + $0x78] sm:$0xff] %v585
    %663 = vst [vmem:[#allocation2 + $0x80] sm:$0xff] %v476
    %664 = vst [vmem:[#allocation2 + $0x88] sm:$0xff] %v478
    %665 = vst [vmem:[#allocation2 + $0x90] sm:$0xff] %v589
    %666 = vst [vmem:[#allocation2 + $0x98] sm:$0xff] %v591
    %667 = vst [vmem:[#allocation2 + $0xa0] sm:$0xff] %v480
    %668 = vst [vmem:[#allocation2 + $0xa8] sm:$0xff] %v482
    %669 = vst [vmem:[#allocation2 + $0xb0] sm:$0xff] %v593
    %670 = vst [vmem:[#allocation2 + $0xb8] sm:$0xff] %v595
    %671 = vst [vmem:[#allocation2 + $0xc0] sm:$0xff] %v486
    %672 = vst [vmem:[#allocation2 + $0xc8] sm:$0xff] %v488
    %673 = vst [vmem:[#allocation2 + $0xd0] sm:$0xff] %v599
    %674 = vst [vmem:[#allocation2 + $0xd8] sm:$0xff] %v601
    %675 = vst [vmem:[#allocation2 + $0xe0] sm:$0xff] %v490
    %676 = vst [vmem:[#allocation2 + $0xe8] sm:$0xff] %v492
    %677 = vst [vmem:[#allocation2 + $0xf0] sm:$0xff] %v603
    %678 = vst [vmem:[#allocation2 + $0xf8] sm:$0xff] %v605
    %679 = vst [vmem:[#allocation2 + $0x100] sm:$0xff] %v496
    %680 = vst [vmem:[#allocation2 + $0x108] sm:$0xff] %v498
    %681 = vst [vmem:[#allocation2 + $0x110] sm:$0xff] %v609
    %682 = vst [vmem:[#allocation2 + $0x118] sm:$0xff] %v611
    %683 = vst [vmem:[#allocation2 + $0x120] sm:$0xff] %v500
    %684 = vst [vmem:[#allocation2 + $0x128] sm:$0xff] %v502
    %685 = vst [vmem:[#allocation2 + $0x130] sm:$0xff] %v613
    %686 = vst [vmem:[#allocation2 + $0x138] sm:$0xff] %v615
    %687 = vst [vmem:[#allocation2 + $0x140] sm:$0xff] %v506
    %688 = vst [vmem:[#allocation2 + $0x148] sm:$0xff] %v508
    %689 = vst [vmem:[#allocation2 + $0x150] sm:$0xff] %v619
    %690 = vst [vmem:[#allocation2 + $0x158] sm:$0xff] %v621
    %691 = vst [vmem:[#allocation2 + $0x160] sm:$0xff] %v510
    %692 = vst [vmem:[#allocation2 + $0x168] sm:$0xff] %v512
    %693 = vst [vmem:[#allocation2 + $0x170] sm:$0xff] %v623
    %694 = vst [vmem:[#allocation2 + $0x178] sm:$0xff] %v625
    %695 = vst [vmem:[#allocation2 + $0x180] sm:$0xff] %v516
    %696 = vst [vmem:[#allocation2 + $0x188] sm:$0xff] %v518
    %697 = vst [vmem:[#allocation2 + $0x190] sm:$0xff] %v629
    %698 = vst [vmem:[#allocation2 + $0x198] sm:$0xff] %v631
    %699 = vst [vmem:[#allocation2 + $0x1a0] sm:$0xff] %v520
    %700 = vst [vmem:[#allocation2 + $0x1a8] sm:$0xff] %v522
    %701 = vst [vmem:[#allocation2 + $0x1b0] sm:$0xff] %v633
    %702 = vst [vmem:[#allocation2 + $0x1b8] sm:$0xff] %v635
    %703 = vst [vmem:[#allocation2 + $0x1c0] sm:$0xff] %v526
    %704 = vst [vmem:[#allocation2 + $0x1c8] sm:$0xff] %v528
    %705 = vst [vmem:[#allocation2 + $0x1d0] sm:$0xff] %v639
    %706 = vst [vmem:[#allocation2 + $0x1d8] sm:$0xff] %v641
    %707 = vst [vmem:[#allocation2 + $0x1e0] sm:$0xff] %v530
    %708 = vst [vmem:[#allocation2 + $0x1e8] sm:$0xff] %v532
    %709 = vst [vmem:[#allocation2 + $0x1f0] sm:$0xff] %v643
    %710 = vst [vmem:[#allocation2 + $0x1f8] sm:$0xff] %v645
    %v711 = vld [vmem:[#allocation16] sm:$0xff]
    %v712 = vld [vmem:[#allocation16 + $0x8] sm:$0xff]
    %v713 = vld [vmem:[#allocation16 + $0x10] sm:$0xff]
    %v714 = vld [vmem:[#allocation16 + $0x18] sm:$0xff]
    %v715 = vld [vmem:[#allocation16 + $0x20] sm:$0xff]
    %v716 = vld [vmem:[#allocation16 + $0x28] sm:$0xff]
    %v717 = vld [vmem:[#allocation16 + $0x30] sm:$0xff]
    %v718 = vld [vmem:[#allocation16 + $0x38] sm:$0xff]
    %v719 = vld [vmem:[#allocation16 + $0x40] sm:$0xff]
    %v720 = vld [vmem:[#allocation16 + $0x48] sm:$0xff]
    %v721 = vld [vmem:[#allocation16 + $0x50] sm:$0xff]
    %v722 = vld [vmem:[#allocation16 + $0x58] sm:$0xff]
    %v723 = vld [vmem:[#allocation16 + $0x60] sm:$0xff]
    %v724 = vld [vmem:[#allocation16 + $0x68] sm:$0xff]
    %v725 = vld [vmem:[#allocation16 + $0x70] sm:$0xff]
    %v726 = vld [vmem:[#allocation16 + $0x78] sm:$0xff]
    %v727 = vld [vmem:[#allocation16 + $0x80] sm:$0xff]
    %v728 = vld [vmem:[#allocation16 + $0x88] sm:$0xff]
    %v729 = vld [vmem:[#allocation16 + $0x90] sm:$0xff]
    %v730 = vld [vmem:[#allocation16 + $0x98] sm:$0xff]
    %v731 = vld [vmem:[#allocation16 + $0xa0] sm:$0xff]
    %v732 = vld [vmem:[#allocation16 + $0xa8] sm:$0xff]
    %v733 = vld [vmem:[#allocation16 + $0xb0] sm:$0xff]
    %v734 = vld [vmem:[#allocation16 + $0xb8] sm:$0xff]
    %v735 = vld [vmem:[#allocation16 + $0xc0] sm:$0xff]
    %v736 = vld [vmem:[#allocation16 + $0xc8] sm:$0xff]
    %v737 = vld [vmem:[#allocation16 + $0xd0] sm:$0xff]
    %v738 = vld [vmem:[#allocation16 + $0xd8] sm:$0xff]
    %v739 = vld [vmem:[#allocation16 + $0xe0] sm:$0xff]
    %v740 = vld [vmem:[#allocation16 + $0xe8] sm:$0xff]
    %v741 = vld [vmem:[#allocation16 + $0xf0] sm:$0xff]
    %v742 = vld [vmem:[#allocation16 + $0xf8] sm:$0xff]
    %v743 = vld [vmem:[%s7] sm:$0xf]
    %v745 = vlaneseq
    %v746 = vshrl.u32 %v745, 7
    %v747 = vsub.s32 0, %v746
    %v748 = vrot.slane %v743, %v747
    %v749 = vlaneseq
    %v750 = vshrl.u32 %v749, 7
    %v751 = vsub.s32 1, %v750
    %v752 = vrot.slane %v743, %v751
    %v753 = vlaneseq
    %v754 = vshrl.u32 %v753, 7
    %v755 = vsub.s32 2, %v754
    %v756 = vrot.slane %v743, %v755
    %v757 = vlaneseq
    %v758 = vshrl.u32 %v757, 7
    %v759 = vsub.s32 3, %v758
    %v760 = vrot.slane %v743, %v759
    %v781 = vunpack.c.l.b16 %v143
    %v782 = vunpack.c.l.b16 %v144
    %v783 = vunpack.c.l.b16 %v145
    %v784 = vunpack.c.l.b16 %v146
    %v785 = vunpack.c.l.b16 %v147
    %v786 = vunpack.c.l.b16 %v148
    %v787 = vunpack.c.l.b16 %v149
    %v788 = vunpack.c.l.b16 %v150
    %v789 = vunpack.c.l.b16 %v151
    %v790 = vunpack.c.l.b16 %v152
    %v791 = vunpack.c.l.b16 %v153
    %v792 = vunpack.c.l.b16 %v154
    %v793 = vunpack.c.l.b16 %v155
    %v794 = vunpack.c.l.b16 %v156
    %v795 = vunpack.c.l.b16 %v157
    %v796 = vunpack.c.l.b16 %v158
    %v797 = vpack.c.b16 %v782, %v781
    %v798 = vpack.c.b16 %v784, %v783
    %v799 = vpack.c.b16 %v786, %v785
    %v800 = vpack.c.b16 %v788, %v787
    %v801 = vpack.c.b16 %v790, %v789
    %v802 = vpack.c.b16 %v792, %v791
    %v803 = vpack.c.b16 %v794, %v793
    %v804 = vpack.c.b16 %v796, %v795
    %v845 = vunpack.c.l.b16 %v711
    %v846 = vunpack.c.h.b16 %v711
    %v847 = vunpack.c.l.b16 %v712
    %v848 = vunpack.c.h.b16 %v712
    %v849 = vunpack.c.l.b16 %v713
    %v850 = vunpack.c.h.b16 %v713
    %v851 = vunpack.c.l.b16 %v714
    %v852 = vunpack.c.h.b16 %v714
    %v853 = vunpack.c.l.b16 %v715
    %v854 = vunpack.c.h.b16 %v715
    %v855 = vunpack.c.l.b16 %v716
    %v856 = vunpack.c.h.b16 %v716
    %v857 = vunpack.c.l.b16 %v717
    %v858 = vunpack.c.h.b16 %v717
    %v859 = vunpack.c.l.b16 %v718
    %v860 = vunpack.c.h.b16 %v718
    %v861 = vunpack.c.l.b16 %v719
    %v862 = vunpack.c.h.b16 %v719
    %v863 = vunpack.c.l.b16 %v720
    %v864 = vunpack.c.h.b16 %v720
    %v865 = vunpack.c.l.b16 %v721
    %v866 = vunpack.c.h.b16 %v721
    %v867 = vunpack.c.l.b16 %v722
    %v868 = vunpack.c.h.b16 %v722
    %v869 = vunpack.c.l.b16 %v723
    %v870 = vunpack.c.h.b16 %v723
    %v871 = vunpack.c.l.b16 %v724
    %v872 = vunpack.c.h.b16 %v724
    %v873 = vunpack.c.l.b16 %v725
    %v874 = vunpack.c.h.b16 %v725
    %v875 = vunpack.c.l.b16 %v726
    %v876 = vunpack.c.h.b16 %v726
    %v877 = vunpack.c.l.b16 %v727
    %v878 = vunpack.c.h.b16 %v727
    %v879 = vunpack.c.l.b16 %v728
    %v880 = vunpack.c.h.b16 %v728
    %v881 = vunpack.c.l.b16 %v729
    %v882 = vunpack.c.h.b16 %v729
    %v883 = vunpack.c.l.b16 %v730
    %v884 = vunpack.c.h.b16 %v730
    %v885 = vunpack.c.l.b16 %v731
    %v886 = vunpack.c.h.b16 %v731
    %v887 = vunpack.c.l.b16 %v732
    %v888 = vunpack.c.h.b16 %v732
    %v889 = vunpack.c.l.b16 %v733
    %v890 = vunpack.c.h.b16 %v733
    %v891 = vunpack.c.l.b16 %v734
    %v892 = vunpack.c.h.b16 %v734
    %v893 = vunpack.c.l.b16 %v735
    %v894 = vunpack.c.h.b16 %v735
    %v895 = vunpack.c.l.b16 %v736
    %v896 = vunpack.c.h.b16 %v736
    %v897 = vunpack.c.l.b16 %v737
    %v898 = vunpack.c.h.b16 %v737
    %v899 = vunpack.c.l.b16 %v738
    %v900 = vunpack.c.h.b16 %v738
    %v901 = vunpack.c.l.b16 %v739
    %v902 = vunpack.c.h.b16 %v739
    %v903 = vunpack.c.l.b16 %v740
    %v904 = vunpack.c.h.b16 %v740
    %v905 = vunpack.c.l.b16 %v741
    %v906 = vunpack.c.h.b16 %v741
    %v907 = vunpack.c.l.b16 %v742
    %v908 = vunpack.c.h.b16 %v742
    %v909 = vpack.c.b16 %v849, %v845
    %v910 = vpack.c.b16 %v850, %v846
    %v911 = vpack.c.b16 %v851, %v847
    %v912 = vpack.c.b16 %v852, %v848
    %v913 = vpack.c.b16 %v857, %v853
    %v914 = vpack.c.b16 %v858, %v854
    %v915 = vpack.c.b16 %v859, %v855
    %v916 = vpack.c.b16 %v860, %v856
    %v917 = vpack.c.b16 %v865, %v861
    %v918 = vpack.c.b16 %v866, %v862
    %v919 = vpack.c.b16 %v867, %v863
    %v920 = vpack.c.b16 %v868, %v864
    %v921 = vpack.c.b16 %v873, %v869
    %v922 = vpack.c.b16 %v874, %v870
    %v923 = vpack.c.b16 %v875, %v871
    %v924 = vpack.c.b16 %v876, %v872
    %v925 = vpack.c.b16 %v881, %v877
    %v926 = vpack.c.b16 %v882, %v878
    %v927 = vpack.c.b16 %v883, %v879
    %v928 = vpack.c.b16 %v884, %v880
    %v929 = vpack.c.b16 %v889, %v885
    %v930 = vpack.c.b16 %v890, %v886
    %v931 = vpack.c.b16 %v891, %v887
    %v932 = vpack.c.b16 %v892, %v888
    %v933 = vpack.c.b16 %v897, %v893
    %v934 = vpack.c.b16 %v898, %v894
    %v935 = vpack.c.b16 %v899, %v895
    %v936 = vpack.c.b16 %v900, %v896
    %v937 = vpack.c.b16 %v905, %v901
    %v938 = vpack.c.b16 %v906, %v902
    %v939 = vpack.c.b16 %v907, %v903
    %v940 = vpack.c.b16 %v908, %v904
    %973 = vmatprep.subr.bf16.mxu0 %v910
    %974 = vmatpush1.bf16.msra.mxu0 %v909
    %975 = vmatprep.subr.bf16.mxu0 %v914
    %976 = vmatpush1.bf16.msra.mxu0 %v913
    %977 = vmatprep.subr.bf16.mxu0 %v918
    %978 = vmatpush1.bf16.msra.mxu0 %v917
    %979 = vmatprep.subr.bf16.mxu0 %v922
    %980 = vmatpush1.bf16.msra.mxu0 %v921
    %981 = vmatprep.subr.bf16.mxu0 %v926
    %982 = vmatpush1.bf16.msra.mxu0 %v925
    %983 = vmatprep.subr.bf16.mxu0 %v930
    %984 = vmatpush1.bf16.msra.mxu0 %v929
    %985 = vmatprep.subr.bf16.mxu0 %v934
    %986 = vmatpush1.bf16.msra.mxu0 %v933
    %987 = vmatprep.subr.bf16.mxu0 %v938
    %988 = vmatpush1.bf16.msra.mxu0 %v937
    %989 = vmatprep.subr.bf16.mxu0 0
    %990 = vmatpush1.bf16.msra.mxu0 0
    %991 = vmatprep.subr.bf16.mxu0 0
    %992 = vmatpush1.bf16.msra.mxu0 0
    %993 = vmatprep.subr.bf16.mxu0 0
    %994 = vmatpush1.bf16.msra.mxu0 0
    %995 = vmatprep.subr.bf16.mxu0 0
    %996 = vmatpush1.bf16.msra.mxu0 0
    %997 = vmatprep.subr.bf16.mxu0 0
    %998 = vmatpush1.bf16.msra.mxu0 0
    %999 = vmatprep.subr.bf16.mxu0 0
    %1000 = vmatpush1.bf16.msra.mxu0 0
    %1001 = vmatprep.subr.bf16.mxu0 0
    %1002 = vmatpush1.bf16.msra.mxu0 0
    %1003 = vmatprep.subr.bf16.mxu0 0
    %1004 = vmatpush1.bf16.msra.mxu0 0
    %1005 = vmatprep.mubr.bf16.mxu0 0
    %1006 = vmatmul.mubr.bf16.gmra.mrb[0].mxu0 %v797
    %v1007 = vpop.f32.mrb[0].mxu0
    %v1008 = vadd.f32 %v748, %v1007
    %v1009 = vpop.f32.mrb[0].mxu0
    %v1010 = vadd.f32 %v752, %v1009
    %v1011 = vpop.f32.mrb[0].mxu0
    %v1012 = vadd.f32 %v748, %v1011
    %v1013 = vpop.f32.mrb[0].mxu0
    %v1014 = vadd.f32 %v752, %v1013
    %1015 = vmatprep.mubr.bf16.mxu0 0
    %1016 = vmatmul.mubr.bf16.gmra.mrb[0].mxu0 %v798
    %v1017 = vpop.f32.mrb[0].mxu0
    %v1018 = vadd.f32 %v748, %v1017
    %v1019 = vpop.f32.mrb[0].mxu0
    %v1020 = vadd.f32 %v752, %v1019
    %v1021 = vpop.f32.mrb[0].mxu0
    %v1022 = vadd.f32 %v748, %v1021
    %v1023 = vpop.f32.mrb[0].mxu0
    %v1024 = vadd.f32 %v752, %v1023
    %1025 = vmatprep.mubr.bf16.mxu0 0
    %1026 = vmatmul.mubr.bf16.gmra.mrb[0].mxu0 %v799
    %v1027 = vpop.f32.mrb[0].mxu0
    %v1028 = vadd.f32 %v748, %v1027
    %v1029 = vpop.f32.mrb[0].mxu0
    %v1030 = vadd.f32 %v752, %v1029
    %v1031 = vpop.f32.mrb[0].mxu0
    %v1032 = vadd.f32 %v748, %v1031
    %v1033 = vpop.f32.mrb[0].mxu0
    %v1034 = vadd.f32 %v752, %v1033
    %1035 = vmatprep.mubr.bf16.mxu0 0
    %1036 = vmatmul.mubr.bf16.gmra.mrb[0].mxu0 %v800
    %v1037 = vpop.f32.mrb[0].mxu0
    %v1038 = vadd.f32 %v748, %v1037
    %v1039 = vpop.f32.mrb[0].mxu0
    %v1040 = vadd.f32 %v752, %v1039
    %v1041 = vpop.f32.mrb[0].mxu0
    %v1042 = vadd.f32 %v748, %v1041
    %v1043 = vpop.f32.mrb[0].mxu0
    %v1044 = vadd.f32 %v752, %v1043
    %1045 = vmatprep.mubr.bf16.mxu0 0
    %1046 = vmatmul.mubr.bf16.gmra.mrb[0].mxu0 %v801
    %v1047 = vpop.f32.mrb[0].mxu0
    %v1048 = vadd.f32 %v748, %v1047
    %v1049 = vpop.f32.mrb[0].mxu0
    %v1050 = vadd.f32 %v752, %v1049
    %v1051 = vpop.f32.mrb[0].mxu0
    %v1052 = vadd.f32 %v748, %v1051
    %v1053 = vpop.f32.mrb[0].mxu0
    %v1054 = vadd.f32 %v752, %v1053
    %1055 = vmatprep.mubr.bf16.mxu0 0
    %1056 = vmatmul.mubr.bf16.gmra.mrb[0].mxu0 %v802
    %v1057 = vpop.f32.mrb[0].mxu0
    %v1058 = vadd.f32 %v748, %v1057
    %v1059 = vpop.f32.mrb[0].mxu0
    %v1060 = vadd.f32 %v752, %v1059
    %v1061 = vpop.f32.mrb[0].mxu0
    %v1062 = vadd.f32 %v748, %v1061
    %v1063 = vpop.f32.mrb[0].mxu0
    %v1064 = vadd.f32 %v752, %v1063
    %1065 = vmatprep.mubr.bf16.mxu0 0
    %1066 = vmatmul.mubr.bf16.gmra.mrb[0].mxu0 %v803
    %v1067 = vpop.f32.mrb[0].mxu0
    %v1068 = vadd.f32 %v748, %v1067
    %v1069 = vpop.f32.mrb[0].mxu0
    %v1070 = vadd.f32 %v752, %v1069
    %v1071 = vpop.f32.mrb[0].mxu0
    %v1072 = vadd.f32 %v748, %v1071
    %v1073 = vpop.f32.mrb[0].mxu0
    %v1074 = vadd.f32 %v752, %v1073
    %1075 = vmatprep.mubr.bf16.mxu0 0
    %1076 = vmatmul.mubr.bf16.gmra.mrb[0].mxu0 %v804
    %v1077 = vpop.f32.mrb[0].mxu0
    %v1078 = vadd.f32 %v748, %v1077
    %v1079 = vpop.f32.mrb[0].mxu0
    %v1080 = vadd.f32 %v752, %v1079
    %v1081 = vpop.f32.mrb[0].mxu0
    %v1082 = vadd.f32 %v748, %v1081
    %v1083 = vpop.f32.mrb[0].mxu0
    %v1084 = vadd.f32 %v752, %v1083
    %1085 = vdwg.mxu0
    %1086 = vmatprep.subr.bf16.mxu0 %v912
    %1087 = vmatpush1.bf16.msra.mxu0 %v911
    %1088 = vmatprep.subr.bf16.mxu0 %v916
    %1089 = vmatpush1.bf16.msra.mxu0 %v915
    %1090 = vmatprep.subr.bf16.mxu0 %v920
    %1091 = vmatpush1.bf16.msra.mxu0 %v919
    %1092 = vmatprep.subr.bf16.mxu0 %v924
    %1093 = vmatpush1.bf16.msra.mxu0 %v923
    %1094 = vmatprep.subr.bf16.mxu0 %v928
    %1095 = vmatpush1.bf16.msra.mxu0 %v927
    %1096 = vmatprep.subr.bf16.mxu0 %v932
    %1097 = vmatpush1.bf16.msra.mxu0 %v931
    %1098 = vmatprep.subr.bf16.mxu0 %v936
    %1099 = vmatpush1.bf16.msra.mxu0 %v935
    %1100 = vmatprep.subr.bf16.mxu0 %v940
    %1101 = vmatpush1.bf16.msra.mxu0 %v939
    %1102 = vmatprep.subr.bf16.mxu0 0
    %1103 = vmatpush1.bf16.msra.mxu0 0
    %1104 = vmatprep.subr.bf16.mxu0 0
    %1105 = vmatpush1.bf16.msra.mxu0 0
    %1106 = vmatprep.subr.bf16.mxu0 0
    %1107 = vmatpush1.bf16.msra.mxu0 0
    %1108 = vmatprep.subr.bf16.mxu0 0
    %1109 = vmatpush1.bf16.msra.mxu0 0
    %1110 = vmatprep.subr.bf16.mxu0 0
    %1111 = vmatpush1.bf16.msra.mxu0 0
    %1112 = vmatprep.subr.bf16.mxu0 0
    %1113 = vmatpush1.bf16.msra.mxu0 0
    %1114 = vmatprep.subr.bf16.mxu0 0
    %1115 = vmatpush1.bf16.msra.mxu0 0
    %1116 = vmatprep.subr.bf16.mxu0 0
    %1117 = vmatpush1.bf16.msra.mxu0 0
    %1118 = vmatprep.mubr.bf16.mxu0 0
    %1119 = vmatmul.mubr.bf16.gmra.mrb[0].mxu0 %v797
    %v1120 = vpop.f32.mrb[0].mxu0
    %v1121 = vadd.f32 %v756, %v1120
    %v1122 = vpop.f32.mrb[0].mxu0
    %v1123 = vadd.f32 %v760, %v1122
    %v1124 = vpop.f32.mrb[0].mxu0
    %v1125 = vadd.f32 %v756, %v1124
    %v1126 = vpop.f32.mrb[0].mxu0
    %v1127 = vadd.f32 %v760, %v1126
    %1128 = vmatprep.mubr.bf16.mxu0 0
    %1129 = vmatmul.mubr.bf16.gmra.mrb[0].mxu0 %v798
    %v1130 = vpop.f32.mrb[0].mxu0
    %v1131 = vadd.f32 %v756, %v1130
    %v1132 = vpop.f32.mrb[0].mxu0
    %v1133 = vadd.f32 %v760, %v1132
    %v1134 = vpop.f32.mrb[0].mxu0
    %v1135 = vadd.f32 %v756, %v1134
    %v1136 = vpop.f32.mrb[0].mxu0
    %v1137 = vadd.f32 %v760, %v1136
    %1138 = vmatprep.mubr.bf16.mxu0 0
    %1139 = vmatmul.mubr.bf16.gmra.mrb[0].mxu0 %v799
    %v1140 = vpop.f32.mrb[0].mxu0
    %v1141 = vadd.f32 %v756, %v1140
    %v1142 = vpop.f32.mrb[0].mxu0
    %v1143 = vadd.f32 %v760, %v1142
    %v1144 = vpop.f32.mrb[0].mxu0
    %v1145 = vadd.f32 %v756, %v1144
    %v1146 = vpop.f32.mrb[0].mxu0
    %v1147 = vadd.f32 %v760, %v1146
    %1148 = vmatprep.mubr.bf16.mxu0 0
    %1149 = vmatmul.mubr.bf16.gmra.mrb[0].mxu0 %v800
    %v1150 = vpop.f32.mrb[0].mxu0
    %v1151 = vadd.f32 %v756, %v1150
    %v1152 = vpop.f32.mrb[0].mxu0
    %v1153 = vadd.f32 %v760, %v1152
    %v1154 = vpop.f32.mrb[0].mxu0
    %v1155 = vadd.f32 %v756, %v1154
    %v1156 = vpop.f32.mrb[0].mxu0
    %v1157 = vadd.f32 %v760, %v1156
    %1158 = vmatprep.mubr.bf16.mxu0 0
    %1159 = vmatmul.mubr.bf16.gmra.mrb[0].mxu0 %v801
    %v1160 = vpop.f32.mrb[0].mxu0
    %v1161 = vadd.f32 %v756, %v1160
    %v1162 = vpop.f32.mrb[0].mxu0
    %v1163 = vadd.f32 %v760, %v1162
    %v1164 = vpop.f32.mrb[0].mxu0
    %v1165 = vadd.f32 %v756, %v1164
    %v1166 = vpop.f32.mrb[0].mxu0
    %v1167 = vadd.f32 %v760, %v1166
    %1168 = vmatprep.mubr.bf16.mxu0 0
    %1169 = vmatmul.mubr.bf16.gmra.mrb[0].mxu0 %v802
    %v1170 = vpop.f32.mrb[0].mxu0
    %v1171 = vadd.f32 %v756, %v1170
    %v1172 = vpop.f32.mrb[0].mxu0
    %v1173 = vadd.f32 %v760, %v1172
    %v1174 = vpop.f32.mrb[0].mxu0
    %v1175 = vadd.f32 %v756, %v1174
    %v1176 = vpop.f32.mrb[0].mxu0
    %v1177 = vadd.f32 %v760, %v1176
    %1178 = vmatprep.mubr.bf16.mxu0 0
    %1179 = vmatmul.mubr.bf16.gmra.mrb[0].mxu0 %v803
    %v1180 = vpop.f32.mrb[0].mxu0
    %v1181 = vadd.f32 %v756, %v1180
    %v1182 = vpop.f32.mrb[0].mxu0
    %v1183 = vadd.f32 %v760, %v1182
    %v1184 = vpop.f32.mrb[0].mxu0
    %v1185 = vadd.f32 %v756, %v1184
    %v1186 = vpop.f32.mrb[0].mxu0
    %v1187 = vadd.f32 %v760, %v1186
    %1188 = vmatprep.mubr.bf16.mxu0 0
    %1189 = vmatmul.mubr.bf16.gmra.mrb[0].mxu0 %v804
    %v1190 = vpop.f32.mrb[0].mxu0
    %v1191 = vadd.f32 %v756, %v1190
    %v1192 = vpop.f32.mrb[0].mxu0
    %v1193 = vadd.f32 %v760, %v1192
    %v1194 = vpop.f32.mrb[0].mxu0
    %v1195 = vadd.f32 %v756, %v1194
    %v1196 = vpop.f32.mrb[0].mxu0
    %v1197 = vadd.f32 %v760, %v1196
    %1198 = vdwg.mxu0
    %1199 = vst [vmem:[#allocation3] sm:$0xff] %v1008
    %1200 = vst [vmem:[#allocation3 + $0x8] sm:$0xff] %v1010
    %1201 = vst [vmem:[#allocation3 + $0x10] sm:$0xff] %v1121
    %1202 = vst [vmem:[#allocation3 + $0x18] sm:$0xff] %v1123
    %1203 = vst [vmem:[#allocation3 + $0x20] sm:$0xff] %v1012
    %1204 = vst [vmem:[#allocation3 + $0x28] sm:$0xff] %v1014
    %1205 = vst [vmem:[#allocation3 + $0x30] sm:$0xff] %v1125
    %1206 = vst [vmem:[#allocation3 + $0x38] sm:$0xff] %v1127
    %1207 = vst [vmem:[#allocation3 + $0x40] sm:$0xff] %v1018
    %1208 = vst [vmem:[#allocation3 + $0x48] sm:$0xff] %v1020
    %1209 = vst [vmem:[#allocation3 + $0x50] sm:$0xff] %v1131
    %1210 = vst [vmem:[#allocation3 + $0x58] sm:$0xff] %v1133
    %1211 = vst [vmem:[#allocation3 + $0x60] sm:$0xff] %v1022
    %1212 = vst [vmem:[#allocation3 + $0x68] sm:$0xff] %v1024
    %1213 = vst [vmem:[#allocation3 + $0x70] sm:$0xff] %v1135
    %1214 = vst [vmem:[#allocation3 + $0x78] sm:$0xff] %v1137
    %1215 = vst [vmem:[#allocation3 + $0x80] sm:$0xff] %v1028
    %1216 = vst [vmem:[#allocation3 + $0x88] sm:$0xff] %v1030
    %1217 = vst [vmem:[#allocation3 + $0x90] sm:$0xff] %v1141
    %1218 = vst [vmem:[#allocation3 + $0x98] sm:$0xff] %v1143
    %1219 = vst [vmem:[#allocation3 + $0xa0] sm:$0xff] %v1032
    %1220 = vst [vmem:[#allocation3 + $0xa8] sm:$0xff] %v1034
    %1221 = vst [vmem:[#allocation3 + $0xb0] sm:$0xff] %v1145
    %1222 = vst [vmem:[#allocation3 + $0xb8] sm:$0xff] %v1147
    %1223 = vst [vmem:[#allocation3 + $0xc0] sm:$0xff] %v1038
    %1224 = vst [vmem:[#allocation3 + $0xc8] sm:$0xff] %v1040
    %1225 = vst [vmem:[#allocation3 + $0xd0] sm:$0xff] %v1151
    %1226 = vst [vmem:[#allocation3 + $0xd8] sm:$0xff] %v1153
    %1227 = vst [vmem:[#allocation3 + $0xe0] sm:$0xff] %v1042
    %1228 = vst [vmem:[#allocation3 + $0xe8] sm:$0xff] %v1044
    %1229 = vst [vmem:[#allocation3 + $0xf0] sm:$0xff] %v1155
    %1230 = vst [vmem:[#allocation3 + $0xf8] sm:$0xff] %v1157
    %1231 = vst [vmem:[#allocation3 + $0x100] sm:$0xff] %v1048
    %1232 = vst [vmem:[#allocation3 + $0x108] sm:$0xff] %v1050
    %1233 = vst [vmem:[#allocation3 + $0x110] sm:$0xff] %v1161
    %1234 = vst [vmem:[#allocation3 + $0x118] sm:$0xff] %v1163
    %1235 = vst [vmem:[#allocation3 + $0x120] sm:$0xff] %v1052
    %1236 = vst [vmem:[#allocation3 + $0x128] sm:$0xff] %v1054
    %1237 = vst [vmem:[#allocation3 + $0x130] sm:$0xff] %v1165
    %1238 = vst [vmem:[#allocation3 + $0x138] sm:$0xff] %v1167
    %1239 = vst [vmem:[#allocation3 + $0x140] sm:$0xff] %v1058
    %1240 = vst [vmem:[#allocation3 + $0x148] sm:$0xff] %v1060
    %1241 = vst [vmem:[#allocation3 + $0x150] sm:$0xff] %v1171
    %1242 = vst [vmem:[#allocation3 + $0x158] sm:$0xff] %v1173
    %1243 = vst [vmem:[#allocation3 + $0x160] sm:$0xff] %v1062
    %1244 = vst [vmem:[#allocation3 + $0x168] sm:$0xff] %v1064
    %1245 = vst [vmem:[#allocation3 + $0x170] sm:$0xff] %v1175
    %1246 = vst [vmem:[#allocation3 + $0x178] sm:$0xff] %v1177
    %1247 = vst [vmem:[#allocation3 + $0x180] sm:$0xff] %v1068
    %1248 = vst [vmem:[#allocation3 + $0x188] sm:$0xff] %v1070
    %1249 = vst [vmem:[#allocation3 + $0x190] sm:$0xff] %v1181
    %1250 = vst [vmem:[#allocation3 + $0x198] sm:$0xff] %v1183
    %1251 = vst [vmem:[#allocation3 + $0x1a0] sm:$0xff] %v1072
    %1252 = vst [vmem:[#allocation3 + $0x1a8] sm:$0xff] %v1074
    %1253 = vst [vmem:[#allocation3 + $0x1b0] sm:$0xff] %v1185
    %1254 = vst [vmem:[#allocation3 + $0x1b8] sm:$0xff] %v1187
    %1255 = vst [vmem:[#allocation3 + $0x1c0] sm:$0xff] %v1078
    %1256 = vst [vmem:[#allocation3 + $0x1c8] sm:$0xff] %v1080
    %1257 = vst [vmem:[#allocation3 + $0x1d0] sm:$0xff] %v1191
    %1258 = vst [vmem:[#allocation3 + $0x1d8] sm:$0xff] %v1193
    %1259 = vst [vmem:[#allocation3 + $0x1e0] sm:$0xff] %v1082
    %1260 = vst [vmem:[#allocation3 + $0x1e8] sm:$0xff] %v1084
    %1261 = vst [vmem:[#allocation3 + $0x1f0] sm:$0xff] %v1195
    %1262 = vst [vmem:[#allocation3 + $0x1f8] sm:$0xff] %v1197
    %v1263 = vld [vmem:[#allocation14] sm:$0xff]
    %v1264 = vld [vmem:[#allocation14 + $0x8] sm:$0xff]
    %v1265 = vld [vmem:[#allocation14 + $0x10] sm:$0xff]
    %v1266 = vld [vmem:[#allocation14 + $0x18] sm:$0xff]
    %v1267 = vld [vmem:[#allocation14 + $0x20] sm:$0xff]
    %v1268 = vld [vmem:[#allocation14 + $0x28] sm:$0xff]
    %v1269 = vld [vmem:[#allocation14 + $0x30] sm:$0xff]
    %v1270 = vld [vmem:[#allocation14 + $0x38] sm:$0xff]
    %v1271 = vld [vmem:[#allocation14 + $0x40] sm:$0xff]
    %v1272 = vld [vmem:[#allocation14 + $0x48] sm:$0xff]
    %v1273 = vld [vmem:[#allocation14 + $0x50] sm:$0xff]
    %v1274 = vld [vmem:[#allocation14 + $0x58] sm:$0xff]
    %v1275 = vld [vmem:[#allocation14 + $0x60] sm:$0xff]
    %v1276 = vld [vmem:[#allocation14 + $0x68] sm:$0xff]
    %v1277 = vld [vmem:[#allocation14 + $0x70] sm:$0xff]
    %v1278 = vld [vmem:[#allocation14 + $0x78] sm:$0xff]
    %v1279 = vld [vmem:[#allocation14 + $0x80] sm:$0xff]
    %v1280 = vld [vmem:[#allocation14 + $0x88] sm:$0xff]
    %v1281 = vld [vmem:[#allocation14 + $0x90] sm:$0xff]
    %v1282 = vld [vmem:[#allocation14 + $0x98] sm:$0xff]
    %v1283 = vld [vmem:[#allocation14 + $0xa0] sm:$0xff]
    %v1284 = vld [vmem:[#allocation14 + $0xa8] sm:$0xff]
    %v1285 = vld [vmem:[#allocation14 + $0xb0] sm:$0xff]
    %v1286 = vld [vmem:[#allocation14 + $0xb8] sm:$0xff]
    %v1287 = vld [vmem:[#allocation14 + $0xc0] sm:$0xff]
    %v1288 = vld [vmem:[#allocation14 + $0xc8] sm:$0xff]
    %v1289 = vld [vmem:[#allocation14 + $0xd0] sm:$0xff]
    %v1290 = vld [vmem:[#allocation14 + $0xd8] sm:$0xff]
    %v1291 = vld [vmem:[#allocation14 + $0xe0] sm:$0xff]
    %v1292 = vld [vmem:[#allocation14 + $0xe8] sm:$0xff]
    %v1293 = vld [vmem:[#allocation14 + $0xf0] sm:$0xff]
    %v1294 = vld [vmem:[#allocation14 + $0xf8] sm:$0xff]
    %v1295 = vld [vmem:[#allocation17] sm:$0xff]
    %v1296 = vld [vmem:[#allocation17 + $0x8] sm:$0xff]
    %v1297 = vld [vmem:[#allocation17 + $0x10] sm:$0xff]
    %v1298 = vld [vmem:[#allocation17 + $0x18] sm:$0xff]
    %v1299 = vld [vmem:[#allocation17 + $0x20] sm:$0xff]
    %v1300 = vld [vmem:[#allocation17 + $0x28] sm:$0xff]
    %v1301 = vld [vmem:[#allocation17 + $0x30] sm:$0xff]
    %v1302 = vld [vmem:[#allocation17 + $0x38] sm:$0xff]
    %v1303 = vld [vmem:[#allocation17 + $0x40] sm:$0xff]
    %v1304 = vld [vmem:[#allocation17 + $0x48] sm:$0xff]
    %v1305 = vld [vmem:[#allocation17 + $0x50] sm:$0xff]
    %v1306 = vld [vmem:[#allocation17 + $0x58] sm:$0xff]
    %v1307 = vld [vmem:[#allocation17 + $0x60] sm:$0xff]
    %v1308 = vld [vmem:[#allocation17 + $0x68] sm:$0xff]
    %v1309 = vld [vmem:[#allocation17 + $0x70] sm:$0xff]
    %v1310 = vld [vmem:[#allocation17 + $0x78] sm:$0xff]
    %v1311 = vld [vmem:[#allocation17 + $0x80] sm:$0xff]
    %v1312 = vld [vmem:[#allocation17 + $0x88] sm:$0xff]
    %v1313 = vld [vmem:[#allocation17 + $0x90] sm:$0xff]
    %v1314 = vld [vmem:[#allocation17 + $0x98] sm:$0xff]
    %v1315 = vld [vmem:[#allocation17 + $0xa0] sm:$0xff]
    %v1316 = vld [vmem:[#allocation17 + $0xa8] sm:$0xff]
    %v1317 = vld [vmem:[#allocation17 + $0xb0] sm:$0xff]
    %v1318 = vld [vmem:[#allocation17 + $0xb8] sm:$0xff]
    %v1319 = vld [vmem:[#allocation17 + $0xc0] sm:$0xff]
    %v1320 = vld [vmem:[#allocation17 + $0xc8] sm:$0xff]
    %v1321 = vld [vmem:[#allocation17 + $0xd0] sm:$0xff]
    %v1322 = vld [vmem:[#allocation17 + $0xd8] sm:$0xff]
    %v1323 = vld [vmem:[#allocation17 + $0xe0] sm:$0xff]
    %v1324 = vld [vmem:[#allocation17 + $0xe8] sm:$0xff]
    %v1325 = vld [vmem:[#allocation17 + $0xf0] sm:$0xff]
    %v1326 = vld [vmem:[#allocation17 + $0xf8] sm:$0xff]
    %v1327 = vld [vmem:[#allocation4] sm:$0xff]
    %v1328 = vld [vmem:[#allocation5] sm:$0xff]
    %v1329 = vld [vmem:[#allocation6] sm:$0xff]
    %v1330 = vld [vmem:[#allocation7] sm:$0xff]
    %v1331 = vld [vmem:[#allocation2] sm:$0xff]
    %v1332 = vld [vmem:[#allocation2 + $0x8] sm:$0xff]
    %v1333 = vld [vmem:[#allocation2 + $0x10] sm:$0xff]
    %v1334 = vld [vmem:[#allocation2 + $0x18] sm:$0xff]
    %v1335 = vpack.c.bf16 %v1327, %v1327
    %v1368 = vunpack.c.l.b16 %v1263
    %v1369 = vunpack.c.h.b16 %v1263
    %v1370 = vunpack.c.l.b16 %v1264
    %v1371 = vunpack.c.h.b16 %v1264
    %v1372 = vunpack.c.l.b16 %v1265
    %v1373 = vunpack.c.h.b16 %v1265
    %v1374 = vunpack.c.l.b16 %v1266
    %v1375 = vunpack.c.h.b16 %v1266
    %v1376 = vunpack.c.l.b16 %v1267
    %v1377 = vunpack.c.h.b16 %v1267
    %v1378 = vunpack.c.l.b16 %v1268
    %v1379 = vunpack.c.h.b16 %v1268
    %v1380 = vunpack.c.l.b16 %v1269
    %v1381 = vunpack.c.h.b16 %v1269
    %v1382 = vunpack.c.l.b16 %v1270
    %v1383 = vunpack.c.h.b16 %v1270
    %v1384 = vunpack.c.l.b16 %v1271
    %v1385 = vunpack.c.h.b16 %v1271
    %v1386 = vunpack.c.l.b16 %v1272
    %v1387 = vunpack.c.h.b16 %v1272
    %v1388 = vunpack.c.l.b16 %v1273
    %v1389 = vunpack.c.h.b16 %v1273
    %v1390 = vunpack.c.l.b16 %v1274
    %v1391 = vunpack.c.h.b16 %v1274
    %v1392 = vunpack.c.l.b16 %v1275
    %v1393 = vunpack.c.h.b16 %v1275
    %v1394 = vunpack.c.l.b16 %v1276
    %v1395 = vunpack.c.h.b16 %v1276
    %v1396 = vunpack.c.l.b16 %v1277
    %v1397 = vunpack.c.h.b16 %v1277
    %v1398 = vunpack.c.l.b16 %v1278
    %v1399 = vunpack.c.h.b16 %v1278
    %v1400 = vunpack.c.l.b16 %v1279
    %v1401 = vunpack.c.h.b16 %v1279
    %v1402 = vunpack.c.l.b16 %v1280
    %v1403 = vunpack.c.h.b16 %v1280
    %v1404 = vunpack.c.l.b16 %v1281
    %v1405 = vunpack.c.h.b16 %v1281
    %v1406 = vunpack.c.l.b16 %v1282
    %v1407 = vunpack.c.h.b16 %v1282
    %v1408 = vunpack.c.l.b16 %v1283
    %v1409 = vunpack.c.h.b16 %v1283
    %v1410 = vunpack.c.l.b16 %v1284
    %v1411 = vunpack.c.h.b16 %v1284
    %v1412 = vunpack.c.l.b16 %v1285
    %v1413 = vunpack.c.h.b16 %v1285
    %v1414 = vunpack.c.l.b16 %v1286
    %v1415 = vunpack.c.h.b16 %v1286
    %v1416 = vunpack.c.l.b16 %v1287
    %v1417 = vunpack.c.h.b16 %v1287
    %v1418 = vunpack.c.l.b16 %v1288
    %v1419 = vunpack.c.h.b16 %v1288
    %v1420 = vunpack.c.l.b16 %v1289
    %v1421 = vunpack.c.h.b16 %v1289
    %v1422 = vunpack.c.l.b16 %v1290
    %v1423 = vunpack.c.h.b16 %v1290
    %v1424 = vunpack.c.l.b16 %v1291
    %v1425 = vunpack.c.h.b16 %v1291
    %v1426 = vunpack.c.l.b16 %v1292
    %v1427 = vunpack.c.h.b16 %v1292
    %v1428 = vunpack.c.l.b16 %v1293
    %v1429 = vunpack.c.h.b16 %v1293
    %v1430 = vunpack.c.l.b16 %v1294
    %v1431 = vunpack.c.h.b16 %v1294
    %v1432 = vpack.c.b16 %v1372, %v1368
    %v1433 = vpack.c.b16 %v1373, %v1369
    %v1434 = vpack.c.b16 %v1374, %v1370
    %v1435 = vpack.c.b16 %v1375, %v1371
    %v1436 = vpack.c.b16 %v1380, %v1376
    %v1437 = vpack.c.b16 %v1381, %v1377
    %v1438 = vpack.c.b16 %v1382, %v1378
    %v1439 = vpack.c.b16 %v1383, %v1379
    %v1440 = vpack.c.b16 %v1388, %v1384
    %v1441 = vpack.c.b16 %v1389, %v1385
    %v1442 = vpack.c.b16 %v1390, %v1386
    %v1443 = vpack.c.b16 %v1391, %v1387
    %v1444 = vpack.c.b16 %v1396, %v1392
    %v1445 = vpack.c.b16 %v1397, %v1393
    %v1446 = vpack.c.b16 %v1398, %v1394
    %v1447 = vpack.c.b16 %v1399, %v1395
    %v1448 = vpack.c.b16 %v1404, %v1400
    %v1449 = vpack.c.b16 %v1405, %v1401
    %v1450 = vpack.c.b16 %v1406, %v1402
    %v1451 = vpack.c.b16 %v1407, %v1403
    %v1452 = vpack.c.b16 %v1412, %v1408
    %v1453 = vpack.c.b16 %v1413, %v1409
    %v1454 = vpack.c.b16 %v1414, %v1410
    %v1455 = vpack.c.b16 %v1415, %v1411
    %v1456 = vpack.c.b16 %v1420, %v1416
    %v1457 = vpack.c.b16 %v1421, %v1417
    %v1458 = vpack.c.b16 %v1422, %v1418
    %v1459 = vpack.c.b16 %v1423, %v1419
    %v1460 = vpack.c.b16 %v1428, %v1424
    %v1461 = vpack.c.b16 %v1429, %v1425
    %v1462 = vpack.c.b16 %v1430, %v1426
    %v1463 = vpack.c.b16 %v1431, %v1427
    %1496 = vmatprep.subr.bf16.mxu0 %v1433
    %1497 = vmatpush1.bf16.msra.mxu0 %v1432
    %1498 = vmatprep.subr.bf16.mxu0 %v1437
    %1499 = vmatpush1.bf16.msra.mxu0 %v1436
    %1500 = vmatprep.subr.bf16.mxu0 %v1441
    %1501 = vmatpush1.bf16.msra.mxu0 %v1440
    %1502 = vmatprep.subr.bf16.mxu0 %v1445
    %1503 = vmatpush1.bf16.msra.mxu0 %v1444
    %1504 = vmatprep.subr.bf16.mxu0 %v1449
    %1505 = vmatpush1.bf16.msra.mxu0 %v1448
    %1506 = vmatprep.subr.bf16.mxu0 %v1453
    %1507 = vmatpush1.bf16.msra.mxu0 %v1452
    %1508 = vmatprep.subr.bf16.mxu0 %v1457
    %1509 = vmatpush1.bf16.msra.mxu0 %v1456
    %1510 = vmatprep.subr.bf16.mxu0 %v1461
    %1511 = vmatpush1.bf16.msra.mxu0 %v1460
    %1512 = vmatprep.subr.bf16.mxu0 0
    %1513 = vmatpush1.bf16.msra.mxu0 0
    %1514 = vmatprep.subr.bf16.mxu0 0
    %1515 = vmatpush1.bf16.msra.mxu0 0
    %1516 = vmatprep.subr.bf16.mxu0 0
    %1517 = vmatpush1.bf16.msra.mxu0 0
    %1518 = vmatprep.subr.bf16.mxu0 0
    %1519 = vmatpush1.bf16.msra.mxu0 0
    %1520 = vmatprep.subr.bf16.mxu0 0
    %1521 = vmatpush1.bf16.msra.mxu0 0
    %1522 = vmatprep.subr.bf16.mxu0 0
    %1523 = vmatpush1.bf16.msra.mxu0 0
    %1524 = vmatprep.subr.bf16.mxu0 0
    %1525 = vmatpush1.bf16.msra.mxu0 0
    %1526 = vmatprep.subr.bf16.mxu0 0
    %1527 = vmatpush1.bf16.msra.mxu0 0
    %1528 = vmatprep.mubr.bf16.mxu0 0
    %1529 = vmatmul.mubr.bf16.gmra.mrb[0].mxu0 %v1335
    %v1530 = vpop.f32.mrb[0].mxu0
    %v1531 = vadd.f32 0.0, %v1530
    %v1532 = vpop.f32.mrb[0].mxu0
    %v1533 = vadd.f32 0.0, %v1532
    %v1534 = vpop.f32.mrb[0].mxu0
    %v1535 = vpop.f32.mrb[0].mxu0
    %1536 = vdwg.mxu0
    %1537 = vmatprep.subr.bf16.mxu0 %v1435
    %1538 = vmatpush1.bf16.msra.mxu0 %v1434
    %1539 = vmatprep.subr.bf16.mxu0 %v1439
    %1540 = vmatpush1.bf16.msra.mxu0 %v1438
    %1541 = vmatprep.subr.bf16.mxu0 %v1443
    %1542 = vmatpush1.bf16.msra.mxu0 %v1442
    %1543 = vmatprep.subr.bf16.mxu0 %v1447
    %1544 = vmatpush1.bf16.msra.mxu0 %v1446
    %1545 = vmatprep.subr.bf16.mxu0 %v1451
    %1546 = vmatpush1.bf16.msra.mxu0 %v1450
    %1547 = vmatprep.subr.bf16.mxu0 %v1455
    %1548 = vmatpush1.bf16.msra.mxu0 %v1454
    %1549 = vmatprep.subr.bf16.mxu0 %v1459
    %1550 = vmatpush1.bf16.msra.mxu0 %v1458
    %1551 = vmatprep.subr.bf16.mxu0 %v1463
    %1552 = vmatpush1.bf16.msra.mxu0 %v1462
    %1553 = vmatprep.subr.bf16.mxu0 0
    %1554 = vmatpush1.bf16.msra.mxu0 0
    %1555 = vmatprep.subr.bf16.mxu0 0
    %1556 = vmatpush1.bf16.msra.mxu0 0
    %1557 = vmatprep.subr.bf16.mxu0 0
    %1558 = vmatpush1.bf16.msra.mxu0 0
    %1559 = vmatprep.subr.bf16.mxu0 0
    %1560 = vmatpush1.bf16.msra.mxu0 0
    %1561 = vmatprep.subr.bf16.mxu0 0
    %1562 = vmatpush1.bf16.msra.mxu0 0
    %1563 = vmatprep.subr.bf16.mxu0 0
    %1564 = vmatpush1.bf16.msra.mxu0 0
    %1565 = vmatprep.subr.bf16.mxu0 0
    %1566 = vmatpush1.bf16.msra.mxu0 0
    %1567 = vmatprep.subr.bf16.mxu0 0
    %1568 = vmatpush1.bf16.msra.mxu0 0
    %1569 = vmatprep.mubr.bf16.mxu0 0
    %1570 = vmatmul.mubr.bf16.gmra.mrb[0].mxu0 %v1335
    %v1571 = vpop.f32.mrb[0].mxu0
    %v1572 = vadd.f32 0.0, %v1571
    %v1573 = vpop.f32.mrb[0].mxu0
    %v1574 = vadd.f32 0.0, %v1573
    %v1575 = vpop.f32.mrb[0].mxu0
    %v1576 = vpop.f32.mrb[0].mxu0
    %1577 = vdwg.mxu0
    %v1578 = vadd.f32 %v1331, %v1531
    %v1579 = vadd.f32 %v1332, %v1533
    %v1580 = vadd.f32 %v1333, %v1572
    %v1581 = vadd.f32 %v1334, %v1574
    %v1582 = vxor.u32 %v1578, 2147483648
    %v1583 = vxor.u32 %v1579, 2147483648
    %v1584 = vxor.u32 %v1580, 2147483648
    %v1585 = vmul.f32 %v1582, 1.442695
    %v1586 = vpow.pop %v1585
    %v1587 = vmul.f32 %v1583, 1.442695
    %v1588 = vpow.pop %v1587
    %v1589 = vmul.f32 %v1584, 1.442695
    %v1590 = vpow.pop %v1589
    %v1591 = vadd.f32 %v1586, 1.0
    %v1592 = vadd.f32 %v1588, 1.0
    %v1593 = vadd.f32 %v1590, 1.0
    %v1594 = vrcp.pop %v1591
    %v1595 = vmul.f32 1.0, %v1594
    %v1596 = vrcp.pop %v1592
    %v1597 = vmul.f32 1.0, %v1596
    %v1598 = vrcp.pop %v1593
    %v1599 = vmul.f32 1.0, %v1598
    %v1600 = vtanh.pop %v1581
    %v1601 = vmul.f32 %v1597, %v1328
    %v1602 = vmul.f32 %v1595, %v1600
    %v1603 = vadd.f32 %v1601, %v1602
    %v1604 = vtanh.pop %v1603
    %v1605 = vmul.f32 %v1599, %v1604
    %s1606 = scalar_lea.vmem [#allocation3], 480
    %v1607 = vld [vmem:[%s1606] sm:$0xff]
    %v1608 = vld [vmem:[%s1606 + $0x8] sm:$0xff]
    %v1609 = vld [vmem:[%s1606 + $0x10] sm:$0xff]
    %v1610 = vld [vmem:[%s1606 + $0x18] sm:$0xff]
    %v1611 = vpack.c.bf16 %v1329, %v1329
    %v1644 = vunpack.c.l.b16 %v1295
    %v1645 = vunpack.c.h.b16 %v1295
    %v1646 = vunpack.c.l.b16 %v1296
    %v1647 = vunpack.c.h.b16 %v1296
    %v1648 = vunpack.c.l.b16 %v1297
    %v1649 = vunpack.c.h.b16 %v1297
    %v1650 = vunpack.c.l.b16 %v1298
    %v1651 = vunpack.c.h.b16 %v1298
    %v1652 = vunpack.c.l.b16 %v1299
    %v1653 = vunpack.c.h.b16 %v1299
    %v1654 = vunpack.c.l.b16 %v1300
    %v1655 = vunpack.c.h.b16 %v1300
    %v1656 = vunpack.c.l.b16 %v1301
    %v1657 = vunpack.c.h.b16 %v1301
    %v1658 = vunpack.c.l.b16 %v1302
    %v1659 = vunpack.c.h.b16 %v1302
    %v1660 = vunpack.c.l.b16 %v1303
    %v1661 = vunpack.c.h.b16 %v1303
    %v1662 = vunpack.c.l.b16 %v1304
    %v1663 = vunpack.c.h.b16 %v1304
    %v1664 = vunpack.c.l.b16 %v1305
    %v1665 = vunpack.c.h.b16 %v1305
    %v1666 = vunpack.c.l.b16 %v1306
    %v1667 = vunpack.c.h.b16 %v1306
    %v1668 = vunpack.c.l.b16 %v1307
    %v1669 = vunpack.c.h.b16 %v1307
    %v1670 = vunpack.c.l.b16 %v1308
    %v1671 = vunpack.c.h.b16 %v1308
    %v1672 = vunpack.c.l.b16 %v1309
    %v1673 = vunpack.c.h.b16 %v1309
    %v1674 = vunpack.c.l.b16 %v1310
    %v1675 = vunpack.c.h.b16 %v1310
    %v1676 = vunpack.c.l.b16 %v1311
    %v1677 = vunpack.c.h.b16 %v1311
    %v1678 = vunpack.c.l.b16 %v1312
    %v1679 = vunpack.c.h.b16 %v1312
    %v1680 = vunpack.c.l.b16 %v1313
    %v1681 = vunpack.c.h.b16 %v1313
    %v1682 = vunpack.c.l.b16 %v1314
    %v1683 = vunpack.c.h.b16 %v1314
    %v1684 = vunpack.c.l.b16 %v1315
    %v1685 = vunpack.c.h.b16 %v1315
    %v1686 = vunpack.c.l.b16 %v1316
    %v1687 = vunpack.c.h.b16 %v1316
    %v1688 = vunpack.c.l.b16 %v1317
    %v1689 = vunpack.c.h.b16 %v1317
    %v1690 = vunpack.c.l.b16 %v1318
    %v1691 = vunpack.c.h.b16 %v1318
    %v1692 = vunpack.c.l.b16 %v1319
    %v1693 = vunpack.c.h.b16 %v1319
    %v1694 = vunpack.c.l.b16 %v1320
    %v1695 = vunpack.c.h.b16 %v1320
    %v1696 = vunpack.c.l.b16 %v1321
    %v1697 = vunpack.c.h.b16 %v1321
    %v1698 = vunpack.c.l.b16 %v1322
    %v1699 = vunpack.c.h.b16 %v1322
    %v1700 = vunpack.c.l.b16 %v1323
    %v1701 = vunpack.c.h.b16 %v1323
    %v1702 = vunpack.c.l.b16 %v1324
    %v1703 = vunpack.c.h.b16 %v1324
    %v1704 = vunpack.c.l.b16 %v1325
    %v1705 = vunpack.c.h.b16 %v1325
    %v1706 = vunpack.c.l.b16 %v1326
    %v1707 = vunpack.c.h.b16 %v1326
    %v1708 = vpack.c.b16 %v1648, %v1644
    %v1709 = vpack.c.b16 %v1649, %v1645
    %v1710 = vpack.c.b16 %v1650, %v1646
    %v1711 = vpack.c.b16 %v1651, %v1647
    %v1712 = vpack.c.b16 %v1656, %v1652
    %v1713 = vpack.c.b16 %v1657, %v1653
    %v1714 = vpack.c.b16 %v1658, %v1654
    %v1715 = vpack.c.b16 %v1659, %v1655
    %v1716 = vpack.c.b16 %v1664, %v1660
    %v1717 = vpack.c.b16 %v1665, %v1661
    %v1718 = vpack.c.b16 %v1666, %v1662
    %v1719 = vpack.c.b16 %v1667, %v1663
    %v1720 = vpack.c.b16 %v1672, %v1668
    %v1721 = vpack.c.b16 %v1673, %v1669
    %v1722 = vpack.c.b16 %v1674, %v1670
    %v1723 = vpack.c.b16 %v1675, %v1671
    %v1724 = vpack.c.b16 %v1680, %v1676
    %v1725 = vpack.c.b16 %v1681, %v1677
    %v1726 = vpack.c.b16 %v1682, %v1678
    %v1727 = vpack.c.b16 %v1683, %v1679
    %v1728 = vpack.c.b16 %v1688, %v1684
    %v1729 = vpack.c.b16 %v1689, %v1685
    %v1730 = vpack.c.b16 %v1690, %v1686
    %v1731 = vpack.c.b16 %v1691, %v1687
    %v1732 = vpack.c.b16 %v1696, %v1692
    %v1733 = vpack.c.b16 %v1697, %v1693
    %v1734 = vpack.c.b16 %v1698, %v1694
    %v1735 = vpack.c.b16 %v1699, %v1695
    %v1736 = vpack.c.b16 %v1704, %v1700
    %v1737 = vpack.c.b16 %v1705, %v1701
    %v1738 = vpack.c.b16 %v1706, %v1702
    %v1739 = vpack.c.b16 %v1707, %v1703
    %1772 = vmatprep.subr.bf16.mxu0 %v1709
    %1773 = vmatpush1.bf16.msra.mxu0 %v1708
    %1774 = vmatprep.subr.bf16.mxu0 %v1713
    %1775 = vmatpush1.bf16.msra.mxu0 %v1712
    %1776 = vmatprep.subr.bf16.mxu0 %v1717
    %1777 = vmatpush1.bf16.msra.mxu0 %v1716
    %1778 = vmatprep.subr.bf16.mxu0 %v1721
    %1779 = vmatpush1.bf16.msra.mxu0 %v1720
    %1780 = vmatprep.subr.bf16.mxu0 %v1725
    %1781 = vmatpush1.bf16.msra.mxu0 %v1724
    %1782 = vmatprep.subr.bf16.mxu0 %v1729
    %1783 = vmatpush1.bf16.msra.mxu0 %v1728
    %1784 = vmatprep.subr.bf16.mxu0 %v1733
    %1785 = vmatpush1.bf16.msra.mxu0 %v1732
    %1786 = vmatprep.subr.bf16.mxu0 %v1737
    %1787 = vmatpush1.bf16.msra.mxu0 %v1736
    %1788 = vmatprep.subr.bf16.mxu0 0
    %1789 = vmatpush1.bf16.msra.mxu0 0
    %1790 = vmatprep.subr.bf16.mxu0 0
    %1791 = vmatpush1.bf16.msra.mxu0 0
    %1792 = vmatprep.subr.bf16.mxu0 0
    %1793 = vmatpush1.bf16.msra.mxu0 0
    %1794 = vmatprep.subr.bf16.mxu0 0
    %1795 = vmatpush1.bf16.msra.mxu0 0
    %1796 = vmatprep.subr.bf16.mxu0 0
    %1797 = vmatpush1.bf16.msra.mxu0 0
    %1798 = vmatprep.subr.bf16.mxu0 0
    %1799 = vmatpush1.bf16.msra.mxu0 0
    %1800 = vmatprep.subr.bf16.mxu0 0
    %1801 = vmatpush1.bf16.msra.mxu0 0
    %1802 = vmatprep.subr.bf16.mxu0 0
    %1803 = vmatpush1.bf16.msra.mxu0 0
    %1804 = vmatprep.mubr.bf16.mxu0 0
    %1805 = vmatmul.mubr.bf16.gmra.mrb[0].mxu0 %v1611
    %v1806 = vpop.f32.mrb[0].mxu0
    %v1807 = vadd.f32 0.0, %v1806
    %v1808 = vpop.f32.mrb[0].mxu0
    %v1809 = vadd.f32 0.0, %v1808
    %v1810 = vpop.f32.mrb[0].mxu0
    %v1811 = vpop.f32.mrb[0].mxu0
    %1812 = vdwg.mxu0
    %1813 = vmatprep.subr.bf16.mxu0 %v1711
    %1814 = vmatpush1.bf16.msra.mxu0 %v1710
    %1815 = vmatprep.subr.bf16.mxu0 %v1715
    %1816 = vmatpush1.bf16.msra.mxu0 %v1714
    %1817 = vmatprep.subr.bf16.mxu0 %v1719
    %1818 = vmatpush1.bf16.msra.mxu0 %v1718
    %1819 = vmatprep.subr.bf16.mxu0 %v1723
    %1820 = vmatpush1.bf16.msra.mxu0 %v1722
    %1821 = vmatprep.subr.bf16.mxu0 %v1727
    %1822 = vmatpush1.bf16.msra.mxu0 %v1726
    %1823 = vmatprep.subr.bf16.mxu0 %v1731
    %1824 = vmatpush1.bf16.msra.mxu0 %v1730
    %1825 = vmatprep.subr.bf16.mxu0 %v1735
    %1826 = vmatpush1.bf16.msra.mxu0 %v1734
    %1827 = vmatprep.subr.bf16.mxu0 %v1739
    %1828 = vmatpush1.bf16.msra.mxu0 %v1738
    %1829 = vmatprep.subr.bf16.mxu0 0
    %1830 = vmatpush1.bf16.msra.mxu0 0
    %1831 = vmatprep.subr.bf16.mxu0 0
    %1832 = vmatpush1.bf16.msra.mxu0 0
    %1833 = vmatprep.subr.bf16.mxu0 0
    %1834 = vmatpush1.bf16.msra.mxu0 0
    %1835 = vmatprep.subr.bf16.mxu0 0
    %1836 = vmatpush1.bf16.msra.mxu0 0
    %1837 = vmatprep.subr.bf16.mxu0 0
    %1838 = vmatpush1.bf16.msra.mxu0 0
    %1839 = vmatprep.subr.bf16.mxu0 0
    %1840 = vmatpush1.bf16.msra.mxu0 0
    %1841 = vmatprep.subr.bf16.mxu0 0
    %1842 = vmatpush1.bf16.msra.mxu0 0
    %1843 = vmatprep.subr.bf16.mxu0 0
    %1844 = vmatpush1.bf16.msra.mxu0 0
    %1845 = vmatprep.mubr.bf16.mxu0 0
    %1846 = vmatmul.mubr.bf16.gmra.mrb[0].mxu0 %v1611
    %v1847 = vpop.f32.mrb[0].mxu0
    %v1848 = vadd.f32 0.0, %v1847
    %v1849 = vpop.f32.mrb[0].mxu0
    %v1850 = vadd.f32 0.0, %v1849
    %v1851 = vpop.f32.mrb[0].mxu0
    %v1852 = vpop.f32.mrb[0].mxu0
    %1853 = vdwg.mxu0
    %v1854 = vadd.f32 %v1607, %v1807
    %v1855 = vadd.f32 %v1608, %v1809
    %v1856 = vadd.f32 %v1609, %v1848
    %v1857 = vadd.f32 %v1610, %v1850
    %v1858 = vxor.u32 %v1854, 2147483648
    %v1859 = vxor.u32 %v1855, 2147483648
    %v1860 = vxor.u32 %v1856, 2147483648
    %v1861 = vmul.f32 %v1858, 1.442695
    %v1862 = vpow.pop %v1861
    %v1863 = vmul.f32 %v1859, 1.442695
    %v1864 = vpow.pop %v1863
    %v1865 = vmul.f32 %v1860, 1.442695
    %v1866 = vpow.pop %v1865
    %v1867 = vadd.f32 %v1862, 1.0
    %v1868 = vadd.f32 %v1864, 1.0
    %v1869 = vadd.f32 %v1866, 1.0
    %v1870 = vrcp.pop %v1867
    %v1871 = vmul.f32 1.0, %v1870
    %v1872 = vrcp.pop %v1868
    %v1873 = vmul.f32 1.0, %v1872
    %v1874 = vrcp.pop %v1869
    %v1875 = vmul.f32 1.0, %v1874
    %v1876 = vtanh.pop %v1857
    %v1877 = vmul.f32 %v1873, %v1330
    %v1878 = vmul.f32 %v1871, %v1876
    %v1879 = vadd.f32 %v1877, %v1878
    %v1880 = vtanh.pop %v1879
    %v1881 = vmul.f32 %v1875, %v1880
    %s1882 = scalar_lea.vmem [#allocation2], 32
    %v1883 = vld [vmem:[%s1882] sm:$0xff]
    %v1884 = vld [vmem:[%s1882 + $0x8] sm:$0xff]
    %v1885 = vld [vmem:[%s1882 + $0x10] sm:$0xff]
    %v1886 = vld [vmem:[%s1882 + $0x18] sm:$0xff]
    %v1887 = vpack.c.bf16 %v1605, %v1605
    %1888 = vmatprep.subr.bf16.mxu0 %v1433
    %1889 = vmatpush1.bf16.msra.mxu0 %v1432
    %1890 = vmatprep.subr.bf16.mxu0 %v1437
    %1891 = vmatpush1.bf16.msra.mxu0 %v1436
    %1892 = vmatprep.subr.bf16.mxu0 %v1441
    %1893 = vmatpush1.bf16.msra.mxu0 %v1440
    %1894 = vmatprep.subr.bf16.mxu0 %v1445
    %1895 = vmatpush1.bf16.msra.mxu0 %v1444
    %1896 = vmatprep.subr.bf16.mxu0 %v1449
    %1897 = vmatpush1.bf16.msra.mxu0 %v1448
    %1898 = vmatprep.subr.bf16.mxu0 %v1453
    %1899 = vmatpush1.bf16.msra.mxu0 %v1452
    %1900 = vmatprep.subr.bf16.mxu0 %v1457
    %1901 = vmatpush1.bf16.msra.mxu0 %v1456
    %1902 = vmatprep.subr.bf16.mxu0 %v1461
    %1903 = vmatpush1.bf16.msra.mxu0 %v1460
    %1904 = vmatprep.subr.bf16.mxu0 0
    %1905 = vmatpush1.bf16.msra.mxu0 0
    %1906 = vmatprep.subr.bf16.mxu0 0
    %1907 = vmatpush1.bf16.msra.mxu0 0
    %1908 = vmatprep.subr.bf16.mxu0 0
    %1909 = vmatpush1.bf16.msra.mxu0 0
    %1910 = vmatprep.subr.bf16.mxu0 0
    %1911 = vmatpush1.bf16.msra.mxu0 0
    %1912 = vmatprep.subr.bf16.mxu0 0
    %1913 = vmatpush1.bf16.msra.mxu0 0
    %1914 = vmatprep.subr.bf16.mxu0 0
    %1915 = vmatpush1.bf16.msra.mxu0 0
    %1916 = vmatprep.subr.bf16.mxu0 0
    %1917 = vmatpush1.bf16.msra.mxu0 0
    %1918 = vmatprep.subr.bf16.mxu0 0
    %1919 = vmatpush1.bf16.msra.mxu0 0
    %1920 = vmatprep.mubr.bf16.mxu0 0
    %1921 = vmatmul.mubr.bf16.gmra.mrb[0].mxu0 %v1887
    %v1922 = vpop.f32.mrb[0].mxu0
    %v1923 = vadd.f32 0.0, %v1922
    %v1924 = vpop.f32.mrb[0].mxu0
    %v1925 = vadd.f32 0.0, %v1924
    %v1926 = vpop.f32.mrb[0].mxu0
    %v1927 = vpop.f32.mrb[0].mxu0
    %1928 = vdwg.mxu0
    %1929 = vmatprep.subr.bf16.mxu0 %v1435
    %1930 = vmatpush1.bf16.msra.mxu0 %v1434
    %1931 = vmatprep.subr.bf16.mxu0 %v1439
    %1932 = vmatpush1.bf16.msra.mxu0 %v1438
    %1933 = vmatprep.subr.bf16.mxu0 %v1443
    %1934 = vmatpush1.bf16.msra.mxu0 %v1442
    %1935 = vmatprep.subr.bf16.mxu0 %v1447
    %1936 = vmatpush1.bf16.msra.mxu0 %v1446
    %1937 = vmatprep.subr.bf16.mxu0 %v1451
    %1938 = vmatpush1.bf16.msra.mxu0 %v1450
    %1939 = vmatprep.subr.bf16.mxu0 %v1455
    %1940 = vmatpush1.bf16.msra.mxu0 %v1454
    %1941 = vmatprep.subr.bf16.mxu0 %v1459
    %1942 = vmatpush1.bf16.msra.mxu0 %v1458
    %1943 = vmatprep.subr.bf16.mxu0 %v1463
    %1944 = vmatpush1.bf16.msra.mxu0 %v1462
    %1945 = vmatprep.subr.bf16.mxu0 0
    %1946 = vmatpush1.bf16.msra.mxu0 0
    %1947 = vmatprep.subr.bf16.mxu0 0
    %1948 = vmatpush1.bf16.msra.mxu0 0
    %1949 = vmatprep.subr.bf16.mxu0 0
    %1950 = vmatpush1.bf16.msra.mxu0 0
    %1951 = vmatprep.subr.bf16.mxu0 0
    %1952 = vmatpush1.bf16.msra.mxu0 0
    %1953 = vmatprep.subr.bf16.mxu0 0
    %1954 = vmatpush1.bf16.msra.mxu0 0
    %1955 = vmatprep.subr.bf16.mxu0 0
    %1956 = vmatpush1.bf16.msra.mxu0 0
    %1957 = vmatprep.subr.bf16.mxu0 0
    %1958 = vmatpush1.bf16.msra.mxu0 0
    %1959 = vmatprep.subr.bf16.mxu0 0
    %1960 = vmatpush1.bf16.msra.mxu0 0
    %1961 = vmatprep.mubr.bf16.mxu0 0
    %1962 = vmatmul.mubr.bf16.gmra.mrb[0].mxu0 %v1887
    %v1963 = vpop.f32.mrb[0].mxu0
    %v1964 = vadd.f32 0.0, %v1963
    %v1965 = vpop.f32.mrb[0].mxu0
    %v1966 = vadd.f32 0.0, %v1965
    %v1967 = vpop.f32.mrb[0].mxu0
    %v1968 = vpop.f32.mrb[0].mxu0
    %1969 = vdwg.mxu0
    %v1970 = vadd.f32 %v1883, %v1923
    %v1971 = vadd.f32 %v1884, %v1925
    %v1972 = vadd.f32 %v1885, %v1964
    %v1973 = vadd.f32 %v1886, %v1966
    %v1974 = vxor.u32 %v1970, 2147483648
    %v1975 = vxor.u32 %v1971, 2147483648
    %v1976 = vxor.u32 %v1972, 2147483648
    %v1977 = vmul.f32 %v1974, 1.442695
    %v1978 = vpow.pop %v1977
    %v1979 = vmul.f32 %v1975, 1.442695
    %v1980 = vpow.pop %v1979
    %v1981 = vmul.f32 %v1976, 1.442695
    %v1982 = vpow.pop %v1981
    %v1983 = vadd.f32 %v1978, 1.0
    %v1984 = vadd.f32 %v1980, 1.0
    %v1985 = vadd.f32 %v1982, 1.0
    %v1986 = vrcp.pop %v1983
    %v1987 = vmul.f32 1.0, %v1986
    %v1988 = vrcp.pop %v1984
    %v1989 = vmul.f32 1.0, %v1988
    %v1990 = vrcp.pop %v1985
    %v1991 = vmul.f32 1.0, %v1990
    %v1992 = vtanh.pop %v1973
    %v1993 = vmul.f32 %v1989, %v1603
    %v1994 = vmul.f32 %v1987, %v1992
    %v1995 = vadd.f32 %v1993, %v1994
    %v1996 = vtanh.pop %v1995
    %v1997 = vmul.f32 %v1991, %v1996
    %s1998 = scalar_lea.vmem [#allocation3], 448
    %v1999 = vld [vmem:[%s1998] sm:$0xff]
    %v2000 = vld [vmem:[%s1998 + $0x8] sm:$0xff]
    %v2001 = vld [vmem:[%s1998 + $0x10] sm:$0xff]
    %v2002 = vld [vmem:[%s1998 + $0x18] sm:$0xff]
    %v2003 = vpack.c.bf16 %v1881, %v1881
    %2004 = vmatprep.subr.bf16.mxu0 %v1709
    %2005 = vmatpush1.bf16.msra.mxu0 %v1708
    %2006 = vmatprep.subr.bf16.mxu0 %v1713
    %2007 = vmatpush1.bf16.msra.mxu0 %v1712
    %2008 = vmatprep.subr.bf16.mxu0 %v1717
    %2009 = vmatpush1.bf16.msra.mxu0 %v1716
    %2010 = vmatprep.subr.bf16.mxu0 %v1721
    %2011 = vmatpush1.bf16.msra.mxu0 %v1720
    %2012 = vmatprep.subr.bf16.mxu0 %v1725
    %2013 = vmatpush1.bf16.msra.mxu0 %v1724
    %2014 = vmatprep.subr.bf16.mxu0 %v1729
    %2015 = vmatpush1.bf16.msra.mxu0 %v1728
    %2016 = vmatprep.subr.bf16.mxu0 %v1733
    %2017 = vmatpush1.bf16.msra.mxu0 %v1732
    %2018 = vmatprep.subr.bf16.mxu0 %v1737
    %2019 = vmatpush1.bf16.msra.mxu0 %v1736
    %2020 = vmatprep.subr.bf16.mxu0 0
    %2021 = vmatpush1.bf16.msra.mxu0 0
    %2022 = vmatprep.subr.bf16.mxu0 0
    %2023 = vmatpush1.bf16.msra.mxu0 0
    %2024 = vmatprep.subr.bf16.mxu0 0
    %2025 = vmatpush1.bf16.msra.mxu0 0
    %2026 = vmatprep.subr.bf16.mxu0 0
    %2027 = vmatpush1.bf16.msra.mxu0 0
    %2028 = vmatprep.subr.bf16.mxu0 0
    %2029 = vmatpush1.bf16.msra.mxu0 0
    %2030 = vmatprep.subr.bf16.mxu0 0
    %2031 = vmatpush1.bf16.msra.mxu0 0
    %2032 = vmatprep.subr.bf16.mxu0 0
    %2033 = vmatpush1.bf16.msra.mxu0 0
    %2034 = vmatprep.subr.bf16.mxu0 0
    %2035 = vmatpush1.bf16.msra.mxu0 0
    %2036 = vmatprep.mubr.bf16.mxu0 0
    %2037 = vmatmul.mubr.bf16.gmra.mrb[0].mxu0 %v2003
    %v2038 = vpop.f32.mrb[0].mxu0
    %v2039 = vadd.f32 0.0, %v2038
    %v2040 = vpop.f32.mrb[0].mxu0
    %v2041 = vadd.f32 0.0, %v2040
    %v2042 = vpop.f32.mrb[0].mxu0
    %v2043 = vpop.f32.mrb[0].mxu0
    %2044 = vdwg.mxu0
    %2045 = vmatprep.subr.bf16.mxu0 %v1711
    %2046 = vmatpush1.bf16.msra.mxu0 %v1710
    %2047 = vmatprep.subr.bf16.mxu0 %v1715
    %2048 = vmatpush1.bf16.msra.mxu0 %v1714
    %2049 = vmatprep.subr.bf16.mxu0 %v1719
    %2050 = vmatpush1.bf16.msra.mxu0 %v1718
    %2051 = vmatprep.subr.bf16.mxu0 %v1723
    %2052 = vmatpush1.bf16.msra.mxu0 %v1722
    %2053 = vmatprep.subr.bf16.mxu0 %v1727
    %2054 = vmatpush1.bf16.msra.mxu0 %v1726
    %2055 = vmatprep.subr.bf16.mxu0 %v1731
    %2056 = vmatpush1.bf16.msra.mxu0 %v1730
    %2057 = vmatprep.subr.bf16.mxu0 %v1735
    %2058 = vmatpush1.bf16.msra.mxu0 %v1734
    %2059 = vmatprep.subr.bf16.mxu0 %v1739
    %2060 = vmatpush1.bf16.msra.mxu0 %v1738
    %2061 = vmatprep.subr.bf16.mxu0 0
    %2062 = vmatpush1.bf16.msra.mxu0 0
    %2063 = vmatprep.subr.bf16.mxu0 0
    %2064 = vmatpush1.bf16.msra.mxu0 0
    %2065 = vmatprep.subr.bf16.mxu0 0
    %2066 = vmatpush1.bf16.msra.mxu0 0
    %2067 = vmatprep.subr.bf16.mxu0 0
    %2068 = vmatpush1.bf16.msra.mxu0 0
    %2069 = vmatprep.subr.bf16.mxu0 0
    %2070 = vmatpush1.bf16.msra.mxu0 0
    %2071 = vmatprep.subr.bf16.mxu0 0
    %2072 = vmatpush1.bf16.msra.mxu0 0
    %2073 = vmatprep.subr.bf16.mxu0 0
    %2074 = vmatpush1.bf16.msra.mxu0 0
    %2075 = vmatprep.subr.bf16.mxu0 0
    %2076 = vmatpush1.bf16.msra.mxu0 0
    %2077 = vmatprep.mubr.bf16.mxu0 0
    %2078 = vmatmul.mubr.bf16.gmra.mrb[0].mxu0 %v2003
    %v2079 = vpop.f32.mrb[0].mxu0
    %v2080 = vadd.f32 0.0, %v2079
    %v2081 = vpop.f32.mrb[0].mxu0
    %v2082 = vadd.f32 0.0, %v2081
    %v2083 = vpop.f32.mrb[0].mxu0
    %v2084 = vpop.f32.mrb[0].mxu0
    %2085 = vdwg.mxu0
    %v2086 = vadd.f32 %v1999, %v2039
    %v2087 = vadd.f32 %v2000, %v2041
    %v2088 = vadd.f32 %v2001, %v2080
    %v2089 = vadd.f32 %v2002, %v2082
    %v2090 = vxor.u32 %v2086, 2147483648
    %v2091 = vxor.u32 %v2087, 2147483648
    %v2092 = vxor.u32 %v2088, 2147483648
    %v2093 = vmul.f32 %v2090, 1.442695
    %v2094 = vpow.pop %v2093
    %v2095 = vmul.f32 %v2091, 1.442695
    %v2096 = vpow.pop %v2095
    %v2097 = vmul.f32 %v2092, 1.442695
    %v2098 = vpow.pop %v2097
    %v2099 = vadd.f32 %v2094, 1.0
    %v2100 = vadd.f32 %v2096, 1.0
    %v2101 = vadd.f32 %v2098, 1.0
    %v2102 = vrcp.pop %v2099
    %v2103 = vmul.f32 1.0, %v2102
    %v2104 = vrcp.pop %v2100
    %v2105 = vmul.f32 1.0, %v2104
    %v2106 = vrcp.pop %v2101
    %v2107 = vmul.f32 1.0, %v2106
    %v2108 = vtanh.pop %v2089
    %v2109 = vmul.f32 %v2105, %v1879
    %v2110 = vmul.f32 %v2103, %v2108
    %v2111 = vadd.f32 %v2109, %v2110
    %v2112 = vtanh.pop %v2111
    %v2113 = vmul.f32 %v2107, %v2112
    %s2114 = scalar_lea.vmem [#allocation2], 64
    %v2115 = vld [vmem:[%s2114] sm:$0xff]
    %v2116 = vld [vmem:[%s2114 + $0x8] sm:$0xff]
    %v2117 = vld [vmem:[%s2114 + $0x10] sm:$0xff]
    %v2118 = vld [vmem:[%s2114 + $0x18] sm:$0xff]
    %v2119 = vpack.c.bf16 %v1997, %v1997
    %2120 = vmatprep.subr.bf16.mxu0 %v1433
    %2121 = vmatpush1.bf16.msra.mxu0 %v1432
    %2122 = vmatprep.subr.bf16.mxu0 %v1437
    %2123 = vmatpush1.bf16.msra.mxu0 %v1436
    %2124 = vmatprep.subr.bf16.mxu0 %v1441
    %2125 = vmatpush1.bf16.msra.mxu0 %v1440
    %2126 = vmatprep.subr.bf16.mxu0 %v1445
    %2127 = vmatpush1.bf16.msra.mxu0 %v1444
    %2128 = vmatprep.subr.bf16.mxu0 %v1449
    %2129 = vmatpush1.bf16.msra.mxu0 %v1448
    %2130 = vmatprep.subr.bf16.mxu0 %v1453
    %2131 = vmatpush1.bf16.msra.mxu0 %v1452
    %2132 = vmatprep.subr.bf16.mxu0 %v1457
    %2133 = vmatpush1.bf16.msra.mxu0 %v1456
    %2134 = vmatprep.subr.bf16.mxu0 %v1461
    %2135 = vmatpush1.bf16.msra.mxu0 %v1460
    %2136 = vmatprep.subr.bf16.mxu0 0
    %2137 = vmatpush1.bf16.msra.mxu0 0
    %2138 = vmatprep.subr.bf16.mxu0 0
    %2139 = vmatpush1.bf16.msra.mxu0 0
    %2140 = vmatprep.subr.bf16.mxu0 0
    %2141 = vmatpush1.bf16.msra.mxu0 0
    %2142 = vmatprep.subr.bf16.mxu0 0
    %2143 = vmatpush1.bf16.msra.mxu0 0
    %2144 = vmatprep.subr.bf16.mxu0 0
    %2145 = vmatpush1.bf16.msra.mxu0 0
    %2146 = vmatprep.subr.bf16.mxu0 0
    %2147 = vmatpush1.bf16.msra.mxu0 0
    %2148 = vmatprep.subr.bf16.mxu0 0
    %2149 = vmatpush1.bf16.msra.mxu0 0
    %2150 = vmatprep.subr.bf16.mxu0 0
    %2151 = vmatpush1.bf16.msra.mxu0 0
    %2152 = vmatprep.mubr.bf16.mxu0 0
    %2153 = vmatmul.mubr.bf16.gmra.mrb[0].mxu0 %v2119
    %v2154 = vpop.f32.mrb[0].mxu0
    %v2155 = vadd.f32 0.0, %v2154
    %v2156 = vpop.f32.mrb[0].mxu0
    %v2157 = vadd.f32 0.0, %v2156
    %v2158 = vpop.f32.mrb[0].mxu0
    %v2159 = vpop.f32.mrb[0].mxu0
    %2160 = vdwg.mxu0
    %2161 = vmatprep.subr.bf16.mxu0 %v1435
    %2162 = vmatpush1.bf16.msra.mxu0 %v1434
    %2163 = vmatprep.subr.bf16.mxu0 %v1439
    %2164 = vmatpush1.bf16.msra.mxu0 %v1438
    %2165 = vmatprep.subr.bf16.mxu0 %v1443
    %2166 = vmatpush1.bf16.msra.mxu0 %v1442
    %2167 = vmatprep.subr.bf16.mxu0 %v1447
    %2168 = vmatpush1.bf16.msra.mxu0 %v1446
    %2169 = vmatprep.subr.bf16.mxu0 %v1451
    %2170 = vmatpush1.bf16.msra.mxu0 %v1450
    %2171 = vmatprep.subr.bf16.mxu0 %v1455
    %2172 = vmatpush1.bf16.msra.mxu0 %v1454
    %2173 = vmatprep.subr.bf16.mxu0 %v1459
    %2174 = vmatpush1.bf16.msra.mxu0 %v1458
    %2175 = vmatprep.subr.bf16.mxu0 %v1463
    %2176 = vmatpush1.bf16.msra.mxu0 %v1462
    %2177 = vmatprep.subr.bf16.mxu0 0
    %2178 = vmatpush1.bf16.msra.mxu0 0
    %2179 = vmatprep.subr.bf16.mxu0 0
    %2180 = vmatpush1.bf16.msra.mxu0 0
    %2181 = vmatprep.subr.bf16.mxu0 0
    %2182 = vmatpush1.bf16.msra.mxu0 0
    %2183 = vmatprep.subr.bf16.mxu0 0
    %2184 = vmatpush1.bf16.msra.mxu0 0
    %2185 = vmatprep.subr.bf16.mxu0 0
    %2186 = vmatpush1.bf16.msra.mxu0 0
    %2187 = vmatprep.subr.bf16.mxu0 0
    %2188 = vmatpush1.bf16.msra.mxu0 0
    %2189 = vmatprep.subr.bf16.mxu0 0
    %2190 = vmatpush1.bf16.msra.mxu0 0
    %2191 = vmatprep.subr.bf16.mxu0 0
    %2192 = vmatpush1.bf16.msra.mxu0 0
    %2193 = vmatprep.mubr.bf16.mxu0 0
    %2194 = vmatmul.mubr.bf16.gmra.mrb[0].mxu0 %v2119
    %v2195 = vpop.f32.mrb[0].mxu0
    %v2196 = vadd.f32 0.0, %v2195
    %v2197 = vpop.f32.mrb[0].mxu0
    %v2198 = vadd.f32 0.0, %v2197
    %v2199 = vpop.f32.mrb[0].mxu0
    %v2200 = vpop.f32.mrb[0].mxu0
    %2201 = vdwg.mxu0
    %v2202 = vadd.f32 %v2115, %v2155
    %v2203 = vadd.f32 %v2116, %v2157
    %v2204 = vadd.f32 %v2117, %v2196
    %v2205 = vadd.f32 %v2118, %v2198
    %v2206 = vxor.u32 %v2202, 2147483648
    %v2207 = vxor.u32 %v2203, 2147483648
    %v2208 = vxor.u32 %v2204, 2147483648
    %v2209 = vmul.f32 %v2206, 1.442695
    %v2210 = vpow.pop %v2209
    %v2211 = vmul.f32 %v2207, 1.442695
    %v2212 = vpow.pop %v2211
    %v2213 = vmul.f32 %v2208, 1.442695
    %v2214 = vpow.pop %v2213
    %v2215 = vadd.f32 %v2210, 1.0
    %v2216 = vadd.f32 %v2212, 1.0
    %v2217 = vadd.f32 %v2214, 1.0
    %v2218 = vrcp.pop %v2215
    %v2219 = vmul.f32 1.0, %v2218
    %v2220 = vrcp.pop %v2216
    %v2221 = vmul.f32 1.0, %v2220
    %v2222 = vrcp.pop %v2217
    %v2223 = vmul.f32 1.0, %v2222
    %v2224 = vtanh.pop %v2205
    %v2225 = vmul.f32 %v2221, %v1995
    %v2226 = vmul.f32 %v2219, %v2224
    %v2227 = vadd.f32 %v2225, %v2226
    %v2228 = vtanh.pop %v2227
    %v2229 = vmul.f32 %v2223, %v2228
    %s2230 = scalar_lea.vmem [#allocation3], 416
    %v2231 = vld [vmem:[%s2230] sm:$0xff]
    %v2232 = vld [vmem:[%s2230 + $0x8] sm:$0xff]
    %v2233 = vld [vmem:[%s2230 + $0x10] sm:$0xff]
    %v2234 = vld [vmem:[%s2230 + $0x18] sm:$0xff]
    %v2235 = vpack.c.bf16 %v2113, %v2113
    %2236 = vmatprep.subr.bf16.mxu0 %v1709
    %2237 = vmatpush1.bf16.msra.mxu0 %v1708
    %2238 = vmatprep.subr.bf16.mxu0 %v1713
    %2239 = vmatpush1.bf16.msra.mxu0 %v1712
    %2240 = vmatprep.subr.bf16.mxu0 %v1717
    %2241 = vmatpush1.bf16.msra.mxu0 %v1716
    %2242 = vmatprep.subr.bf16.mxu0 %v1721
    %2243 = vmatpush1.bf16.msra.mxu0 %v1720
    %2244 = vmatprep.subr.bf16.mxu0 %v1725
    %2245 = vmatpush1.bf16.msra.mxu0 %v1724
    %2246 = vmatprep.subr.bf16.mxu0 %v1729
    %2247 = vmatpush1.bf16.msra.mxu0 %v1728
    %2248 = vmatprep.subr.bf16.mxu0 %v1733
    %2249 = vmatpush1.bf16.msra.mxu0 %v1732
    %2250 = vmatprep.subr.bf16.mxu0 %v1737
    %2251 = vmatpush1.bf16.msra.mxu0 %v1736
    %2252 = vmatprep.subr.bf16.mxu0 0
    %2253 = vmatpush1.bf16.msra.mxu0 0
    %2254 = vmatprep.subr.bf16.mxu0 0
    %2255 = vmatpush1.bf16.msra.mxu0 0
    %2256 = vmatprep.subr.bf16.mxu0 0
    %2257 = vmatpush1.bf16.msra.mxu0 0
    %2258 = vmatprep.subr.bf16.mxu0 0
    %2259 = vmatpush1.bf16.msra.mxu0 0
    %2260 = vmatprep.subr.bf16.mxu0 0
    %2261 = vmatpush1.bf16.msra.mxu0 0
    %2262 = vmatprep.subr.bf16.mxu0 0
    %2263 = vmatpush1.bf16.msra.mxu0 0
    %2264 = vmatprep.subr.bf16.mxu0 0
    %2265 = vmatpush1.bf16.msra.mxu0 0
    %2266 = vmatprep.subr.bf16.mxu0 0
    %2267 = vmatpush1.bf16.msra.mxu0 0
    %2268 = vmatprep.mubr.bf16.mxu0 0
    %2269 = vmatmul.mubr.bf16.gmra.mrb[0].mxu0 %v2235
    %v2270 = vpop.f32.mrb[0].mxu0
    %v2271 = vadd.f32 0.0, %v2270
    %v2272 = vpop.f32.mrb[0].mxu0
    %v2273 = vadd.f32 0.0, %v2272
    %v2274 = vpop.f32.mrb[0].mxu0
    %v2275 = vpop.f32.mrb[0].mxu0
    %2276 = vdwg.mxu0
    %2277 = vmatprep.subr.bf16.mxu0 %v1711
    %2278 = vmatpush1.bf16.msra.mxu0 %v1710
    %2279 = vmatprep.subr.bf16.mxu0 %v1715
    %2280 = vmatpush1.bf16.msra.mxu0 %v1714
    %2281 = vmatprep.subr.bf16.mxu0 %v1719
    %2282 = vmatpush1.bf16.msra.mxu0 %v1718
    %2283 = vmatprep.subr.bf16.mxu0 %v1723
    %2284 = vmatpush1.bf16.msra.mxu0 %v1722
    %2285 = vmatprep.subr.bf16.mxu0 %v1727
    %2286 = vmatpush1.bf16.msra.mxu0 %v1726
    %2287 = vmatprep.subr.bf16.mxu0 %v1731
    %2288 = vmatpush1.bf16.msra.mxu0 %v1730
    %2289 = vmatprep.subr.bf16.mxu0 %v1735
    %2290 = vmatpush1.bf16.msra.mxu0 %v1734
    %2291 = vmatprep.subr.bf16.mxu0 %v1739
    %2292 = vmatpush1.bf16.msra.mxu0 %v1738
    %2293 = vmatprep.subr.bf16.mxu0 0
    %2294 = vmatpush1.bf16.msra.mxu0 0
    %2295 = vmatprep.subr.bf16.mxu0 0
    %2296 = vmatpush1.bf16.msra.mxu0 0
    %2297 = vmatprep.subr.bf16.mxu0 0
    %2298 = vmatpush1.bf16.msra.mxu0 0
    %2299 = vmatprep.subr.bf16.mxu0 0
    %2300 = vmatpush1.bf16.msra.mxu0 0
    %2301 = vmatprep.subr.bf16.mxu0 0
    %2302 = vmatpush1.bf16.msra.mxu0 0
    %2303 = vmatprep.subr.bf16.mxu0 0
    %2304 = vmatpush1.bf16.msra.mxu0 0
    %2305 = vmatprep.subr.bf16.mxu0 0
    %2306 = vmatpush1.bf16.msra.mxu0 0
    %2307 = vmatprep.subr.bf16.mxu0 0
    %2308 = vmatpush1.bf16.msra.mxu0 0
    %2309 = vmatprep.mubr.bf16.mxu0 0
    %2310 = vmatmul.mubr.bf16.gmra.mrb[0].mxu0 %v2235
    %v2311 = vpop.f32.mrb[0].mxu0
    %v2312 = vadd.f32 0.0, %v2311
    %v2313 = vpop.f32.mrb[0].mxu0
    %v2314 = vadd.f32 0.0, %v2313
    %v2315 = vpop.f32.mrb[0].mxu0
    %v2316 = vpop.f32.mrb[0].mxu0
    %2317 = vdwg.mxu0
    %v2318 = vadd.f32 %v2231, %v2271
    %v2319 = vadd.f32 %v2232, %v2273
    %v2320 = vadd.f32 %v2233, %v2312
    %v2321 = vadd.f32 %v2234, %v2314
    %v2322 = vxor.u32 %v2318, 2147483648
    %v2323 = vxor.u32 %v2319, 2147483648
    %v2324 = vxor.u32 %v2320, 2147483648
    %v2325 = vmul.f32 %v2322, 1.442695
    %v2326 = vpow.pop %v2325
    %v2327 = vmul.f32 %v2323, 1.442695
    %v2328 = vpow.pop %v2327
    %v2329 = vmul.f32 %v2324, 1.442695
    %v2330 = vpow.pop %v2329
    %v2331 = vadd.f32 %v2326, 1.0
    %v2332 = vadd.f32 %v2328, 1.0
    %v2333 = vadd.f32 %v2330, 1.0
    %v2334 = vrcp.pop %v2331
    %v2335 = vmul.f32 1.0, %v2334
    %v2336 = vrcp.pop %v2332
    %v2337 = vmul.f32 1.0, %v2336
    %v2338 = vrcp.pop %v2333
    %v2339 = vmul.f32 1.0, %v2338
    %v2340 = vtanh.pop %v2321
    %v2341 = vmul.f32 %v2337, %v2111
    %v2342 = vmul.f32 %v2335, %v2340
    %v2343 = vadd.f32 %v2341, %v2342
    %v2344 = vtanh.pop %v2343
    %v2345 = vmul.f32 %v2339, %v2344
    %s2346 = scalar_lea.vmem [#allocation2], 96
    %v2347 = vld [vmem:[%s2346] sm:$0xff]
    %v2348 = vld [vmem:[%s2346 + $0x8] sm:$0xff]
    %v2349 = vld [vmem:[%s2346 + $0x10] sm:$0xff]
    %v2350 = vld [vmem:[%s2346 + $0x18] sm:$0xff]
    %v2351 = vpack.c.bf16 %v2229, %v2229
    %2352 = vmatprep.subr.bf16.mxu0 %v1433
    %2353 = vmatpush1.bf16.msra.mxu0 %v1432
    %2354 = vmatprep.subr.bf16.mxu0 %v1437
    %2355 = vmatpush1.bf16.msra.mxu0 %v1436
    %2356 = vmatprep.subr.bf16.mxu0 %v1441
    %2357 = vmatpush1.bf16.msra.mxu0 %v1440
    %2358 = vmatprep.subr.bf16.mxu0 %v1445
    %2359 = vmatpush1.bf16.msra.mxu0 %v1444
    %2360 = vmatprep.subr.bf16.mxu0 %v1449
    %2361 = vmatpush1.bf16.msra.mxu0 %v1448
    %2362 = vmatprep.subr.bf16.mxu0 %v1453
    %2363 = vmatpush1.bf16.msra.mxu0 %v1452
    %2364 = vmatprep.subr.bf16.mxu0 %v1457
    %2365 = vmatpush1.bf16.msra.mxu0 %v1456
    %2366 = vmatprep.subr.bf16.mxu0 %v1461
    %2367 = vmatpush1.bf16.msra.mxu0 %v1460
    %2368 = vmatprep.subr.bf16.mxu0 0
    %2369 = vmatpush1.bf16.msra.mxu0 0
    %2370 = vmatprep.subr.bf16.mxu0 0
    %2371 = vmatpush1.bf16.msra.mxu0 0
    %2372 = vmatprep.subr.bf16.mxu0 0
    %2373 = vmatpush1.bf16.msra.mxu0 0
    %2374 = vmatprep.subr.bf16.mxu0 0
    %2375 = vmatpush1.bf16.msra.mxu0 0
    %2376 = vmatprep.subr.bf16.mxu0 0
    %2377 = vmatpush1.bf16.msra.mxu0 0
    %2378 = vmatprep.subr.bf16.mxu0 0
    %2379 = vmatpush1.bf16.msra.mxu0 0
    %2380 = vmatprep.subr.bf16.mxu0 0
    %2381 = vmatpush1.bf16.msra.mxu0 0
    %2382 = vmatprep.subr.bf16.mxu0 0
    %2383 = vmatpush1.bf16.msra.mxu0 0
    %2384 = vmatprep.mubr.bf16.mxu0 0
    %2385 = vmatmul.mubr.bf16.gmra.mrb[0].mxu0 %v2351
    %v2386 = vpop.f32.mrb[0].mxu0
    %v2387 = vadd.f32 0.0, %v2386
    %v2388 = vpop.f32.mrb[0].mxu0
    %v2389 = vadd.f32 0.0, %v2388
    %v2390 = vpop.f32.mrb[0].mxu0
    %v2391 = vpop.f32.mrb[0].mxu0
    %2392 = vdwg.mxu0
    %2393 = vmatprep.subr.bf16.mxu0 %v1435
    %2394 = vmatpush1.bf16.msra.mxu0 %v1434
    %2395 = vmatprep.subr.bf16.mxu0 %v1439
    %2396 = vmatpush1.bf16.msra.mxu0 %v1438
    %2397 = vmatprep.subr.bf16.mxu0 %v1443
    %2398 = vmatpush1.bf16.msra.mxu0 %v1442
    %2399 = vmatprep.subr.bf16.mxu0 %v1447
    %2400 = vmatpush1.bf16.msra.mxu0 %v1446
    %2401 = vmatprep.subr.bf16.mxu0 %v1451
    %2402 = vmatpush1.bf16.msra.mxu0 %v1450
    %2403 = vmatprep.subr.bf16.mxu0 %v1455
    %2404 = vmatpush1.bf16.msra.mxu0 %v1454
    %2405 = vmatprep.subr.bf16.mxu0 %v1459
    %2406 = vmatpush1.bf16.msra.mxu0 %v1458
    %2407 = vmatprep.subr.bf16.mxu0 %v1463
    %2408 = vmatpush1.bf16.msra.mxu0 %v1462
    %2409 = vmatprep.subr.bf16.mxu0 0
    %2410 = vmatpush1.bf16.msra.mxu0 0
    %2411 = vmatprep.subr.bf16.mxu0 0
    %2412 = vmatpush1.bf16.msra.mxu0 0
    %2413 = vmatprep.subr.bf16.mxu0 0
    %2414 = vmatpush1.bf16.msra.mxu0 0
    %2415 = vmatprep.subr.bf16.mxu0 0
    %2416 = vmatpush1.bf16.msra.mxu0 0
    %2417 = vmatprep.subr.bf16.mxu0 0
    %2418 = vmatpush1.bf16.msra.mxu0 0
    %2419 = vmatprep.subr.bf16.mxu0 0
    %2420 = vmatpush1.bf16.msra.mxu0 0
    %2421 = vmatprep.subr.bf16.mxu0 0
    %2422 = vmatpush1.bf16.msra.mxu0 0
    %2423 = vmatprep.subr.bf16.mxu0 0
    %2424 = vmatpush1.bf16.msra.mxu0 0
    %2425 = vmatprep.mubr.bf16.mxu0 0
    %2426 = vmatmul.mubr.bf16.gmra.mrb[0].mxu0 %v2351
    %v2427 = vpop.f32.mrb[0].mxu0
    %v2428 = vadd.f32 0.0, %v2427
    %v2429 = vpop.f32.mrb[0].mxu0
    %v2430 = vadd.f32 0.0, %v2429
    %v2431 = vpop.f32.mrb[0].mxu0
    %v2432 = vpop.f32.mrb[0].mxu0
    %2433 = vdwg.mxu0
    %v2434 = vadd.f32 %v2347, %v2387
    %v2435 = vadd.f32 %v2348, %v2389
    %v2436 = vadd.f32 %v2349, %v2428
    %v2437 = vadd.f32 %v2350, %v2430
    %v2438 = vxor.u32 %v2434, 2147483648
    %v2439 = vxor.u32 %v2435, 2147483648
    %v2440 = vxor.u32 %v2436, 2147483648
    %v2441 = vmul.f32 %v2438, 1.442695
    %v2442 = vpow.pop %v2441
    %v2443 = vmul.f32 %v2439, 1.442695
    %v2444 = vpow.pop %v2443
    %v2445 = vmul.f32 %v2440, 1.442695
    %v2446 = vpow.pop %v2445
    %v2447 = vadd.f32 %v2442, 1.0
    %v2448 = vadd.f32 %v2444, 1.0
    %v2449 = vadd.f32 %v2446, 1.0
    %v2450 = vrcp.pop %v2447
    %v2451 = vmul.f32 1.0, %v2450
    %v2452 = vrcp.pop %v2448
    %v2453 = vmul.f32 1.0, %v2452
    %v2454 = vrcp.pop %v2449
    %v2455 = vmul.f32 1.0, %v2454
    %v2456 = vtanh.pop %v2437
    %v2457 = vmul.f32 %v2453, %v2227
    %v2458 = vmul.f32 %v2451, %v2456
    %v2459 = vadd.f32 %v2457, %v2458
    %v2460 = vtanh.pop %v2459
    %v2461 = vmul.f32 %v2455, %v2460
    %s2462 = scalar_lea.vmem [#allocation3], 384
    %v2463 = vld [vmem:[%s2462] sm:$0xff]
    %v2464 = vld [vmem:[%s2462 + $0x8] sm:$0xff]
    %v2465 = vld [vmem:[%s2462 + $0x10] sm:$0xff]
    %v2466 = vld [vmem:[%s2462 + $0x18] sm:$0xff]
    %v2467 = vpack.c.bf16 %v2345, %v2345
    %2468 = vmatprep.subr.bf16.mxu0 %v1709
    %2469 = vmatpush1.bf16.msra.mxu0 %v1708
    %2470 = vmatprep.subr.bf16.mxu0 %v1713
    %2471 = vmatpush1.bf16.msra.mxu0 %v1712
    %2472 = vmatprep.subr.bf16.mxu0 %v1717
    %2473 = vmatpush1.bf16.msra.mxu0 %v1716
    %2474 = vmatprep.subr.bf16.mxu0 %v1721
    %2475 = vmatpush1.bf16.msra.mxu0 %v1720
    %2476 = vmatprep.subr.bf16.mxu0 %v1725
    %2477 = vmatpush1.bf16.msra.mxu0 %v1724
    %2478 = vmatprep.subr.bf16.mxu0 %v1729
    %2479 = vmatpush1.bf16.msra.mxu0 %v1728
    %2480 = vmatprep.subr.bf16.mxu0 %v1733
    %2481 = vmatpush1.bf16.msra.mxu0 %v1732
    %2482 = vmatprep.subr.bf16.mxu0 %v1737
    %2483 = vmatpush1.bf16.msra.mxu0 %v1736
    %2484 = vmatprep.subr.bf16.mxu0 0
    %2485 = vmatpush1.bf16.msra.mxu0 0
    %2486 = vmatprep.subr.bf16.mxu0 0
    %2487 = vmatpush1.bf16.msra.mxu0 0
    %2488 = vmatprep.subr.bf16.mxu0 0
    %2489 = vmatpush1.bf16.msra.mxu0 0
    %2490 = vmatprep.subr.bf16.mxu0 0
    %2491 = vmatpush1.bf16.msra.mxu0 0
    %2492 = vmatprep.subr.bf16.mxu0 0
    %2493 = vmatpush1.bf16.msra.mxu0 0
    %2494 = vmatprep.subr.bf16.mxu0 0
    %2495 = vmatpush1.bf16.msra.mxu0 0
    %2496 = vmatprep.subr.bf16.mxu0 0
    %2497 = vmatpush1.bf16.msra.mxu0 0
    %2498 = vmatprep.subr.bf16.mxu0 0
    %2499 = vmatpush1.bf16.msra.mxu0 0
    %2500 = vmatprep.mubr.bf16.mxu0 0
    %2501 = vmatmul.mubr.bf16.gmra.mrb[0].mxu0 %v2467
    %v2502 = vpop.f32.mrb[0].mxu0
    %v2503 = vadd.f32 0.0, %v2502
    %v2504 = vpop.f32.mrb[0].mxu0
    %v2505 = vadd.f32 0.0, %v2504
    %v2506 = vpop.f32.mrb[0].mxu0
    %v2507 = vpop.f32.mrb[0].mxu0
    %2508 = vdwg.mxu0
    %2509 = vmatprep.subr.bf16.mxu0 %v1711
    %2510 = vmatpush1.bf16.msra.mxu0 %v1710
    %2511 = vmatprep.subr.bf16.mxu0 %v1715
    %2512 = vmatpush1.bf16.msra.mxu0 %v1714
    %2513 = vmatprep.subr.bf16.mxu0 %v1719
    %2514 = vmatpush1.bf16.msra.mxu0 %v1718
    %2515 = vmatprep.subr.bf16.mxu0 %v1723
    %2516 = vmatpush1.bf16.msra.mxu0 %v1722
    %2517 = vmatprep.subr.bf16.mxu0 %v1727
    %2518 = vmatpush1.bf16.msra.mxu0 %v1726
    %2519 = vmatprep.subr.bf16.mxu0 %v1731
    %2520 = vmatpush1.bf16.msra.mxu0 %v1730
    %2521 = vmatprep.subr.bf16.mxu0 %v1735
    %2522 = vmatpush1.bf16.msra.mxu0 %v1734
    %2523 = vmatprep.subr.bf16.mxu0 %v1739
    %2524 = vmatpush1.bf16.msra.mxu0 %v1738
    %2525 = vmatprep.subr.bf16.mxu0 0
    %2526 = vmatpush1.bf16.msra.mxu0 0
    %2527 = vmatprep.subr.bf16.mxu0 0
    %2528 = vmatpush1.bf16.msra.mxu0 0
    %2529 = vmatprep.subr.bf16.mxu0 0
    %2530 = vmatpush1.bf16.msra.mxu0 0
    %2531 = vmatprep.subr.bf16.mxu0 0
    %2532 = vmatpush1.bf16.msra.mxu0 0
    %2533 = vmatprep.subr.bf16.mxu0 0
    %2534 = vmatpush1.bf16.msra.mxu0 0
    %2535 = vmatprep.subr.bf16.mxu0 0
    %2536 = vmatpush1.bf16.msra.mxu0 0
    %2537 = vmatprep.subr.bf16.mxu0 0
    %2538 = vmatpush1.bf16.msra.mxu0 0
    %2539 = vmatprep.subr.bf16.mxu0 0
    %2540 = vmatpush1.bf16.msra.mxu0 0
    %2541 = vmatprep.mubr.bf16.mxu0 0
    %2542 = vmatmul.mubr.bf16.gmra.mrb[0].mxu0 %v2467
    %v2543 = vpop.f32.mrb[0].mxu0
    %v2544 = vadd.f32 0.0, %v2543
    %v2545 = vpop.f32.mrb[0].mxu0
    %v2546 = vadd.f32 0.0, %v2545
    %v2547 = vpop.f32.mrb[0].mxu0
    %v2548 = vpop.f32.mrb[0].mxu0
    %2549 = vdwg.mxu0
    %v2550 = vadd.f32 %v2463, %v2503
    %v2551 = vadd.f32 %v2464, %v2505
    %v2552 = vadd.f32 %v2465, %v2544
    %v2553 = vadd.f32 %v2466, %v2546
    %v2554 = vxor.u32 %v2550, 2147483648
    %v2555 = vxor.u32 %v2551, 2147483648
    %v2556 = vxor.u32 %v2552, 2147483648
    %v2557 = vmul.f32 %v2554, 1.442695
    %v2558 = vpow.pop %v2557
    %v2559 = vmul.f32 %v2555, 1.442695
    %v2560 = vpow.pop %v2559
    %v2561 = vmul.f32 %v2556, 1.442695
    %v2562 = vpow.pop %v2561
    %v2563 = vadd.f32 %v2558, 1.0
    %v2564 = vadd.f32 %v2560, 1.0
    %v2565 = vadd.f32 %v2562, 1.0
    %v2566 = vrcp.pop %v2563
    %v2567 = vmul.f32 1.0, %v2566
    %v2568 = vrcp.pop %v2564
    %v2569 = vmul.f32 1.0, %v2568
    %v2570 = vrcp.pop %v2565
    %v2571 = vmul.f32 1.0, %v2570
    %v2572 = vtanh.pop %v2553
    %v2573 = vmul.f32 %v2569, %v2343
    %v2574 = vmul.f32 %v2567, %v2572
    %v2575 = vadd.f32 %v2573, %v2574
    %v2576 = vtanh.pop %v2575
    %v2577 = vmul.f32 %v2571, %v2576
    %s2578 = scalar_lea.vmem [#allocation2], 128
    %v2579 = vld [vmem:[%s2578] sm:$0xff]
    %v2580 = vld [vmem:[%s2578 + $0x8] sm:$0xff]
    %v2581 = vld [vmem:[%s2578 + $0x10] sm:$0xff]
    %v2582 = vld [vmem:[%s2578 + $0x18] sm:$0xff]
    %v2583 = vpack.c.bf16 %v2461, %v2461
    %2584 = vmatprep.subr.bf16.mxu0 %v1433
    %2585 = vmatpush1.bf16.msra.mxu0 %v1432
    %2586 = vmatprep.subr.bf16.mxu0 %v1437
    %2587 = vmatpush1.bf16.msra.mxu0 %v1436
    %2588 = vmatprep.subr.bf16.mxu0 %v1441
    %2589 = vmatpush1.bf16.msra.mxu0 %v1440
    %2590 = vmatprep.subr.bf16.mxu0 %v1445
    %2591 = vmatpush1.bf16.msra.mxu0 %v1444
    %2592 = vmatprep.subr.bf16.mxu0 %v1449
    %2593 = vmatpush1.bf16.msra.mxu0 %v1448
    %2594 = vmatprep.subr.bf16.mxu0 %v1453
    %2595 = vmatpush1.bf16.msra.mxu0 %v1452
    %2596 = vmatprep.subr.bf16.mxu0 %v1457
    %2597 = vmatpush1.bf16.msra.mxu0 %v1456
    %2598 = vmatprep.subr.bf16.mxu0 %v1461
    %2599 = vmatpush1.bf16.msra.mxu0 %v1460
    %2600 = vmatprep.subr.bf16.mxu0 0
    %2601 = vmatpush1.bf16.msra.mxu0 0
    %2602 = vmatprep.subr.bf16.mxu0 0
    %2603 = vmatpush1.bf16.msra.mxu0 0
    %2604 = vmatprep.subr.bf16.mxu0 0
    %2605 = vmatpush1.bf16.msra.mxu0 0
    %2606 = vmatprep.subr.bf16.mxu0 0
    %2607 = vmatpush1.bf16.msra.mxu0 0
    %2608 = vmatprep.subr.bf16.mxu0 0
    %2609 = vmatpush1.bf16.msra.mxu0 0
    %2610 = vmatprep.subr.bf16.mxu0 0
    %2611 = vmatpush1.bf16.msra.mxu0 0
    %2612 = vmatprep.subr.bf16.mxu0 0
    %2613 = vmatpush1.bf16.msra.mxu0 0
    %2614 = vmatprep.subr.bf16.mxu0 0
    %2615 = vmatpush1.bf16.msra.mxu0 0
    %2616 = vmatprep.mubr.bf16.mxu0 0
    %2617 = vmatmul.mubr.bf16.gmra.mrb[0].mxu0 %v2583
    %v2618 = vpop.f32.mrb[0].mxu0
    %v2619 = vadd.f32 0.0, %v2618
    %v2620 = vpop.f32.mrb[0].mxu0
    %v2621 = vadd.f32 0.0, %v2620
    %v2622 = vpop.f32.mrb[0].mxu0
    %v2623 = vpop.f32.mrb[0].mxu0
    %2624 = vdwg.mxu0
    %2625 = vmatprep.subr.bf16.mxu0 %v1435
    %2626 = vmatpush1.bf16.msra.mxu0 %v1434
    %2627 = vmatprep.subr.bf16.mxu0 %v1439
    %2628 = vmatpush1.bf16.msra.mxu0 %v1438
    %2629 = vmatprep.subr.bf16.mxu0 %v1443
    %2630 = vmatpush1.bf16.msra.mxu0 %v1442
    %2631 = vmatprep.subr.bf16.mxu0 %v1447
    %2632 = vmatpush1.bf16.msra.mxu0 %v1446
    %2633 = vmatprep.subr.bf16.mxu0 %v1451
    %2634 = vmatpush1.bf16.msra.mxu0 %v1450
    %2635 = vmatprep.subr.bf16.mxu0 %v1455
    %2636 = vmatpush1.bf16.msra.mxu0 %v1454
    %2637 = vmatprep.subr.bf16.mxu0 %v1459
    %2638 = vmatpush1.bf16.msra.mxu0 %v1458
    %2639 = vmatprep.subr.bf16.mxu0 %v1463
    %2640 = vmatpush1.bf16.msra.mxu0 %v1462
    %2641 = vmatprep.subr.bf16.mxu0 0
    %2642 = vmatpush1.bf16.msra.mxu0 0
    %2643 = vmatprep.subr.bf16.mxu0 0
    %2644 = vmatpush1.bf16.msra.mxu0 0
    %2645 = vmatprep.subr.bf16.mxu0 0
    %2646 = vmatpush1.bf16.msra.mxu0 0
    %2647 = vmatprep.subr.bf16.mxu0 0
    %2648 = vmatpush1.bf16.msra.mxu0 0
    %2649 = vmatprep.subr.bf16.mxu0 0
    %2650 = vmatpush1.bf16.msra.mxu0 0
    %2651 = vmatprep.subr.bf16.mxu0 0
    %2652 = vmatpush1.bf16.msra.mxu0 0
    %2653 = vmatprep.subr.bf16.mxu0 0
    %2654 = vmatpush1.bf16.msra.mxu0 0
    %2655 = vmatprep.subr.bf16.mxu0 0
    %2656 = vmatpush1.bf16.msra.mxu0 0
    %2657 = vmatprep.mubr.bf16.mxu0 0
    %2658 = vmatmul.mubr.bf16.gmra.mrb[0].mxu0 %v2583
    %v2659 = vpop.f32.mrb[0].mxu0
    %v2660 = vadd.f32 0.0, %v2659
    %v2661 = vpop.f32.mrb[0].mxu0
    %v2662 = vadd.f32 0.0, %v2661
    %v2663 = vpop.f32.mrb[0].mxu0
    %v2664 = vpop.f32.mrb[0].mxu0
    %2665 = vdwg.mxu0
    %v2666 = vadd.f32 %v2579, %v2619
    %v2667 = vadd.f32 %v2580, %v2621
    %v2668 = vadd.f32 %v2581, %v2660
    %v2669 = vadd.f32 %v2582, %v2662
    %v2670 = vxor.u32 %v2666, 2147483648
    %v2671 = vxor.u32 %v2667, 2147483648
    %v2672 = vxor.u32 %v2668, 2147483648
    %v2673 = vmul.f32 %v2670, 1.442695
    %v2674 = vpow.pop %v2673
    %v2675 = vmul.f32 %v2671, 1.442695
    %v2676 = vpow.pop %v2675
    %v2677 = vmul.f32 %v2672, 1.442695
    %v2678 = vpow.pop %v2677
    %v2679 = vadd.f32 %v2674, 1.0
    %v2680 = vadd.f32 %v2676, 1.0
    %v2681 = vadd.f32 %v2678, 1.0
    %v2682 = vrcp.pop %v2679
    %v2683 = vmul.f32 1.0, %v2682
    %v2684 = vrcp.pop %v2680
    %v2685 = vmul.f32 1.0, %v2684
    %v2686 = vrcp.pop %v2681
    %v2687 = vmul.f32 1.0, %v2686
    %v2688 = vtanh.pop %v2669
    %v2689 = vmul.f32 %v2685, %v2459
    %v2690 = vmul.f32 %v2683, %v2688
    %v2691 = vadd.f32 %v2689, %v2690
    %v2692 = vtanh.pop %v2691
    %v2693 = vmul.f32 %v2687, %v2692
    %s2694 = scalar_lea.vmem [#allocation3], 352
    %v2695 = vld [vmem:[%s2694] sm:$0xff]
    %v2696 = vld [vmem:[%s2694 + $0x8] sm:$0xff]
    %v2697 = vld [vmem:[%s2694 + $0x10] sm:$0xff]
    %v2698 = vld [vmem:[%s2694 + $0x18] sm:$0xff]
    %v2699 = vpack.c.bf16 %v2577, %v2577
    %2700 = vmatprep.subr.bf16.mxu0 %v1709
    %2701 = vmatpush1.bf16.msra.mxu0 %v1708
    %2702 = vmatprep.subr.bf16.mxu0 %v1713
    %2703 = vmatpush1.bf16.msra.mxu0 %v1712
    %2704 = vmatprep.subr.bf16.mxu0 %v1717
    %2705 = vmatpush1.bf16.msra.mxu0 %v1716
    %2706 = vmatprep.subr.bf16.mxu0 %v1721
    %2707 = vmatpush1.bf16.msra.mxu0 %v1720
    %2708 = vmatprep.subr.bf16.mxu0 %v1725
    %2709 = vmatpush1.bf16.msra.mxu0 %v1724
    %2710 = vmatprep.subr.bf16.mxu0 %v1729
    %2711 = vmatpush1.bf16.msra.mxu0 %v1728
    %2712 = vmatprep.subr.bf16.mxu0 %v1733
    %2713 = vmatpush1.bf16.msra.mxu0 %v1732
    %2714 = vmatprep.subr.bf16.mxu0 %v1737
    %2715 = vmatpush1.bf16.msra.mxu0 %v1736
    %2716 = vmatprep.subr.bf16.mxu0 0
    %2717 = vmatpush1.bf16.msra.mxu0 0
    %2718 = vmatprep.subr.bf16.mxu0 0
    %2719 = vmatpush1.bf16.msra.mxu0 0
    %2720 = vmatprep.subr.bf16.mxu0 0
    %2721 = vmatpush1.bf16.msra.mxu0 0
    %2722 = vmatprep.subr.bf16.mxu0 0
    %2723 = vmatpush1.bf16.msra.mxu0 0
    %2724 = vmatprep.subr.bf16.mxu0 0
    %2725 = vmatpush1.bf16.msra.mxu0 0
    %2726 = vmatprep.subr.bf16.mxu0 0
    %2727 = vmatpush1.bf16.msra.mxu0 0
    %2728 = vmatprep.subr.bf16.mxu0 0
    %2729 = vmatpush1.bf16.msra.mxu0 0
    %2730 = vmatprep.subr.bf16.mxu0 0
    %2731 = vmatpush1.bf16.msra.mxu0 0
    %2732 = vmatprep.mubr.bf16.mxu0 0
    %2733 = vmatmul.mubr.bf16.gmra.mrb[0].mxu0 %v2699
    %v2734 = vpop.f32.mrb[0].mxu0
    %v2735 = vadd.f32 0.0, %v2734
    %v2736 = vpop.f32.mrb[0].mxu0
    %v2737 = vadd.f32 0.0, %v2736
    %v2738 = vpop.f32.mrb[0].mxu0
    %v2739 = vpop.f32.mrb[0].mxu0
    %2740 = vdwg.mxu0
    %2741 = vmatprep.subr.bf16.mxu0 %v1711
    %2742 = vmatpush1.bf16.msra.mxu0 %v1710
    %2743 = vmatprep.subr.bf16.mxu0 %v1715
    %2744 = vmatpush1.bf16.msra.mxu0 %v1714
    %2745 = vmatprep.subr.bf16.mxu0 %v1719
    %2746 = vmatpush1.bf16.msra.mxu0 %v1718
    %2747 = vmatprep.subr.bf16.mxu0 %v1723
    %2748 = vmatpush1.bf16.msra.mxu0 %v1722
    %2749 = vmatprep.subr.bf16.mxu0 %v1727
    %2750 = vmatpush1.bf16.msra.mxu0 %v1726
    %2751 = vmatprep.subr.bf16.mxu0 %v1731
    %2752 = vmatpush1.bf16.msra.mxu0 %v1730
    %2753 = vmatprep.subr.bf16.mxu0 %v1735
    %2754 = vmatpush1.bf16.msra.mxu0 %v1734
    %2755 = vmatprep.subr.bf16.mxu0 %v1739
    %2756 = vmatpush1.bf16.msra.mxu0 %v1738
    %2757 = vmatprep.subr.bf16.mxu0 0
    %2758 = vmatpush1.bf16.msra.mxu0 0
    %2759 = vmatprep.subr.bf16.mxu0 0
    %2760 = vmatpush1.bf16.msra.mxu0 0
    %2761 = vmatprep.subr.bf16.mxu0 0
    %2762 = vmatpush1.bf16.msra.mxu0 0
    %2763 = vmatprep.subr.bf16.mxu0 0
    %2764 = vmatpush1.bf16.msra.mxu0 0
    %2765 = vmatprep.subr.bf16.mxu0 0
    %2766 = vmatpush1.bf16.msra.mxu0 0
    %2767 = vmatprep.subr.bf16.mxu0 0
    %2768 = vmatpush1.bf16.msra.mxu0 0
    %2769 = vmatprep.subr.bf16.mxu0 0
    %2770 = vmatpush1.bf16.msra.mxu0 0
    %2771 = vmatprep.subr.bf16.mxu0 0
    %2772 = vmatpush1.bf16.msra.mxu0 0
    %2773 = vmatprep.mubr.bf16.mxu0 0
    %2774 = vmatmul.mubr.bf16.gmra.mrb[0].mxu0 %v2699
    %v2775 = vpop.f32.mrb[0].mxu0
    %v2776 = vadd.f32 0.0, %v2775
    %v2777 = vpop.f32.mrb[0].mxu0
    %v2778 = vadd.f32 0.0, %v2777
    %v2779 = vpop.f32.mrb[0].mxu0
    %v2780 = vpop.f32.mrb[0].mxu0
    %2781 = vdwg.mxu0
    %v2782 = vadd.f32 %v2695, %v2735
    %v2783 = vadd.f32 %v2696, %v2737
    %v2784 = vadd.f32 %v2697, %v2776
    %v2785 = vadd.f32 %v2698, %v2778
    %v2786 = vxor.u32 %v2782, 2147483648
    %v2787 = vxor.u32 %v2783, 2147483648
    %v2788 = vxor.u32 %v2784, 2147483648
    %v2789 = vmul.f32 %v2786, 1.442695
    %v2790 = vpow.pop %v2789
    %v2791 = vmul.f32 %v2787, 1.442695
    %v2792 = vpow.pop %v2791
    %v2793 = vmul.f32 %v2788, 1.442695
    %v2794 = vpow.pop %v2793
    %v2795 = vadd.f32 %v2790, 1.0
    %v2796 = vadd.f32 %v2792, 1.0
    %v2797 = vadd.f32 %v2794, 1.0
    %v2798 = vrcp.pop %v2795
    %v2799 = vmul.f32 1.0, %v2798
    %v2800 = vrcp.pop %v2796
    %v2801 = vmul.f32 1.0, %v2800
    %v2802 = vrcp.pop %v2797
    %v2803 = vmul.f32 1.0, %v2802
    %v2804 = vtanh.pop %v2785
    %v2805 = vmul.f32 %v2801, %v2575
    %v2806 = vmul.f32 %v2799, %v2804
    %v2807 = vadd.f32 %v2805, %v2806
    %v2808 = vtanh.pop %v2807
    %v2809 = vmul.f32 %v2803, %v2808
    %s2810 = scalar_lea.vmem [#allocation2], 160
    %v2811 = vld [vmem:[%s2810] sm:$0xff]
    %v2812 = vld [vmem:[%s2810 + $0x8] sm:$0xff]
    %v2813 = vld [vmem:[%s2810 + $0x10] sm:$0xff]
    %v2814 = vld [vmem:[%s2810 + $0x18] sm:$0xff]
    %v2815 = vpack.c.bf16 %v2693, %v2693
    %2816 = vmatprep.subr.bf16.mxu0 %v1433
    %2817 = vmatpush1.bf16.msra.mxu0 %v1432
    %2818 = vmatprep.subr.bf16.mxu0 %v1437
    %2819 = vmatpush1.bf16.msra.mxu0 %v1436
    %2820 = vmatprep.subr.bf16.mxu0 %v1441
    %2821 = vmatpush1.bf16.msra.mxu0 %v1440
    %2822 = vmatprep.subr.bf16.mxu0 %v1445
    %2823 = vmatpush1.bf16.msra.mxu0 %v1444
    %2824 = vmatprep.subr.bf16.mxu0 %v1449
    %2825 = vmatpush1.bf16.msra.mxu0 %v1448
    %2826 = vmatprep.subr.bf16.mxu0 %v1453
    %2827 = vmatpush1.bf16.msra.mxu0 %v1452
    %2828 = vmatprep.subr.bf16.mxu0 %v1457
    %2829 = vmatpush1.bf16.msra.mxu0 %v1456
    %2830 = vmatprep.subr.bf16.mxu0 %v1461
    %2831 = vmatpush1.bf16.msra.mxu0 %v1460
    %2832 = vmatprep.subr.bf16.mxu0 0
    %2833 = vmatpush1.bf16.msra.mxu0 0
    %2834 = vmatprep.subr.bf16.mxu0 0
    %2835 = vmatpush1.bf16.msra.mxu0 0
    %2836 = vmatprep.subr.bf16.mxu0 0
    %2837 = vmatpush1.bf16.msra.mxu0 0
    %2838 = vmatprep.subr.bf16.mxu0 0
    %2839 = vmatpush1.bf16.msra.mxu0 0
    %2840 = vmatprep.subr.bf16.mxu0 0
    %2841 = vmatpush1.bf16.msra.mxu0 0
    %2842 = vmatprep.subr.bf16.mxu0 0
    %2843 = vmatpush1.bf16.msra.mxu0 0
    %2844 = vmatprep.subr.bf16.mxu0 0
    %2845 = vmatpush1.bf16.msra.mxu0 0
    %2846 = vmatprep.subr.bf16.mxu0 0
    %2847 = vmatpush1.bf16.msra.mxu0 0
    %2848 = vmatprep.mubr.bf16.mxu0 0
    %2849 = vmatmul.mubr.bf16.gmra.mrb[0].mxu0 %v2815
    %v2850 = vpop.f32.mrb[0].mxu0
    %v2851 = vadd.f32 0.0, %v2850
    %v2852 = vpop.f32.mrb[0].mxu0
    %v2853 = vadd.f32 0.0, %v2852
    %v2854 = vpop.f32.mrb[0].mxu0
    %v2855 = vpop.f32.mrb[0].mxu0
    %2856 = vdwg.mxu0
    %2857 = vmatprep.subr.bf16.mxu0 %v1435
    %2858 = vmatpush1.bf16.msra.mxu0 %v1434
    %2859 = vmatprep.subr.bf16.mxu0 %v1439
    %2860 = vmatpush1.bf16.msra.mxu0 %v1438
    %2861 = vmatprep.subr.bf16.mxu0 %v1443
    %2862 = vmatpush1.bf16.msra.mxu0 %v1442
    %2863 = vmatprep.subr.bf16.mxu0 %v1447
    %2864 = vmatpush1.bf16.msra.mxu0 %v1446
    %2865 = vmatprep.subr.bf16.mxu0 %v1451
    %2866 = vmatpush1.bf16.msra.mxu0 %v1450
    %2867 = vmatprep.subr.bf16.mxu0 %v1455
    %2868 = vmatpush1.bf16.msra.mxu0 %v1454
    %2869 = vmatprep.subr.bf16.mxu0 %v1459
    %2870 = vmatpush1.bf16.msra.mxu0 %v1458
    %2871 = vmatprep.subr.bf16.mxu0 %v1463
    %2872 = vmatpush1.bf16.msra.mxu0 %v1462
    %2873 = vmatprep.subr.bf16.mxu0 0
    %2874 = vmatpush1.bf16.msra.mxu0 0
    %2875 = vmatprep.subr.bf16.mxu0 0
    %2876 = vmatpush1.bf16.msra.mxu0 0
    %2877 = vmatprep.subr.bf16.mxu0 0
    %2878 = vmatpush1.bf16.msra.mxu0 0
    %2879 = vmatprep.subr.bf16.mxu0 0
    %2880 = vmatpush1.bf16.msra.mxu0 0
    %2881 = vmatprep.subr.bf16.mxu0 0
    %2882 = vmatpush1.bf16.msra.mxu0 0
    %2883 = vmatprep.subr.bf16.mxu0 0
    %2884 = vmatpush1.bf16.msra.mxu0 0
    %2885 = vmatprep.subr.bf16.mxu0 0
    %2886 = vmatpush1.bf16.msra.mxu0 0
    %2887 = vmatprep.subr.bf16.mxu0 0
    %2888 = vmatpush1.bf16.msra.mxu0 0
    %2889 = vmatprep.mubr.bf16.mxu0 0
    %2890 = vmatmul.mubr.bf16.gmra.mrb[0].mxu0 %v2815
    %v2891 = vpop.f32.mrb[0].mxu0
    %v2892 = vadd.f32 0.0, %v2891
    %v2893 = vpop.f32.mrb[0].mxu0
    %v2894 = vadd.f32 0.0, %v2893
    %v2895 = vpop.f32.mrb[0].mxu0
    %v2896 = vpop.f32.mrb[0].mxu0
    %2897 = vdwg.mxu0
    %v2898 = vadd.f32 %v2811, %v2851
    %v2899 = vadd.f32 %v2812, %v2853
    %v2900 = vadd.f32 %v2813, %v2892
    %v2901 = vadd.f32 %v2814, %v2894
    %v2902 = vxor.u32 %v2898, 2147483648
    %v2903 = vxor.u32 %v2899, 2147483648
    %v2904 = vxor.u32 %v2900, 2147483648
    %v2905 = vmul.f32 %v2902, 1.442695
    %v2906 = vpow.pop %v2905
    %v2907 = vmul.f32 %v2903, 1.442695
    %v2908 = vpow.pop %v2907
    %v2909 = vmul.f32 %v2904, 1.442695
    %v2910 = vpow.pop %v2909
    %v2911 = vadd.f32 %v2906, 1.0
    %v2912 = vadd.f32 %v2908, 1.0
    %v2913 = vadd.f32 %v2910, 1.0
    %v2914 = vrcp.pop %v2911
    %v2915 = vmul.f32 1.0, %v2914
    %v2916 = vrcp.pop %v2912
    %v2917 = vmul.f32 1.0, %v2916
    %v2918 = vrcp.pop %v2913
    %v2919 = vmul.f32 1.0, %v2918
    %v2920 = vtanh.pop %v2901
    %v2921 = vmul.f32 %v2917, %v2691
    %v2922 = vmul.f32 %v2915, %v2920
    %v2923 = vadd.f32 %v2921, %v2922
    %v2924 = vtanh.pop %v2923
    %v2925 = vmul.f32 %v2919, %v2924
    %s2926 = scalar_lea.vmem [#allocation3], 320
    %v2927 = vld [vmem:[%s2926] sm:$0xff]
    %v2928 = vld [vmem:[%s2926 + $0x8] sm:$0xff]
    %v2929 = vld [vmem:[%s2926 + $0x10] sm:$0xff]
    %v2930 = vld [vmem:[%s2926 + $0x18] sm:$0xff]
    %v2931 = vpack.c.bf16 %v2809, %v2809
    %2932 = vmatprep.subr.bf16.mxu0 %v1709
    %2933 = vmatpush1.bf16.msra.mxu0 %v1708
    %2934 = vmatprep.subr.bf16.mxu0 %v1713
    %2935 = vmatpush1.bf16.msra.mxu0 %v1712
    %2936 = vmatprep.subr.bf16.mxu0 %v1717
    %2937 = vmatpush1.bf16.msra.mxu0 %v1716
    %2938 = vmatprep.subr.bf16.mxu0 %v1721
    %2939 = vmatpush1.bf16.msra.mxu0 %v1720
    %2940 = vmatprep.subr.bf16.mxu0 %v1725
    %2941 = vmatpush1.bf16.msra.mxu0 %v1724
    %2942 = vmatprep.subr.bf16.mxu0 %v1729
    %2943 = vmatpush1.bf16.msra.mxu0 %v1728
    %2944 = vmatprep.subr.bf16.mxu0 %v1733
    %2945 = vmatpush1.bf16.msra.mxu0 %v1732
    %2946 = vmatprep.subr.bf16.mxu0 %v1737
    %2947 = vmatpush1.bf16.msra.mxu0 %v1736
    %2948 = vmatprep.subr.bf16.mxu0 0
    %2949 = vmatpush1.bf16.msra.mxu0 0
    %2950 = vmatprep.subr.bf16.mxu0 0
    %2951 = vmatpush1.bf16.msra.mxu0 0
    %2952 = vmatprep.subr.bf16.mxu0 0
    %2953 = vmatpush1.bf16.msra.mxu0 0
    %2954 = vmatprep.subr.bf16.mxu0 0
    %2955 = vmatpush1.bf16.msra.mxu0 0
    %2956 = vmatprep.subr.bf16.mxu0 0
    %2957 = vmatpush1.bf16.msra.mxu0 0
    %2958 = vmatprep.subr.bf16.mxu0 0
    %2959 = vmatpush1.bf16.msra.mxu0 0
    %2960 = vmatprep.subr.bf16.mxu0 0
    %2961 = vmatpush1.bf16.msra.mxu0 0
    %2962 = vmatprep.subr.bf16.mxu0 0
    %2963 = vmatpush1.bf16.msra.mxu0 0
    %2964 = vmatprep.mubr.bf16.mxu0 0
    %2965 = vmatmul.mubr.bf16.gmra.mrb[0].mxu0 %v2931
    %v2966 = vpop.f32.mrb[0].mxu0
    %v2967 = vadd.f32 0.0, %v2966
    %v2968 = vpop.f32.mrb[0].mxu0
    %v2969 = vadd.f32 0.0, %v2968
    %v2970 = vpop.f32.mrb[0].mxu0
    %v2971 = vpop.f32.mrb[0].mxu0
    %2972 = vdwg.mxu0
    %2973 = vmatprep.subr.bf16.mxu0 %v1711
    %2974 = vmatpush1.bf16.msra.mxu0 %v1710
    %2975 = vmatprep.subr.bf16.mxu0 %v1715
    %2976 = vmatpush1.bf16.msra.mxu0 %v1714
    %2977 = vmatprep.subr.bf16.mxu0 %v1719
    %2978 = vmatpush1.bf16.msra.mxu0 %v1718
    %2979 = vmatprep.subr.bf16.mxu0 %v1723
    %2980 = vmatpush1.bf16.msra.mxu0 %v1722
    %2981 = vmatprep.subr.bf16.mxu0 %v1727
    %2982 = vmatpush1.bf16.msra.mxu0 %v1726
    %2983 = vmatprep.subr.bf16.mxu0 %v1731
    %2984 = vmatpush1.bf16.msra.mxu0 %v1730
    %2985 = vmatprep.subr.bf16.mxu0 %v1735
    %2986 = vmatpush1.bf16.msra.mxu0 %v1734
    %2987 = vmatprep.subr.bf16.mxu0 %v1739
    %2988 = vmatpush1.bf16.msra.mxu0 %v1738
    %2989 = vmatprep.subr.bf16.mxu0 0
    %2990 = vmatpush1.bf16.msra.mxu0 0
    %2991 = vmatprep.subr.bf16.mxu0 0
    %2992 = vmatpush1.bf16.msra.mxu0 0
    %2993 = vmatprep.subr.bf16.mxu0 0
    %2994 = vmatpush1.bf16.msra.mxu0 0
    %2995 = vmatprep.subr.bf16.mxu0 0
    %2996 = vmatpush1.bf16.msra.mxu0 0
    %2997 = vmatprep.subr.bf16.mxu0 0
    %2998 = vmatpush1.bf16.msra.mxu0 0
    %2999 = vmatprep.subr.bf16.mxu0 0
    %3000 = vmatpush1.bf16.msra.mxu0 0
    %3001 = vmatprep.subr.bf16.mxu0 0
    %3002 = vmatpush1.bf16.msra.mxu0 0
    %3003 = vmatprep.subr.bf16.mxu0 0
    %3004 = vmatpush1.bf16.msra.mxu0 0
    %3005 = vmatprep.mubr.bf16.mxu0 0
    %3006 = vmatmul.mubr.bf16.gmra.mrb[0].mxu0 %v2931
    %v3007 = vpop.f32.mrb[0].mxu0
    %v3008 = vadd.f32 0.0, %v3007
    %v3009 = vpop.f32.mrb[0].mxu0
    %v3010 = vadd.f32 0.0, %v3009
    %v3011 = vpop.f32.mrb[0].mxu0
    %v3012 = vpop.f32.mrb[0].mxu0
    %3013 = vdwg.mxu0
    %v3014 = vadd.f32 %v2927, %v2967
    %v3015 = vadd.f32 %v2928, %v2969
    %v3016 = vadd.f32 %v2929, %v3008
    %v3017 = vadd.f32 %v2930, %v3010
    %v3018 = vxor.u32 %v3014, 2147483648
    %v3019 = vxor.u32 %v3015, 2147483648
    %v3020 = vxor.u32 %v3016, 2147483648
    %v3021 = vmul.f32 %v3018, 1.442695
    %v3022 = vpow.pop %v3021
    %v3023 = vmul.f32 %v3019, 1.442695
    %v3024 = vpow.pop %v3023
    %v3025 = vmul.f32 %v3020, 1.442695
    %v3026 = vpow.pop %v3025
    %v3027 = vadd.f32 %v3022, 1.0
    %v3028 = vadd.f32 %v3024, 1.0
    %v3029 = vadd.f32 %v3026, 1.0
    %v3030 = vrcp.pop %v3027
    %v3031 = vmul.f32 1.0, %v3030
    %v3032 = vrcp.pop %v3028
    %v3033 = vmul.f32 1.0, %v3032
    %v3034 = vrcp.pop %v3029
    %v3035 = vmul.f32 1.0, %v3034
    %v3036 = vtanh.pop %v3017
    %v3037 = vmul.f32 %v3033, %v2807
    %v3038 = vmul.f32 %v3031, %v3036
    %v3039 = vadd.f32 %v3037, %v3038
    %v3040 = vtanh.pop %v3039
    %v3041 = vmul.f32 %v3035, %v3040
    %s3042 = scalar_lea.vmem [#allocation2], 192
    %v3043 = vld [vmem:[%s3042] sm:$0xff]
    %v3044 = vld [vmem:[%s3042 + $0x8] sm:$0xff]
    %v3045 = vld [vmem:[%s3042 + $0x10] sm:$0xff]
    %v3046 = vld [vmem:[%s3042 + $0x18] sm:$0xff]
    %v3047 = vpack.c.bf16 %v2925, %v2925
    %3048 = vmatprep.subr.bf16.mxu0 %v1433
    %3049 = vmatpush1.bf16.msra.mxu0 %v1432
    %3050 = vmatprep.subr.bf16.mxu0 %v1437
    %3051 = vmatpush1.bf16.msra.mxu0 %v1436
    %3052 = vmatprep.subr.bf16.mxu0 %v1441
    %3053 = vmatpush1.bf16.msra.mxu0 %v1440
    %3054 = vmatprep.subr.bf16.mxu0 %v1445
    %3055 = vmatpush1.bf16.msra.mxu0 %v1444
    %3056 = vmatprep.subr.bf16.mxu0 %v1449
    %3057 = vmatpush1.bf16.msra.mxu0 %v1448
    %3058 = vmatprep.subr.bf16.mxu0 %v1453
    %3059 = vmatpush1.bf16.msra.mxu0 %v1452
    %3060 = vmatprep.subr.bf16.mxu0 %v1457
    %3061 = vmatpush1.bf16.msra.mxu0 %v1456
    %3062 = vmatprep.subr.bf16.mxu0 %v1461
    %3063 = vmatpush1.bf16.msra.mxu0 %v1460
    %3064 = vmatprep.subr.bf16.mxu0 0
    %3065 = vmatpush1.bf16.msra.mxu0 0
    %3066 = vmatprep.subr.bf16.mxu0 0
    %3067 = vmatpush1.bf16.msra.mxu0 0
    %3068 = vmatprep.subr.bf16.mxu0 0
    %3069 = vmatpush1.bf16.msra.mxu0 0
    %3070 = vmatprep.subr.bf16.mxu0 0
    %3071 = vmatpush1.bf16.msra.mxu0 0
    %3072 = vmatprep.subr.bf16.mxu0 0
    %3073 = vmatpush1.bf16.msra.mxu0 0
    %3074 = vmatprep.subr.bf16.mxu0 0
    %3075 = vmatpush1.bf16.msra.mxu0 0
    %3076 = vmatprep.subr.bf16.mxu0 0
    %3077 = vmatpush1.bf16.msra.mxu0 0
    %3078 = vmatprep.subr.bf16.mxu0 0
    %3079 = vmatpush1.bf16.msra.mxu0 0
    %3080 = vmatprep.mubr.bf16.mxu0 0
    %3081 = vmatmul.mubr.bf16.gmra.mrb[0].mxu0 %v3047
    %v3082 = vpop.f32.mrb[0].mxu0
    %v3083 = vadd.f32 0.0, %v3082
    %v3084 = vpop.f32.mrb[0].mxu0
    %v3085 = vadd.f32 0.0, %v3084
    %v3086 = vpop.f32.mrb[0].mxu0
    %v3087 = vpop.f32.mrb[0].mxu0
    %3088 = vdwg.mxu0
    %3089 = vmatprep.subr.bf16.mxu0 %v1435
    %3090 = vmatpush1.bf16.msra.mxu0 %v1434
    %3091 = vmatprep.subr.bf16.mxu0 %v1439
    %3092 = vmatpush1.bf16.msra.mxu0 %v1438
    %3093 = vmatprep.subr.bf16.mxu0 %v1443
    %3094 = vmatpush1.bf16.msra.mxu0 %v1442
    %3095 = vmatprep.subr.bf16.mxu0 %v1447
    %3096 = vmatpush1.bf16.msra.mxu0 %v1446
    %3097 = vmatprep.subr.bf16.mxu0 %v1451
    %3098 = vmatpush1.bf16.msra.mxu0 %v1450
    %3099 = vmatprep.subr.bf16.mxu0 %v1455
    %3100 = vmatpush1.bf16.msra.mxu0 %v1454
    %3101 = vmatprep.subr.bf16.mxu0 %v1459
    %3102 = vmatpush1.bf16.msra.mxu0 %v1458
    %3103 = vmatprep.subr.bf16.mxu0 %v1463
    %3104 = vmatpush1.bf16.msra.mxu0 %v1462
    %3105 = vmatprep.subr.bf16.mxu0 0
    %3106 = vmatpush1.bf16.msra.mxu0 0
    %3107 = vmatprep.subr.bf16.mxu0 0
    %3108 = vmatpush1.bf16.msra.mxu0 0
    %3109 = vmatprep.subr.bf16.mxu0 0
    %3110 = vmatpush1.bf16.msra.mxu0 0
    %3111 = vmatprep.subr.bf16.mxu0 0
    %3112 = vmatpush1.bf16.msra.mxu0 0
    %3113 = vmatprep.subr.bf16.mxu0 0
    %3114 = vmatpush1.bf16.msra.mxu0 0
    %3115 = vmatprep.subr.bf16.mxu0 0
    %3116 = vmatpush1.bf16.msra.mxu0 0
    %3117 = vmatprep.subr.bf16.mxu0 0
    %3118 = vmatpush1.bf16.msra.mxu0 0
    %3119 = vmatprep.subr.bf16.mxu0 0
    %3120 = vmatpush1.bf16.msra.mxu0 0
    %3121 = vmatprep.mubr.bf16.mxu0 0
    %3122 = vmatmul.mubr.bf16.gmra.mrb[0].mxu0 %v3047
    %v3123 = vpop.f32.mrb[0].mxu0
    %v3124 = vadd.f32 0.0, %v3123
    %v3125 = vpop.f32.mrb[0].mxu0
    %v3126 = vadd.f32 0.0, %v3125
    %v3127 = vpop.f32.mrb[0].mxu0
    %v3128 = vpop.f32.mrb[0].mxu0
    %3129 = vdwg.mxu0
    %v3130 = vadd.f32 %v3043, %v3083
    %v3131 = vadd.f32 %v3044, %v3085
    %v3132 = vadd.f32 %v3045, %v3124
    %v3133 = vadd.f32 %v3046, %v3126
    %v3134 = vxor.u32 %v3130, 2147483648
    %v3135 = vxor.u32 %v3131, 2147483648
    %v3136 = vxor.u32 %v3132, 2147483648
    %v3137 = vmul.f32 %v3134, 1.442695
    %v3138 = vpow.pop %v3137
    %v3139 = vmul.f32 %v3135, 1.442695
    %v3140 = vpow.pop %v3139
    %v3141 = vmul.f32 %v3136, 1.442695
    %v3142 = vpow.pop %v3141
    %v3143 = vadd.f32 %v3138, 1.0
    %v3144 = vadd.f32 %v3140, 1.0
    %v3145 = vadd.f32 %v3142, 1.0
    %v3146 = vrcp.pop %v3143
    %v3147 = vmul.f32 1.0, %v3146
    %v3148 = vrcp.pop %v3144
    %v3149 = vmul.f32 1.0, %v3148
    %v3150 = vrcp.pop %v3145
    %v3151 = vmul.f32 1.0, %v3150
    %v3152 = vtanh.pop %v3133
    %v3153 = vmul.f32 %v3149, %v2923
    %v3154 = vmul.f32 %v3147, %v3152
    %v3155 = vadd.f32 %v3153, %v3154
    %v3156 = vtanh.pop %v3155
    %v3157 = vmul.f32 %v3151, %v3156
    %s3158 = scalar_lea.vmem [#allocation3], 288
    %v3159 = vld [vmem:[%s3158] sm:$0xff]
    %v3160 = vld [vmem:[%s3158 + $0x8] sm:$0xff]
    %v3161 = vld [vmem:[%s3158 + $0x10] sm:$0xff]
    %v3162 = vld [vmem:[%s3158 + $0x18] sm:$0xff]
    %v3163 = vpack.c.bf16 %v3041, %v3041
    %3164 = vmatprep.subr.bf16.mxu0 %v1709
    %3165 = vmatpush1.bf16.msra.mxu0 %v1708
    %3166 = vmatprep.subr.bf16.mxu0 %v1713
    %3167 = vmatpush1.bf16.msra.mxu0 %v1712
    %3168 = vmatprep.subr.bf16.mxu0 %v1717
    %3169 = vmatpush1.bf16.msra.mxu0 %v1716
    %3170 = vmatprep.subr.bf16.mxu0 %v1721
    %3171 = vmatpush1.bf16.msra.mxu0 %v1720
    %3172 = vmatprep.subr.bf16.mxu0 %v1725
    %3173 = vmatpush1.bf16.msra.mxu0 %v1724
    %3174 = vmatprep.subr.bf16.mxu0 %v1729
    %3175 = vmatpush1.bf16.msra.mxu0 %v1728
    %3176 = vmatprep.subr.bf16.mxu0 %v1733
    %3177 = vmatpush1.bf16.msra.mxu0 %v1732
    %3178 = vmatprep.subr.bf16.mxu0 %v1737
    %3179 = vmatpush1.bf16.msra.mxu0 %v1736
    %3180 = vmatprep.subr.bf16.mxu0 0
    %3181 = vmatpush1.bf16.msra.mxu0 0
    %3182 = vmatprep.subr.bf16.mxu0 0
    %3183 = vmatpush1.bf16.msra.mxu0 0
    %3184 = vmatprep.subr.bf16.mxu0 0
    %3185 = vmatpush1.bf16.msra.mxu0 0
    %3186 = vmatprep.subr.bf16.mxu0 0
    %3187 = vmatpush1.bf16.msra.mxu0 0
    %3188 = vmatprep.subr.bf16.mxu0 0
    %3189 = vmatpush1.bf16.msra.mxu0 0
    %3190 = vmatprep.subr.bf16.mxu0 0
    %3191 = vmatpush1.bf16.msra.mxu0 0
    %3192 = vmatprep.subr.bf16.mxu0 0
    %3193 = vmatpush1.bf16.msra.mxu0 0
    %3194 = vmatprep.subr.bf16.mxu0 0
    %3195 = vmatpush1.bf16.msra.mxu0 0
    %3196 = vmatprep.mubr.bf16.mxu0 0
    %3197 = vmatmul.mubr.bf16.gmra.mrb[0].mxu0 %v3163
    %v3198 = vpop.f32.mrb[0].mxu0
    %v3199 = vadd.f32 0.0, %v3198
    %v3200 = vpop.f32.mrb[0].mxu0
    %v3201 = vadd.f32 0.0, %v3200
    %v3202 = vpop.f32.mrb[0].mxu0
    %v3203 = vpop.f32.mrb[0].mxu0
    %3204 = vdwg.mxu0
    %3205 = vmatprep.subr.bf16.mxu0 %v1711
    %3206 = vmatpush1.bf16.msra.mxu0 %v1710
    %3207 = vmatprep.subr.bf16.mxu0 %v1715
    %3208 = vmatpush1.bf16.msra.mxu0 %v1714
    %3209 = vmatprep.subr.bf16.mxu0 %v1719
    %3210 = vmatpush1.bf16.msra.mxu0 %v1718
    %3211 = vmatprep.subr.bf16.mxu0 %v1723
    %3212 = vmatpush1.bf16.msra.mxu0 %v1722
    %3213 = vmatprep.subr.bf16.mxu0 %v1727
    %3214 = vmatpush1.bf16.msra.mxu0 %v1726
    %3215 = vmatprep.subr.bf16.mxu0 %v1731
    %3216 = vmatpush1.bf16.msra.mxu0 %v1730
    %3217 = vmatprep.subr.bf16.mxu0 %v1735
    %3218 = vmatpush1.bf16.msra.mxu0 %v1734
    %3219 = vmatprep.subr.bf16.mxu0 %v1739
    %3220 = vmatpush1.bf16.msra.mxu0 %v1738
    %3221 = vmatprep.subr.bf16.mxu0 0
    %3222 = vmatpush1.bf16.msra.mxu0 0
    %3223 = vmatprep.subr.bf16.mxu0 0
    %3224 = vmatpush1.bf16.msra.mxu0 0
    %3225 = vmatprep.subr.bf16.mxu0 0
    %3226 = vmatpush1.bf16.msra.mxu0 0
    %3227 = vmatprep.subr.bf16.mxu0 0
    %3228 = vmatpush1.bf16.msra.mxu0 0
    %3229 = vmatprep.subr.bf16.mxu0 0
    %3230 = vmatpush1.bf16.msra.mxu0 0
    %3231 = vmatprep.subr.bf16.mxu0 0
    %3232 = vmatpush1.bf16.msra.mxu0 0
    %3233 = vmatprep.subr.bf16.mxu0 0
    %3234 = vmatpush1.bf16.msra.mxu0 0
    %3235 = vmatprep.subr.bf16.mxu0 0
    %3236 = vmatpush1.bf16.msra.mxu0 0
    %3237 = vmatprep.mubr.bf16.mxu0 0
    %3238 = vmatmul.mubr.bf16.gmra.mrb[0].mxu0 %v3163
    %v3239 = vpop.f32.mrb[0].mxu0
    %v3240 = vadd.f32 0.0, %v3239
    %v3241 = vpop.f32.mrb[0].mxu0
    %v3242 = vadd.f32 0.0, %v3241
    %v3243 = vpop.f32.mrb[0].mxu0
    %v3244 = vpop.f32.mrb[0].mxu0
    %3245 = vdwg.mxu0
    %v3246 = vadd.f32 %v3159, %v3199
    %v3247 = vadd.f32 %v3160, %v3201
    %v3248 = vadd.f32 %v3161, %v3240
    %v3249 = vadd.f32 %v3162, %v3242
    %v3250 = vxor.u32 %v3246, 2147483648
    %v3251 = vxor.u32 %v3247, 2147483648
    %v3252 = vxor.u32 %v3248, 2147483648
    %v3253 = vmul.f32 %v3250, 1.442695
    %v3254 = vpow.pop %v3253
    %v3255 = vmul.f32 %v3251, 1.442695
    %v3256 = vpow.pop %v3255
    %v3257 = vmul.f32 %v3252, 1.442695
    %v3258 = vpow.pop %v3257
    %v3259 = vadd.f32 %v3254, 1.0
    %v3260 = vadd.f32 %v3256, 1.0
    %v3261 = vadd.f32 %v3258, 1.0
    %v3262 = vrcp.pop %v3259
    %v3263 = vmul.f32 1.0, %v3262
    %v3264 = vrcp.pop %v3260
    %v3265 = vmul.f32 1.0, %v3264
    %v3266 = vrcp.pop %v3261
    %v3267 = vmul.f32 1.0, %v3266
    %v3268 = vtanh.pop %v3249
    %v3269 = vmul.f32 %v3265, %v3039
    %v3270 = vmul.f32 %v3263, %v3268
    %v3271 = vadd.f32 %v3269, %v3270
    %v3272 = vtanh.pop %v3271
    %v3273 = vmul.f32 %v3267, %v3272
    %s3274 = scalar_lea.vmem [#allocation2], 224
    %v3275 = vld [vmem:[%s3274] sm:$0xff]
    %v3276 = vld [vmem:[%s3274 + $0x8] sm:$0xff]
    %v3277 = vld [vmem:[%s3274 + $0x10] sm:$0xff]
    %v3278 = vld [vmem:[%s3274 + $0x18] sm:$0xff]
    %v3279 = vpack.c.bf16 %v3157, %v3157
    %3280 = vmatprep.subr.bf16.mxu0 %v1433
    %3281 = vmatpush1.bf16.msra.mxu0 %v1432
    %3282 = vmatprep.subr.bf16.mxu0 %v1437
    %3283 = vmatpush1.bf16.msra.mxu0 %v1436
    %3284 = vmatprep.subr.bf16.mxu0 %v1441
    %3285 = vmatpush1.bf16.msra.mxu0 %v1440
    %3286 = vmatprep.subr.bf16.mxu0 %v1445
    %3287 = vmatpush1.bf16.msra.mxu0 %v1444
    %3288 = vmatprep.subr.bf16.mxu0 %v1449
    %3289 = vmatpush1.bf16.msra.mxu0 %v1448
    %3290 = vmatprep.subr.bf16.mxu0 %v1453
    %3291 = vmatpush1.bf16.msra.mxu0 %v1452
    %3292 = vmatprep.subr.bf16.mxu0 %v1457
    %3293 = vmatpush1.bf16.msra.mxu0 %v1456
    %3294 = vmatprep.subr.bf16.mxu0 %v1461
    %3295 = vmatpush1.bf16.msra.mxu0 %v1460
    %3296 = vmatprep.subr.bf16.mxu0 0
    %3297 = vmatpush1.bf16.msra.mxu0 0
    %3298 = vmatprep.subr.bf16.mxu0 0
    %3299 = vmatpush1.bf16.msra.mxu0 0
    %3300 = vmatprep.subr.bf16.mxu0 0
    %3301 = vmatpush1.bf16.msra.mxu0 0
    %3302 = vmatprep.subr.bf16.mxu0 0
    %3303 = vmatpush1.bf16.msra.mxu0 0
    %3304 = vmatprep.subr.bf16.mxu0 0
    %3305 = vmatpush1.bf16.msra.mxu0 0
    %3306 = vmatprep.subr.bf16.mxu0 0
    %3307 = vmatpush1.bf16.msra.mxu0 0
    %3308 = vmatprep.subr.bf16.mxu0 0
    %3309 = vmatpush1.bf16.msra.mxu0 0
    %3310 = vmatprep.subr.bf16.mxu0 0
    %3311 = vmatpush1.bf16.msra.mxu0 0
    %3312 = vmatprep.mubr.bf16.mxu0 0
    %3313 = vmatmul.mubr.bf16.gmra.mrb[0].mxu0 %v3279
    %v3314 = vpop.f32.mrb[0].mxu0
    %v3315 = vadd.f32 0.0, %v3314
    %v3316 = vpop.f32.mrb[0].mxu0
    %v3317 = vadd.f32 0.0, %v3316
    %v3318 = vpop.f32.mrb[0].mxu0
    %v3319 = vpop.f32.mrb[0].mxu0
    %3320 = vdwg.mxu0
    %3321 = vmatprep.subr.bf16.mxu0 %v1435
    %3322 = vmatpush1.bf16.msra.mxu0 %v1434
    %3323 = vmatprep.subr.bf16.mxu0 %v1439
    %3324 = vmatpush1.bf16.msra.mxu0 %v1438
    %3325 = vmatprep.subr.bf16.mxu0 %v1443
    %3326 = vmatpush1.bf16.msra.mxu0 %v1442
    %3327 = vmatprep.subr.bf16.mxu0 %v1447
    %3328 = vmatpush1.bf16.msra.mxu0 %v1446
    %3329 = vmatprep.subr.bf16.mxu0 %v1451
    %3330 = vmatpush1.bf16.msra.mxu0 %v1450
    %3331 = vmatprep.subr.bf16.mxu0 %v1455
    %3332 = vmatpush1.bf16.msra.mxu0 %v1454
    %3333 = vmatprep.subr.bf16.mxu0 %v1459
    %3334 = vmatpush1.bf16.msra.mxu0 %v1458
    %3335 = vmatprep.subr.bf16.mxu0 %v1463
    %3336 = vmatpush1.bf16.msra.mxu0 %v1462
    %3337 = vmatprep.subr.bf16.mxu0 0
    %3338 = vmatpush1.bf16.msra.mxu0 0
    %3339 = vmatprep.subr.bf16.mxu0 0
    %3340 = vmatpush1.bf16.msra.mxu0 0
    %3341 = vmatprep.subr.bf16.mxu0 0
    %3342 = vmatpush1.bf16.msra.mxu0 0
    %3343 = vmatprep.subr.bf16.mxu0 0
    %3344 = vmatpush1.bf16.msra.mxu0 0
    %3345 = vmatprep.subr.bf16.mxu0 0
    %3346 = vmatpush1.bf16.msra.mxu0 0
    %3347 = vmatprep.subr.bf16.mxu0 0
    %3348 = vmatpush1.bf16.msra.mxu0 0
    %3349 = vmatprep.subr.bf16.mxu0 0
    %3350 = vmatpush1.bf16.msra.mxu0 0
    %3351 = vmatprep.subr.bf16.mxu0 0
    %3352 = vmatpush1.bf16.msra.mxu0 0
    %3353 = vmatprep.mubr.bf16.mxu0 0
    %3354 = vmatmul.mubr.bf16.gmra.mrb[0].mxu0 %v3279
    %v3355 = vpop.f32.mrb[0].mxu0
    %v3356 = vadd.f32 0.0, %v3355
    %v3357 = vpop.f32.mrb[0].mxu0
    %v3358 = vadd.f32 0.0, %v3357
    %v3359 = vpop.f32.mrb[0].mxu0
    %v3360 = vpop.f32.mrb[0].mxu0
    %3361 = vdwg.mxu0
    %v3362 = vadd.f32 %v3275, %v3315
    %v3363 = vadd.f32 %v3276, %v3317
    %v3364 = vadd.f32 %v3277, %v3356
    %v3365 = vadd.f32 %v3278, %v3358
    %v3366 = vxor.u32 %v3362, 2147483648
    %v3367 = vxor.u32 %v3363, 2147483648
    %v3368 = vxor.u32 %v3364, 2147483648
    %v3369 = vmul.f32 %v3366, 1.442695
    %v3370 = vpow.pop %v3369
    %v3371 = vmul.f32 %v3367, 1.442695
    %v3372 = vpow.pop %v3371
    %v3373 = vmul.f32 %v3368, 1.442695
    %v3374 = vpow.pop %v3373
    %v3375 = vadd.f32 %v3370, 1.0
    %v3376 = vadd.f32 %v3372, 1.0
    %v3377 = vadd.f32 %v3374, 1.0
    %v3378 = vrcp.pop %v3375
    %v3379 = vmul.f32 1.0, %v3378
    %v3380 = vrcp.pop %v3376
    %v3381 = vmul.f32 1.0, %v3380
    %v3382 = vrcp.pop %v3377
    %v3383 = vmul.f32 1.0, %v3382
    %v3384 = vtanh.pop %v3365
    %v3385 = vmul.f32 %v3381, %v3155
    %v3386 = vmul.f32 %v3379, %v3384
    %v3387 = vadd.f32 %v3385, %v3386
    %v3388 = vtanh.pop %v3387
    %v3389 = vmul.f32 %v3383, %v3388
    %s3390 = scalar_lea.vmem [#allocation3], 256
    %v3391 = vld [vmem:[%s3390] sm:$0xff]
    %v3392 = vld [vmem:[%s3390 + $0x8] sm:$0xff]
    %v3393 = vld [vmem:[%s3390 + $0x10] sm:$0xff]
    %v3394 = vld [vmem:[%s3390 + $0x18] sm:$0xff]
    %v3395 = vpack.c.bf16 %v3273, %v3273
    %3396 = vmatprep.subr.bf16.mxu0 %v1709
    %3397 = vmatpush1.bf16.msra.mxu0 %v1708
    %3398 = vmatprep.subr.bf16.mxu0 %v1713
    %3399 = vmatpush1.bf16.msra.mxu0 %v1712
    %3400 = vmatprep.subr.bf16.mxu0 %v1717
    %3401 = vmatpush1.bf16.msra.mxu0 %v1716
    %3402 = vmatprep.subr.bf16.mxu0 %v1721
    %3403 = vmatpush1.bf16.msra.mxu0 %v1720
    %3404 = vmatprep.subr.bf16.mxu0 %v1725
    %3405 = vmatpush1.bf16.msra.mxu0 %v1724
    %3406 = vmatprep.subr.bf16.mxu0 %v1729
    %3407 = vmatpush1.bf16.msra.mxu0 %v1728
    %3408 = vmatprep.subr.bf16.mxu0 %v1733
    %3409 = vmatpush1.bf16.msra.mxu0 %v1732
    %3410 = vmatprep.subr.bf16.mxu0 %v1737
    %3411 = vmatpush1.bf16.msra.mxu0 %v1736
    %3412 = vmatprep.subr.bf16.mxu0 0
    %3413 = vmatpush1.bf16.msra.mxu0 0
    %3414 = vmatprep.subr.bf16.mxu0 0
    %3415 = vmatpush1.bf16.msra.mxu0 0
    %3416 = vmatprep.subr.bf16.mxu0 0
    %3417 = vmatpush1.bf16.msra.mxu0 0
    %3418 = vmatprep.subr.bf16.mxu0 0
    %3419 = vmatpush1.bf16.msra.mxu0 0
    %3420 = vmatprep.subr.bf16.mxu0 0
    %3421 = vmatpush1.bf16.msra.mxu0 0
    %3422 = vmatprep.subr.bf16.mxu0 0
    %3423 = vmatpush1.bf16.msra.mxu0 0
    %3424 = vmatprep.subr.bf16.mxu0 0
    %3425 = vmatpush1.bf16.msra.mxu0 0
    %3426 = vmatprep.subr.bf16.mxu0 0
    %3427 = vmatpush1.bf16.msra.mxu0 0
    %3428 = vmatprep.mubr.bf16.mxu0 0
    %3429 = vmatmul.mubr.bf16.gmra.mrb[0].mxu0 %v3395
    %v3430 = vpop.f32.mrb[0].mxu0
    %v3431 = vadd.f32 0.0, %v3430
    %v3432 = vpop.f32.mrb[0].mxu0
    %v3433 = vadd.f32 0.0, %v3432
    %v3434 = vpop.f32.mrb[0].mxu0
    %v3435 = vpop.f32.mrb[0].mxu0
    %3436 = vdwg.mxu0
    %3437 = vmatprep.subr.bf16.mxu0 %v1711
    %3438 = vmatpush1.bf16.msra.mxu0 %v1710
    %3439 = vmatprep.subr.bf16.mxu0 %v1715
    %3440 = vmatpush1.bf16.msra.mxu0 %v1714
    %3441 = vmatprep.subr.bf16.mxu0 %v1719
    %3442 = vmatpush1.bf16.msra.mxu0 %v1718
    %3443 = vmatprep.subr.bf16.mxu0 %v1723
    %3444 = vmatpush1.bf16.msra.mxu0 %v1722
    %3445 = vmatprep.subr.bf16.mxu0 %v1727
    %3446 = vmatpush1.bf16.msra.mxu0 %v1726
    %3447 = vmatprep.subr.bf16.mxu0 %v1731
    %3448 = vmatpush1.bf16.msra.mxu0 %v1730
    %3449 = vmatprep.subr.bf16.mxu0 %v1735
    %3450 = vmatpush1.bf16.msra.mxu0 %v1734
    %3451 = vmatprep.subr.bf16.mxu0 %v1739
    %3452 = vmatpush1.bf16.msra.mxu0 %v1738
    %3453 = vmatprep.subr.bf16.mxu0 0
    %3454 = vmatpush1.bf16.msra.mxu0 0
    %3455 = vmatprep.subr.bf16.mxu0 0
    %3456 = vmatpush1.bf16.msra.mxu0 0
    %3457 = vmatprep.subr.bf16.mxu0 0
    %3458 = vmatpush1.bf16.msra.mxu0 0
    %3459 = vmatprep.subr.bf16.mxu0 0
    %3460 = vmatpush1.bf16.msra.mxu0 0
    %3461 = vmatprep.subr.bf16.mxu0 0
    %3462 = vmatpush1.bf16.msra.mxu0 0
    %3463 = vmatprep.subr.bf16.mxu0 0
    %3464 = vmatpush1.bf16.msra.mxu0 0
    %3465 = vmatprep.subr.bf16.mxu0 0
    %3466 = vmatpush1.bf16.msra.mxu0 0
    %3467 = vmatprep.subr.bf16.mxu0 0
    %3468 = vmatpush1.bf16.msra.mxu0 0
    %3469 = vmatprep.mubr.bf16.mxu0 0
    %3470 = vmatmul.mubr.bf16.gmra.mrb[0].mxu0 %v3395
    %v3471 = vpop.f32.mrb[0].mxu0
    %v3472 = vadd.f32 0.0, %v3471
    %v3473 = vpop.f32.mrb[0].mxu0
    %v3474 = vadd.f32 0.0, %v3473
    %v3475 = vpop.f32.mrb[0].mxu0
    %v3476 = vpop.f32.mrb[0].mxu0
    %3477 = vdwg.mxu0
    %v3478 = vadd.f32 %v3391, %v3431
    %v3479 = vadd.f32 %v3392, %v3433
    %v3480 = vadd.f32 %v3393, %v3472
    %v3481 = vadd.f32 %v3394, %v3474
    %v3482 = vxor.u32 %v3478, 2147483648
    %v3483 = vxor.u32 %v3479, 2147483648
    %v3484 = vxor.u32 %v3480, 2147483648
    %v3485 = vmul.f32 %v3482, 1.442695
    %v3486 = vpow.pop %v3485
    %v3487 = vmul.f32 %v3483, 1.442695
    %v3488 = vpow.pop %v3487
    %v3489 = vmul.f32 %v3484, 1.442695
    %v3490 = vpow.pop %v3489
    %v3491 = vadd.f32 %v3486, 1.0
    %v3492 = vadd.f32 %v3488, 1.0
    %v3493 = vadd.f32 %v3490, 1.0
    %v3494 = vrcp.pop %v3491
    %v3495 = vmul.f32 1.0, %v3494
    %v3496 = vrcp.pop %v3492
    %v3497 = vmul.f32 1.0, %v3496
    %v3498 = vrcp.pop %v3493
    %v3499 = vmul.f32 1.0, %v3498
    %v3500 = vtanh.pop %v3481
    %v3501 = vmul.f32 %v3497, %v3271
    %v3502 = vmul.f32 %v3495, %v3500
    %v3503 = vadd.f32 %v3501, %v3502
    %v3504 = vtanh.pop %v3503
    %v3505 = vmul.f32 %v3499, %v3504
    %s3506 = scalar_lea.vmem [#allocation2], 256
    %v3507 = vld [vmem:[%s3506] sm:$0xff]
    %v3508 = vld [vmem:[%s3506 + $0x8] sm:$0xff]
    %v3509 = vld [vmem:[%s3506 + $0x10] sm:$0xff]
    %v3510 = vld [vmem:[%s3506 + $0x18] sm:$0xff]
    %v3511 = vpack.c.bf16 %v3389, %v3389
    %3512 = vmatprep.subr.bf16.mxu0 %v1433
    %3513 = vmatpush1.bf16.msra.mxu0 %v1432
    %3514 = vmatprep.subr.bf16.mxu0 %v1437
    %3515 = vmatpush1.bf16.msra.mxu0 %v1436
    %3516 = vmatprep.subr.bf16.mxu0 %v1441
    %3517 = vmatpush1.bf16.msra.mxu0 %v1440
    %3518 = vmatprep.subr.bf16.mxu0 %v1445
    %3519 = vmatpush1.bf16.msra.mxu0 %v1444
    %3520 = vmatprep.subr.bf16.mxu0 %v1449
    %3521 = vmatpush1.bf16.msra.mxu0 %v1448
    %3522 = vmatprep.subr.bf16.mxu0 %v1453
    %3523 = vmatpush1.bf16.msra.mxu0 %v1452
    %3524 = vmatprep.subr.bf16.mxu0 %v1457
    %3525 = vmatpush1.bf16.msra.mxu0 %v1456
    %3526 = vmatprep.subr.bf16.mxu0 %v1461
    %3527 = vmatpush1.bf16.msra.mxu0 %v1460
    %3528 = vmatprep.subr.bf16.mxu0 0
    %3529 = vmatpush1.bf16.msra.mxu0 0
    %3530 = vmatprep.subr.bf16.mxu0 0
    %3531 = vmatpush1.bf16.msra.mxu0 0
    %3532 = vmatprep.subr.bf16.mxu0 0
    %3533 = vmatpush1.bf16.msra.mxu0 0
    %3534 = vmatprep.subr.bf16.mxu0 0
    %3535 = vmatpush1.bf16.msra.mxu0 0
    %3536 = vmatprep.subr.bf16.mxu0 0
    %3537 = vmatpush1.bf16.msra.mxu0 0
    %3538 = vmatprep.subr.bf16.mxu0 0
    %3539 = vmatpush1.bf16.msra.mxu0 0
    %3540 = vmatprep.subr.bf16.mxu0 0
    %3541 = vmatpush1.bf16.msra.mxu0 0
    %3542 = vmatprep.subr.bf16.mxu0 0
    %3543 = vmatpush1.bf16.msra.mxu0 0
    %3544 = vmatprep.mubr.bf16.mxu0 0
    %3545 = vmatmul.mubr.bf16.gmra.mrb[0].mxu0 %v3511
    %v3546 = vpop.f32.mrb[0].mxu0
    %v3547 = vadd.f32 0.0, %v3546
    %v3548 = vpop.f32.mrb[0].mxu0
    %v3549 = vadd.f32 0.0, %v3548
    %v3550 = vpop.f32.mrb[0].mxu0
    %v3551 = vpop.f32.mrb[0].mxu0
    %3552 = vdwg.mxu0
    %3553 = vmatprep.subr.bf16.mxu0 %v1435
    %3554 = vmatpush1.bf16.msra.mxu0 %v1434
    %3555 = vmatprep.subr.bf16.mxu0 %v1439
    %3556 = vmatpush1.bf16.msra.mxu0 %v1438
    %3557 = vmatprep.subr.bf16.mxu0 %v1443
    %3558 = vmatpush1.bf16.msra.mxu0 %v1442
    %3559 = vmatprep.subr.bf16.mxu0 %v1447
    %3560 = vmatpush1.bf16.msra.mxu0 %v1446
    %3561 = vmatprep.subr.bf16.mxu0 %v1451
    %3562 = vmatpush1.bf16.msra.mxu0 %v1450
    %3563 = vmatprep.subr.bf16.mxu0 %v1455
    %3564 = vmatpush1.bf16.msra.mxu0 %v1454
    %3565 = vmatprep.subr.bf16.mxu0 %v1459
    %3566 = vmatpush1.bf16.msra.mxu0 %v1458
    %3567 = vmatprep.subr.bf16.mxu0 %v1463
    %3568 = vmatpush1.bf16.msra.mxu0 %v1462
    %3569 = vmatprep.subr.bf16.mxu0 0
    %3570 = vmatpush1.bf16.msra.mxu0 0
    %3571 = vmatprep.subr.bf16.mxu0 0
    %3572 = vmatpush1.bf16.msra.mxu0 0
    %3573 = vmatprep.subr.bf16.mxu0 0
    %3574 = vmatpush1.bf16.msra.mxu0 0
    %3575 = vmatprep.subr.bf16.mxu0 0
    %3576 = vmatpush1.bf16.msra.mxu0 0
    %3577 = vmatprep.subr.bf16.mxu0 0
    %3578 = vmatpush1.bf16.msra.mxu0 0
    %3579 = vmatprep.subr.bf16.mxu0 0
    %3580 = vmatpush1.bf16.msra.mxu0 0
    %3581 = vmatprep.subr.bf16.mxu0 0
    %3582 = vmatpush1.bf16.msra.mxu0 0
    %3583 = vmatprep.subr.bf16.mxu0 0
    %3584 = vmatpush1.bf16.msra.mxu0 0
    %3585 = vmatprep.mubr.bf16.mxu0 0
    %3586 = vmatmul.mubr.bf16.gmra.mrb[0].mxu0 %v3511
    %v3587 = vpop.f32.mrb[0].mxu0
    %v3588 = vadd.f32 0.0, %v3587
    %v3589 = vpop.f32.mrb[0].mxu0
    %v3590 = vadd.f32 0.0, %v3589
    %v3591 = vpop.f32.mrb[0].mxu0
    %v3592 = vpop.f32.mrb[0].mxu0
    %3593 = vdwg.mxu0
    %v3594 = vadd.f32 %v3507, %v3547
    %v3595 = vadd.f32 %v3508, %v3549
    %v3596 = vadd.f32 %v3509, %v3588
    %v3597 = vadd.f32 %v3510, %v3590
    %v3598 = vxor.u32 %v3594, 2147483648
    %v3599 = vxor.u32 %v3595, 2147483648
    %v3600 = vxor.u32 %v3596, 2147483648
    %v3601 = vmul.f32 %v3598, 1.442695
    %v3602 = vpow.pop %v3601
    %v3603 = vmul.f32 %v3599, 1.442695
    %v3604 = vpow.pop %v3603
    %v3605 = vmul.f32 %v3600, 1.442695
    %v3606 = vpow.pop %v3605
    %v3607 = vadd.f32 %v3602, 1.0
    %v3608 = vadd.f32 %v3604, 1.0
    %v3609 = vadd.f32 %v3606, 1.0
    %v3610 = vrcp.pop %v3607
    %v3611 = vmul.f32 1.0, %v3610
    %v3612 = vrcp.pop %v3608
    %v3613 = vmul.f32 1.0, %v3612
    %v3614 = vrcp.pop %v3609
    %v3615 = vmul.f32 1.0, %v3614
    %v3616 = vtanh.pop %v3597
    %v3617 = vmul.f32 %v3613, %v3387
    %v3618 = vmul.f32 %v3611, %v3616
    %v3619 = vadd.f32 %v3617, %v3618
    %v3620 = vtanh.pop %v3619
    %v3621 = vmul.f32 %v3615, %v3620
    %s3622 = scalar_lea.vmem [#allocation3], 224
    %v3623 = vld [vmem:[%s3622] sm:$0xff]
    %v3624 = vld [vmem:[%s3622 + $0x8] sm:$0xff]
    %v3625 = vld [vmem:[%s3622 + $0x10] sm:$0xff]
    %v3626 = vld [vmem:[%s3622 + $0x18] sm:$0xff]
    %v3627 = vpack.c.bf16 %v3505, %v3505
    %3628 = vmatprep.subr.bf16.mxu0 %v1709
    %3629 = vmatpush1.bf16.msra.mxu0 %v1708
    %3630 = vmatprep.subr.bf16.mxu0 %v1713
    %3631 = vmatpush1.bf16.msra.mxu0 %v1712
    %3632 = vmatprep.subr.bf16.mxu0 %v1717
    %3633 = vmatpush1.bf16.msra.mxu0 %v1716
    %3634 = vmatprep.subr.bf16.mxu0 %v1721
    %3635 = vmatpush1.bf16.msra.mxu0 %v1720
    %3636 = vmatprep.subr.bf16.mxu0 %v1725
    %3637 = vmatpush1.bf16.msra.mxu0 %v1724
    %3638 = vmatprep.subr.bf16.mxu0 %v1729
    %3639 = vmatpush1.bf16.msra.mxu0 %v1728
    %3640 = vmatprep.subr.bf16.mxu0 %v1733
    %3641 = vmatpush1.bf16.msra.mxu0 %v1732
    %3642 = vmatprep.subr.bf16.mxu0 %v1737
    %3643 = vmatpush1.bf16.msra.mxu0 %v1736
    %3644 = vmatprep.subr.bf16.mxu0 0
    %3645 = vmatpush1.bf16.msra.mxu0 0
    %3646 = vmatprep.subr.bf16.mxu0 0
    %3647 = vmatpush1.bf16.msra.mxu0 0
    %3648 = vmatprep.subr.bf16.mxu0 0
    %3649 = vmatpush1.bf16.msra.mxu0 0
    %3650 = vmatprep.subr.bf16.mxu0 0
    %3651 = vmatpush1.bf16.msra.mxu0 0
    %3652 = vmatprep.subr.bf16.mxu0 0
    %3653 = vmatpush1.bf16.msra.mxu0 0
    %3654 = vmatprep.subr.bf16.mxu0 0
    %3655 = vmatpush1.bf16.msra.mxu0 0
    %3656 = vmatprep.subr.bf16.mxu0 0
    %3657 = vmatpush1.bf16.msra.mxu0 0
    %3658 = vmatprep.subr.bf16.mxu0 0
    %3659 = vmatpush1.bf16.msra.mxu0 0
    %3660 = vmatprep.mubr.bf16.mxu0 0
    %3661 = vmatmul.mubr.bf16.gmra.mrb[0].mxu0 %v3627
    %v3662 = vpop.f32.mrb[0].mxu0
    %v3663 = vadd.f32 0.0, %v3662
    %v3664 = vpop.f32.mrb[0].mxu0
    %v3665 = vadd.f32 0.0, %v3664
    %v3666 = vpop.f32.mrb[0].mxu0
    %v3667 = vpop.f32.mrb[0].mxu0
    %3668 = vdwg.mxu0
    %3669 = vmatprep.subr.bf16.mxu0 %v1711
    %3670 = vmatpush1.bf16.msra.mxu0 %v1710
    %3671 = vmatprep.subr.bf16.mxu0 %v1715
    %3672 = vmatpush1.bf16.msra.mxu0 %v1714
    %3673 = vmatprep.subr.bf16.mxu0 %v1719
    %3674 = vmatpush1.bf16.msra.mxu0 %v1718
    %3675 = vmatprep.subr.bf16.mxu0 %v1723
    %3676 = vmatpush1.bf16.msra.mxu0 %v1722
    %3677 = vmatprep.subr.bf16.mxu0 %v1727
    %3678 = vmatpush1.bf16.msra.mxu0 %v1726
    %3679 = vmatprep.subr.bf16.mxu0 %v1731
    %3680 = vmatpush1.bf16.msra.mxu0 %v1730
    %3681 = vmatprep.subr.bf16.mxu0 %v1735
    %3682 = vmatpush1.bf16.msra.mxu0 %v1734
    %3683 = vmatprep.subr.bf16.mxu0 %v1739
    %3684 = vmatpush1.bf16.msra.mxu0 %v1738
    %3685 = vmatprep.subr.bf16.mxu0 0
    %3686 = vmatpush1.bf16.msra.mxu0 0
    %3687 = vmatprep.subr.bf16.mxu0 0
    %3688 = vmatpush1.bf16.msra.mxu0 0
    %3689 = vmatprep.subr.bf16.mxu0 0
    %3690 = vmatpush1.bf16.msra.mxu0 0
    %3691 = vmatprep.subr.bf16.mxu0 0
    %3692 = vmatpush1.bf16.msra.mxu0 0
    %3693 = vmatprep.subr.bf16.mxu0 0
    %3694 = vmatpush1.bf16.msra.mxu0 0
    %3695 = vmatprep.subr.bf16.mxu0 0
    %3696 = vmatpush1.bf16.msra.mxu0 0
    %3697 = vmatprep.subr.bf16.mxu0 0
    %3698 = vmatpush1.bf16.msra.mxu0 0
    %3699 = vmatprep.subr.bf16.mxu0 0
    %3700 = vmatpush1.bf16.msra.mxu0 0
    %3701 = vmatprep.mubr.bf16.mxu0 0
    %3702 = vmatmul.mubr.bf16.gmra.mrb[0].mxu0 %v3627
    %v3703 = vpop.f32.mrb[0].mxu0
    %v3704 = vadd.f32 0.0, %v3703
    %v3705 = vpop.f32.mrb[0].mxu0
    %v3706 = vadd.f32 0.0, %v3705
    %v3707 = vpop.f32.mrb[0].mxu0
    %v3708 = vpop.f32.mrb[0].mxu0
    %3709 = vdwg.mxu0
    %v3710 = vadd.f32 %v3623, %v3663
    %v3711 = vadd.f32 %v3624, %v3665
    %v3712 = vadd.f32 %v3625, %v3704
    %v3713 = vadd.f32 %v3626, %v3706
    %v3714 = vxor.u32 %v3710, 2147483648
    %v3715 = vxor.u32 %v3711, 2147483648
    %v3716 = vxor.u32 %v3712, 2147483648
    %v3717 = vmul.f32 %v3714, 1.442695
    %v3718 = vpow.pop %v3717
    %v3719 = vmul.f32 %v3715, 1.442695
    %v3720 = vpow.pop %v3719
    %v3721 = vmul.f32 %v3716, 1.442695
    %v3722 = vpow.pop %v3721
    %v3723 = vadd.f32 %v3718, 1.0
    %v3724 = vadd.f32 %v3720, 1.0
    %v3725 = vadd.f32 %v3722, 1.0
    %v3726 = vrcp.pop %v3723
    %v3727 = vmul.f32 1.0, %v3726
    %v3728 = vrcp.pop %v3724
    %v3729 = vmul.f32 1.0, %v3728
    %v3730 = vrcp.pop %v3725
    %v3731 = vmul.f32 1.0, %v3730
    %v3732 = vtanh.pop %v3713
    %v3733 = vmul.f32 %v3729, %v3503
    %v3734 = vmul.f32 %v3727, %v3732
    %v3735 = vadd.f32 %v3733, %v3734
    %v3736 = vtanh.pop %v3735
    %v3737 = vmul.f32 %v3731, %v3736
    %s3738 = scalar_lea.vmem [#allocation2], 288
    %v3739 = vld [vmem:[%s3738] sm:$0xff]
    %v3740 = vld [vmem:[%s3738 + $0x8] sm:$0xff]
    %v3741 = vld [vmem:[%s3738 + $0x10] sm:$0xff]
    %v3742 = vld [vmem:[%s3738 + $0x18] sm:$0xff]
    %v3743 = vpack.c.bf16 %v3621, %v3621
    %3744 = vmatprep.subr.bf16.mxu0 %v1433
    %3745 = vmatpush1.bf16.msra.mxu0 %v1432
    %3746 = vmatprep.subr.bf16.mxu0 %v1437
    %3747 = vmatpush1.bf16.msra.mxu0 %v1436
    %3748 = vmatprep.subr.bf16.mxu0 %v1441
    %3749 = vmatpush1.bf16.msra.mxu0 %v1440
    %3750 = vmatprep.subr.bf16.mxu0 %v1445
    %3751 = vmatpush1.bf16.msra.mxu0 %v1444
    %3752 = vmatprep.subr.bf16.mxu0 %v1449
    %3753 = vmatpush1.bf16.msra.mxu0 %v1448
    %3754 = vmatprep.subr.bf16.mxu0 %v1453
    %3755 = vmatpush1.bf16.msra.mxu0 %v1452
    %3756 = vmatprep.subr.bf16.mxu0 %v1457
    %3757 = vmatpush1.bf16.msra.mxu0 %v1456
    %3758 = vmatprep.subr.bf16.mxu0 %v1461
    %3759 = vmatpush1.bf16.msra.mxu0 %v1460
    %3760 = vmatprep.subr.bf16.mxu0 0
    %3761 = vmatpush1.bf16.msra.mxu0 0
    %3762 = vmatprep.subr.bf16.mxu0 0
    %3763 = vmatpush1.bf16.msra.mxu0 0
    %3764 = vmatprep.subr.bf16.mxu0 0
    %3765 = vmatpush1.bf16.msra.mxu0 0
    %3766 = vmatprep.subr.bf16.mxu0 0
    %3767 = vmatpush1.bf16.msra.mxu0 0
    %3768 = vmatprep.subr.bf16.mxu0 0
    %3769 = vmatpush1.bf16.msra.mxu0 0
    %3770 = vmatprep.subr.bf16.mxu0 0
    %3771 = vmatpush1.bf16.msra.mxu0 0
    %3772 = vmatprep.subr.bf16.mxu0 0
    %3773 = vmatpush1.bf16.msra.mxu0 0
    %3774 = vmatprep.subr.bf16.mxu0 0
    %3775 = vmatpush1.bf16.msra.mxu0 0
    %3776 = vmatprep.mubr.bf16.mxu0 0
    %3777 = vmatmul.mubr.bf16.gmra.mrb[0].mxu0 %v3743
    %v3778 = vpop.f32.mrb[0].mxu0
    %v3779 = vadd.f32 0.0, %v3778
    %v3780 = vpop.f32.mrb[0].mxu0
    %v3781 = vadd.f32 0.0, %v3780
    %v3782 = vpop.f32.mrb[0].mxu0
    %v3783 = vpop.f32.mrb[0].mxu0
    %3784 = vdwg.mxu0
    %3785 = vmatprep.subr.bf16.mxu0 %v1435
    %3786 = vmatpush1.bf16.msra.mxu0 %v1434
    %3787 = vmatprep.subr.bf16.mxu0 %v1439
    %3788 = vmatpush1.bf16.msra.mxu0 %v1438
    %3789 = vmatprep.subr.bf16.mxu0 %v1443
    %3790 = vmatpush1.bf16.msra.mxu0 %v1442
    %3791 = vmatprep.subr.bf16.mxu0 %v1447
    %3792 = vmatpush1.bf16.msra.mxu0 %v1446
    %3793 = vmatprep.subr.bf16.mxu0 %v1451
    %3794 = vmatpush1.bf16.msra.mxu0 %v1450
    %3795 = vmatprep.subr.bf16.mxu0 %v1455
    %3796 = vmatpush1.bf16.msra.mxu0 %v1454
    %3797 = vmatprep.subr.bf16.mxu0 %v1459
    %3798 = vmatpush1.bf16.msra.mxu0 %v1458
    %3799 = vmatprep.subr.bf16.mxu0 %v1463
    %3800 = vmatpush1.bf16.msra.mxu0 %v1462
    %3801 = vmatprep.subr.bf16.mxu0 0
    %3802 = vmatpush1.bf16.msra.mxu0 0
    %3803 = vmatprep.subr.bf16.mxu0 0
    %3804 = vmatpush1.bf16.msra.mxu0 0
    %3805 = vmatprep.subr.bf16.mxu0 0
    %3806 = vmatpush1.bf16.msra.mxu0 0
    %3807 = vmatprep.subr.bf16.mxu0 0
    %3808 = vmatpush1.bf16.msra.mxu0 0
    %3809 = vmatprep.subr.bf16.mxu0 0
    %3810 = vmatpush1.bf16.msra.mxu0 0
    %3811 = vmatprep.subr.bf16.mxu0 0
    %3812 = vmatpush1.bf16.msra.mxu0 0
    %3813 = vmatprep.subr.bf16.mxu0 0
    %3814 = vmatpush1.bf16.msra.mxu0 0
    %3815 = vmatprep.subr.bf16.mxu0 0
    %3816 = vmatpush1.bf16.msra.mxu0 0
    %3817 = vmatprep.mubr.bf16.mxu0 0
    %3818 = vmatmul.mubr.bf16.gmra.mrb[0].mxu0 %v3743
    %v3819 = vpop.f32.mrb[0].mxu0
    %v3820 = vadd.f32 0.0, %v3819
    %v3821 = vpop.f32.mrb[0].mxu0
    %v3822 = vadd.f32 0.0, %v3821
    %v3823 = vpop.f32.mrb[0].mxu0
    %v3824 = vpop.f32.mrb[0].mxu0
    %3825 = vdwg.mxu0
    %v3826 = vadd.f32 %v3739, %v3779
    %v3827 = vadd.f32 %v3740, %v3781
    %v3828 = vadd.f32 %v3741, %v3820
    %v3829 = vadd.f32 %v3742, %v3822
    %v3830 = vxor.u32 %v3826, 2147483648
    %v3831 = vxor.u32 %v3827, 2147483648
    %v3832 = vxor.u32 %v3828, 2147483648
    %v3833 = vmul.f32 %v3830, 1.442695
    %v3834 = vpow.pop %v3833
    %v3835 = vmul.f32 %v3831, 1.442695
    %v3836 = vpow.pop %v3835
    %v3837 = vmul.f32 %v3832, 1.442695
    %v3838 = vpow.pop %v3837
    %v3839 = vadd.f32 %v3834, 1.0
    %v3840 = vadd.f32 %v3836, 1.0
    %v3841 = vadd.f32 %v3838, 1.0
    %v3842 = vrcp.pop %v3839
    %v3843 = vmul.f32 1.0, %v3842
    %v3844 = vrcp.pop %v3840
    %v3845 = vmul.f32 1.0, %v3844
    %v3846 = vrcp.pop %v3841
    %v3847 = vmul.f32 1.0, %v3846
    %v3848 = vtanh.pop %v3829
    %v3849 = vmul.f32 %v3845, %v3619
    %v3850 = vmul.f32 %v3843, %v3848
    %v3851 = vadd.f32 %v3849, %v3850
    %v3852 = vtanh.pop %v3851
    %v3853 = vmul.f32 %v3847, %v3852
    %s3854 = scalar_lea.vmem [#allocation3], 192
    %v3855 = vld [vmem:[%s3854] sm:$0xff]
    %v3856 = vld [vmem:[%s3854 + $0x8] sm:$0xff]
    %v3857 = vld [vmem:[%s3854 + $0x10] sm:$0xff]
    %v3858 = vld [vmem:[%s3854 + $0x18] sm:$0xff]
    %v3859 = vpack.c.bf16 %v3737, %v3737
    %3860 = vmatprep.subr.bf16.mxu0 %v1709
    %3861 = vmatpush1.bf16.msra.mxu0 %v1708
    %3862 = vmatprep.subr.bf16.mxu0 %v1713
    %3863 = vmatpush1.bf16.msra.mxu0 %v1712
    %3864 = vmatprep.subr.bf16.mxu0 %v1717
    %3865 = vmatpush1.bf16.msra.mxu0 %v1716
    %3866 = vmatprep.subr.bf16.mxu0 %v1721
    %3867 = vmatpush1.bf16.msra.mxu0 %v1720
    %3868 = vmatprep.subr.bf16.mxu0 %v1725
    %3869 = vmatpush1.bf16.msra.mxu0 %v1724
    %3870 = vmatprep.subr.bf16.mxu0 %v1729
    %3871 = vmatpush1.bf16.msra.mxu0 %v1728
    %3872 = vmatprep.subr.bf16.mxu0 %v1733
    %3873 = vmatpush1.bf16.msra.mxu0 %v1732
    %3874 = vmatprep.subr.bf16.mxu0 %v1737
    %3875 = vmatpush1.bf16.msra.mxu0 %v1736
    %3876 = vmatprep.subr.bf16.mxu0 0
    %3877 = vmatpush1.bf16.msra.mxu0 0
    %3878 = vmatprep.subr.bf16.mxu0 0
    %3879 = vmatpush1.bf16.msra.mxu0 0
    %3880 = vmatprep.subr.bf16.mxu0 0
    %3881 = vmatpush1.bf16.msra.mxu0 0
    %3882 = vmatprep.subr.bf16.mxu0 0
    %3883 = vmatpush1.bf16.msra.mxu0 0
    %3884 = vmatprep.subr.bf16.mxu0 0
    %3885 = vmatpush1.bf16.msra.mxu0 0
    %3886 = vmatprep.subr.bf16.mxu0 0
    %3887 = vmatpush1.bf16.msra.mxu0 0
    %3888 = vmatprep.subr.bf16.mxu0 0
    %3889 = vmatpush1.bf16.msra.mxu0 0
    %3890 = vmatprep.subr.bf16.mxu0 0
    %3891 = vmatpush1.bf16.msra.mxu0 0
    %3892 = vmatprep.mubr.bf16.mxu0 0
    %3893 = vmatmul.mubr.bf16.gmra.mrb[0].mxu0 %v3859
    %v3894 = vpop.f32.mrb[0].mxu0
    %v3895 = vadd.f32 0.0, %v3894
    %v3896 = vpop.f32.mrb[0].mxu0
    %v3897 = vadd.f32 0.0, %v3896
    %v3898 = vpop.f32.mrb[0].mxu0
    %v3899 = vpop.f32.mrb[0].mxu0
    %3900 = vdwg.mxu0
    %3901 = vmatprep.subr.bf16.mxu0 %v1711
    %3902 = vmatpush1.bf16.msra.mxu0 %v1710
    %3903 = vmatprep.subr.bf16.mxu0 %v1715
    %3904 = vmatpush1.bf16.msra.mxu0 %v1714
    %3905 = vmatprep.subr.bf16.mxu0 %v1719
    %3906 = vmatpush1.bf16.msra.mxu0 %v1718
    %3907 = vmatprep.subr.bf16.mxu0 %v1723
    %3908 = vmatpush1.bf16.msra.mxu0 %v1722
    %3909 = vmatprep.subr.bf16.mxu0 %v1727
    %3910 = vmatpush1.bf16.msra.mxu0 %v1726
    %3911 = vmatprep.subr.bf16.mxu0 %v1731
    %3912 = vmatpush1.bf16.msra.mxu0 %v1730
    %3913 = vmatprep.subr.bf16.mxu0 %v1735
    %3914 = vmatpush1.bf16.msra.mxu0 %v1734
    %3915 = vmatprep.subr.bf16.mxu0 %v1739
    %3916 = vmatpush1.bf16.msra.mxu0 %v1738
    %3917 = vmatprep.subr.bf16.mxu0 0
    %3918 = vmatpush1.bf16.msra.mxu0 0
    %3919 = vmatprep.subr.bf16.mxu0 0
    %3920 = vmatpush1.bf16.msra.mxu0 0
    %3921 = vmatprep.subr.bf16.mxu0 0
    %3922 = vmatpush1.bf16.msra.mxu0 0
    %3923 = vmatprep.subr.bf16.mxu0 0
    %3924 = vmatpush1.bf16.msra.mxu0 0
    %3925 = vmatprep.subr.bf16.mxu0 0
    %3926 = vmatpush1.bf16.msra.mxu0 0
    %3927 = vmatprep.subr.bf16.mxu0 0
    %3928 = vmatpush1.bf16.msra.mxu0 0
    %3929 = vmatprep.subr.bf16.mxu0 0
    %3930 = vmatpush1.bf16.msra.mxu0 0
    %3931 = vmatprep.subr.bf16.mxu0 0
    %3932 = vmatpush1.bf16.msra.mxu0 0
    %3933 = vmatprep.mubr.bf16.mxu0 0
    %3934 = vmatmul.mubr.bf16.gmra.mrb[0].mxu0 %v3859
    %v3935 = vpop.f32.mrb[0].mxu0
    %v3936 = vadd.f32 0.0, %v3935
    %v3937 = vpop.f32.mrb[0].mxu0
    %v3938 = vadd.f32 0.0, %v3937
    %v3939 = vpop.f32.mrb[0].mxu0
    %v3940 = vpop.f32.mrb[0].mxu0
    %3941 = vdwg.mxu0
    %v3942 = vadd.f32 %v3855, %v3895
    %v3943 = vadd.f32 %v3856, %v3897
    %v3944 = vadd.f32 %v3857, %v3936
    %v3945 = vadd.f32 %v3858, %v3938
    %v3946 = vxor.u32 %v3942, 2147483648
    %v3947 = vxor.u32 %v3943, 2147483648
    %v3948 = vxor.u32 %v3944, 2147483648
    %v3949 = vmul.f32 %v3946, 1.442695
    %v3950 = vpow.pop %v3949
    %v3951 = vmul.f32 %v3947, 1.442695
    %v3952 = vpow.pop %v3951
    %v3953 = vmul.f32 %v3948, 1.442695
    %v3954 = vpow.pop %v3953
    %v3955 = vadd.f32 %v3950, 1.0
    %v3956 = vadd.f32 %v3952, 1.0
    %v3957 = vadd.f32 %v3954, 1.0
    %v3958 = vrcp.pop %v3955
    %v3959 = vmul.f32 1.0, %v3958
    %v3960 = vrcp.pop %v3956
    %v3961 = vmul.f32 1.0, %v3960
    %v3962 = vrcp.pop %v3957
    %v3963 = vmul.f32 1.0, %v3962
    %v3964 = vtanh.pop %v3945
    %v3965 = vmul.f32 %v3961, %v3735
    %v3966 = vmul.f32 %v3959, %v3964
    %v3967 = vadd.f32 %v3965, %v3966
    %v3968 = vtanh.pop %v3967
    %v3969 = vmul.f32 %v3963, %v3968
    %s3970 = scalar_lea.vmem [#allocation2], 320
    %v3971 = vld [vmem:[%s3970] sm:$0xff]
    %v3972 = vld [vmem:[%s3970 + $0x8] sm:$0xff]
    %v3973 = vld [vmem:[%s3970 + $0x10] sm:$0xff]
    %v3974 = vld [vmem:[%s3970 + $0x18] sm:$0xff]
    %v3975 = vpack.c.bf16 %v3853, %v3853
    %3976 = vmatprep.subr.bf16.mxu0 %v1433
    %3977 = vmatpush1.bf16.msra.mxu0 %v1432
    %3978 = vmatprep.subr.bf16.mxu0 %v1437
    %3979 = vmatpush1.bf16.msra.mxu0 %v1436
    %3980 = vmatprep.subr.bf16.mxu0 %v1441
    %3981 = vmatpush1.bf16.msra.mxu0 %v1440
    %3982 = vmatprep.subr.bf16.mxu0 %v1445
    %3983 = vmatpush1.bf16.msra.mxu0 %v1444
    %3984 = vmatprep.subr.bf16.mxu0 %v1449
    %3985 = vmatpush1.bf16.msra.mxu0 %v1448
    %3986 = vmatprep.subr.bf16.mxu0 %v1453
    %3987 = vmatpush1.bf16.msra.mxu0 %v1452
    %3988 = vmatprep.subr.bf16.mxu0 %v1457
    %3989 = vmatpush1.bf16.msra.mxu0 %v1456
    %3990 = vmatprep.subr.bf16.mxu0 %v1461
    %3991 = vmatpush1.bf16.msra.mxu0 %v1460
    %3992 = vmatprep.subr.bf16.mxu0 0
    %3993 = vmatpush1.bf16.msra.mxu0 0
    %3994 = vmatprep.subr.bf16.mxu0 0
    %3995 = vmatpush1.bf16.msra.mxu0 0
    %3996 = vmatprep.subr.bf16.mxu0 0
    %3997 = vmatpush1.bf16.msra.mxu0 0
    %3998 = vmatprep.subr.bf16.mxu0 0
    %3999 = vmatpush1.bf16.msra.mxu0 0
    %4000 = vmatprep.subr.bf16.mxu0 0
    %4001 = vmatpush1.bf16.msra.mxu0 0
    %4002 = vmatprep.subr.bf16.mxu0 0
    %4003 = vmatpush1.bf16.msra.mxu0 0
    %4004 = vmatprep.subr.bf16.mxu0 0
    %4005 = vmatpush1.bf16.msra.mxu0 0
    %4006 = vmatprep.subr.bf16.mxu0 0
    %4007 = vmatpush1.bf16.msra.mxu0 0
    %4008 = vmatprep.mubr.bf16.mxu0 0
    %4009 = vmatmul.mubr.bf16.gmra.mrb[0].mxu0 %v3975
    %v4010 = vpop.f32.mrb[0].mxu0
    %v4011 = vadd.f32 0.0, %v4010
    %v4012 = vpop.f32.mrb[0].mxu0
    %v4013 = vadd.f32 0.0, %v4012
    %v4014 = vpop.f32.mrb[0].mxu0
    %v4015 = vpop.f32.mrb[0].mxu0
    %4016 = vdwg.mxu0
    %4017 = vmatprep.subr.bf16.mxu0 %v1435
    %4018 = vmatpush1.bf16.msra.mxu0 %v1434
    %4019 = vmatprep.subr.bf16.mxu0 %v1439
    %4020 = vmatpush1.bf16.msra.mxu0 %v1438
    %4021 = vmatprep.subr.bf16.mxu0 %v1443
    %4022 = vmatpush1.bf16.msra.mxu0 %v1442
    %4023 = vmatprep.subr.bf16.mxu0 %v1447
    %4024 = vmatpush1.bf16.msra.mxu0 %v1446
    %4025 = vmatprep.subr.bf16.mxu0 %v1451
    %4026 = vmatpush1.bf16.msra.mxu0 %v1450
    %4027 = vmatprep.subr.bf16.mxu0 %v1455
    %4028 = vmatpush1.bf16.msra.mxu0 %v1454
    %4029 = vmatprep.subr.bf16.mxu0 %v1459
    %4030 = vmatpush1.bf16.msra.mxu0 %v1458
    %4031 = vmatprep.subr.bf16.mxu0 %v1463
    %4032 = vmatpush1.bf16.msra.mxu0 %v1462
    %4033 = vmatprep.subr.bf16.mxu0 0
    %4034 = vmatpush1.bf16.msra.mxu0 0
    %4035 = vmatprep.subr.bf16.mxu0 0
    %4036 = vmatpush1.bf16.msra.mxu0 0
    %4037 = vmatprep.subr.bf16.mxu0 0
    %4038 = vmatpush1.bf16.msra.mxu0 0
    %4039 = vmatprep.subr.bf16.mxu0 0
    %4040 = vmatpush1.bf16.msra.mxu0 0
    %4041 = vmatprep.subr.bf16.mxu0 0
    %4042 = vmatpush1.bf16.msra.mxu0 0
    %4043 = vmatprep.subr.bf16.mxu0 0
    %4044 = vmatpush1.bf16.msra.mxu0 0
    %4045 = vmatprep.subr.bf16.mxu0 0
    %4046 = vmatpush1.bf16.msra.mxu0 0
    %4047 = vmatprep.subr.bf16.mxu0 0
    %4048 = vmatpush1.bf16.msra.mxu0 0
    %4049 = vmatprep.mubr.bf16.mxu0 0
    %4050 = vmatmul.mubr.bf16.gmra.mrb[0].mxu0 %v3975
    %v4051 = vpop.f32.mrb[0].mxu0
    %v4052 = vadd.f32 0.0, %v4051
    %v4053 = vpop.f32.mrb[0].mxu0
    %v4054 = vadd.f32 0.0, %v4053
    %v4055 = vpop.f32.mrb[0].mxu0
    %v4056 = vpop.f32.mrb[0].mxu0
    %4057 = vdwg.mxu0
    %v4058 = vadd.f32 %v3971, %v4011
    %v4059 = vadd.f32 %v3972, %v4013
    %v4060 = vadd.f32 %v3973, %v4052
    %v4061 = vadd.f32 %v3974, %v4054
    %v4062 = vxor.u32 %v4058, 2147483648
    %v4063 = vxor.u32 %v4059, 2147483648
    %v4064 = vxor.u32 %v4060, 2147483648
    %v4065 = vmul.f32 %v4062, 1.442695
    %v4066 = vpow.pop %v4065
    %v4067 = vmul.f32 %v4063, 1.442695
    %v4068 = vpow.pop %v4067
    %v4069 = vmul.f32 %v4064, 1.442695
    %v4070 = vpow.pop %v4069
    %v4071 = vadd.f32 %v4066, 1.0
    %v4072 = vadd.f32 %v4068, 1.0
    %v4073 = vadd.f32 %v4070, 1.0
    %v4074 = vrcp.pop %v4071
    %v4075 = vmul.f32 1.0, %v4074
    %v4076 = vrcp.pop %v4072
    %v4077 = vmul.f32 1.0, %v4076
    %v4078 = vrcp.pop %v4073
    %v4079 = vmul.f32 1.0, %v4078
    %v4080 = vtanh.pop %v4061
    %v4081 = vmul.f32 %v4077, %v3851
    %v4082 = vmul.f32 %v4075, %v4080
    %v4083 = vadd.f32 %v4081, %v4082
    %v4084 = vtanh.pop %v4083
    %v4085 = vmul.f32 %v4079, %v4084
    %s4086 = scalar_lea.vmem [#allocation3], 160
    %v4087 = vld [vmem:[%s4086] sm:$0xff]
    %v4088 = vld [vmem:[%s4086 + $0x8] sm:$0xff]
    %v4089 = vld [vmem:[%s4086 + $0x10] sm:$0xff]
    %v4090 = vld [vmem:[%s4086 + $0x18] sm:$0xff]
    %v4091 = vpack.c.bf16 %v3969, %v3969
    %4092 = vmatprep.subr.bf16.mxu0 %v1709
    %4093 = vmatpush1.bf16.msra.mxu0 %v1708
    %4094 = vmatprep.subr.bf16.mxu0 %v1713
    %4095 = vmatpush1.bf16.msra.mxu0 %v1712
    %4096 = vmatprep.subr.bf16.mxu0 %v1717
    %4097 = vmatpush1.bf16.msra.mxu0 %v1716
    %4098 = vmatprep.subr.bf16.mxu0 %v1721
    %4099 = vmatpush1.bf16.msra.mxu0 %v1720
    %4100 = vmatprep.subr.bf16.mxu0 %v1725
    %4101 = vmatpush1.bf16.msra.mxu0 %v1724
    %4102 = vmatprep.subr.bf16.mxu0 %v1729
    %4103 = vmatpush1.bf16.msra.mxu0 %v1728
    %4104 = vmatprep.subr.bf16.mxu0 %v1733
    %4105 = vmatpush1.bf16.msra.mxu0 %v1732
    %4106 = vmatprep.subr.bf16.mxu0 %v1737
    %4107 = vmatpush1.bf16.msra.mxu0 %v1736
    %4108 = vmatprep.subr.bf16.mxu0 0
    %4109 = vmatpush1.bf16.msra.mxu0 0
    %4110 = vmatprep.subr.bf16.mxu0 0
    %4111 = vmatpush1.bf16.msra.mxu0 0
    %4112 = vmatprep.subr.bf16.mxu0 0
    %4113 = vmatpush1.bf16.msra.mxu0 0
    %4114 = vmatprep.subr.bf16.mxu0 0
    %4115 = vmatpush1.bf16.msra.mxu0 0
    %4116 = vmatprep.subr.bf16.mxu0 0
    %4117 = vmatpush1.bf16.msra.mxu0 0
    %4118 = vmatprep.subr.bf16.mxu0 0
    %4119 = vmatpush1.bf16.msra.mxu0 0
    %4120 = vmatprep.subr.bf16.mxu0 0
    %4121 = vmatpush1.bf16.msra.mxu0 0
    %4122 = vmatprep.subr.bf16.mxu0 0
    %4123 = vmatpush1.bf16.msra.mxu0 0
    %4124 = vmatprep.mubr.bf16.mxu0 0
    %4125 = vmatmul.mubr.bf16.gmra.mrb[0].mxu0 %v4091
    %v4126 = vpop.f32.mrb[0].mxu0
    %v4127 = vadd.f32 0.0, %v4126
    %v4128 = vpop.f32.mrb[0].mxu0
    %v4129 = vadd.f32 0.0, %v4128
    %v4130 = vpop.f32.mrb[0].mxu0
    %v4131 = vpop.f32.mrb[0].mxu0
    %4132 = vdwg.mxu0
    %4133 = vmatprep.subr.bf16.mxu0 %v1711
    %4134 = vmatpush1.bf16.msra.mxu0 %v1710
    %4135 = vmatprep.subr.bf16.mxu0 %v1715
    %4136 = vmatpush1.bf16.msra.mxu0 %v1714
    %4137 = vmatprep.subr.bf16.mxu0 %v1719
    %4138 = vmatpush1.bf16.msra.mxu0 %v1718
    %4139 = vmatprep.subr.bf16.mxu0 %v1723
    %4140 = vmatpush1.bf16.msra.mxu0 %v1722
    %4141 = vmatprep.subr.bf16.mxu0 %v1727
    %4142 = vmatpush1.bf16.msra.mxu0 %v1726
    %4143 = vmatprep.subr.bf16.mxu0 %v1731
    %4144 = vmatpush1.bf16.msra.mxu0 %v1730
    %4145 = vmatprep.subr.bf16.mxu0 %v1735
    %4146 = vmatpush1.bf16.msra.mxu0 %v1734
    %4147 = vmatprep.subr.bf16.mxu0 %v1739
    %4148 = vmatpush1.bf16.msra.mxu0 %v1738
    %4149 = vmatprep.subr.bf16.mxu0 0
    %4150 = vmatpush1.bf16.msra.mxu0 0
    %4151 = vmatprep.subr.bf16.mxu0 0
    %4152 = vmatpush1.bf16.msra.mxu0 0
    %4153 = vmatprep.subr.bf16.mxu0 0
    %4154 = vmatpush1.bf16.msra.mxu0 0
    %4155 = vmatprep.subr.bf16.mxu0 0
    %4156 = vmatpush1.bf16.msra.mxu0 0
    %4157 = vmatprep.subr.bf16.mxu0 0
    %4158 = vmatpush1.bf16.msra.mxu0 0
    %4159 = vmatprep.subr.bf16.mxu0 0
    %4160 = vmatpush1.bf16.msra.mxu0 0
    %4161 = vmatprep.subr.bf16.mxu0 0
    %4162 = vmatpush1.bf16.msra.mxu0 0
    %4163 = vmatprep.subr.bf16.mxu0 0
    %4164 = vmatpush1.bf16.msra.mxu0 0
    %4165 = vmatprep.mubr.bf16.mxu0 0
    %4166 = vmatmul.mubr.bf16.gmra.mrb[0].mxu0 %v4091
    %v4167 = vpop.f32.mrb[0].mxu0
    %v4168 = vadd.f32 0.0, %v4167
    %v4169 = vpop.f32.mrb[0].mxu0
    %v4170 = vadd.f32 0.0, %v4169
    %v4171 = vpop.f32.mrb[0].mxu0
    %v4172 = vpop.f32.mrb[0].mxu0
    %4173 = vdwg.mxu0
    %v4174 = vadd.f32 %v4087, %v4127
    %v4175 = vadd.f32 %v4088, %v4129
    %v4176 = vadd.f32 %v4089, %v4168
    %v4177 = vadd.f32 %v4090, %v4170
    %v4178 = vxor.u32 %v4174, 2147483648
    %v4179 = vxor.u32 %v4175, 2147483648
    %v4180 = vxor.u32 %v4176, 2147483648
    %v4181 = vmul.f32 %v4178, 1.442695
    %v4182 = vpow.pop %v4181
    %v4183 = vmul.f32 %v4179, 1.442695
    %v4184 = vpow.pop %v4183
    %v4185 = vmul.f32 %v4180, 1.442695
    %v4186 = vpow.pop %v4185
    %v4187 = vadd.f32 %v4182, 1.0
    %v4188 = vadd.f32 %v4184, 1.0
    %v4189 = vadd.f32 %v4186, 1.0
    %v4190 = vrcp.pop %v4187
    %v4191 = vmul.f32 1.0, %v4190
    %v4192 = vrcp.pop %v4188
    %v4193 = vmul.f32 1.0, %v4192
    %v4194 = vrcp.pop %v4189
    %v4195 = vmul.f32 1.0, %v4194
    %v4196 = vtanh.pop %v4177
    %v4197 = vmul.f32 %v4193, %v3967
    %v4198 = vmul.f32 %v4191, %v4196
    %v4199 = vadd.f32 %v4197, %v4198
    %v4200 = vtanh.pop %v4199
    %v4201 = vmul.f32 %v4195, %v4200
    %s4202 = scalar_lea.vmem [#allocation2], 352
    %v4203 = vld [vmem:[%s4202] sm:$0xff]
    %v4204 = vld [vmem:[%s4202 + $0x8] sm:$0xff]
    %v4205 = vld [vmem:[%s4202 + $0x10] sm:$0xff]
    %v4206 = vld [vmem:[%s4202 + $0x18] sm:$0xff]
    %v4207 = vpack.c.bf16 %v4085, %v4085
    %4208 = vmatprep.subr.bf16.mxu0 %v1433
    %4209 = vmatpush1.bf16.msra.mxu0 %v1432
    %4210 = vmatprep.subr.bf16.mxu0 %v1437
    %4211 = vmatpush1.bf16.msra.mxu0 %v1436
    %4212 = vmatprep.subr.bf16.mxu0 %v1441
    %4213 = vmatpush1.bf16.msra.mxu0 %v1440
    %4214 = vmatprep.subr.bf16.mxu0 %v1445
    %4215 = vmatpush1.bf16.msra.mxu0 %v1444
    %4216 = vmatprep.subr.bf16.mxu0 %v1449
    %4217 = vmatpush1.bf16.msra.mxu0 %v1448
    %4218 = vmatprep.subr.bf16.mxu0 %v1453
    %4219 = vmatpush1.bf16.msra.mxu0 %v1452
    %4220 = vmatprep.subr.bf16.mxu0 %v1457
    %4221 = vmatpush1.bf16.msra.mxu0 %v1456
    %4222 = vmatprep.subr.bf16.mxu0 %v1461
    %4223 = vmatpush1.bf16.msra.mxu0 %v1460
    %4224 = vmatprep.subr.bf16.mxu0 0
    %4225 = vmatpush1.bf16.msra.mxu0 0
    %4226 = vmatprep.subr.bf16.mxu0 0
    %4227 = vmatpush1.bf16.msra.mxu0 0
    %4228 = vmatprep.subr.bf16.mxu0 0
    %4229 = vmatpush1.bf16.msra.mxu0 0
    %4230 = vmatprep.subr.bf16.mxu0 0
    %4231 = vmatpush1.bf16.msra.mxu0 0
    %4232 = vmatprep.subr.bf16.mxu0 0
    %4233 = vmatpush1.bf16.msra.mxu0 0
    %4234 = vmatprep.subr.bf16.mxu0 0
    %4235 = vmatpush1.bf16.msra.mxu0 0
    %4236 = vmatprep.subr.bf16.mxu0 0
    %4237 = vmatpush1.bf16.msra.mxu0 0
    %4238 = vmatprep.subr.bf16.mxu0 0
    %4239 = vmatpush1.bf16.msra.mxu0 0
    %4240 = vmatprep.mubr.bf16.mxu0 0
    %4241 = vmatmul.mubr.bf16.gmra.mrb[0].mxu0 %v4207
    %v4242 = vpop.f32.mrb[0].mxu0
    %v4243 = vadd.f32 0.0, %v4242
    %v4244 = vpop.f32.mrb[0].mxu0
    %v4245 = vadd.f32 0.0, %v4244
    %v4246 = vpop.f32.mrb[0].mxu0
    %v4247 = vpop.f32.mrb[0].mxu0
    %4248 = vdwg.mxu0
    %4249 = vmatprep.subr.bf16.mxu0 %v1435
    %4250 = vmatpush1.bf16.msra.mxu0 %v1434
    %4251 = vmatprep.subr.bf16.mxu0 %v1439
    %4252 = vmatpush1.bf16.msra.mxu0 %v1438
    %4253 = vmatprep.subr.bf16.mxu0 %v1443
    %4254 = vmatpush1.bf16.msra.mxu0 %v1442
    %4255 = vmatprep.subr.bf16.mxu0 %v1447
    %4256 = vmatpush1.bf16.msra.mxu0 %v1446
    %4257 = vmatprep.subr.bf16.mxu0 %v1451
    %4258 = vmatpush1.bf16.msra.mxu0 %v1450
    %4259 = vmatprep.subr.bf16.mxu0 %v1455
    %4260 = vmatpush1.bf16.msra.mxu0 %v1454
    %4261 = vmatprep.subr.bf16.mxu0 %v1459
    %4262 = vmatpush1.bf16.msra.mxu0 %v1458
    %4263 = vmatprep.subr.bf16.mxu0 %v1463
    %4264 = vmatpush1.bf16.msra.mxu0 %v1462
    %4265 = vmatprep.subr.bf16.mxu0 0
    %4266 = vmatpush1.bf16.msra.mxu0 0
    %4267 = vmatprep.subr.bf16.mxu0 0
    %4268 = vmatpush1.bf16.msra.mxu0 0
    %4269 = vmatprep.subr.bf16.mxu0 0
    %4270 = vmatpush1.bf16.msra.mxu0 0
    %4271 = vmatprep.subr.bf16.mxu0 0
    %4272 = vmatpush1.bf16.msra.mxu0 0
    %4273 = vmatprep.subr.bf16.mxu0 0
    %4274 = vmatpush1.bf16.msra.mxu0 0
    %4275 = vmatprep.subr.bf16.mxu0 0
    %4276 = vmatpush1.bf16.msra.mxu0 0
    %4277 = vmatprep.subr.bf16.mxu0 0
    %4278 = vmatpush1.bf16.msra.mxu0 0
    %4279 = vmatprep.subr.bf16.mxu0 0
    %4280 = vmatpush1.bf16.msra.mxu0 0
    %4281 = vmatprep.mubr.bf16.mxu0 0
    %4282 = vmatmul.mubr.bf16.gmra.mrb[0].mxu0 %v4207
    %v4283 = vpop.f32.mrb[0].mxu0
    %v4284 = vadd.f32 0.0, %v4283
    %v4285 = vpop.f32.mrb[0].mxu0
    %v4286 = vadd.f32 0.0, %v4285
    %v4287 = vpop.f32.mrb[0].mxu0
    %v4288 = vpop.f32.mrb[0].mxu0
    %4289 = vdwg.mxu0
    %v4290 = vadd.f32 %v4203, %v4243
    %v4291 = vadd.f32 %v4204, %v4245
    %v4292 = vadd.f32 %v4205, %v4284
    %v4293 = vadd.f32 %v4206, %v4286
    %v4294 = vxor.u32 %v4290, 2147483648
    %v4295 = vxor.u32 %v4291, 2147483648
    %v4296 = vxor.u32 %v4292, 2147483648
    %v4297 = vmul.f32 %v4294, 1.442695
    %v4298 = vpow.pop %v4297
    %v4299 = vmul.f32 %v4295, 1.442695
    %v4300 = vpow.pop %v4299
    %v4301 = vmul.f32 %v4296, 1.442695
    %v4302 = vpow.pop %v4301
    %v4303 = vadd.f32 %v4298, 1.0
    %v4304 = vadd.f32 %v4300, 1.0
    %v4305 = vadd.f32 %v4302, 1.0
    %v4306 = vrcp.pop %v4303
    %v4307 = vmul.f32 1.0, %v4306
    %v4308 = vrcp.pop %v4304
    %v4309 = vmul.f32 1.0, %v4308
    %v4310 = vrcp.pop %v4305
    %v4311 = vmul.f32 1.0, %v4310
    %v4312 = vtanh.pop %v4293
    %v4313 = vmul.f32 %v4309, %v4083
    %v4314 = vmul.f32 %v4307, %v4312
    %v4315 = vadd.f32 %v4313, %v4314
    %v4316 = vtanh.pop %v4315
    %v4317 = vmul.f32 %v4311, %v4316
    %s4318 = scalar_lea.vmem [#allocation3], 128
    %v4319 = vld [vmem:[%s4318] sm:$0xff]
    %v4320 = vld [vmem:[%s4318 + $0x8] sm:$0xff]
    %v4321 = vld [vmem:[%s4318 + $0x10] sm:$0xff]
    %v4322 = vld [vmem:[%s4318 + $0x18] sm:$0xff]
    %v4323 = vpack.c.bf16 %v4201, %v4201
    %4324 = vmatprep.subr.bf16.mxu0 %v1709
    %4325 = vmatpush1.bf16.msra.mxu0 %v1708
    %4326 = vmatprep.subr.bf16.mxu0 %v1713
    %4327 = vmatpush1.bf16.msra.mxu0 %v1712
    %4328 = vmatprep.subr.bf16.mxu0 %v1717
    %4329 = vmatpush1.bf16.msra.mxu0 %v1716
    %4330 = vmatprep.subr.bf16.mxu0 %v1721
    %4331 = vmatpush1.bf16.msra.mxu0 %v1720
    %4332 = vmatprep.subr.bf16.mxu0 %v1725
    %4333 = vmatpush1.bf16.msra.mxu0 %v1724
    %4334 = vmatprep.subr.bf16.mxu0 %v1729
    %4335 = vmatpush1.bf16.msra.mxu0 %v1728
    %4336 = vmatprep.subr.bf16.mxu0 %v1733
    %4337 = vmatpush1.bf16.msra.mxu0 %v1732
    %4338 = vmatprep.subr.bf16.mxu0 %v1737
    %4339 = vmatpush1.bf16.msra.mxu0 %v1736
    %4340 = vmatprep.subr.bf16.mxu0 0
    %4341 = vmatpush1.bf16.msra.mxu0 0
    %4342 = vmatprep.subr.bf16.mxu0 0
    %4343 = vmatpush1.bf16.msra.mxu0 0
    %4344 = vmatprep.subr.bf16.mxu0 0
    %4345 = vmatpush1.bf16.msra.mxu0 0
    %4346 = vmatprep.subr.bf16.mxu0 0
    %4347 = vmatpush1.bf16.msra.mxu0 0
    %4348 = vmatprep.subr.bf16.mxu0 0
    %4349 = vmatpush1.bf16.msra.mxu0 0
    %4350 = vmatprep.subr.bf16.mxu0 0
    %4351 = vmatpush1.bf16.msra.mxu0 0
    %4352 = vmatprep.subr.bf16.mxu0 0
    %4353 = vmatpush1.bf16.msra.mxu0 0
    %4354 = vmatprep.subr.bf16.mxu0 0
    %4355 = vmatpush1.bf16.msra.mxu0 0
    %4356 = vmatprep.mubr.bf16.mxu0 0
    %4357 = vmatmul.mubr.bf16.gmra.mrb[0].mxu0 %v4323
    %v4358 = vpop.f32.mrb[0].mxu0
    %v4359 = vadd.f32 0.0, %v4358
    %v4360 = vpop.f32.mrb[0].mxu0
    %v4361 = vadd.f32 0.0, %v4360
    %v4362 = vpop.f32.mrb[0].mxu0
    %v4363 = vpop.f32.mrb[0].mxu0
    %4364 = vdwg.mxu0
    %4365 = vmatprep.subr.bf16.mxu0 %v1711
    %4366 = vmatpush1.bf16.msra.mxu0 %v1710
    %4367 = vmatprep.subr.bf16.mxu0 %v1715
    %4368 = vmatpush1.bf16.msra.mxu0 %v1714
    %4369 = vmatprep.subr.bf16.mxu0 %v1719
    %4370 = vmatpush1.bf16.msra.mxu0 %v1718
    %4371 = vmatprep.subr.bf16.mxu0 %v1723
    %4372 = vmatpush1.bf16.msra.mxu0 %v1722
    %4373 = vmatprep.subr.bf16.mxu0 %v1727
    %4374 = vmatpush1.bf16.msra.mxu0 %v1726
    %4375 = vmatprep.subr.bf16.mxu0 %v1731
    %4376 = vmatpush1.bf16.msra.mxu0 %v1730
    %4377 = vmatprep.subr.bf16.mxu0 %v1735
    %4378 = vmatpush1.bf16.msra.mxu0 %v1734
    %4379 = vmatprep.subr.bf16.mxu0 %v1739
    %4380 = vmatpush1.bf16.msra.mxu0 %v1738
    %4381 = vmatprep.subr.bf16.mxu0 0
    %4382 = vmatpush1.bf16.msra.mxu0 0
    %4383 = vmatprep.subr.bf16.mxu0 0
    %4384 = vmatpush1.bf16.msra.mxu0 0
    %4385 = vmatprep.subr.bf16.mxu0 0
    %4386 = vmatpush1.bf16.msra.mxu0 0
    %4387 = vmatprep.subr.bf16.mxu0 0
    %4388 = vmatpush1.bf16.msra.mxu0 0
    %4389 = vmatprep.subr.bf16.mxu0 0
    %4390 = vmatpush1.bf16.msra.mxu0 0
    %4391 = vmatprep.subr.bf16.mxu0 0
    %4392 = vmatpush1.bf16.msra.mxu0 0
    %4393 = vmatprep.subr.bf16.mxu0 0
    %4394 = vmatpush1.bf16.msra.mxu0 0
    %4395 = vmatprep.subr.bf16.mxu0 0
    %4396 = vmatpush1.bf16.msra.mxu0 0
    %4397 = vmatprep.mubr.bf16.mxu0 0
    %4398 = vmatmul.mubr.bf16.gmra.mrb[0].mxu0 %v4323
    %v4399 = vpop.f32.mrb[0].mxu0
    %v4400 = vadd.f32 0.0, %v4399
    %v4401 = vpop.f32.mrb[0].mxu0
    %v4402 = vadd.f32 0.0, %v4401
    %v4403 = vpop.f32.mrb[0].mxu0
    %v4404 = vpop.f32.mrb[0].mxu0
    %4405 = vdwg.mxu0
    %v4406 = vadd.f32 %v4319, %v4359
    %v4407 = vadd.f32 %v4320, %v4361
    %v4408 = vadd.f32 %v4321, %v4400
    %v4409 = vadd.f32 %v4322, %v4402
    %v4410 = vxor.u32 %v4406, 2147483648
    %v4411 = vxor.u32 %v4407, 2147483648
    %v4412 = vxor.u32 %v4408, 2147483648
    %v4413 = vmul.f32 %v4410, 1.442695
    %v4414 = vpow.pop %v4413
    %v4415 = vmul.f32 %v4411, 1.442695
    %v4416 = vpow.pop %v4415
    %v4417 = vmul.f32 %v4412, 1.442695
    %v4418 = vpow.pop %v4417
    %v4419 = vadd.f32 %v4414, 1.0
    %v4420 = vadd.f32 %v4416, 1.0
    %v4421 = vadd.f32 %v4418, 1.0
    %v4422 = vrcp.pop %v4419
    %v4423 = vmul.f32 1.0, %v4422
    %v4424 = vrcp.pop %v4420
    %v4425 = vmul.f32 1.0, %v4424
    %v4426 = vrcp.pop %v4421
    %v4427 = vmul.f32 1.0, %v4426
    %v4428 = vtanh.pop %v4409
    %v4429 = vmul.f32 %v4425, %v4199
    %v4430 = vmul.f32 %v4423, %v4428
    %v4431 = vadd.f32 %v4429, %v4430
    %v4432 = vtanh.pop %v4431
    %v4433 = vmul.f32 %v4427, %v4432
    %s4434 = scalar_lea.vmem [#allocation2], 384
    %v4435 = vld [vmem:[%s4434] sm:$0xff]
    %v4436 = vld [vmem:[%s4434 + $0x8] sm:$0xff]
    %v4437 = vld [vmem:[%s4434 + $0x10] sm:$0xff]
    %v4438 = vld [vmem:[%s4434 + $0x18] sm:$0xff]
    %v4439 = vpack.c.bf16 %v4317, %v4317
    %4440 = vmatprep.subr.bf16.mxu0 %v1433
    %4441 = vmatpush1.bf16.msra.mxu0 %v1432
    %4442 = vmatprep.subr.bf16.mxu0 %v1437
    %4443 = vmatpush1.bf16.msra.mxu0 %v1436
    %4444 = vmatprep.subr.bf16.mxu0 %v1441
    %4445 = vmatpush1.bf16.msra.mxu0 %v1440
    %4446 = vmatprep.subr.bf16.mxu0 %v1445
    %4447 = vmatpush1.bf16.msra.mxu0 %v1444
    %4448 = vmatprep.subr.bf16.mxu0 %v1449
    %4449 = vmatpush1.bf16.msra.mxu0 %v1448
    %4450 = vmatprep.subr.bf16.mxu0 %v1453
    %4451 = vmatpush1.bf16.msra.mxu0 %v1452
    %4452 = vmatprep.subr.bf16.mxu0 %v1457
    %4453 = vmatpush1.bf16.msra.mxu0 %v1456
    %4454 = vmatprep.subr.bf16.mxu0 %v1461
    %4455 = vmatpush1.bf16.msra.mxu0 %v1460
    %4456 = vmatprep.subr.bf16.mxu0 0
    %4457 = vmatpush1.bf16.msra.mxu0 0
    %4458 = vmatprep.subr.bf16.mxu0 0
    %4459 = vmatpush1.bf16.msra.mxu0 0
    %4460 = vmatprep.subr.bf16.mxu0 0
    %4461 = vmatpush1.bf16.msra.mxu0 0
    %4462 = vmatprep.subr.bf16.mxu0 0
    %4463 = vmatpush1.bf16.msra.mxu0 0
    %4464 = vmatprep.subr.bf16.mxu0 0
    %4465 = vmatpush1.bf16.msra.mxu0 0
    %4466 = vmatprep.subr.bf16.mxu0 0
    %4467 = vmatpush1.bf16.msra.mxu0 0
    %4468 = vmatprep.subr.bf16.mxu0 0
    %4469 = vmatpush1.bf16.msra.mxu0 0
    %4470 = vmatprep.subr.bf16.mxu0 0
    %4471 = vmatpush1.bf16.msra.mxu0 0
    %4472 = vmatprep.mubr.bf16.mxu0 0
    %4473 = vmatmul.mubr.bf16.gmra.mrb[0].mxu0 %v4439
    %v4474 = vpop.f32.mrb[0].mxu0
    %v4475 = vadd.f32 0.0, %v4474
    %v4476 = vpop.f32.mrb[0].mxu0
    %v4477 = vadd.f32 0.0, %v4476
    %v4478 = vpop.f32.mrb[0].mxu0
    %v4479 = vpop.f32.mrb[0].mxu0
    %4480 = vdwg.mxu0
    %4481 = vmatprep.subr.bf16.mxu0 %v1435
    %4482 = vmatpush1.bf16.msra.mxu0 %v1434
    %4483 = vmatprep.subr.bf16.mxu0 %v1439
    %4484 = vmatpush1.bf16.msra.mxu0 %v1438
    %4485 = vmatprep.subr.bf16.mxu0 %v1443
    %4486 = vmatpush1.bf16.msra.mxu0 %v1442
    %4487 = vmatprep.subr.bf16.mxu0 %v1447
    %4488 = vmatpush1.bf16.msra.mxu0 %v1446
    %4489 = vmatprep.subr.bf16.mxu0 %v1451
    %4490 = vmatpush1.bf16.msra.mxu0 %v1450
    %4491 = vmatprep.subr.bf16.mxu0 %v1455
    %4492 = vmatpush1.bf16.msra.mxu0 %v1454
    %4493 = vmatprep.subr.bf16.mxu0 %v1459
    %4494 = vmatpush1.bf16.msra.mxu0 %v1458
    %4495 = vmatprep.subr.bf16.mxu0 %v1463
    %4496 = vmatpush1.bf16.msra.mxu0 %v1462
    %4497 = vmatprep.subr.bf16.mxu0 0
    %4498 = vmatpush1.bf16.msra.mxu0 0
    %4499 = vmatprep.subr.bf16.mxu0 0
    %4500 = vmatpush1.bf16.msra.mxu0 0
    %4501 = vmatprep.subr.bf16.mxu0 0
    %4502 = vmatpush1.bf16.msra.mxu0 0
    %4503 = vmatprep.subr.bf16.mxu0 0
    %4504 = vmatpush1.bf16.msra.mxu0 0
    %4505 = vmatprep.subr.bf16.mxu0 0
    %4506 = vmatpush1.bf16.msra.mxu0 0
    %4507 = vmatprep.subr.bf16.mxu0 0
    %4508 = vmatpush1.bf16.msra.mxu0 0
    %4509 = vmatprep.subr.bf16.mxu0 0
    %4510 = vmatpush1.bf16.msra.mxu0 0
    %4511 = vmatprep.subr.bf16.mxu0 0
    %4512 = vmatpush1.bf16.msra.mxu0 0
    %4513 = vmatprep.mubr.bf16.mxu0 0
    %4514 = vmatmul.mubr.bf16.gmra.mrb[0].mxu0 %v4439
    %v4515 = vpop.f32.mrb[0].mxu0
    %v4516 = vadd.f32 0.0, %v4515
    %v4517 = vpop.f32.mrb[0].mxu0
    %v4518 = vadd.f32 0.0, %v4517
    %v4519 = vpop.f32.mrb[0].mxu0
    %v4520 = vpop.f32.mrb[0].mxu0
    %4521 = vdwg.mxu0
    %v4522 = vadd.f32 %v4435, %v4475
    %v4523 = vadd.f32 %v4436, %v4477
    %v4524 = vadd.f32 %v4437, %v4516
    %v4525 = vadd.f32 %v4438, %v4518
    %v4526 = vxor.u32 %v4522, 2147483648
    %v4527 = vxor.u32 %v4523, 2147483648
    %v4528 = vxor.u32 %v4524, 2147483648
    %v4529 = vmul.f32 %v4526, 1.442695
    %v4530 = vpow.pop %v4529
    %v4531 = vmul.f32 %v4527, 1.442695
    %v4532 = vpow.pop %v4531
    %v4533 = vmul.f32 %v4528, 1.442695
    %v4534 = vpow.pop %v4533
    %v4535 = vadd.f32 %v4530, 1.0
    %v4536 = vadd.f32 %v4532, 1.0
    %v4537 = vadd.f32 %v4534, 1.0
    %v4538 = vrcp.pop %v4535
    %v4539 = vmul.f32 1.0, %v4538
    %v4540 = vrcp.pop %v4536
    %v4541 = vmul.f32 1.0, %v4540
    %v4542 = vrcp.pop %v4537
    %v4543 = vmul.f32 1.0, %v4542
    %v4544 = vtanh.pop %v4525
    %v4545 = vmul.f32 %v4541, %v4315
    %v4546 = vmul.f32 %v4539, %v4544
    %v4547 = vadd.f32 %v4545, %v4546
    %v4548 = vtanh.pop %v4547
    %v4549 = vmul.f32 %v4543, %v4548
    %s4550 = scalar_lea.vmem [#allocation3], 96
    %v4551 = vld [vmem:[%s4550] sm:$0xff]
    %v4552 = vld [vmem:[%s4550 + $0x8] sm:$0xff]
    %v4553 = vld [vmem:[%s4550 + $0x10] sm:$0xff]
    %v4554 = vld [vmem:[%s4550 + $0x18] sm:$0xff]
    %v4555 = vpack.c.bf16 %v4433, %v4433
    %4556 = vmatprep.subr.bf16.mxu0 %v1709
    %4557 = vmatpush1.bf16.msra.mxu0 %v1708
    %4558 = vmatprep.subr.bf16.mxu0 %v1713
    %4559 = vmatpush1.bf16.msra.mxu0 %v1712
    %4560 = vmatprep.subr.bf16.mxu0 %v1717
    %4561 = vmatpush1.bf16.msra.mxu0 %v1716
    %4562 = vmatprep.subr.bf16.mxu0 %v1721
    %4563 = vmatpush1.bf16.msra.mxu0 %v1720
    %4564 = vmatprep.subr.bf16.mxu0 %v1725
    %4565 = vmatpush1.bf16.msra.mxu0 %v1724
    %4566 = vmatprep.subr.bf16.mxu0 %v1729
    %4567 = vmatpush1.bf16.msra.mxu0 %v1728
    %4568 = vmatprep.subr.bf16.mxu0 %v1733
    %4569 = vmatpush1.bf16.msra.mxu0 %v1732
    %4570 = vmatprep.subr.bf16.mxu0 %v1737
    %4571 = vmatpush1.bf16.msra.mxu0 %v1736
    %4572 = vmatprep.subr.bf16.mxu0 0
    %4573 = vmatpush1.bf16.msra.mxu0 0
    %4574 = vmatprep.subr.bf16.mxu0 0
    %4575 = vmatpush1.bf16.msra.mxu0 0
    %4576 = vmatprep.subr.bf16.mxu0 0
    %4577 = vmatpush1.bf16.msra.mxu0 0
    %4578 = vmatprep.subr.bf16.mxu0 0
    %4579 = vmatpush1.bf16.msra.mxu0 0
    %4580 = vmatprep.subr.bf16.mxu0 0
    %4581 = vmatpush1.bf16.msra.mxu0 0
    %4582 = vmatprep.subr.bf16.mxu0 0
    %4583 = vmatpush1.bf16.msra.mxu0 0
    %4584 = vmatprep.subr.bf16.mxu0 0
    %4585 = vmatpush1.bf16.msra.mxu0 0
    %4586 = vmatprep.subr.bf16.mxu0 0
    %4587 = vmatpush1.bf16.msra.mxu0 0
    %4588 = vmatprep.mubr.bf16.mxu0 0
    %4589 = vmatmul.mubr.bf16.gmra.mrb[0].mxu0 %v4555
    %v4590 = vpop.f32.mrb[0].mxu0
    %v4591 = vadd.f32 0.0, %v4590
    %v4592 = vpop.f32.mrb[0].mxu0
    %v4593 = vadd.f32 0.0, %v4592
    %v4594 = vpop.f32.mrb[0].mxu0
    %v4595 = vpop.f32.mrb[0].mxu0
    %4596 = vdwg.mxu0
    %4597 = vmatprep.subr.bf16.mxu0 %v1711
    %4598 = vmatpush1.bf16.msra.mxu0 %v1710
    %4599 = vmatprep.subr.bf16.mxu0 %v1715
    %4600 = vmatpush1.bf16.msra.mxu0 %v1714
    %4601 = vmatprep.subr.bf16.mxu0 %v1719
    %4602 = vmatpush1.bf16.msra.mxu0 %v1718
    %4603 = vmatprep.subr.bf16.mxu0 %v1723
    %4604 = vmatpush1.bf16.msra.mxu0 %v1722
    %4605 = vmatprep.subr.bf16.mxu0 %v1727
    %4606 = vmatpush1.bf16.msra.mxu0 %v1726
    %4607 = vmatprep.subr.bf16.mxu0 %v1731
    %4608 = vmatpush1.bf16.msra.mxu0 %v1730
    %4609 = vmatprep.subr.bf16.mxu0 %v1735
    %4610 = vmatpush1.bf16.msra.mxu0 %v1734
    %4611 = vmatprep.subr.bf16.mxu0 %v1739
    %4612 = vmatpush1.bf16.msra.mxu0 %v1738
    %4613 = vmatprep.subr.bf16.mxu0 0
    %4614 = vmatpush1.bf16.msra.mxu0 0
    %4615 = vmatprep.subr.bf16.mxu0 0
    %4616 = vmatpush1.bf16.msra.mxu0 0
    %4617 = vmatprep.subr.bf16.mxu0 0
    %4618 = vmatpush1.bf16.msra.mxu0 0
    %4619 = vmatprep.subr.bf16.mxu0 0
    %4620 = vmatpush1.bf16.msra.mxu0 0
    %4621 = vmatprep.subr.bf16.mxu0 0
    %4622 = vmatpush1.bf16.msra.mxu0 0
    %4623 = vmatprep.subr.bf16.mxu0 0
    %4624 = vmatpush1.bf16.msra.mxu0 0
    %4625 = vmatprep.subr.bf16.mxu0 0
    %4626 = vmatpush1.bf16.msra.mxu0 0
    %4627 = vmatprep.subr.bf16.mxu0 0
    %4628 = vmatpush1.bf16.msra.mxu0 0
    %4629 = vmatprep.mubr.bf16.mxu0 0
    %4630 = vmatmul.mubr.bf16.gmra.mrb[0].mxu0 %v4555
    %v4631 = vpop.f32.mrb[0].mxu0
    %v4632 = vadd.f32 0.0, %v4631
    %v4633 = vpop.f32.mrb[0].mxu0
    %v4634 = vadd.f32 0.0, %v4633
    %v4635 = vpop.f32.mrb[0].mxu0
    %v4636 = vpop.f32.mrb[0].mxu0
    %4637 = vdwg.mxu0
    %v4638 = vadd.f32 %v4551, %v4591
    %v4639 = vadd.f32 %v4552, %v4593
    %v4640 = vadd.f32 %v4553, %v4632
    %v4641 = vadd.f32 %v4554, %v4634
    %v4642 = vxor.u32 %v4638, 2147483648
    %v4643 = vxor.u32 %v4639, 2147483648
    %v4644 = vxor.u32 %v4640, 2147483648
    %v4645 = vmul.f32 %v4642, 1.442695
    %v4646 = vpow.pop %v4645
    %v4647 = vmul.f32 %v4643, 1.442695
    %v4648 = vpow.pop %v4647
    %v4649 = vmul.f32 %v4644, 1.442695
    %v4650 = vpow.pop %v4649
    %v4651 = vadd.f32 %v4646, 1.0
    %v4652 = vadd.f32 %v4648, 1.0
    %v4653 = vadd.f32 %v4650, 1.0
    %v4654 = vrcp.pop %v4651
    %v4655 = vmul.f32 1.0, %v4654
    %v4656 = vrcp.pop %v4652
    %v4657 = vmul.f32 1.0, %v4656
    %v4658 = vrcp.pop %v4653
    %v4659 = vmul.f32 1.0, %v4658
    %v4660 = vtanh.pop %v4641
    %v4661 = vmul.f32 %v4657, %v4431
    %v4662 = vmul.f32 %v4655, %v4660
    %v4663 = vadd.f32 %v4661, %v4662
    %v4664 = vtanh.pop %v4663
    %v4665 = vmul.f32 %v4659, %v4664
    %s4666 = scalar_lea.vmem [#allocation2], 416
    %v4667 = vld [vmem:[%s4666] sm:$0xff]
    %v4668 = vld [vmem:[%s4666 + $0x8] sm:$0xff]
    %v4669 = vld [vmem:[%s4666 + $0x10] sm:$0xff]
    %v4670 = vld [vmem:[%s4666 + $0x18] sm:$0xff]
    %v4671 = vpack.c.bf16 %v4549, %v4549
    %4672 = vmatprep.subr.bf16.mxu0 %v1433
    %4673 = vmatpush1.bf16.msra.mxu0 %v1432
    %4674 = vmatprep.subr.bf16.mxu0 %v1437
    %4675 = vmatpush1.bf16.msra.mxu0 %v1436
    %4676 = vmatprep.subr.bf16.mxu0 %v1441
    %4677 = vmatpush1.bf16.msra.mxu0 %v1440
    %4678 = vmatprep.subr.bf16.mxu0 %v1445
    %4679 = vmatpush1.bf16.msra.mxu0 %v1444
    %4680 = vmatprep.subr.bf16.mxu0 %v1449
    %4681 = vmatpush1.bf16.msra.mxu0 %v1448
    %4682 = vmatprep.subr.bf16.mxu0 %v1453
    %4683 = vmatpush1.bf16.msra.mxu0 %v1452
    %4684 = vmatprep.subr.bf16.mxu0 %v1457
    %4685 = vmatpush1.bf16.msra.mxu0 %v1456
    %4686 = vmatprep.subr.bf16.mxu0 %v1461
    %4687 = vmatpush1.bf16.msra.mxu0 %v1460
    %4688 = vmatprep.subr.bf16.mxu0 0
    %4689 = vmatpush1.bf16.msra.mxu0 0
    %4690 = vmatprep.subr.bf16.mxu0 0
    %4691 = vmatpush1.bf16.msra.mxu0 0
    %4692 = vmatprep.subr.bf16.mxu0 0
    %4693 = vmatpush1.bf16.msra.mxu0 0
    %4694 = vmatprep.subr.bf16.mxu0 0
    %4695 = vmatpush1.bf16.msra.mxu0 0
    %4696 = vmatprep.subr.bf16.mxu0 0
    %4697 = vmatpush1.bf16.msra.mxu0 0
    %4698 = vmatprep.subr.bf16.mxu0 0
    %4699 = vmatpush1.bf16.msra.mxu0 0
    %4700 = vmatprep.subr.bf16.mxu0 0
    %4701 = vmatpush1.bf16.msra.mxu0 0
    %4702 = vmatprep.subr.bf16.mxu0 0
    %4703 = vmatpush1.bf16.msra.mxu0 0
    %4704 = vmatprep.mubr.bf16.mxu0 0
    %4705 = vmatmul.mubr.bf16.gmra.mrb[0].mxu0 %v4671
    %v4706 = vpop.f32.mrb[0].mxu0
    %v4707 = vadd.f32 0.0, %v4706
    %v4708 = vpop.f32.mrb[0].mxu0
    %v4709 = vadd.f32 0.0, %v4708
    %v4710 = vpop.f32.mrb[0].mxu0
    %v4711 = vpop.f32.mrb[0].mxu0
    %4712 = vdwg.mxu0
    %4713 = vmatprep.subr.bf16.mxu0 %v1435
    %4714 = vmatpush1.bf16.msra.mxu0 %v1434
    %4715 = vmatprep.subr.bf16.mxu0 %v1439
    %4716 = vmatpush1.bf16.msra.mxu0 %v1438
    %4717 = vmatprep.subr.bf16.mxu0 %v1443
    %4718 = vmatpush1.bf16.msra.mxu0 %v1442
    %4719 = vmatprep.subr.bf16.mxu0 %v1447
    %4720 = vmatpush1.bf16.msra.mxu0 %v1446
    %4721 = vmatprep.subr.bf16.mxu0 %v1451
    %4722 = vmatpush1.bf16.msra.mxu0 %v1450
    %4723 = vmatprep.subr.bf16.mxu0 %v1455
    %4724 = vmatpush1.bf16.msra.mxu0 %v1454
    %4725 = vmatprep.subr.bf16.mxu0 %v1459
    %4726 = vmatpush1.bf16.msra.mxu0 %v1458
    %4727 = vmatprep.subr.bf16.mxu0 %v1463
    %4728 = vmatpush1.bf16.msra.mxu0 %v1462
    %4729 = vmatprep.subr.bf16.mxu0 0
    %4730 = vmatpush1.bf16.msra.mxu0 0
    %4731 = vmatprep.subr.bf16.mxu0 0
    %4732 = vmatpush1.bf16.msra.mxu0 0
    %4733 = vmatprep.subr.bf16.mxu0 0
    %4734 = vmatpush1.bf16.msra.mxu0 0
    %4735 = vmatprep.subr.bf16.mxu0 0
    %4736 = vmatpush1.bf16.msra.mxu0 0
    %4737 = vmatprep.subr.bf16.mxu0 0
    %4738 = vmatpush1.bf16.msra.mxu0 0
    %4739 = vmatprep.subr.bf16.mxu0 0
    %4740 = vmatpush1.bf16.msra.mxu0 0
    %4741 = vmatprep.subr.bf16.mxu0 0
    %4742 = vmatpush1.bf16.msra.mxu0 0
    %4743 = vmatprep.subr.bf16.mxu0 0
    %4744 = vmatpush1.bf16.msra.mxu0 0
    %4745 = vmatprep.mubr.bf16.mxu0 0
    %4746 = vmatmul.mubr.bf16.gmra.mrb[0].mxu0 %v4671
    %v4747 = vpop.f32.mrb[0].mxu0
    %v4748 = vadd.f32 0.0, %v4747
    %v4749 = vpop.f32.mrb[0].mxu0
    %v4750 = vadd.f32 0.0, %v4749
    %v4751 = vpop.f32.mrb[0].mxu0
    %v4752 = vpop.f32.mrb[0].mxu0
    %4753 = vdwg.mxu0
    %v4754 = vadd.f32 %v4667, %v4707
    %v4755 = vadd.f32 %v4668, %v4709
    %v4756 = vadd.f32 %v4669, %v4748
    %v4757 = vadd.f32 %v4670, %v4750
    %v4758 = vxor.u32 %v4754, 2147483648
    %v4759 = vxor.u32 %v4755, 2147483648
    %v4760 = vxor.u32 %v4756, 2147483648
    %v4761 = vmul.f32 %v4758, 1.442695
    %v4762 = vpow.pop %v4761
    %v4763 = vmul.f32 %v4759, 1.442695
    %v4764 = vpow.pop %v4763
    %v4765 = vmul.f32 %v4760, 1.442695
    %v4766 = vpow.pop %v4765
    %v4767 = vadd.f32 %v4762, 1.0
    %v4768 = vadd.f32 %v4764, 1.0
    %v4769 = vadd.f32 %v4766, 1.0
    %v4770 = vrcp.pop %v4767
    %v4771 = vmul.f32 1.0, %v4770
    %v4772 = vrcp.pop %v4768
    %v4773 = vmul.f32 1.0, %v4772
    %v4774 = vrcp.pop %v4769
    %v4775 = vmul.f32 1.0, %v4774
    %v4776 = vtanh.pop %v4757
    %v4777 = vmul.f32 %v4773, %v4547
    %v4778 = vmul.f32 %v4771, %v4776
    %v4779 = vadd.f32 %v4777, %v4778
    %v4780 = vtanh.pop %v4779
    %v4781 = vmul.f32 %v4775, %v4780
    %s4782 = scalar_lea.vmem [#allocation3], 64
    %v4783 = vld [vmem:[%s4782] sm:$0xff]
    %v4784 = vld [vmem:[%s4782 + $0x8] sm:$0xff]
    %v4785 = vld [vmem:[%s4782 + $0x10] sm:$0xff]
    %v4786 = vld [vmem:[%s4782 + $0x18] sm:$0xff]
    %v4787 = vpack.c.bf16 %v4665, %v4665
    %4788 = vmatprep.subr.bf16.mxu0 %v1709
    %4789 = vmatpush1.bf16.msra.mxu0 %v1708
    %4790 = vmatprep.subr.bf16.mxu0 %v1713
    %4791 = vmatpush1.bf16.msra.mxu0 %v1712
    %4792 = vmatprep.subr.bf16.mxu0 %v1717
    %4793 = vmatpush1.bf16.msra.mxu0 %v1716
    %4794 = vmatprep.subr.bf16.mxu0 %v1721
    %4795 = vmatpush1.bf16.msra.mxu0 %v1720
    %4796 = vmatprep.subr.bf16.mxu0 %v1725
    %4797 = vmatpush1.bf16.msra.mxu0 %v1724
    %4798 = vmatprep.subr.bf16.mxu0 %v1729
    %4799 = vmatpush1.bf16.msra.mxu0 %v1728
    %4800 = vmatprep.subr.bf16.mxu0 %v1733
    %4801 = vmatpush1.bf16.msra.mxu0 %v1732
    %4802 = vmatprep.subr.bf16.mxu0 %v1737
    %4803 = vmatpush1.bf16.msra.mxu0 %v1736
    %4804 = vmatprep.subr.bf16.mxu0 0
    %4805 = vmatpush1.bf16.msra.mxu0 0
    %4806 = vmatprep.subr.bf16.mxu0 0
    %4807 = vmatpush1.bf16.msra.mxu0 0
    %4808 = vmatprep.subr.bf16.mxu0 0
    %4809 = vmatpush1.bf16.msra.mxu0 0
    %4810 = vmatprep.subr.bf16.mxu0 0
    %4811 = vmatpush1.bf16.msra.mxu0 0
    %4812 = vmatprep.subr.bf16.mxu0 0
    %4813 = vmatpush1.bf16.msra.mxu0 0
    %4814 = vmatprep.subr.bf16.mxu0 0
    %4815 = vmatpush1.bf16.msra.mxu0 0
    %4816 = vmatprep.subr.bf16.mxu0 0
    %4817 = vmatpush1.bf16.msra.mxu0 0
    %4818 = vmatprep.subr.bf16.mxu0 0
    %4819 = vmatpush1.bf16.msra.mxu0 0
    %4820 = vmatprep.mubr.bf16.mxu0 0
    %4821 = vmatmul.mubr.bf16.gmra.mrb[0].mxu0 %v4787
    %v4822 = vpop.f32.mrb[0].mxu0
    %v4823 = vadd.f32 0.0, %v4822
    %v4824 = vpop.f32.mrb[0].mxu0
    %v4825 = vadd.f32 0.0, %v4824
    %v4826 = vpop.f32.mrb[0].mxu0
    %v4827 = vpop.f32.mrb[0].mxu0
    %4828 = vdwg.mxu0
    %4829 = vmatprep.subr.bf16.mxu0 %v1711
    %4830 = vmatpush1.bf16.msra.mxu0 %v1710
    %4831 = vmatprep.subr.bf16.mxu0 %v1715
    %4832 = vmatpush1.bf16.msra.mxu0 %v1714
    %4833 = vmatprep.subr.bf16.mxu0 %v1719
    %4834 = vmatpush1.bf16.msra.mxu0 %v1718
    %4835 = vmatprep.subr.bf16.mxu0 %v1723
    %4836 = vmatpush1.bf16.msra.mxu0 %v1722
    %4837 = vmatprep.subr.bf16.mxu0 %v1727
    %4838 = vmatpush1.bf16.msra.mxu0 %v1726
    %4839 = vmatprep.subr.bf16.mxu0 %v1731
    %4840 = vmatpush1.bf16.msra.mxu0 %v1730
    %4841 = vmatprep.subr.bf16.mxu0 %v1735
    %4842 = vmatpush1.bf16.msra.mxu0 %v1734
    %4843 = vmatprep.subr.bf16.mxu0 %v1739
    %4844 = vmatpush1.bf16.msra.mxu0 %v1738
    %4845 = vmatprep.subr.bf16.mxu0 0
    %4846 = vmatpush1.bf16.msra.mxu0 0
    %4847 = vmatprep.subr.bf16.mxu0 0
    %4848 = vmatpush1.bf16.msra.mxu0 0
    %4849 = vmatprep.subr.bf16.mxu0 0
    %4850 = vmatpush1.bf16.msra.mxu0 0
    %4851 = vmatprep.subr.bf16.mxu0 0
    %4852 = vmatpush1.bf16.msra.mxu0 0
    %4853 = vmatprep.subr.bf16.mxu0 0
    %4854 = vmatpush1.bf16.msra.mxu0 0
    %4855 = vmatprep.subr.bf16.mxu0 0
    %4856 = vmatpush1.bf16.msra.mxu0 0
    %4857 = vmatprep.subr.bf16.mxu0 0
    %4858 = vmatpush1.bf16.msra.mxu0 0
    %4859 = vmatprep.subr.bf16.mxu0 0
    %4860 = vmatpush1.bf16.msra.mxu0 0
    %4861 = vmatprep.mubr.bf16.mxu0 0
    %4862 = vmatmul.mubr.bf16.gmra.mrb[0].mxu0 %v4787
    %v4863 = vpop.f32.mrb[0].mxu0
    %v4864 = vadd.f32 0.0, %v4863
    %v4865 = vpop.f32.mrb[0].mxu0
    %v4866 = vadd.f32 0.0, %v4865
    %v4867 = vpop.f32.mrb[0].mxu0
    %v4868 = vpop.f32.mrb[0].mxu0
    %4869 = vdwg.mxu0
    %v4870 = vadd.f32 %v4783, %v4823
    %v4871 = vadd.f32 %v4784, %v4825
    %v4872 = vadd.f32 %v4785, %v4864
    %v4873 = vadd.f32 %v4786, %v4866
    %v4874 = vxor.u32 %v4870, 2147483648
    %v4875 = vxor.u32 %v4871, 2147483648
    %v4876 = vxor.u32 %v4872, 2147483648
    %v4877 = vmul.f32 %v4874, 1.442695
    %v4878 = vpow.pop %v4877
    %v4879 = vmul.f32 %v4875, 1.442695
    %v4880 = vpow.pop %v4879
    %v4881 = vmul.f32 %v4876, 1.442695
    %v4882 = vpow.pop %v4881
    %v4883 = vadd.f32 %v4878, 1.0
    %v4884 = vadd.f32 %v4880, 1.0
    %v4885 = vadd.f32 %v4882, 1.0
    %v4886 = vrcp.pop %v4883
    %v4887 = vmul.f32 1.0, %v4886
    %v4888 = vrcp.pop %v4884
    %v4889 = vmul.f32 1.0, %v4888
    %v4890 = vrcp.pop %v4885
    %v4891 = vmul.f32 1.0, %v4890
    %v4892 = vtanh.pop %v4873
    %v4893 = vmul.f32 %v4889, %v4663
    %v4894 = vmul.f32 %v4887, %v4892
    %v4895 = vadd.f32 %v4893, %v4894
    %v4896 = vtanh.pop %v4895
    %v4897 = vmul.f32 %v4891, %v4896
    %s4898 = scalar_lea.vmem [#allocation2], 448
    %v4899 = vld [vmem:[%s4898] sm:$0xff]
    %v4900 = vld [vmem:[%s4898 + $0x8] sm:$0xff]
    %v4901 = vld [vmem:[%s4898 + $0x10] sm:$0xff]
    %v4902 = vld [vmem:[%s4898 + $0x18] sm:$0xff]
    %v4903 = vpack.c.bf16 %v4781, %v4781
    %4904 = vmatprep.subr.bf16.mxu0 %v1433
    %4905 = vmatpush1.bf16.msra.mxu0 %v1432
    %4906 = vmatprep.subr.bf16.mxu0 %v1437
    %4907 = vmatpush1.bf16.msra.mxu0 %v1436
    %4908 = vmatprep.subr.bf16.mxu0 %v1441
    %4909 = vmatpush1.bf16.msra.mxu0 %v1440
    %4910 = vmatprep.subr.bf16.mxu0 %v1445
    %4911 = vmatpush1.bf16.msra.mxu0 %v1444
    %4912 = vmatprep.subr.bf16.mxu0 %v1449
    %4913 = vmatpush1.bf16.msra.mxu0 %v1448
    %4914 = vmatprep.subr.bf16.mxu0 %v1453
    %4915 = vmatpush1.bf16.msra.mxu0 %v1452
    %4916 = vmatprep.subr.bf16.mxu0 %v1457
    %4917 = vmatpush1.bf16.msra.mxu0 %v1456
    %4918 = vmatprep.subr.bf16.mxu0 %v1461
    %4919 = vmatpush1.bf16.msra.mxu0 %v1460
    %4920 = vmatprep.subr.bf16.mxu0 0
    %4921 = vmatpush1.bf16.msra.mxu0 0
    %4922 = vmatprep.subr.bf16.mxu0 0
    %4923 = vmatpush1.bf16.msra.mxu0 0
    %4924 = vmatprep.subr.bf16.mxu0 0
    %4925 = vmatpush1.bf16.msra.mxu0 0
    %4926 = vmatprep.subr.bf16.mxu0 0
    %4927 = vmatpush1.bf16.msra.mxu0 0
    %4928 = vmatprep.subr.bf16.mxu0 0
    %4929 = vmatpush1.bf16.msra.mxu0 0
    %4930 = vmatprep.subr.bf16.mxu0 0
    %4931 = vmatpush1.bf16.msra.mxu0 0
    %4932 = vmatprep.subr.bf16.mxu0 0
    %4933 = vmatpush1.bf16.msra.mxu0 0
    %4934 = vmatprep.subr.bf16.mxu0 0
    %4935 = vmatpush1.bf16.msra.mxu0 0
    %4936 = vmatprep.mubr.bf16.mxu0 0
    %4937 = vmatmul.mubr.bf16.gmra.mrb[0].mxu0 %v4903
    %v4938 = vpop.f32.mrb[0].mxu0
    %v4939 = vadd.f32 0.0, %v4938
    %v4940 = vpop.f32.mrb[0].mxu0
    %v4941 = vadd.f32 0.0, %v4940
    %v4942 = vpop.f32.mrb[0].mxu0
    %v4943 = vpop.f32.mrb[0].mxu0
    %4944 = vdwg.mxu0
    %4945 = vmatprep.subr.bf16.mxu0 %v1435
    %4946 = vmatpush1.bf16.msra.mxu0 %v1434
    %4947 = vmatprep.subr.bf16.mxu0 %v1439
    %4948 = vmatpush1.bf16.msra.mxu0 %v1438
    %4949 = vmatprep.subr.bf16.mxu0 %v1443
    %4950 = vmatpush1.bf16.msra.mxu0 %v1442
    %4951 = vmatprep.subr.bf16.mxu0 %v1447
    %4952 = vmatpush1.bf16.msra.mxu0 %v1446
    %4953 = vmatprep.subr.bf16.mxu0 %v1451
    %4954 = vmatpush1.bf16.msra.mxu0 %v1450
    %4955 = vmatprep.subr.bf16.mxu0 %v1455
    %4956 = vmatpush1.bf16.msra.mxu0 %v1454
    %4957 = vmatprep.subr.bf16.mxu0 %v1459
    %4958 = vmatpush1.bf16.msra.mxu0 %v1458
    %4959 = vmatprep.subr.bf16.mxu0 %v1463
    %4960 = vmatpush1.bf16.msra.mxu0 %v1462
    %4961 = vmatprep.subr.bf16.mxu0 0
    %4962 = vmatpush1.bf16.msra.mxu0 0
    %4963 = vmatprep.subr.bf16.mxu0 0
    %4964 = vmatpush1.bf16.msra.mxu0 0
    %4965 = vmatprep.subr.bf16.mxu0 0
    %4966 = vmatpush1.bf16.msra.mxu0 0
    %4967 = vmatprep.subr.bf16.mxu0 0
    %4968 = vmatpush1.bf16.msra.mxu0 0
    %4969 = vmatprep.subr.bf16.mxu0 0
    %4970 = vmatpush1.bf16.msra.mxu0 0
    %4971 = vmatprep.subr.bf16.mxu0 0
    %4972 = vmatpush1.bf16.msra.mxu0 0
    %4973 = vmatprep.subr.bf16.mxu0 0
    %4974 = vmatpush1.bf16.msra.mxu0 0
    %4975 = vmatprep.subr.bf16.mxu0 0
    %4976 = vmatpush1.bf16.msra.mxu0 0
    %4977 = vmatprep.mubr.bf16.mxu0 0
    %4978 = vmatmul.mubr.bf16.gmra.mrb[0].mxu0 %v4903
    %v4979 = vpop.f32.mrb[0].mxu0
    %v4980 = vadd.f32 0.0, %v4979
    %v4981 = vpop.f32.mrb[0].mxu0
    %v4982 = vadd.f32 0.0, %v4981
    %v4983 = vpop.f32.mrb[0].mxu0
    %v4984 = vpop.f32.mrb[0].mxu0
    %4985 = vdwg.mxu0
    %v4986 = vadd.f32 %v4899, %v4939
    %v4987 = vadd.f32 %v4900, %v4941
    %v4988 = vadd.f32 %v4901, %v4980
    %v4989 = vadd.f32 %v4902, %v4982
    %v4990 = vxor.u32 %v4986, 2147483648
    %v4991 = vxor.u32 %v4987, 2147483648
    %v4992 = vxor.u32 %v4988, 2147483648
    %v4993 = vmul.f32 %v4990, 1.442695
    %v4994 = vpow.pop %v4993
    %v4995 = vmul.f32 %v4991, 1.442695
    %v4996 = vpow.pop %v4995
    %v4997 = vmul.f32 %v4992, 1.442695
    %v4998 = vpow.pop %v4997
    %v4999 = vadd.f32 %v4994, 1.0
    %v5000 = vadd.f32 %v4996, 1.0
    %v5001 = vadd.f32 %v4998, 1.0
    %v5002 = vrcp.pop %v4999
    %v5003 = vmul.f32 1.0, %v5002
    %v5004 = vrcp.pop %v5000
    %v5005 = vmul.f32 1.0, %v5004
    %v5006 = vrcp.pop %v5001
    %v5007 = vmul.f32 1.0, %v5006
    %v5008 = vtanh.pop %v4989
    %v5009 = vmul.f32 %v5005, %v4779
    %v5010 = vmul.f32 %v5003, %v5008
    %v5011 = vadd.f32 %v5009, %v5010
    %v5012 = vtanh.pop %v5011
    %v5013 = vmul.f32 %v5007, %v5012
    %s5014 = scalar_lea.vmem [#allocation3], 32
    %v5015 = vld [vmem:[%s5014] sm:$0xff]
    %v5016 = vld [vmem:[%s5014 + $0x8] sm:$0xff]
    %v5017 = vld [vmem:[%s5014 + $0x10] sm:$0xff]
    %v5018 = vld [vmem:[%s5014 + $0x18] sm:$0xff]
    %v5019 = vpack.c.bf16 %v4897, %v4897
    %5020 = vmatprep.subr.bf16.mxu0 %v1709
    %5021 = vmatpush1.bf16.msra.mxu0 %v1708
    %5022 = vmatprep.subr.bf16.mxu0 %v1713
    %5023 = vmatpush1.bf16.msra.mxu0 %v1712
    %5024 = vmatprep.subr.bf16.mxu0 %v1717
    %5025 = vmatpush1.bf16.msra.mxu0 %v1716
    %5026 = vmatprep.subr.bf16.mxu0 %v1721
    %5027 = vmatpush1.bf16.msra.mxu0 %v1720
    %5028 = vmatprep.subr.bf16.mxu0 %v1725
    %5029 = vmatpush1.bf16.msra.mxu0 %v1724
    %5030 = vmatprep.subr.bf16.mxu0 %v1729
    %5031 = vmatpush1.bf16.msra.mxu0 %v1728
    %5032 = vmatprep.subr.bf16.mxu0 %v1733
    %5033 = vmatpush1.bf16.msra.mxu0 %v1732
    %5034 = vmatprep.subr.bf16.mxu0 %v1737
    %5035 = vmatpush1.bf16.msra.mxu0 %v1736
    %5036 = vmatprep.subr.bf16.mxu0 0
    %5037 = vmatpush1.bf16.msra.mxu0 0
    %5038 = vmatprep.subr.bf16.mxu0 0
    %5039 = vmatpush1.bf16.msra.mxu0 0
    %5040 = vmatprep.subr.bf16.mxu0 0
    %5041 = vmatpush1.bf16.msra.mxu0 0
    %5042 = vmatprep.subr.bf16.mxu0 0
    %5043 = vmatpush1.bf16.msra.mxu0 0
    %5044 = vmatprep.subr.bf16.mxu0 0
    %5045 = vmatpush1.bf16.msra.mxu0 0
    %5046 = vmatprep.subr.bf16.mxu0 0
    %5047 = vmatpush1.bf16.msra.mxu0 0
    %5048 = vmatprep.subr.bf16.mxu0 0
    %5049 = vmatpush1.bf16.msra.mxu0 0
    %5050 = vmatprep.subr.bf16.mxu0 0
    %5051 = vmatpush1.bf16.msra.mxu0 0
    %5052 = vmatprep.mubr.bf16.mxu0 0
    %5053 = vmatmul.mubr.bf16.gmra.mrb[0].mxu0 %v5019
    %v5054 = vpop.f32.mrb[0].mxu0
    %v5055 = vadd.f32 0.0, %v5054
    %v5056 = vpop.f32.mrb[0].mxu0
    %v5057 = vadd.f32 0.0, %v5056
    %v5058 = vpop.f32.mrb[0].mxu0
    %v5059 = vpop.f32.mrb[0].mxu0
    %5060 = vdwg.mxu0
    %5061 = vmatprep.subr.bf16.mxu0 %v1711
    %5062 = vmatpush1.bf16.msra.mxu0 %v1710
    %5063 = vmatprep.subr.bf16.mxu0 %v1715
    %5064 = vmatpush1.bf16.msra.mxu0 %v1714
    %5065 = vmatprep.subr.bf16.mxu0 %v1719
    %5066 = vmatpush1.bf16.msra.mxu0 %v1718
    %5067 = vmatprep.subr.bf16.mxu0 %v1723
    %5068 = vmatpush1.bf16.msra.mxu0 %v1722
    %5069 = vmatprep.subr.bf16.mxu0 %v1727
    %5070 = vmatpush1.bf16.msra.mxu0 %v1726
    %5071 = vmatprep.subr.bf16.mxu0 %v1731
    %5072 = vmatpush1.bf16.msra.mxu0 %v1730
    %5073 = vmatprep.subr.bf16.mxu0 %v1735
    %5074 = vmatpush1.bf16.msra.mxu0 %v1734
    %5075 = vmatprep.subr.bf16.mxu0 %v1739
    %5076 = vmatpush1.bf16.msra.mxu0 %v1738
    %5077 = vmatprep.subr.bf16.mxu0 0
    %5078 = vmatpush1.bf16.msra.mxu0 0
    %5079 = vmatprep.subr.bf16.mxu0 0
    %5080 = vmatpush1.bf16.msra.mxu0 0
    %5081 = vmatprep.subr.bf16.mxu0 0
    %5082 = vmatpush1.bf16.msra.mxu0 0
    %5083 = vmatprep.subr.bf16.mxu0 0
    %5084 = vmatpush1.bf16.msra.mxu0 0
    %5085 = vmatprep.subr.bf16.mxu0 0
    %5086 = vmatpush1.bf16.msra.mxu0 0
    %5087 = vmatprep.subr.bf16.mxu0 0
    %5088 = vmatpush1.bf16.msra.mxu0 0
    %5089 = vmatprep.subr.bf16.mxu0 0
    %5090 = vmatpush1.bf16.msra.mxu0 0
    %5091 = vmatprep.subr.bf16.mxu0 0
    %5092 = vmatpush1.bf16.msra.mxu0 0
    %5093 = vmatprep.mubr.bf16.mxu0 0
    %5094 = vmatmul.mubr.bf16.gmra.mrb[0].mxu0 %v5019
    %v5095 = vpop.f32.mrb[0].mxu0
    %v5096 = vadd.f32 0.0, %v5095
    %v5097 = vpop.f32.mrb[0].mxu0
    %v5098 = vadd.f32 0.0, %v5097
    %v5099 = vpop.f32.mrb[0].mxu0
    %v5100 = vpop.f32.mrb[0].mxu0
    %5101 = vdwg.mxu0
    %v5102 = vadd.f32 %v5015, %v5055
    %v5103 = vadd.f32 %v5016, %v5057
    %v5104 = vadd.f32 %v5017, %v5096
    %v5105 = vadd.f32 %v5018, %v5098
    %v5106 = vxor.u32 %v5102, 2147483648
    %v5107 = vxor.u32 %v5103, 2147483648
    %v5108 = vxor.u32 %v5104, 2147483648
    %v5109 = vmul.f32 %v5106, 1.442695
    %v5110 = vpow.pop %v5109
    %v5111 = vmul.f32 %v5107, 1.442695
    %v5112 = vpow.pop %v5111
    %v5113 = vmul.f32 %v5108, 1.442695
    %v5114 = vpow.pop %v5113
    %v5115 = vadd.f32 %v5110, 1.0
    %v5116 = vadd.f32 %v5112, 1.0
    %v5117 = vadd.f32 %v5114, 1.0
    %v5118 = vrcp.pop %v5115
    %v5119 = vmul.f32 1.0, %v5118
    %v5120 = vrcp.pop %v5116
    %v5121 = vmul.f32 1.0, %v5120
    %v5122 = vrcp.pop %v5117
    %v5123 = vmul.f32 1.0, %v5122
    %v5124 = vtanh.pop %v5105
    %v5125 = vmul.f32 %v5121, %v4895
    %v5126 = vmul.f32 %v5119, %v5124
    %v5127 = vadd.f32 %v5125, %v5126
    %v5128 = vtanh.pop %v5127
    %v5129 = vmul.f32 %v5123, %v5128
    %s5130 = scalar_lea.vmem [#allocation2], 480
    %v5131 = vld [vmem:[%s5130] sm:$0xff]
    %v5132 = vld [vmem:[%s5130 + $0x8] sm:$0xff]
    %v5133 = vld [vmem:[%s5130 + $0x10] sm:$0xff]
    %v5134 = vld [vmem:[%s5130 + $0x18] sm:$0xff]
    %v5135 = vpack.c.bf16 %v5013, %v5013
    %5136 = vmatprep.subr.bf16.mxu0 %v1433
    %5137 = vmatpush1.bf16.msra.mxu0 %v1432
    %5138 = vmatprep.subr.bf16.mxu0 %v1437
    %5139 = vmatpush1.bf16.msra.mxu0 %v1436
    %5140 = vmatprep.subr.bf16.mxu0 %v1441
    %5141 = vmatpush1.bf16.msra.mxu0 %v1440
    %5142 = vmatprep.subr.bf16.mxu0 %v1445
    %5143 = vmatpush1.bf16.msra.mxu0 %v1444
    %5144 = vmatprep.subr.bf16.mxu0 %v1449
    %5145 = vmatpush1.bf16.msra.mxu0 %v1448
    %5146 = vmatprep.subr.bf16.mxu0 %v1453
    %5147 = vmatpush1.bf16.msra.mxu0 %v1452
    %5148 = vmatprep.subr.bf16.mxu0 %v1457
    %5149 = vmatpush1.bf16.msra.mxu0 %v1456
    %5150 = vmatprep.subr.bf16.mxu0 %v1461
    %5151 = vmatpush1.bf16.msra.mxu0 %v1460
    %5152 = vmatprep.subr.bf16.mxu0 0
    %5153 = vmatpush1.bf16.msra.mxu0 0
    %5154 = vmatprep.subr.bf16.mxu0 0
    %5155 = vmatpush1.bf16.msra.mxu0 0
    %5156 = vmatprep.subr.bf16.mxu0 0
    %5157 = vmatpush1.bf16.msra.mxu0 0
    %5158 = vmatprep.subr.bf16.mxu0 0
    %5159 = vmatpush1.bf16.msra.mxu0 0
    %5160 = vmatprep.subr.bf16.mxu0 0
    %5161 = vmatpush1.bf16.msra.mxu0 0
    %5162 = vmatprep.subr.bf16.mxu0 0
    %5163 = vmatpush1.bf16.msra.mxu0 0
    %5164 = vmatprep.subr.bf16.mxu0 0
    %5165 = vmatpush1.bf16.msra.mxu0 0
    %5166 = vmatprep.subr.bf16.mxu0 0
    %5167 = vmatpush1.bf16.msra.mxu0 0
    %5168 = vmatprep.mubr.bf16.mxu0 0
    %5169 = vmatmul.mubr.bf16.gmra.mrb[0].mxu0 %v5135
    %v5170 = vpop.f32.mrb[0].mxu0
    %v5171 = vadd.f32 0.0, %v5170
    %v5172 = vpop.f32.mrb[0].mxu0
    %v5173 = vadd.f32 0.0, %v5172
    %v5174 = vpop.f32.mrb[0].mxu0
    %v5175 = vpop.f32.mrb[0].mxu0
    %5176 = vdwg.mxu0
    %5177 = vmatprep.subr.bf16.mxu0 %v1435
    %5178 = vmatpush1.bf16.msra.mxu0 %v1434
    %5179 = vmatprep.subr.bf16.mxu0 %v1439
    %5180 = vmatpush1.bf16.msra.mxu0 %v1438
    %5181 = vmatprep.subr.bf16.mxu0 %v1443
    %5182 = vmatpush1.bf16.msra.mxu0 %v1442
    %5183 = vmatprep.subr.bf16.mxu0 %v1447
    %5184 = vmatpush1.bf16.msra.mxu0 %v1446
    %5185 = vmatprep.subr.bf16.mxu0 %v1451
    %5186 = vmatpush1.bf16.msra.mxu0 %v1450
    %5187 = vmatprep.subr.bf16.mxu0 %v1455
    %5188 = vmatpush1.bf16.msra.mxu0 %v1454
    %5189 = vmatprep.subr.bf16.mxu0 %v1459
    %5190 = vmatpush1.bf16.msra.mxu0 %v1458
    %5191 = vmatprep.subr.bf16.mxu0 %v1463
    %5192 = vmatpush1.bf16.msra.mxu0 %v1462
    %5193 = vmatprep.subr.bf16.mxu0 0
    %5194 = vmatpush1.bf16.msra.mxu0 0
    %5195 = vmatprep.subr.bf16.mxu0 0
    %5196 = vmatpush1.bf16.msra.mxu0 0
    %5197 = vmatprep.subr.bf16.mxu0 0
    %5198 = vmatpush1.bf16.msra.mxu0 0
    %5199 = vmatprep.subr.bf16.mxu0 0
    %5200 = vmatpush1.bf16.msra.mxu0 0
    %5201 = vmatprep.subr.bf16.mxu0 0
    %5202 = vmatpush1.bf16.msra.mxu0 0
    %5203 = vmatprep.subr.bf16.mxu0 0
    %5204 = vmatpush1.bf16.msra.mxu0 0
    %5205 = vmatprep.subr.bf16.mxu0 0
    %5206 = vmatpush1.bf16.msra.mxu0 0
    %5207 = vmatprep.subr.bf16.mxu0 0
    %5208 = vmatpush1.bf16.msra.mxu0 0
    %5209 = vmatprep.mubr.bf16.mxu0 0
    %5210 = vmatmul.mubr.bf16.gmra.mrb[0].mxu0 %v5135
    %v5211 = vpop.f32.mrb[0].mxu0
    %v5212 = vadd.f32 0.0, %v5211
    %v5213 = vpop.f32.mrb[0].mxu0
    %v5214 = vadd.f32 0.0, %v5213
    %v5215 = vpop.f32.mrb[0].mxu0
    %v5216 = vpop.f32.mrb[0].mxu0
    %5217 = vdwg.mxu0
    %v5218 = vadd.f32 %v5131, %v5171
    %v5219 = vadd.f32 %v5132, %v5173
    %v5220 = vadd.f32 %v5133, %v5212
    %v5221 = vadd.f32 %v5134, %v5214
    %v5222 = vxor.u32 %v5218, 2147483648
    %v5223 = vxor.u32 %v5219, 2147483648
    %v5224 = vxor.u32 %v5220, 2147483648
    %v5225 = vmul.f32 %v5222, 1.442695
    %v5226 = vpow.pop %v5225
    %v5227 = vmul.f32 %v5223, 1.442695
    %v5228 = vpow.pop %v5227
    %v5229 = vmul.f32 %v5224, 1.442695
    %v5230 = vpow.pop %v5229
    %v5231 = vadd.f32 %v5226, 1.0
    %v5232 = vadd.f32 %v5228, 1.0
    %v5233 = vadd.f32 %v5230, 1.0
    %v5234 = vrcp.pop %v5231
    %v5235 = vmul.f32 1.0, %v5234
    %v5236 = vrcp.pop %v5232
    %v5237 = vmul.f32 1.0, %v5236
    %v5238 = vrcp.pop %v5233
    %v5239 = vmul.f32 1.0, %v5238
    %v5240 = vtanh.pop %v5221
    %v5241 = vmul.f32 %v5237, %v5011
    %v5242 = vmul.f32 %v5235, %v5240
    %v5243 = vadd.f32 %v5241, %v5242
    %v5244 = vtanh.pop %v5243
    %v5245 = vmul.f32 %v5239, %v5244
    %v5246 = vld [vmem:[#allocation3] sm:$0xff]
    %v5247 = vld [vmem:[#allocation3 + $0x8] sm:$0xff]
    %v5248 = vld [vmem:[#allocation3 + $0x10] sm:$0xff]
    %v5249 = vld [vmem:[#allocation3 + $0x18] sm:$0xff]
    %v5250 = vpack.c.bf16 %v5129, %v5129
    %5251 = vmatprep.subr.bf16.mxu0 %v1709
    %5252 = vmatpush1.bf16.msra.mxu0 %v1708
    %5253 = vmatprep.subr.bf16.mxu0 %v1713
    %5254 = vmatpush1.bf16.msra.mxu0 %v1712
    %5255 = vmatprep.subr.bf16.mxu0 %v1717
    %5256 = vmatpush1.bf16.msra.mxu0 %v1716
    %5257 = vmatprep.subr.bf16.mxu0 %v1721
    %5258 = vmatpush1.bf16.msra.mxu0 %v1720
    %5259 = vmatprep.subr.bf16.mxu0 %v1725
    %5260 = vmatpush1.bf16.msra.mxu0 %v1724
    %5261 = vmatprep.subr.bf16.mxu0 %v1729
    %5262 = vmatpush1.bf16.msra.mxu0 %v1728
    %5263 = vmatprep.subr.bf16.mxu0 %v1733
    %5264 = vmatpush1.bf16.msra.mxu0 %v1732
    %5265 = vmatprep.subr.bf16.mxu0 %v1737
    %5266 = vmatpush1.bf16.msra.mxu0 %v1736
    %5267 = vmatprep.subr.bf16.mxu0 0
    %5268 = vmatpush1.bf16.msra.mxu0 0
    %5269 = vmatprep.subr.bf16.mxu0 0
    %5270 = vmatpush1.bf16.msra.mxu0 0
    %5271 = vmatprep.subr.bf16.mxu0 0
    %5272 = vmatpush1.bf16.msra.mxu0 0
    %5273 = vmatprep.subr.bf16.mxu0 0
    %5274 = vmatpush1.bf16.msra.mxu0 0
    %5275 = vmatprep.subr.bf16.mxu0 0
    %5276 = vmatpush1.bf16.msra.mxu0 0
    %5277 = vmatprep.subr.bf16.mxu0 0
    %5278 = vmatpush1.bf16.msra.mxu0 0
    %5279 = vmatprep.subr.bf16.mxu0 0
    %5280 = vmatpush1.bf16.msra.mxu0 0
    %5281 = vmatprep.subr.bf16.mxu0 0
    %5282 = vmatpush1.bf16.msra.mxu0 0
    %5283 = vmatprep.mubr.bf16.mxu0 0
    %5284 = vmatmul.mubr.bf16.gmra.mrb[0].mxu0 %v5250
    %v5285 = vpop.f32.mrb[0].mxu0
    %v5286 = vadd.f32 0.0, %v5285
    %v5287 = vpop.f32.mrb[0].mxu0
    %v5288 = vadd.f32 0.0, %v5287
    %v5289 = vpop.f32.mrb[0].mxu0
    %v5290 = vpop.f32.mrb[0].mxu0
    %5291 = vdwg.mxu0
    %5292 = vmatprep.subr.bf16.mxu0 %v1711
    %5293 = vmatpush1.bf16.msra.mxu0 %v1710
    %5294 = vmatprep.subr.bf16.mxu0 %v1715
    %5295 = vmatpush1.bf16.msra.mxu0 %v1714
    %5296 = vmatprep.subr.bf16.mxu0 %v1719
    %5297 = vmatpush1.bf16.msra.mxu0 %v1718
    %5298 = vmatprep.subr.bf16.mxu0 %v1723
    %5299 = vmatpush1.bf16.msra.mxu0 %v1722
    %5300 = vmatprep.subr.bf16.mxu0 %v1727
    %5301 = vmatpush1.bf16.msra.mxu0 %v1726
    %5302 = vmatprep.subr.bf16.mxu0 %v1731
    %5303 = vmatpush1.bf16.msra.mxu0 %v1730
    %5304 = vmatprep.subr.bf16.mxu0 %v1735
    %5305 = vmatpush1.bf16.msra.mxu0 %v1734
    %5306 = vmatprep.subr.bf16.mxu0 %v1739
    %5307 = vmatpush1.bf16.msra.mxu0 %v1738
    %5308 = vmatprep.subr.bf16.mxu0 0
    %5309 = vmatpush1.bf16.msra.mxu0 0
    %5310 = vmatprep.subr.bf16.mxu0 0
    %5311 = vmatpush1.bf16.msra.mxu0 0
    %5312 = vmatprep.subr.bf16.mxu0 0
    %5313 = vmatpush1.bf16.msra.mxu0 0
    %5314 = vmatprep.subr.bf16.mxu0 0
    %5315 = vmatpush1.bf16.msra.mxu0 0
    %5316 = vmatprep.subr.bf16.mxu0 0
    %5317 = vmatpush1.bf16.msra.mxu0 0
    %5318 = vmatprep.subr.bf16.mxu0 0
    %5319 = vmatpush1.bf16.msra.mxu0 0
    %5320 = vmatprep.subr.bf16.mxu0 0
    %5321 = vmatpush1.bf16.msra.mxu0 0
    %5322 = vmatprep.subr.bf16.mxu0 0
    %5323 = vmatpush1.bf16.msra.mxu0 0
    %5324 = vmatprep.mubr.bf16.mxu0 0
    %5325 = vmatmul.mubr.bf16.gmra.mrb[0].mxu0 %v5250
    %v5326 = vpop.f32.mrb[0].mxu0
    %v5327 = vadd.f32 0.0, %v5326
    %v5328 = vpop.f32.mrb[0].mxu0
    %v5329 = vadd.f32 0.0, %v5328
    %v5330 = vpop.f32.mrb[0].mxu0
    %v5331 = vpop.f32.mrb[0].mxu0
    %5332 = vdwg.mxu0
    %v5333 = vadd.f32 %v5246, %v5286
    %v5334 = vadd.f32 %v5247, %v5288
    %v5335 = vadd.f32 %v5248, %v5327
    %v5336 = vadd.f32 %v5249, %v5329
    %v5337 = vxor.u32 %v5333, 2147483648
    %v5338 = vxor.u32 %v5334, 2147483648
    %v5339 = vxor.u32 %v5335, 2147483648
    %v5340 = vmul.f32 %v5337, 1.442695
    %v5341 = vpow.pop %v5340
    %v5342 = vmul.f32 %v5338, 1.442695
    %v5343 = vpow.pop %v5342
    %v5344 = vmul.f32 %v5339, 1.442695
    %v5345 = vpow.pop %v5344
    %v5346 = vadd.f32 %v5341, 1.0
    %v5347 = vadd.f32 %v5343, 1.0
    %v5348 = vadd.f32 %v5345, 1.0
    %v5349 = vrcp.pop %v5346
    %v5350 = vmul.f32 1.0, %v5349
    %v5351 = vrcp.pop %v5347
    %v5352 = vmul.f32 1.0, %v5351
    %v5353 = vrcp.pop %v5348
    %v5354 = vmul.f32 1.0, %v5353
    %v5355 = vtanh.pop %v5336
    %v5356 = vmul.f32 %v5352, %v5127
    %v5357 = vmul.f32 %v5350, %v5355
    %v5358 = vadd.f32 %v5356, %v5357
    %v5359 = vtanh.pop %v5358
    %v5360 = vmul.f32 %v5354, %v5359
    %5361 = vst [vmem:[#allocation4] sm:$0xff] %v5245
    %5362 = vst [vmem:[#allocation5] sm:$0xff] %v5243
    %5363 = vst [vmem:[#allocation6] sm:$0xff] %v5360
    %5364 = vst [vmem:[#allocation7] sm:$0xff] %v5358
    // Predicated region
    $region62: #{tpu_custom_call.1} parent=1 // pred_check
      %p5365 = pneg %p119
    $region63: #{tpu_custom_call.1} parent=1 // pred_check_branch
      %5367 = sbr.rel (%p5365) target = $region65
    $region64: #{tpu_custom_call.1} parent=1 // pred_region
      %5368 = vst [vmem:[#allocation19] sm:$0xff] %v5245
      %5369 = vst [vmem:[#allocation19 + $0x8] sm:$0xff] %v5360
    $region65: #{tpu_custom_call.1} parent=1 // pred_fallthru
      _
    // Predicated region
    $region66: #{tpu_custom_call.1} parent=1 // pred_check
      _
    $region67: #{tpu_custom_call.1} parent=1 // pred_check_branch
      %5371 = sbr.rel (0) target = $region69
    $region68: #{tpu_custom_call.1} parent=1 // pred_region
      %s5373 = ssub.s32 256, 256
      %5374 = vsyncadd [#allocation10], %s5373
      %s5376 = sshll.u32 [#allocation19], 4
      %s5377 = int_to_ptr.vmem [resolvable:$true] %s5376
      %5379 = dma.vmem_to_hbm [thread:$0]  %s5377, 256, %s8, [#allocation10]
    $region69: #{tpu_custom_call.1} parent=1 // pred_fallthru
      _
    // Predicated region
    $region70: #{tpu_custom_call.1} parent=1 // pred_check
      _
    $region71: #{tpu_custom_call.1} parent=1 // pred_check_branch
      %5381 = sbr.rel (0) target = $region73
    $region72: #{tpu_custom_call.1} parent=1 // pred_region
      %5382 = dma.done [#allocation10], 256
    $region73: #{tpu_custom_call.1} parent=1 // pred_fallthru
      _
    %5383 = vsyncpa [#allocation9], 1
    %5384 = vsyncpa [#allocation12], 1
    %5385 = vsyncpa [#allocation15], 1
    %5386 = vsyncpa [#allocation18], 1
    %5387 = vsyncpa [#allocation10], 1

</llo_original>
